<compile_context>
chip_gen: v7x
topology: tpu7x:2x2x1
jax: 0.10.0
libtpu: 0.0.40
codegen_flags: <defaults>
</compile_context>

<pallas_src>
import jax
import jax.numpy as jnp
from jax.experimental import pallas as pl
from jax.experimental.pallas import tpu as pltpu

LANES = 128  # vreg lane width; classifier output padded to this for lane-dense stores


# ----------------------------------------------------------------------------
# Fused Pallas kernel: one sample per grid step
# ----------------------------------------------------------------------------
def _simplenet2_kernel(x_ref, w1_ref, b1_ref, w2_ref, b2_ref, wh_ref, bh_ref,
                       wc_ref, bc_ref, o_ref, acc1_ref, h1p_ref, acc2_ref):
    """conv3x3+ReLU -> conv3x3+ReLU -> global-avg-pool -> Linear+ReLU -> Linear.

    Convs are 9 shifted matmuls (MXU, bf16 operands, f32 accumulation); bias, ReLU
    and the GAP mean are f32 VPU work. Everything stays in VMEM within one grid step.
    """
    _, Hp, Wp, Cin = x_ref.shape            # pre-padded input block (1, H+2, W+2, Cin)
    H, W = Hp - 2, Wp - 2
    HW = H * W
    C1 = w1_ref.shape[-1]

    # ---- conv1: 3x3, stride 1, 'same' zero padding (input pre-padded in wrapper) ----
    acc1_ref[...] = jnp.zeros_like(acc1_ref)
    for k in range(9):
        kh, kw = divmod(k, 3)
        xs = x_ref[0, kh:kh + H, kw:kw + W, :].reshape(HW, Cin)
        acc1_ref[...] += jnp.dot(xs.astype(jnp.bfloat16), w1_ref[k],
                                 preferred_element_type=jnp.float32)
    h1 = jnp.maximum(acc1_ref[...] + b1_ref[...], 0.0)           # (HW, C1) f32

    # Stash conv1 activation zero-padded in VMEM for conv2's shifted windows.
    h1p_ref[...] = jnp.zeros_like(h1p_ref)
    h1p_ref[1:1 + H, 1:1 + W, :] = h1.reshape(H, W, C1)

    # ---- conv2: 3x3, stride 1, 'same' zero padding ----
    acc2_ref[...] = jnp.zeros_like(acc2_ref)
    for k in range(9):
        kh, kw = divmod(k, 3)
        hs = h1p_ref[kh:kh + H, kw:kw + W, :].reshape(HW, C1)
        acc2_ref[...] += jnp.dot(hs.astype(jnp.bfloat16), w2_ref[k],
                                 preferred_element_type=jnp.float32)
    h2 = jnp.maximum(acc2_ref[...] + b2_ref[...], 0.0)           # (HW, C2) f32

    # ---- global average pool (fused epilogue, f32) ----
    f = jnp.sum(h2, axis=0, keepdims=True) * (1.0 / HW)          # (1, C2)

    # ---- MLP head: Linear + ReLU ----
    fh = jnp.dot(f.astype(jnp.bfloat16), wh_ref[...],
                 preferred_element_type=jnp.float32) + bh_ref[...]
    fh = jnp.maximum(fh, 0.0)                                    # (1, hidden)

    # ---- classifier (lane-padded to 128 -> unmasked, lane-dense store) ----
    y = jnp.dot(fh.astype(jnp.bfloat16), wc_ref[...],
                preferred_element_type=jnp.float32) + bc_ref[...]   # (1, LANES)
    o_ref[...] = jnp.broadcast_to(y.reshape(1, 1, -1), o_ref.shape)


# ----------------------------------------------------------------------------
# Wrapper
# ----------------------------------------------------------------------------
def _prepare_params(params, lane_pad=LANES):
    """bf16-cast matmul weights (f32 accumulation in-kernel); lane-pad the classifier."""
    hidden, num_classes = params["cls_w"].shape
    assert num_classes <= lane_pad
    wc = jnp.zeros((hidden, lane_pad), jnp.float32).at[:, :num_classes].set(params["cls_w"])
    bc = jnp.zeros((1, lane_pad), jnp.float32).at[:, :num_classes].set(params["cls_b"])
    return dict(
        w1=params["conv1_w"].astype(jnp.bfloat16),
        b1=params["conv1_b"].reshape(1, -1).astype(jnp.float32),
        w2=params["conv2_w"].astype(jnp.bfloat16),
        b2=params["conv2_b"].reshape(1, -1).astype(jnp.float32),
        wh=params["head_w"].astype(jnp.bfloat16),
        bh=params["head_b"].reshape(1, -1).astype(jnp.float32),
        wc=wc.astype(jnp.bfloat16),
        bc=bc,
        num_classes=num_classes,
    )


def simplenet2_forward(x_nchw, params):
    """SimpleNet2 forward (output_f_mid=False path) as a single fused Pallas kernel."""
    p = _prepare_params(params)
    x = jnp.transpose(x_nchw, (0, 2, 3, 1)).astype(jnp.float32)    # NCHW -> NHWC
    N, H, W, Cin = x.shape
    xp = jnp.pad(x, ((0, 0), (1, 1), (1, 1), (0, 0)))              # 'same' padding for conv1
    Hp, Wp = H + 2, W + 2

    C1 = p["w1"].shape[-1]
    C2 = p["w2"].shape[-1]
    Hd = p["wh"].shape[-1]
    ncp = p["wc"].shape[-1]

    out = pl.pallas_call(
        _simplenet2_kernel,
        out_shape=jax.ShapeDtypeStruct((N, 8, ncp), jnp.float32),
        grid=(N,),   # one sample per grid step; "parallel" lets v7x's 2 TCs split the batch
        in_specs=[
            pl.BlockSpec((1, Hp, Wp, Cin), lambda i: (i, 0, 0, 0)),   # padded input sample
            pl.BlockSpec((9, Cin, C1), lambda i: (0, 0, 0)),          # conv1 weight
            pl.BlockSpec((1, C1), lambda i: (0, 0)),                  # conv1 bias
            pl.BlockSpec((9, C1, C2), lambda i: (0, 0, 0)),           # conv2 weight
            pl.BlockSpec((1, C2), lambda i: (0, 0)),                  # conv2 bias
            pl.BlockSpec((C2, Hd), lambda i: (0, 0)),                 # head weight
            pl.BlockSpec((1, Hd), lambda i: (0, 0)),                  # head bias
            pl.BlockSpec((Hd, ncp), lambda i: (0, 0)),                # classifier weight (padded)
            pl.BlockSpec((1, ncp), lambda i: (0, 0)),                 # classifier bias (padded)
        ],
        out_specs=pl.BlockSpec((1, 8, ncp), lambda i: (i, 0, 0)),
        scratch_shapes=[
            pltpu.VMEM((H * W, C1), jnp.float32),    # conv1 accumulator
            pltpu.VMEM((Hp, Wp, C1), jnp.float32),   # zero-padded conv1 activation
            pltpu.VMEM((H * W, C2), jnp.float32),    # conv2 accumulator
        ],
        compiler_params=pltpu.CompilerParams(dimension_semantics=("parallel",)),
    )(xp, p["w1"], p["b1"], p["w2"], p["b2"], p["wh"], p["bh"], p["wc"], p["bc"])

    return out[:, 0, :p["num_classes"]]


# ----------------------------------------------------------------------------
# Synthetic parameters + pure-JAX f32 reference (correctness check only)
# ----------------------------------------------------------------------------
def init_params(key, in_ch=4, c1=32, c2=64, hidden=32, num_classes=10):
    """Deterministic synthetic parameters (kaiming-ish uniform scaling)."""
    ks = jax.random.split(key, 8)

    def u(k, shape, fan_in):
        s = 1.0 / jnp.sqrt(jnp.float32(fan_in))
        return jax.random.uniform(k, shape, jnp.float32, -s, s)

    return {
        # conv weights in (kh*kw, Cin, Cout) layout (see header note for PyTorch permute)
        "conv1_w": u(ks[0], (9, in_ch, c1), 9 * in_ch),
        "conv1_b": u(ks[1], (c1,), 9 * in_ch),
        "conv2_w": u(ks[2], (9, c1, c2), 9 * c1),
        "conv2_b": u(ks[3], (c2,), 9 * c1),
        "head_w": u(ks[4], (c2, hidden), c2),
        "head_b": u(ks[5], (hidden,), c2),
        "cls_w": u(ks[6], (hidden, num_classes), hidden),
        "cls_b": u(ks[7], (num_classes,), hidden),
    }


def simplenet2_reference(x_nchw, params):
    """Pure-JAX f32 reference of the same forward."""
    x = jnp.transpose(x_nchw, (0, 2, 3, 1)).astype(jnp.float32)

    def conv3x3_relu(h, w, b):
        hp = jnp.pad(h, ((0, 0), (1, 1), (1, 1), (0, 0)))
        H, W = h.shape[1], h.shape[2]
        out = jnp.zeros(h.shape[:3] + (w.shape[-1],), jnp.float32)
        for k in range(9):
            kh, kw = divmod(k, 3)
            out = out + jnp.einsum("nhwc,cf->nhwf", hp[:, kh:kh + H, kw:kw + W, :], w[k])
        return jax.nn.relu(out + b)

    h1 = conv3x3_relu(x, params["conv1_w"], params["conv1_b"])
    h2 = conv3x3_relu(h1, params["conv2_w"], params["conv2_b"])
    f = h2.mean(axis=(1, 2))
    f = jax.nn.relu(f @ params["head_w"] + params["head_b"])
    return f @ params["cls_w"] + params["cls_b"]


if __name__ == "__main__":
    key = jax.random.PRNGKey(0)
    k_x, k_p = jax.random.split(key)

    x = jax.random.normal(k_x, (2, 4, 16, 16), jnp.float32)   # NCHW, PyTorch-style
    params = init_params(k_p, in_ch=4, c1=32, c2=64, hidden=32, num_classes=10)

    y = jax.block_until_ready(jax.jit(simplenet2_forward)(x, params))
    assert y.shape == (2, 10) and y.dtype == jnp.float32

    y_ref = jax.block_until_ready(jax.jit(simplenet2_reference)(x, params))
    max_err = float(jnp.max(jnp.abs(y - y_ref)))
    assert max_err < 2e-2, f"max abs error vs f32 reference: {max_err}"

    print("KERNEL_OK")
</pallas_src>

<mosaic_0001>
module attributes {stable_mosaic.version = 11 : i64} {
  func.func @_simplenet2_kernel(%arg0: i32, %arg1: memref<1x18x18x4xf32, #tpu.memory_space<vmem>>, %arg2: memref<9x4x32xbf16, #tpu.memory_space<vmem>>, %arg3: memref<1x32xf32, #tpu.memory_space<vmem>>, %arg4: memref<9x32x64xbf16, #tpu.memory_space<vmem>>, %arg5: memref<1x64xf32, #tpu.memory_space<vmem>>, %arg6: memref<64x32xbf16, #tpu.memory_space<vmem>>, %arg7: memref<1x32xf32, #tpu.memory_space<vmem>>, %arg8: memref<32x128xbf16, #tpu.memory_space<vmem>>, %arg9: memref<1x128xf32, #tpu.memory_space<vmem>>, %arg10: memref<1x8x128xf32, #tpu.memory_space<vmem>>, %arg11: memref<256x32xf32, #tpu.memory_space<vmem>>, %arg12: memref<18x18x32xf32, #tpu.memory_space<vmem>>, %arg13: memref<256x64xf32, #tpu.memory_space<vmem>>) attributes {dimension_semantics = [#tpu.dimension_semantics<parallel>], iteration_bounds = array<i64: 2>, scalar_prefetch = 0 : i64, scratch_operands = 3 : i64, tpu.core_type = #tpu.core_type<tc>, window_params = [{transform_indices = @transform_0, window_bounds = array<i64: 1, 18, 18, 4>}, {pipeline_mode = #tpu.pipeline_mode<synchronous>, transform_indices = @transform_1, window_bounds = array<i64: 9, 4, 32>}, {pipeline_mode = #tpu.pipeline_mode<synchronous>, transform_indices = @transform_2, window_bounds = array<i64: 1, 32>}, {pipeline_mode = #tpu.pipeline_mode<synchronous>, transform_indices = @transform_3, window_bounds = array<i64: 9, 32, 64>}, {pipeline_mode = #tpu.pipeline_mode<synchronous>, transform_indices = @transform_4, window_bounds = array<i64: 1, 64>}, {pipeline_mode = #tpu.pipeline_mode<synchronous>, transform_indices = @transform_5, window_bounds = array<i64: 64, 32>}, {pipeline_mode = #tpu.pipeline_mode<synchronous>, transform_indices = @transform_6, window_bounds = array<i64: 1, 32>}, {pipeline_mode = #tpu.pipeline_mode<synchronous>, transform_indices = @transform_7, window_bounds = array<i64: 32, 128>}, {pipeline_mode = #tpu.pipeline_mode<synchronous>, transform_indices = @transform_8, window_bounds = array<i64: 1, 128>}, {transform_indices = @transform_9, window_bounds = array<i64: 1, 8, 128>}]} {
    %cst = arith.constant 0.000000e+00 : f32
    %0 = vector.broadcast %cst : f32 to vector<256x32xf32>
    %c0 = arith.constant 0 : index
    %c0_0 = arith.constant 0 : index
    %1 = vector.load %arg11[%c0, %c0_0] : memref<256x32xf32, #tpu.memory_space<vmem>>, vector<256x32xf32>
    tpu.vector_store %arg11[%c0, %c0_0], %0 {strides = array<i32>} : memref<256x32xf32, #tpu.memory_space<vmem>>, vector<256x32xf32>,
    %c0_1 = arith.constant 0 : index
    %c0_2 = arith.constant 0 : index
    %c0_3 = arith.constant 0 : index
    %c0_4 = arith.constant 0 : index
    %2 = vector.load %arg1[%c0_1, %c0_2, %c0_3, %c0_4] : memref<1x18x18x4xf32, #tpu.memory_space<vmem>>, vector<1x16x16x4xf32>
    %3 = vector.shape_cast %2 : vector<1x16x16x4xf32> to vector<16x16x4xf32>
    %4 = vector.shape_cast %3 : vector<16x16x4xf32> to vector<256x4xf32>
    %c0_5 = arith.constant 0 : index
    %c0_6 = arith.constant 0 : index
    %5 = vector.load %arg11[%c0_5, %c0_6] : memref<256x32xf32, #tpu.memory_space<vmem>>, vector<256x32xf32>
    %6 = arith.truncf %4 : vector<256x4xf32> to vector<256x4xbf16>
    %c0_7 = arith.constant 0 : index
    %c0_8 = arith.constant 0 : index
    %c0_9 = arith.constant 0 : index
    %7 = vector.load %arg2[%c0_7, %c0_8, %c0_9] : memref<9x4x32xbf16, #tpu.memory_space<vmem>>, vector<1x4x32xbf16>
    %8 = vector.shape_cast %7 : vector<1x4x32xbf16> to vector<4x32xbf16>
    %cst_10 = arith.constant dense<0.000000e+00> : vector<256x32xf32>
    %9 = tpu.matmul %6, %8, %cst_10 {dimension_numbers = #tpu.dot_dimension_numbers<[1], [0], [0], [1], [0, 0, 1, 1], [], []>} : vector<256x4xbf16>, vector<4x32xbf16>, vector<256x32xf32> -> vector<256x32xf32>
    %10 = arith.addf %5, %9 : vector<256x32xf32>
    %c0_11 = arith.constant 0 : index
    %c0_12 = arith.constant 0 : index
    %11 = vector.load %arg11[%c0_11, %c0_12] : memref<256x32xf32, #tpu.memory_space<vmem>>, vector<256x32xf32>
    tpu.vector_store %arg11[%c0_11, %c0_12], %10 {strides = array<i32>} : memref<256x32xf32, #tpu.memory_space<vmem>>, vector<256x32xf32>,
    %c0_13 = arith.constant 0 : index
    %c0_14 = arith.constant 0 : index
    %c1 = arith.constant 1 : index
    %c0_15 = arith.constant 0 : index
    %12 = vector.load %arg1[%c0_13, %c0_14, %c1, %c0_15] : memref<1x18x18x4xf32, #tpu.memory_space<vmem>>, vector<1x16x16x4xf32>
    %13 = vector.shape_cast %12 : vector<1x16x16x4xf32> to vector<16x16x4xf32>
    %14 = vector.shape_cast %13 : vector<16x16x4xf32> to vector<256x4xf32>
    %c0_16 = arith.constant 0 : index
    %c0_17 = arith.constant 0 : index
    %15 = vector.load %arg11[%c0_16, %c0_17] : memref<256x32xf32, #tpu.memory_space<vmem>>, vector<256x32xf32>
    %16 = arith.truncf %14 : vector<256x4xf32> to vector<256x4xbf16>
    %c1_18 = arith.constant 1 : index
    %c0_19 = arith.constant 0 : index
    %c0_20 = arith.constant 0 : index
    %17 = vector.load %arg2[%c1_18, %c0_19, %c0_20] : memref<9x4x32xbf16, #tpu.memory_space<vmem>>, vector<1x4x32xbf16>
    %18 = vector.shape_cast %17 : vector<1x4x32xbf16> to vector<4x32xbf16>
    %cst_21 = arith.constant dense<0.000000e+00> : vector<256x32xf32>
    %19 = tpu.matmul %16, %18, %cst_21 {dimension_numbers = #tpu.dot_dimension_numbers<[1], [0], [0], [1], [0, 0, 1, 1], [], []>} : vector<256x4xbf16>, vector<4x32xbf16>, vector<256x32xf32> -> vector<256x32xf32>
    %20 = arith.addf %15, %19 : vector<256x32xf32>
    %c0_22 = arith.constant 0 : index
    %c0_23 = arith.constant 0 : index
    %21 = vector.load %arg11[%c0_22, %c0_23] : memref<256x32xf32, #tpu.memory_space<vmem>>, vector<256x32xf32>
    tpu.vector_store %arg11[%c0_22, %c0_23], %20 {strides = array<i32>} : memref<256x32xf32, #tpu.memory_space<vmem>>, vector<256x32xf32>,
    %c0_24 = arith.constant 0 : index
    %c0_25 = arith.constant 0 : index
    %c2 = arith.constant 2 : index
    %c0_26 = arith.constant 0 : index
    %22 = vector.load %arg1[%c0_24, %c0_25, %c2, %c0_26] : memref<1x18x18x4xf32, #tpu.memory_space<vmem>>, vector<1x16x16x4xf32>
    %23 = vector.shape_cast %22 : vector<1x16x16x4xf32> to vector<16x16x4xf32>
    %24 = vector.shape_cast %23 : vector<16x16x4xf32> to vector<256x4xf32>
    %c0_27 = arith.constant 0 : index
    %c0_28 = arith.constant 0 : index
    %25 = vector.load %arg11[%c0_27, %c0_28] : memref<256x32xf32, #tpu.memory_space<vmem>>, vector<256x32xf32>
    %26 = arith.truncf %24 : vector<256x4xf32> to vector<256x4xbf16>
    %c2_29 = arith.constant 2 : index
    %c0_30 = arith.constant 0 : index
    %c0_31 = arith.constant 0 : index
    %27 = vector.load %arg2[%c2_29, %c0_30, %c0_31] : memref<9x4x32xbf16, #tpu.memory_space<vmem>>, vector<1x4x32xbf16>
    %28 = vector.shape_cast %27 : vector<1x4x32xbf16> to vector<4x32xbf16>
    %cst_32 = arith.constant dense<0.000000e+00> : vector<256x32xf32>
    %29 = tpu.matmul %26, %28, %cst_32 {dimension_numbers = #tpu.dot_dimension_numbers<[1], [0], [0], [1], [0, 0, 1, 1], [], []>} : vector<256x4xbf16>, vector<4x32xbf16>, vector<256x32xf32> -> vector<256x32xf32>
    %30 = arith.addf %25, %29 : vector<256x32xf32>
    %c0_33 = arith.constant 0 : index
    %c0_34 = arith.constant 0 : index
    %31 = vector.load %arg11[%c0_33, %c0_34] : memref<256x32xf32, #tpu.memory_space<vmem>>, vector<256x32xf32>
    tpu.vector_store %arg11[%c0_33, %c0_34], %30 {strides = array<i32>} : memref<256x32xf32, #tpu.memory_space<vmem>>, vector<256x32xf32>,
    %c0_35 = arith.constant 0 : index
    %c1_36 = arith.constant 1 : index
    %c0_37 = arith.constant 0 : index
    %c0_38 = arith.constant 0 : index
    %32 = vector.load %arg1[%c0_35, %c1_36, %c0_37, %c0_38] : memref<1x18x18x4xf32, #tpu.memory_space<vmem>>, vector<1x16x16x4xf32>
    %33 = vector.shape_cast %32 : vector<1x16x16x4xf32> to vector<16x16x4xf32>
    %34 = vector.shape_cast %33 : vector<16x16x4xf32> to vector<256x4xf32>
    %c0_39 = arith.constant 0 : index
    %c0_40 = arith.constant 0 : index
    %35 = vector.load %arg11[%c0_39, %c0_40] : memref<256x32xf32, #tpu.memory_space<vmem>>, vector<256x32xf32>
    %36 = arith.truncf %34 : vector<256x4xf32> to vector<256x4xbf16>
    %c3 = arith.constant 3 : index
    %c0_41 = arith.constant 0 : index
    %c0_42 = arith.constant 0 : index
    %37 = vector.load %arg2[%c3, %c0_41, %c0_42] : memref<9x4x32xbf16, #tpu.memory_space<vmem>>, vector<1x4x32xbf16>
    %38 = vector.shape_cast %37 : vector<1x4x32xbf16> to vector<4x32xbf16>
    %cst_43 = arith.constant dense<0.000000e+00> : vector<256x32xf32>
    %39 = tpu.matmul %36, %38, %cst_43 {dimension_numbers = #tpu.dot_dimension_numbers<[1], [0], [0], [1], [0, 0, 1, 1], [], []>} : vector<256x4xbf16>, vector<4x32xbf16>, vector<256x32xf32> -> vector<256x32xf32>
    %40 = arith.addf %35, %39 : vector<256x32xf32>
    %c0_44 = arith.constant 0 : index
    %c0_45 = arith.constant 0 : index
    %41 = vector.load %arg11[%c0_44, %c0_45] : memref<256x32xf32, #tpu.memory_space<vmem>>, vector<256x32xf32>
    tpu.vector_store %arg11[%c0_44, %c0_45], %40 {strides = array<i32>} : memref<256x32xf32, #tpu.memory_space<vmem>>, vector<256x32xf32>,
    %c0_46 = arith.constant 0 : index
    %c1_47 = arith.constant 1 : index
    %c1_48 = arith.constant 1 : index
    %c0_49 = arith.constant 0 : index
    %42 = vector.load %arg1[%c0_46, %c1_47, %c1_48, %c0_49] : memref<1x18x18x4xf32, #tpu.memory_space<vmem>>, vector<1x16x16x4xf32>
    %43 = vector.shape_cast %42 : vector<1x16x16x4xf32> to vector<16x16x4xf32>
    %44 = vector.shape_cast %43 : vector<16x16x4xf32> to vector<256x4xf32>
    %c0_50 = arith.constant 0 : index
    %c0_51 = arith.constant 0 : index
    %45 = vector.load %arg11[%c0_50, %c0_51] : memref<256x32xf32, #tpu.memory_space<vmem>>, vector<256x32xf32>
    %46 = arith.truncf %44 : vector<256x4xf32> to vector<256x4xbf16>
    %c4 = arith.constant 4 : index
    %c0_52 = arith.constant 0 : index
    %c0_53 = arith.constant 0 : index
    %47 = vector.load %arg2[%c4, %c0_52, %c0_53] : memref<9x4x32xbf16, #tpu.memory_space<vmem>>, vector<1x4x32xbf16>
    %48 = vector.shape_cast %47 : vector<1x4x32xbf16> to vector<4x32xbf16>
    %cst_54 = arith.constant dense<0.000000e+00> : vector<256x32xf32>
    %49 = tpu.matmul %46, %48, %cst_54 {dimension_numbers = #tpu.dot_dimension_numbers<[1], [0], [0], [1], [0, 0, 1, 1], [], []>} : vector<256x4xbf16>, vector<4x32xbf16>, vector<256x32xf32> -> vector<256x32xf32>
    %50 = arith.addf %45, %49 : vector<256x32xf32>
    %c0_55 = arith.constant 0 : index
    %c0_56 = arith.constant 0 : index
    %51 = vector.load %arg11[%c0_55, %c0_56] : memref<256x32xf32, #tpu.memory_space<vmem>>, vector<256x32xf32>
    tpu.vector_store %arg11[%c0_55, %c0_56], %50 {strides = array<i32>} : memref<256x32xf32, #tpu.memory_space<vmem>>, vector<256x32xf32>,
    %c0_57 = arith.constant 0 : index
    %c1_58 = arith.constant 1 : index
    %c2_59 = arith.constant 2 : index
    %c0_60 = arith.constant 0 : index
    %52 = vector.load %arg1[%c0_57, %c1_58, %c2_59, %c0_60] : memref<1x18x18x4xf32, #tpu.memory_space<vmem>>, vector<1x16x16x4xf32>
    %53 = vector.shape_cast %52 : vector<1x16x16x4xf32> to vector<16x16x4xf32>
    %54 = vector.shape_cast %53 : vector<16x16x4xf32> to vector<256x4xf32>
    %c0_61 = arith.constant 0 : index
    %c0_62 = arith.constant 0 : index
    %55 = vector.load %arg11[%c0_61, %c0_62] : memref<256x32xf32, #tpu.memory_space<vmem>>, vector<256x32xf32>
    %56 = arith.truncf %54 : vector<256x4xf32> to vector<256x4xbf16>
    %c5 = arith.constant 5 : index
    %c0_63 = arith.constant 0 : index
    %c0_64 = arith.constant 0 : index
    %57 = vector.load %arg2[%c5, %c0_63, %c0_64] : memref<9x4x32xbf16, #tpu.memory_space<vmem>>, vector<1x4x32xbf16>
    %58 = vector.shape_cast %57 : vector<1x4x32xbf16> to vector<4x32xbf16>
    %cst_65 = arith.constant dense<0.000000e+00> : vector<256x32xf32>
    %59 = tpu.matmul %56, %58, %cst_65 {dimension_numbers = #tpu.dot_dimension_numbers<[1], [0], [0], [1], [0, 0, 1, 1], [], []>} : vector<256x4xbf16>, vector<4x32xbf16>, vector<256x32xf32> -> vector<256x32xf32>
    %60 = arith.addf %55, %59 : vector<256x32xf32>
    %c0_66 = arith.constant 0 : index
    %c0_67 = arith.constant 0 : index
    %61 = vector.load %arg11[%c0_66, %c0_67] : memref<256x32xf32, #tpu.memory_space<vmem>>, vector<256x32xf32>
    tpu.vector_store %arg11[%c0_66, %c0_67], %60 {strides = array<i32>} : memref<256x32xf32, #tpu.memory_space<vmem>>, vector<256x32xf32>,
    %c0_68 = arith.constant 0 : index
    %c2_69 = arith.constant 2 : index
    %c0_70 = arith.constant 0 : index
    %c0_71 = arith.constant 0 : index
    %62 = vector.load %arg1[%c0_68, %c2_69, %c0_70, %c0_71] : memref<1x18x18x4xf32, #tpu.memory_space<vmem>>, vector<1x16x16x4xf32>
    %63 = vector.shape_cast %62 : vector<1x16x16x4xf32> to vector<16x16x4xf32>
    %64 = vector.shape_cast %63 : vector<16x16x4xf32> to vector<256x4xf32>
    %c0_72 = arith.constant 0 : index
    %c0_73 = arith.constant 0 : index
    %65 = vector.load %arg11[%c0_72, %c0_73] : memref<256x32xf32, #tpu.memory_space<vmem>>, vector<256x32xf32>
    %66 = arith.truncf %64 : vector<256x4xf32> to vector<256x4xbf16>
    %c6 = arith.constant 6 : index
    %c0_74 = arith.constant 0 : index
    %c0_75 = arith.constant 0 : index
    %67 = vector.load %arg2[%c6, %c0_74, %c0_75] : memref<9x4x32xbf16, #tpu.memory_space<vmem>>, vector<1x4x32xbf16>
    %68 = vector.shape_cast %67 : vector<1x4x32xbf16> to vector<4x32xbf16>
    %cst_76 = arith.constant dense<0.000000e+00> : vector<256x32xf32>
    %69 = tpu.matmul %66, %68, %cst_76 {dimension_numbers = #tpu.dot_dimension_numbers<[1], [0], [0], [1], [0, 0, 1, 1], [], []>} : vector<256x4xbf16>, vector<4x32xbf16>, vector<256x32xf32> -> vector<256x32xf32>
    %70 = arith.addf %65, %69 : vector<256x32xf32>
    %c0_77 = arith.constant 0 : index
    %c0_78 = arith.constant 0 : index
    %71 = vector.load %arg11[%c0_77, %c0_78] : memref<256x32xf32, #tpu.memory_space<vmem>>, vector<256x32xf32>
    tpu.vector_store %arg11[%c0_77, %c0_78], %70 {strides = array<i32>} : memref<256x32xf32, #tpu.memory_space<vmem>>, vector<256x32xf32>,
    %c0_79 = arith.constant 0 : index
    %c2_80 = arith.constant 2 : index
    %c1_81 = arith.constant 1 : index
    %c0_82 = arith.constant 0 : index
    %72 = vector.load %arg1[%c0_79, %c2_80, %c1_81, %c0_82] : memref<1x18x18x4xf32, #tpu.memory_space<vmem>>, vector<1x16x16x4xf32>
    %73 = vector.shape_cast %72 : vector<1x16x16x4xf32> to vector<16x16x4xf32>
    %74 = vector.shape_cast %73 : vector<16x16x4xf32> to vector<256x4xf32>
    %c0_83 = arith.constant 0 : index
    %c0_84 = arith.constant 0 : index
    %75 = vector.load %arg11[%c0_83, %c0_84] : memref<256x32xf32, #tpu.memory_space<vmem>>, vector<256x32xf32>
    %76 = arith.truncf %74 : vector<256x4xf32> to vector<256x4xbf16>
    %c7 = arith.constant 7 : index
    %c0_85 = arith.constant 0 : index
    %c0_86 = arith.constant 0 : index
    %77 = vector.load %arg2[%c7, %c0_85, %c0_86] : memref<9x4x32xbf16, #tpu.memory_space<vmem>>, vector<1x4x32xbf16>
    %78 = vector.shape_cast %77 : vector<1x4x32xbf16> to vector<4x32xbf16>
    %cst_87 = arith.constant dense<0.000000e+00> : vector<256x32xf32>
    %79 = tpu.matmul %76, %78, %cst_87 {dimension_numbers = #tpu.dot_dimension_numbers<[1], [0], [0], [1], [0, 0, 1, 1], [], []>} : vector<256x4xbf16>, vector<4x32xbf16>, vector<256x32xf32> -> vector<256x32xf32>
    %80 = arith.addf %75, %79 : vector<256x32xf32>
    %c0_88 = arith.constant 0 : index
    %c0_89 = arith.constant 0 : index
    %81 = vector.load %arg11[%c0_88, %c0_89] : memref<256x32xf32, #tpu.memory_space<vmem>>, vector<256x32xf32>
    tpu.vector_store %arg11[%c0_88, %c0_89], %80 {strides = array<i32>} : memref<256x32xf32, #tpu.memory_space<vmem>>, vector<256x32xf32>,
    %c0_90 = arith.constant 0 : index
    %c2_91 = arith.constant 2 : index
    %c2_92 = arith.constant 2 : index
    %c0_93 = arith.constant 0 : index
    %82 = vector.load %arg1[%c0_90, %c2_91, %c2_92, %c0_93] : memref<1x18x18x4xf32, #tpu.memory_space<vmem>>, vector<1x16x16x4xf32>
    %83 = vector.shape_cast %82 : vector<1x16x16x4xf32> to vector<16x16x4xf32>
    %84 = vector.shape_cast %83 : vector<16x16x4xf32> to vector<256x4xf32>
    %c0_94 = arith.constant 0 : index
    %c0_95 = arith.constant 0 : index
    %85 = vector.load %arg11[%c0_94, %c0_95] : memref<256x32xf32, #tpu.memory_space<vmem>>, vector<256x32xf32>
    %86 = arith.truncf %84 : vector<256x4xf32> to vector<256x4xbf16>
    %c8 = arith.constant 8 : index
    %c0_96 = arith.constant 0 : index
    %c0_97 = arith.constant 0 : index
    %87 = vector.load %arg2[%c8, %c0_96, %c0_97] : memref<9x4x32xbf16, #tpu.memory_space<vmem>>, vector<1x4x32xbf16>
    %88 = vector.shape_cast %87 : vector<1x4x32xbf16> to vector<4x32xbf16>
    %cst_98 = arith.constant dense<0.000000e+00> : vector<256x32xf32>
    %89 = tpu.matmul %86, %88, %cst_98 {dimension_numbers = #tpu.dot_dimension_numbers<[1], [0], [0], [1], [0, 0, 1, 1], [], []>} : vector<256x4xbf16>, vector<4x32xbf16>, vector<256x32xf32> -> vector<256x32xf32>
    %90 = arith.addf %85, %89 : vector<256x32xf32>
    %c0_99 = arith.constant 0 : index
    %c0_100 = arith.constant 0 : index
    %91 = vector.load %arg11[%c0_99, %c0_100] : memref<256x32xf32, #tpu.memory_space<vmem>>, vector<256x32xf32>
    tpu.vector_store %arg11[%c0_99, %c0_100], %90 {strides = array<i32>} : memref<256x32xf32, #tpu.memory_space<vmem>>, vector<256x32xf32>,
    %c0_101 = arith.constant 0 : index
    %c0_102 = arith.constant 0 : index
    %92 = vector.load %arg11[%c0_101, %c0_102] : memref<256x32xf32, #tpu.memory_space<vmem>>, vector<256x32xf32>
    %c0_103 = arith.constant 0 : index
    %c0_104 = arith.constant 0 : index
    %93 = vector.load %arg3[%c0_103, %c0_104] : memref<1x32xf32, #tpu.memory_space<vmem>>, vector<1x32xf32>
    %94 = vector.broadcast %93 : vector<1x32xf32> to vector<256x32xf32>
    %95 = arith.addf %92, %94 : vector<256x32xf32>
    %cst_105 = arith.constant 0.000000e+00 : f32
    %96 = vector.broadcast %cst_105 : f32 to vector<256x32xf32>
    %97 = arith.maximumf %95, %96 : vector<256x32xf32>
    %cst_106 = arith.constant 0.000000e+00 : f32
    %98 = vector.broadcast %cst_106 : f32 to vector<18x18x32xf32>
    %c0_107 = arith.constant 0 : index
    %c0_108 = arith.constant 0 : index
    %c0_109 = arith.constant 0 : index
    %99 = vector.load %arg12[%c0_107, %c0_108, %c0_109] : memref<18x18x32xf32, #tpu.memory_space<vmem>>, vector<18x18x32xf32>
    tpu.vector_store %arg12[%c0_107, %c0_108, %c0_109], %98 {strides = array<i32>} : memref<18x18x32xf32, #tpu.memory_space<vmem>>, vector<18x18x32xf32>,
    %100 = vector.shape_cast %97 : vector<256x32xf32> to vector<16x16x32xf32>
    %c1_110 = arith.constant 1 : index
    %c1_111 = arith.constant 1 : index
    %c0_112 = arith.constant 0 : index
    %101 = vector.load %arg12[%c1_110, %c1_111, %c0_112] : memref<18x18x32xf32, #tpu.memory_space<vmem>>, vector<16x16x32xf32>
    tpu.vector_store %arg12[%c1_110, %c1_111, %c0_112], %100 {strides = array<i32>} : memref<18x18x32xf32, #tpu.memory_space<vmem>>, vector<16x16x32xf32>,
    %cst_113 = arith.constant 0.000000e+00 : f32
    %102 = vector.broadcast %cst_113 : f32 to vector<256x64xf32>
    %c0_114 = arith.constant 0 : index
    %c0_115 = arith.constant 0 : index
    %103 = vector.load %arg13[%c0_114, %c0_115] : memref<256x64xf32, #tpu.memory_space<vmem>>, vector<256x64xf32>
    tpu.vector_store %arg13[%c0_114, %c0_115], %102 {strides = array<i32>} : memref<256x64xf32, #tpu.memory_space<vmem>>, vector<256x64xf32>,
    %c0_116 = arith.constant 0 : index
    %c0_117 = arith.constant 0 : index
    %c0_118 = arith.constant 0 : index
    %104 = vector.load %arg12[%c0_116, %c0_117, %c0_118] : memref<18x18x32xf32, #tpu.memory_space<vmem>>, vector<16x16x32xf32>
    %105 = vector.shape_cast %104 : vector<16x16x32xf32> to vector<256x32xf32>
    %c0_119 = arith.constant 0 : index
    %c0_120 = arith.constant 0 : index
    %106 = vector.load %arg13[%c0_119, %c0_120] : memref<256x64xf32, #tpu.memory_space<vmem>>, vector<256x64xf32>
    %107 = arith.truncf %105 : vector<256x32xf32> to vector<256x32xbf16>
    %c0_121 = arith.constant 0 : index
    %c0_122 = arith.constant 0 : index
    %c0_123 = arith.constant 0 : index
    %108 = vector.load %arg4[%c0_121, %c0_122, %c0_123] : memref<9x32x64xbf16, #tpu.memory_space<vmem>>, vector<1x32x64xbf16>
    %109 = vector.shape_cast %108 : vector<1x32x64xbf16> to vector<32x64xbf16>
    %cst_124 = arith.constant dense<0.000000e+00> : vector<256x64xf32>
    %110 = tpu.matmul %107, %109, %cst_124 {dimension_numbers = #tpu.dot_dimension_numbers<[1], [0], [0], [1], [0, 0, 1, 1], [], []>} : vector<256x32xbf16>, vector<32x64xbf16>, vector<256x64xf32> -> vector<256x64xf32>
    %111 = arith.addf %106, %110 : vector<256x64xf32>
    %c0_125 = arith.constant 0 : index
    %c0_126 = arith.constant 0 : index
    %112 = vector.load %arg13[%c0_125, %c0_126] : memref<256x64xf32, #tpu.memory_space<vmem>>, vector<256x64xf32>
    tpu.vector_store %arg13[%c0_125, %c0_126], %111 {strides = array<i32>} : memref<256x64xf32, #tpu.memory_space<vmem>>, vector<256x64xf32>,
    %c0_127 = arith.constant 0 : index
    %c1_128 = arith.constant 1 : index
    %c0_129 = arith.constant 0 : index
    %113 = vector.load %arg12[%c0_127, %c1_128, %c0_129] : memref<18x18x32xf32, #tpu.memory_space<vmem>>, vector<16x16x32xf32>
    %114 = vector.shape_cast %113 : vector<16x16x32xf32> to vector<256x32xf32>
    %c0_130 = arith.constant 0 : index
    %c0_131 = arith.constant 0 : index
    %115 = vector.load %arg13[%c0_130, %c0_131] : memref<256x64xf32, #tpu.memory_space<vmem>>, vector<256x64xf32>
    %116 = arith.truncf %114 : vector<256x32xf32> to vector<256x32xbf16>
    %c1_132 = arith.constant 1 : index
    %c0_133 = arith.constant 0 : index
    %c0_134 = arith.constant 0 : index
    %117 = vector.load %arg4[%c1_132, %c0_133, %c0_134] : memref<9x32x64xbf16, #tpu.memory_space<vmem>>, vector<1x32x64xbf16>
    %118 = vector.shape_cast %117 : vector<1x32x64xbf16> to vector<32x64xbf16>
    %cst_135 = arith.constant dense<0.000000e+00> : vector<256x64xf32>
    %119 = tpu.matmul %116, %118, %cst_135 {dimension_numbers = #tpu.dot_dimension_numbers<[1], [0], [0], [1], [0, 0, 1, 1], [], []>} : vector<256x32xbf16>, vector<32x64xbf16>, vector<256x64xf32> -> vector<256x64xf32>
    %120 = arith.addf %115, %119 : vector<256x64xf32>
    %c0_136 = arith.constant 0 : index
    %c0_137 = arith.constant 0 : index
    %121 = vector.load %arg13[%c0_136, %c0_137] : memref<256x64xf32, #tpu.memory_space<vmem>>, vector<256x64xf32>
    tpu.vector_store %arg13[%c0_136, %c0_137], %120 {strides = array<i32>} : memref<256x64xf32, #tpu.memory_space<vmem>>, vector<256x64xf32>,
    %c0_138 = arith.constant 0 : index
    %c2_139 = arith.constant 2 : index
    %c0_140 = arith.constant 0 : index
    %122 = vector.load %arg12[%c0_138, %c2_139, %c0_140] : memref<18x18x32xf32, #tpu.memory_space<vmem>>, vector<16x16x32xf32>
    %123 = vector.shape_cast %122 : vector<16x16x32xf32> to vector<256x32xf32>
    %c0_141 = arith.constant 0 : index
    %c0_142 = arith.constant 0 : index
    %124 = vector.load %arg13[%c0_141, %c0_142] : memref<256x64xf32, #tpu.memory_space<vmem>>, vector<256x64xf32>
    %125 = arith.truncf %123 : vector<256x32xf32> to vector<256x32xbf16>
    %c2_143 = arith.constant 2 : index
    %c0_144 = arith.constant 0 : index
    %c0_145 = arith.constant 0 : index
    %126 = vector.load %arg4[%c2_143, %c0_144, %c0_145] : memref<9x32x64xbf16, #tpu.memory_space<vmem>>, vector<1x32x64xbf16>
    %127 = vector.shape_cast %126 : vector<1x32x64xbf16> to vector<32x64xbf16>
    %cst_146 = arith.constant dense<0.000000e+00> : vector<256x64xf32>
    %128 = tpu.matmul %125, %127, %cst_146 {dimension_numbers = #tpu.dot_dimension_numbers<[1], [0], [0], [1], [0, 0, 1, 1], [], []>} : vector<256x32xbf16>, vector<32x64xbf16>, vector<256x64xf32> -> vector<256x64xf32>
    %129 = arith.addf %124, %128 : vector<256x64xf32>
    %c0_147 = arith.constant 0 : index
    %c0_148 = arith.constant 0 : index
    %130 = vector.load %arg13[%c0_147, %c0_148] : memref<256x64xf32, #tpu.memory_space<vmem>>, vector<256x64xf32>
    tpu.vector_store %arg13[%c0_147, %c0_148], %129 {strides = array<i32>} : memref<256x64xf32, #tpu.memory_space<vmem>>, vector<256x64xf32>,
    %c1_149 = arith.constant 1 : index
    %c0_150 = arith.constant 0 : index
    %c0_151 = arith.constant 0 : index
    %131 = vector.load %arg12[%c1_149, %c0_150, %c0_151] : memref<18x18x32xf32, #tpu.memory_space<vmem>>, vector<16x16x32xf32>
    %132 = vector.shape_cast %131 : vector<16x16x32xf32> to vector<256x32xf32>
    %c0_152 = arith.constant 0 : index
    %c0_153 = arith.constant 0 : index
    %133 = vector.load %arg13[%c0_152, %c0_153] : memref<256x64xf32, #tpu.memory_space<vmem>>, vector<256x64xf32>
    %134 = arith.truncf %132 : vector<256x32xf32> to vector<256x32xbf16>
    %c3_154 = arith.constant 3 : index
    %c0_155 = arith.constant 0 : index
    %c0_156 = arith.constant 0 : index
    %135 = vector.load %arg4[%c3_154, %c0_155, %c0_156] : memref<9x32x64xbf16, #tpu.memory_space<vmem>>, vector<1x32x64xbf16>
    %136 = vector.shape_cast %135 : vector<1x32x64xbf16> to vector<32x64xbf16>
    %cst_157 = arith.constant dense<0.000000e+00> : vector<256x64xf32>
    %137 = tpu.matmul %134, %136, %cst_157 {dimension_numbers = #tpu.dot_dimension_numbers<[1], [0], [0], [1], [0, 0, 1, 1], [], []>} : vector<256x32xbf16>, vector<32x64xbf16>, vector<256x64xf32> -> vector<256x64xf32>
    %138 = arith.addf %133, %137 : vector<256x64xf32>
    %c0_158 = arith.constant 0 : index
    %c0_159 = arith.constant 0 : index
    %139 = vector.load %arg13[%c0_158, %c0_159] : memref<256x64xf32, #tpu.memory_space<vmem>>, vector<256x64xf32>
    tpu.vector_store %arg13[%c0_158, %c0_159], %138 {strides = array<i32>} : memref<256x64xf32, #tpu.memory_space<vmem>>, vector<256x64xf32>,
    %c1_160 = arith.constant 1 : index
    %c1_161 = arith.constant 1 : index
    %c0_162 = arith.constant 0 : index
    %140 = vector.load %arg12[%c1_160, %c1_161, %c0_162] : memref<18x18x32xf32, #tpu.memory_space<vmem>>, vector<16x16x32xf32>
    %141 = vector.shape_cast %140 : vector<16x16x32xf32> to vector<256x32xf32>
    %c0_163 = arith.constant 0 : index
    %c0_164 = arith.constant 0 : index
    %142 = vector.load %arg13[%c0_163, %c0_164] : memref<256x64xf32, #tpu.memory_space<vmem>>, vector<256x64xf32>
    %143 = arith.truncf %141 : vector<256x32xf32> to vector<256x32xbf16>
    %c4_165 = arith.constant 4 : index
    %c0_166 = arith.constant 0 : index
    %c0_167 = arith.constant 0 : index
    %144 = vector.load %arg4[%c4_165, %c0_166, %c0_167] : memref<9x32x64xbf16, #tpu.memory_space<vmem>>, vector<1x32x64xbf16>
    %145 = vector.shape_cast %144 : vector<1x32x64xbf16> to vector<32x64xbf16>
    %cst_168 = arith.constant dense<0.000000e+00> : vector<256x64xf32>
    %146 = tpu.matmul %143, %145, %cst_168 {dimension_numbers = #tpu.dot_dimension_numbers<[1], [0], [0], [1], [0, 0, 1, 1], [], []>} : vector<256x32xbf16>, vector<32x64xbf16>, vector<256x64xf32> -> vector<256x64xf32>
    %147 = arith.addf %142, %146 : vector<256x64xf32>
    %c0_169 = arith.constant 0 : index
    %c0_170 = arith.constant 0 : index
    %148 = vector.load %arg13[%c0_169, %c0_170] : memref<256x64xf32, #tpu.memory_space<vmem>>, vector<256x64xf32>
    tpu.vector_store %arg13[%c0_169, %c0_170], %147 {strides = array<i32>} : memref<256x64xf32, #tpu.memory_space<vmem>>, vector<256x64xf32>,
    %c1_171 = arith.constant 1 : index
    %c2_172 = arith.constant 2 : index
    %c0_173 = arith.constant 0 : index
    %149 = vector.load %arg12[%c1_171, %c2_172, %c0_173] : memref<18x18x32xf32, #tpu.memory_space<vmem>>, vector<16x16x32xf32>
    %150 = vector.shape_cast %149 : vector<16x16x32xf32> to vector<256x32xf32>
    %c0_174 = arith.constant 0 : index
    %c0_175 = arith.constant 0 : index
    %151 = vector.load %arg13[%c0_174, %c0_175] : memref<256x64xf32, #tpu.memory_space<vmem>>, vector<256x64xf32>
    %152 = arith.truncf %150 : vector<256x32xf32> to vector<256x32xbf16>
    %c5_176 = arith.constant 5 : index
    %c0_177 = arith.constant 0 : index
    %c0_178 = arith.constant 0 : index
    %153 = vector.load %arg4[%c5_176, %c0_177, %c0_178] : memref<9x32x64xbf16, #tpu.memory_space<vmem>>, vector<1x32x64xbf16>
    %154 = vector.shape_cast %153 : vector<1x32x64xbf16> to vector<32x64xbf16>
    %cst_179 = arith.constant dense<0.000000e+00> : vector<256x64xf32>
    %155 = tpu.matmul %152, %154, %cst_179 {dimension_numbers = #tpu.dot_dimension_numbers<[1], [0], [0], [1], [0, 0, 1, 1], [], []>} : vector<256x32xbf16>, vector<32x64xbf16>, vector<256x64xf32> -> vector<256x64xf32>
    %156 = arith.addf %151, %155 : vector<256x64xf32>
    %c0_180 = arith.constant 0 : index
    %c0_181 = arith.constant 0 : index
    %157 = vector.load %arg13[%c0_180, %c0_181] : memref<256x64xf32, #tpu.memory_space<vmem>>, vector<256x64xf32>
    tpu.vector_store %arg13[%c0_180, %c0_181], %156 {strides = array<i32>} : memref<256x64xf32, #tpu.memory_space<vmem>>, vector<256x64xf32>,
    %c2_182 = arith.constant 2 : index
    %c0_183 = arith.constant 0 : index
    %c0_184 = arith.constant 0 : index
    %158 = vector.load %arg12[%c2_182, %c0_183, %c0_184] : memref<18x18x32xf32, #tpu.memory_space<vmem>>, vector<16x16x32xf32>
    %159 = vector.shape_cast %158 : vector<16x16x32xf32> to vector<256x32xf32>
    %c0_185 = arith.constant 0 : index
    %c0_186 = arith.constant 0 : index
    %160 = vector.load %arg13[%c0_185, %c0_186] : memref<256x64xf32, #tpu.memory_space<vmem>>, vector<256x64xf32>
    %161 = arith.truncf %159 : vector<256x32xf32> to vector<256x32xbf16>
    %c6_187 = arith.constant 6 : index
    %c0_188 = arith.constant 0 : index
    %c0_189 = arith.constant 0 : index
    %162 = vector.load %arg4[%c6_187, %c0_188, %c0_189] : memref<9x32x64xbf16, #tpu.memory_space<vmem>>, vector<1x32x64xbf16>
    %163 = vector.shape_cast %162 : vector<1x32x64xbf16> to vector<32x64xbf16>
    %cst_190 = arith.constant dense<0.000000e+00> : vector<256x64xf32>
    %164 = tpu.matmul %161, %163, %cst_190 {dimension_numbers = #tpu.dot_dimension_numbers<[1], [0], [0], [1], [0, 0, 1, 1], [], []>} : vector<256x32xbf16>, vector<32x64xbf16>, vector<256x64xf32> -> vector<256x64xf32>
    %165 = arith.addf %160, %164 : vector<256x64xf32>
    %c0_191 = arith.constant 0 : index
    %c0_192 = arith.constant 0 : index
    %166 = vector.load %arg13[%c0_191, %c0_192] : memref<256x64xf32, #tpu.memory_space<vmem>>, vector<256x64xf32>
    tpu.vector_store %arg13[%c0_191, %c0_192], %165 {strides = array<i32>} : memref<256x64xf32, #tpu.memory_space<vmem>>, vector<256x64xf32>,
    %c2_193 = arith.constant 2 : index
    %c1_194 = arith.constant 1 : index
    %c0_195 = arith.constant 0 : index
    %167 = vector.load %arg12[%c2_193, %c1_194, %c0_195] : memref<18x18x32xf32, #tpu.memory_space<vmem>>, vector<16x16x32xf32>
    %168 = vector.shape_cast %167 : vector<16x16x32xf32> to vector<256x32xf32>
    %c0_196 = arith.constant 0 : index
    %c0_197 = arith.constant 0 : index
    %169 = vector.load %arg13[%c0_196, %c0_197] : memref<256x64xf32, #tpu.memory_space<vmem>>, vector<256x64xf32>
    %170 = arith.truncf %168 : vector<256x32xf32> to vector<256x32xbf16>
    %c7_198 = arith.constant 7 : index
    %c0_199 = arith.constant 0 : index
    %c0_200 = arith.constant 0 : index
    %171 = vector.load %arg4[%c7_198, %c0_199, %c0_200] : memref<9x32x64xbf16, #tpu.memory_space<vmem>>, vector<1x32x64xbf16>
    %172 = vector.shape_cast %171 : vector<1x32x64xbf16> to vector<32x64xbf16>
    %cst_201 = arith.constant dense<0.000000e+00> : vector<256x64xf32>
    %173 = tpu.matmul %170, %172, %cst_201 {dimension_numbers = #tpu.dot_dimension_numbers<[1], [0], [0], [1], [0, 0, 1, 1], [], []>} : vector<256x32xbf16>, vector<32x64xbf16>, vector<256x64xf32> -> vector<256x64xf32>
    %174 = arith.addf %169, %173 : vector<256x64xf32>
    %c0_202 = arith.constant 0 : index
    %c0_203 = arith.constant 0 : index
    %175 = vector.load %arg13[%c0_202, %c0_203] : memref<256x64xf32, #tpu.memory_space<vmem>>, vector<256x64xf32>
    tpu.vector_store %arg13[%c0_202, %c0_203], %174 {strides = array<i32>} : memref<256x64xf32, #tpu.memory_space<vmem>>, vector<256x64xf32>,
    %c2_204 = arith.constant 2 : index
    %c2_205 = arith.constant 2 : index
    %c0_206 = arith.constant 0 : index
    %176 = vector.load %arg12[%c2_204, %c2_205, %c0_206] : memref<18x18x32xf32, #tpu.memory_space<vmem>>, vector<16x16x32xf32>
    %177 = vector.shape_cast %176 : vector<16x16x32xf32> to vector<256x32xf32>
    %c0_207 = arith.constant 0 : index
    %c0_208 = arith.constant 0 : index
    %178 = vector.load %arg13[%c0_207, %c0_208] : memref<256x64xf32, #tpu.memory_space<vmem>>, vector<256x64xf32>
    %179 = arith.truncf %177 : vector<256x32xf32> to vector<256x32xbf16>
    %c8_209 = arith.constant 8 : index
    %c0_210 = arith.constant 0 : index
    %c0_211 = arith.constant 0 : index
    %180 = vector.load %arg4[%c8_209, %c0_210, %c0_211] : memref<9x32x64xbf16, #tpu.memory_space<vmem>>, vector<1x32x64xbf16>
    %181 = vector.shape_cast %180 : vector<1x32x64xbf16> to vector<32x64xbf16>
    %cst_212 = arith.constant dense<0.000000e+00> : vector<256x64xf32>
    %182 = tpu.matmul %179, %181, %cst_212 {dimension_numbers = #tpu.dot_dimension_numbers<[1], [0], [0], [1], [0, 0, 1, 1], [], []>} : vector<256x32xbf16>, vector<32x64xbf16>, vector<256x64xf32> -> vector<256x64xf32>
    %183 = arith.addf %178, %182 : vector<256x64xf32>
    %c0_213 = arith.constant 0 : index
    %c0_214 = arith.constant 0 : index
    %184 = vector.load %arg13[%c0_213, %c0_214] : memref<256x64xf32, #tpu.memory_space<vmem>>, vector<256x64xf32>
    tpu.vector_store %arg13[%c0_213, %c0_214], %183 {strides = array<i32>} : memref<256x64xf32, #tpu.memory_space<vmem>>, vector<256x64xf32>,
    %c0_215 = arith.constant 0 : index
    %c0_216 = arith.constant 0 : index
    %185 = vector.load %arg13[%c0_215, %c0_216] : memref<256x64xf32, #tpu.memory_space<vmem>>, vector<256x64xf32>
    %c0_217 = arith.constant 0 : index
    %c0_218 = arith.constant 0 : index
    %186 = vector.load %arg5[%c0_217, %c0_218] : memref<1x64xf32, #tpu.memory_space<vmem>>, vector<1x64xf32>
    %187 = vector.broadcast %186 : vector<1x64xf32> to vector<256x64xf32>
    %188 = arith.addf %185, %187 : vector<256x64xf32>
    %cst_219 = arith.constant 0.000000e+00 : f32
    %189 = vector.broadcast %cst_219 : f32 to vector<256x64xf32>
    %190 = arith.maximumf %188, %189 : vector<256x64xf32>
    %cst_220 = arith.constant dense<0.000000e+00> : vector<64xf32>
    %191 = vector.multi_reduction <add>, %190, %cst_220 [0] : vector<256x64xf32> to vector<64xf32>
    %192 = vector.shape_cast %191 : vector<64xf32> to vector<1x64xf32>
    %cst_221 = arith.constant 3.906250e-03 : f32
    %193 = vector.broadcast %cst_221 : f32 to vector<1x64xf32>
    %194 = arith.mulf %192, %193 : vector<1x64xf32>
    %195 = arith.truncf %194 : vector<1x64xf32> to vector<1x64xbf16>
    %c0_222 = arith.constant 0 : index
    %c0_223 = arith.constant 0 : index
    %196 = vector.load %arg6[%c0_222, %c0_223] : memref<64x32xbf16, #tpu.memory_space<vmem>>, vector<64x32xbf16>
    %cst_224 = arith.constant dense<0.000000e+00> : vector<1x32xf32>
    %197 = tpu.matmul %195, %196, %cst_224 {dimension_numbers = #tpu.dot_dimension_numbers<[1], [0], [0], [1], [0, 0, 1, 1], [], []>} : vector<1x64xbf16>, vector<64x32xbf16>, vector<1x32xf32> -> vector<1x32xf32>
    %c0_225 = arith.constant 0 : index
    %c0_226 = arith.constant 0 : index
    %198 = vector.load %arg7[%c0_225, %c0_226] : memref<1x32xf32, #tpu.memory_space<vmem>>, vector<1x32xf32>
    %199 = arith.addf %197, %198 : vector<1x32xf32>
    %cst_227 = arith.constant 0.000000e+00 : f32
    %200 = vector.broadcast %cst_227 : f32 to vector<1x32xf32>
    %201 = arith.maximumf %199, %200 : vector<1x32xf32>
    %202 = arith.truncf %201 : vector<1x32xf32> to vector<1x32xbf16>
    %c0_228 = arith.constant 0 : index
    %c0_229 = arith.constant 0 : index
    %203 = vector.load %arg8[%c0_228, %c0_229] : memref<32x128xbf16, #tpu.memory_space<vmem>>, vector<32x128xbf16>
    %cst_230 = arith.constant dense<0.000000e+00> : vector<1x128xf32>
    %204 = tpu.matmul %202, %203, %cst_230 {dimension_numbers = #tpu.dot_dimension_numbers<[1], [0], [0], [1], [0, 0, 1, 1], [], []>} : vector<1x32xbf16>, vector<32x128xbf16>, vector<1x128xf32> -> vector<1x128xf32>
    %c0_231 = arith.constant 0 : index
    %c0_232 = arith.constant 0 : index
    %205 = vector.load %arg9[%c0_231, %c0_232] : memref<1x128xf32, #tpu.memory_space<vmem>>, vector<1x128xf32>
    %206 = arith.addf %204, %205 : vector<1x128xf32>
    %207 = vector.shape_cast %206 : vector<1x128xf32> to vector<1x1x128xf32>
    %208 = vector.shape_cast %207 : vector<1x1x128xf32> to vector<1x1x128xf32>
    %209 = vector.broadcast %208 : vector<1x1x128xf32> to vector<1x8x128xf32>
    %c0_233 = arith.constant 0 : index
    %c0_234 = arith.constant 0 : index
    %c0_235 = arith.constant 0 : index
    %210 = vector.load %arg10[%c0_233, %c0_234, %c0_235] : memref<1x8x128xf32, #tpu.memory_space<vmem>>, vector<1x8x128xf32>
    tpu.vector_store %arg10[%c0_233, %c0_234, %c0_235], %209 {strides = array<i32>} : memref<1x8x128xf32, #tpu.memory_space<vmem>>, vector<1x8x128xf32>,
    return
  }
  func.func @transform_0(%arg0: i32) -> (i32, i32, i32, i32) {
    %c0_i32 = arith.constant 0 : i32
    %c0_i32_0 = arith.constant 0 : i32
    %c0_i32_1 = arith.constant 0 : i32
    %c0_i32_2 = arith.constant 0 : i32
    return %arg0, %c0_i32, %c0_i32_0, %c0_i32_1 : i32, i32, i32, i32
  }
  func.func @transform_1(%arg0: i32) -> (i32, i32, i32) {
    %c0_i32 = arith.constant 0 : i32
    %c0_i32_0 = arith.constant 0 : i32
    %c0_i32_1 = arith.constant 0 : i32
    %c0_i32_2 = arith.constant 0 : i32
    return %c0_i32, %c0_i32_0, %c0_i32_1 : i32, i32, i32
  }
  func.func @transform_2(%arg0: i32) -> (i32, i32) {
    %c0_i32 = arith.constant 0 : i32
    %c0_i32_0 = arith.constant 0 : i32
    %c0_i32_1 = arith.constant 0 : i32
    return %c0_i32, %c0_i32_0 : i32, i32
  }
  func.func @transform_3(%arg0: i32) -> (i32, i32, i32) {
    %c0_i32 = arith.constant 0 : i32
    %c0_i32_0 = arith.constant 0 : i32
    %c0_i32_1 = arith.constant 0 : i32
    %c0_i32_2 = arith.constant 0 : i32
    return %c0_i32, %c0_i32_0, %c0_i32_1 : i32, i32, i32
  }
  func.func @transform_4(%arg0: i32) -> (i32, i32) {
    %c0_i32 = arith.constant 0 : i32
    %c0_i32_0 = arith.constant 0 : i32
    %c0_i32_1 = arith.constant 0 : i32
    return %c0_i32, %c0_i32_0 : i32, i32
  }
  func.func @transform_5(%arg0: i32) -> (i32, i32) {
    %c0_i32 = arith.constant 0 : i32
    %c0_i32_0 = arith.constant 0 : i32
    %c0_i32_1 = arith.constant 0 : i32
    return %c0_i32, %c0_i32_0 : i32, i32
  }
  func.func @transform_6(%arg0: i32) -> (i32, i32) {
    %c0_i32 = arith.constant 0 : i32
    %c0_i32_0 = arith.constant 0 : i32
    %c0_i32_1 = arith.constant 0 : i32
    return %c0_i32, %c0_i32_0 : i32, i32
  }
  func.func @transform_7(%arg0: i32) -> (i32, i32) {
    %c0_i32 = arith.constant 0 : i32
    %c0_i32_0 = arith.constant 0 : i32
    %c0_i32_1 = arith.constant 0 : i32
    return %c0_i32, %c0_i32_0 : i32, i32
  }
  func.func @transform_8(%arg0: i32) -> (i32, i32) {
    %c0_i32 = arith.constant 0 : i32
    %c0_i32_0 = arith.constant 0 : i32
    %c0_i32_1 = arith.constant 0 : i32
    return %c0_i32, %c0_i32_0 : i32, i32
  }
  func.func @transform_9(%arg0: i32) -> (i32, i32, i32) {
    %c0_i32 = arith.constant 0 : i32
    %c0_i32_0 = arith.constant 0 : i32
    %c0_i32_1 = arith.constant 0 : i32
    return %arg0, %c0_i32, %c0_i32_0 : i32, i32, i32
  }
}

</mosaic_0001>

<llo_original>
// kernel: simplenet2_forward.1
$region0: #{simplenet2_forward.1}
  #allocation0 [shape = 'u32[]', space=smem, size = 0x4, offset = 0x4, fixed_abs, tag = 'smem constant byte address 0x4 - core index']
  #allocation1 [shape = 'u32[144,128]{1,0:T(1,128)}', space=vmem, size = 0x12000, scoped, tag = 'internal scratch']
  #allocation2 [shape = 'f32[256,32]{1,0:T(8,128)}', space=vmem, size = 0x20000, scoped, tag = 'scratch operand']
  #allocation3 [shape = 'f32[18,18,32]{2,1,0:T(8,128)}', space=vmem, size = 0x36000, scoped, tag = 'scratch operand']
  #allocation4 [shape = 'f32[256,64]{1,0:T(8,128)}', space=vmem, size = 0x20000, scoped, tag = 'scratch operand']
  %s0 = inlined_call_operand.vmem [shape: f32[2,18,18,4], index: 0, kind: input, shape index: {}]
  %s1 = inlined_call_operand.vmem [shape: bf16[9,4,32], index: 1, kind: input, shape index: {}]
  %s2 = inlined_call_operand.vmem [shape: f32[1,32], index: 2, kind: input, shape index: {}]
  %s3 = inlined_call_operand.vmem [shape: bf16[9,32,64], index: 3, kind: input, shape index: {}]
  %s4 = inlined_call_operand.vmem [shape: f32[1,64], index: 4, kind: input, shape index: {}]
  %s5 = inlined_call_operand.vmem [shape: bf16[64,32], index: 5, kind: input, shape index: {}]
  %s6 = inlined_call_operand.vmem [shape: f32[1,32], index: 6, kind: input, shape index: {}]
  %s7 = inlined_call_operand.vmem [shape: bf16[32,128], index: 7, kind: input, shape index: {}]
  %s8 = inlined_call_operand.vmem [shape: f32[1,128], index: 8, kind: input, shape index: {}]
  %s9 = inlined_call_operand.vmem [shape: f32[2,8,128], index: 9, kind: output, shape index: {}]
  %s10 = sld [smem:[#allocation0]]
  $region69: #{simplenet2_forward.1} parent=0
    _
  %s12 = ssub.s32 1, %s10
  %s13 = scalar_select 0, %s12, %s10
  loop: start=0, step=1, limit=4
  $region2: #{simplenet2_forward.1} parent=0 // loop_pre_header
    _
  $region3: #{simplenet2_forward.1} parent=0 // loop_header
    %s15 = sphi 0, %s19
    %p16 = scmp.ge.s32.totalorder %s15, 4
    %s25 = sphi 0, %s27
    %s28 = sphi 0, %s25
    %s29 = sphi 0, %s28
    %s45 = sphi 0, %s29
    %s49 = sphi 0, %s49
    %s51 = sphi 0, %s49
    %s52 = sphi 0, %s51
    %s66 = sphi 0, %s52
    %s70 = sphi 0, %s70
    %s72 = sphi 0, %s70
    %s73 = sphi 0, %s72
    %s87 = sphi 0, %s73
    %s91 = sphi 0, %s91
    %s93 = sphi 0, %s91
    %s94 = sphi 0, %s93
    %s108 = sphi 0, %s94
    %s112 = sphi 0, %s112
    %s114 = sphi 0, %s112
    %s115 = sphi 0, %s114
    %s129 = sphi 0, %s115
    %s133 = sphi 0, %s133
    %s135 = sphi 0, %s133
    %s136 = sphi 0, %s135
    %s150 = sphi 0, %s136
    %s154 = sphi 0, %s154
    %s156 = sphi 0, %s154
    %s157 = sphi 0, %s156
    %s171 = sphi 0, %s157
    %s175 = sphi 0, %s175
    %s177 = sphi 0, %s175
    %s178 = sphi 0, %s177
    %s192 = sphi 0, %s178
    %s196 = sphi 0, %s196
    %s198 = sphi 0, %s196
    %s199 = sphi 0, %s198
    %s213 = sphi 0, %s199
    %s219 = sphi 0, %s221
    %s222 = sphi 0, %s219
    %s223 = sphi 0, %s222
    %s239 = sphi 0, %s223
  $region4: #{simplenet2_forward.1} parent=0 // loop_header_branch
    %18 = sbr.rel (%p16) target = $region8
  $region5: #{simplenet2_forward.1} parent=0 // loop_body
    %s20 = ssub.s32 %s15, 1
    %s21 = ssub.s32 %s15, 2
    %s22 = sadd.s32 %s15, 1
    %s23 = ssub.s32 %s15, %s22
    %p24 = scmp.eq.s32.totalorder %s23, 0
    %s26 = sadd.s32 %s25, 1
    %s27 = scalar_select %p24, %s25, %s26
    %p30 = pneg %p24
    %p31 = scmp.eq.s32.totalorder %s15, 1
    %p32 = por %p30, %p31
    %p33 = scmp.ne.s32.totalorder %s25, %s28
    %p34 = scmp.eq.s32.totalorder %s15, 0
    %p35 = por %p33, %p34
    %p36 = scmp.ne.s32.totalorder %s25, %s28
    %p37 = scmp.eq.s32.totalorder %s20, 1
    %p38 = por %p36, %p37
    %p39 = scmp.ne.s32.totalorder %s28, %s29
    %p40 = scmp.eq.s32.totalorder %s20, 0
    %p41 = por %p39, %p40
    %p42 = scmp.ne.s32.totalorder %s28, %s29
    %p43 = scmp.eq.s32.totalorder %s21, 1
    %p44 = por %p42, %p43
    %p46 = scmp.ne.s32.totalorder %s29, %s45
    %p47 = scmp.eq.s32.totalorder %s21, 0
    %p48 = por %p46, %p47
    %s50 = sadd.s32 %s49, 1
    %p53 = scmp.eq.s32.totalorder %s15, 1
    %p54 = scmp.ne.s32.totalorder %s49, %s51
    %p55 = scmp.eq.s32.totalorder %s15, 0
    %p56 = por %p54, %p55
    %p57 = scmp.ne.s32.totalorder %s49, %s51
    %p58 = scmp.eq.s32.totalorder %s20, 1
    %p59 = por %p57, %p58
    %p60 = scmp.ne.s32.totalorder %s51, %s52
    %p61 = scmp.eq.s32.totalorder %s20, 0
    %p62 = por %p60, %p61
    %p63 = scmp.ne.s32.totalorder %s51, %s52
    %p64 = scmp.eq.s32.totalorder %s21, 1
    %p65 = por %p63, %p64
    %p67 = scmp.ne.s32.totalorder %s52, %s66
    %p68 = scmp.eq.s32.totalorder %s21, 0
    %p69 = por %p67, %p68
    %s71 = sadd.s32 %s70, 1
    %p74 = scmp.eq.s32.totalorder %s15, 1
    %p75 = scmp.ne.s32.totalorder %s70, %s72
    %p76 = scmp.eq.s32.totalorder %s15, 0
    %p77 = por %p75, %p76
    %p78 = scmp.ne.s32.totalorder %s70, %s72
    %p79 = scmp.eq.s32.totalorder %s20, 1
    %p80 = por %p78, %p79
    %p81 = scmp.ne.s32.totalorder %s72, %s73
    %p82 = scmp.eq.s32.totalorder %s20, 0
    %p83 = por %p81, %p82
    %p84 = scmp.ne.s32.totalorder %s72, %s73
    %p85 = scmp.eq.s32.totalorder %s21, 1
    %p86 = por %p84, %p85
    %p88 = scmp.ne.s32.totalorder %s73, %s87
    %p89 = scmp.eq.s32.totalorder %s21, 0
    %p90 = por %p88, %p89
    %s92 = sadd.s32 %s91, 1
    %p95 = scmp.eq.s32.totalorder %s15, 1
    %p96 = scmp.ne.s32.totalorder %s91, %s93
    %p97 = scmp.eq.s32.totalorder %s15, 0
    %p98 = por %p96, %p97
    %p99 = scmp.ne.s32.totalorder %s91, %s93
    %p100 = scmp.eq.s32.totalorder %s20, 1
    %p101 = por %p99, %p100
    %p102 = scmp.ne.s32.totalorder %s93, %s94
    %p103 = scmp.eq.s32.totalorder %s20, 0
    %p104 = por %p102, %p103
    %p105 = scmp.ne.s32.totalorder %s93, %s94
    %p106 = scmp.eq.s32.totalorder %s21, 1
    %p107 = por %p105, %p106
    %p109 = scmp.ne.s32.totalorder %s94, %s108
    %p110 = scmp.eq.s32.totalorder %s21, 0
    %p111 = por %p109, %p110
    %s113 = sadd.s32 %s112, 1
    %p116 = scmp.eq.s32.totalorder %s15, 1
    %p117 = scmp.ne.s32.totalorder %s112, %s114
    %p118 = scmp.eq.s32.totalorder %s15, 0
    %p119 = por %p117, %p118
    %p120 = scmp.ne.s32.totalorder %s112, %s114
    %p121 = scmp.eq.s32.totalorder %s20, 1
    %p122 = por %p120, %p121
    %p123 = scmp.ne.s32.totalorder %s114, %s115
    %p124 = scmp.eq.s32.totalorder %s20, 0
    %p125 = por %p123, %p124
    %p126 = scmp.ne.s32.totalorder %s114, %s115
    %p127 = scmp.eq.s32.totalorder %s21, 1
    %p128 = por %p126, %p127
    %p130 = scmp.ne.s32.totalorder %s115, %s129
    %p131 = scmp.eq.s32.totalorder %s21, 0
    %p132 = por %p130, %p131
    %s134 = sadd.s32 %s133, 1
    %p137 = scmp.eq.s32.totalorder %s15, 1
    %p138 = scmp.ne.s32.totalorder %s133, %s135
    %p139 = scmp.eq.s32.totalorder %s15, 0
    %p140 = por %p138, %p139
    %p141 = scmp.ne.s32.totalorder %s133, %s135
    %p142 = scmp.eq.s32.totalorder %s20, 1
    %p143 = por %p141, %p142
    %p144 = scmp.ne.s32.totalorder %s135, %s136
    %p145 = scmp.eq.s32.totalorder %s20, 0
    %p146 = por %p144, %p145
    %p147 = scmp.ne.s32.totalorder %s135, %s136
    %p148 = scmp.eq.s32.totalorder %s21, 1
    %p149 = por %p147, %p148
    %p151 = scmp.ne.s32.totalorder %s136, %s150
    %p152 = scmp.eq.s32.totalorder %s21, 0
    %p153 = por %p151, %p152
    %s155 = sadd.s32 %s154, 1
    %p158 = scmp.eq.s32.totalorder %s15, 1
    %p159 = scmp.ne.s32.totalorder %s154, %s156
    %p160 = scmp.eq.s32.totalorder %s15, 0
    %p161 = por %p159, %p160
    %p162 = scmp.ne.s32.totalorder %s154, %s156
    %p163 = scmp.eq.s32.totalorder %s20, 1
    %p164 = por %p162, %p163
    %p165 = scmp.ne.s32.totalorder %s156, %s157
    %p166 = scmp.eq.s32.totalorder %s20, 0
    %p167 = por %p165, %p166
    %p168 = scmp.ne.s32.totalorder %s156, %s157
    %p169 = scmp.eq.s32.totalorder %s21, 1
    %p170 = por %p168, %p169
    %p172 = scmp.ne.s32.totalorder %s157, %s171
    %p173 = scmp.eq.s32.totalorder %s21, 0
    %p174 = por %p172, %p173
    %s176 = sadd.s32 %s175, 1
    %p179 = scmp.eq.s32.totalorder %s15, 1
    %p180 = scmp.ne.s32.totalorder %s175, %s177
    %p181 = scmp.eq.s32.totalorder %s15, 0
    %p182 = por %p180, %p181
    %p183 = scmp.ne.s32.totalorder %s175, %s177
    %p184 = scmp.eq.s32.totalorder %s20, 1
    %p185 = por %p183, %p184
    %p186 = scmp.ne.s32.totalorder %s177, %s178
    %p187 = scmp.eq.s32.totalorder %s20, 0
    %p188 = por %p186, %p187
    %p189 = scmp.ne.s32.totalorder %s177, %s178
    %p190 = scmp.eq.s32.totalorder %s21, 1
    %p191 = por %p189, %p190
    %p193 = scmp.ne.s32.totalorder %s178, %s192
    %p194 = scmp.eq.s32.totalorder %s21, 0
    %p195 = por %p193, %p194
    %s197 = sadd.s32 %s196, 1
    %p200 = scmp.eq.s32.totalorder %s15, 1
    %p201 = scmp.ne.s32.totalorder %s196, %s198
    %p202 = scmp.eq.s32.totalorder %s15, 0
    %p203 = por %p201, %p202
    %p204 = scmp.ne.s32.totalorder %s196, %s198
    %p205 = scmp.eq.s32.totalorder %s20, 1
    %p206 = por %p204, %p205
    %p207 = scmp.ne.s32.totalorder %s198, %s199
    %p208 = scmp.eq.s32.totalorder %s20, 0
    %p209 = por %p207, %p208
    %p210 = scmp.ne.s32.totalorder %s198, %s199
    %p211 = scmp.eq.s32.totalorder %s21, 1
    %p212 = por %p210, %p211
    %p214 = scmp.ne.s32.totalorder %s199, %s213
    %p215 = scmp.eq.s32.totalorder %s21, 0
    %p216 = por %p214, %p215
    %s217 = ssub.s32 %s15, %s22
    %p218 = scmp.eq.s32.totalorder %s217, 0
    %s220 = sadd.s32 %s219, 1
    %s221 = scalar_select %p218, %s219, %s220
    %p224 = pneg %p218
    %p225 = scmp.eq.s32.totalorder %s15, 1
    %p226 = por %p224, %p225
    %p227 = scmp.ne.s32.totalorder %s219, %s222
    %p228 = scmp.eq.s32.totalorder %s15, 0
    %p229 = por %p227, %p228
    %p230 = scmp.ne.s32.totalorder %s219, %s222
    %p231 = scmp.eq.s32.totalorder %s20, 1
    %p232 = por %p230, %p231
    %p233 = scmp.ne.s32.totalorder %s222, %s223
    %p234 = scmp.eq.s32.totalorder %s20, 0
    %p235 = por %p233, %p234
    %p236 = scmp.ne.s32.totalorder %s222, %s223
    %p237 = scmp.eq.s32.totalorder %s21, 1
    %p238 = por %p236, %p237
    %p240 = scmp.ne.s32.totalorder %s223, %s239
    %p241 = scmp.eq.s32.totalorder %s21, 0
    %p242 = por %p240, %p241
    %p243 = scmp.le.s32.totalorder 1, %s15
    %p244 = scmp.lt.s32.totalorder %s15, 3
    %p245 = pnand %p243, %p244
    %p246 = pneg %p245
    // Predicated region
    $region9: #{simplenet2_forward.1} parent=5 // pred_check
      _
    $region10: #{simplenet2_forward.1} parent=5 // pred_check_branch
      %248 = sbr.rel (%p245) target = $region12
    $region11: #{simplenet2_forward.1} parent=5 // pred_region
      %s249 = ssub.s32 %s15, 1
      // Predicated region
      $region13: #{simplenet2_forward.1} parent=11 // pred_check
        %p250 = pneg %p62
      $region14: #{simplenet2_forward.1} parent=11 // pred_check_branch
        %252 = sbr.rel (%p250) target = $region16
      $region15: #{simplenet2_forward.1} parent=11 // pred_region
        _
      $region16: #{simplenet2_forward.1} parent=11 // pred_fallthru
        _
      // Predicated region
      $region17: #{simplenet2_forward.1} parent=11 // pred_check
        %p253 = pneg %p83
      $region18: #{simplenet2_forward.1} parent=11 // pred_check_branch
        %255 = sbr.rel (%p253) target = $region20
      $region19: #{simplenet2_forward.1} parent=11 // pred_region
        _
      $region20: #{simplenet2_forward.1} parent=11 // pred_fallthru
        _
      // Predicated region
      $region21: #{simplenet2_forward.1} parent=11 // pred_check
        %p256 = pneg %p104
      $region22: #{simplenet2_forward.1} parent=11 // pred_check_branch
        %258 = sbr.rel (%p256) target = $region24
      $region23: #{simplenet2_forward.1} parent=11 // pred_region
        _
      $region24: #{simplenet2_forward.1} parent=11 // pred_fallthru
        _
      // Predicated region
      $region25: #{simplenet2_forward.1} parent=11 // pred_check
        %p259 = pneg %p125
      $region26: #{simplenet2_forward.1} parent=11 // pred_check_branch
        %261 = sbr.rel (%p259) target = $region28
      $region27: #{simplenet2_forward.1} parent=11 // pred_region
        _
      $region28: #{simplenet2_forward.1} parent=11 // pred_fallthru
        _
      // Predicated region
      $region29: #{simplenet2_forward.1} parent=11 // pred_check
        %p262 = pneg %p146
      $region30: #{simplenet2_forward.1} parent=11 // pred_check_branch
        %264 = sbr.rel (%p262) target = $region32
      $region31: #{simplenet2_forward.1} parent=11 // pred_region
        _
      $region32: #{simplenet2_forward.1} parent=11 // pred_fallthru
        _
      // Predicated region
      $region33: #{simplenet2_forward.1} parent=11 // pred_check
        %p265 = pneg %p167
      $region34: #{simplenet2_forward.1} parent=11 // pred_check_branch
        %267 = sbr.rel (%p265) target = $region36
      $region35: #{simplenet2_forward.1} parent=11 // pred_region
        _
      $region36: #{simplenet2_forward.1} parent=11 // pred_fallthru
        _
      // Predicated region
      $region37: #{simplenet2_forward.1} parent=11 // pred_check
        %p268 = pneg %p188
      $region38: #{simplenet2_forward.1} parent=11 // pred_check_branch
        %270 = sbr.rel (%p268) target = $region40
      $region39: #{simplenet2_forward.1} parent=11 // pred_region
        _
      $region40: #{simplenet2_forward.1} parent=11 // pred_fallthru
        _
      // Predicated region
      $region41: #{simplenet2_forward.1} parent=11 // pred_check
        %p271 = pneg %p209
      $region42: #{simplenet2_forward.1} parent=11 // pred_check_branch
        %273 = sbr.rel (%p271) target = $region44
      $region43: #{simplenet2_forward.1} parent=11 // pred_region
        _
      $region44: #{simplenet2_forward.1} parent=11 // pred_fallthru
        _
    $region12: #{simplenet2_forward.1} parent=5 // pred_fallthru
      _
    %p274 = scmp.lt.s32.totalorder %s15, 2
    // Predicated region
    $region45: #{simplenet2_forward.1} parent=5 // pred_check
      %p275 = pneg %p274
    $region46: #{simplenet2_forward.1} parent=5 // pred_check_branch
      %277 = sbr.rel (%p275) target = $region48
    $region47: #{simplenet2_forward.1} parent=5 // pred_region
      // Predicated region
      $region49: #{simplenet2_forward.1} parent=47 // pred_check
        %p278 = pneg %p35
      $region50: #{simplenet2_forward.1} parent=47 // pred_check_branch
        %280 = sbr.rel (%p278) target = $region52
      $region51: #{simplenet2_forward.1} parent=47 // pred_region
        %p281 = scmp.lt.s32.totalorder %s15, 1
        %s282 = scalar_select %p281, %s15, 1
        %s283 = smul.addr %s282, 54
        %s284 = smul.addr %s283, 8
        %s285 = scalar_lea.vmem %s0, %s284
      $region52: #{simplenet2_forward.1} parent=47 // pred_fallthru
        _
    $region48: #{simplenet2_forward.1} parent=5 // pred_fallthru
      _
    %p286 = scmp.le.s32.totalorder 1, %s15
    %p287 = scmp.lt.s32.totalorder %s15, 3
    %p288 = pnand %p286, %p287
    %p289 = pneg %p288
    // Predicated region
    $region53: #{simplenet2_forward.1} parent=5 // pred_check
      _
    $region54: #{simplenet2_forward.1} parent=5 // pred_check_branch
      %291 = sbr.rel (%p288) target = $region56
    $region55: #{simplenet2_forward.1} parent=5 // pred_region
      %s292 = ssub.s32 %s15, 1
      %p293 = scmp.lt.s32.totalorder %s20, 1
      %s294 = scalar_select %p293, %s20, 1
      %s295 = smul.addr %s294, 54
      %s296 = smul.addr %s295, 8
      %s297 = scalar_lea.vmem %s0, %s296
      %p298 = pneg %p41
      %p299 = pneg %p38
      %p300 = pneg %p62
      %p301 = pneg %p59
      %p302 = pneg %p83
      %p303 = pneg %p80
      %p304 = pneg %p104
      %p305 = pneg %p101
      %p306 = pneg %p125
      %p307 = pneg %p122
      %p308 = pneg %p146
      %p309 = pneg %p143
      %p310 = pneg %p167
      %p311 = pneg %p164
      %p312 = pneg %p188
      %p313 = pneg %p185
      %p314 = pneg %p209
      %p315 = pneg %p206
      %p316 = pneg %p235
      %p317 = pneg %p232
      %p318 = scmp.lt.s32.totalorder %s20, 1
      %s319 = scalar_select %p318, %s20, 1
      %s320 = smul.addr %s319, 8
      %s321 = scalar_lea.vmem %s9, %s320
      %p322 = scmp.lt.s32.totalorder %s20, 1
      %s323 = scalar_select %p322, %s20, 1
      %s324 = smul.addr %s323, 54
      %s325 = smul.addr %s324, 8
      %s326 = scalar_lea.vmem %s0, %s325
      %p327 = scmp.lt.s32.totalorder %s20, 1
      %s328 = scalar_select %p327, %s20, 1
      %s329 = smul.addr %s328, 8
      %s330 = scalar_lea.vmem %s9, %s329
      %vm332 = vcmask 261120
      %333 = vst.msk [vmem:[#allocation2] sm:$0xff] %vm332, 0.0
      %334 = vst.msk [vmem:[#allocation2 + $0x8] sm:$0xff] %vm332, 0.0
      %335 = vst.msk [vmem:[#allocation2 + $0x10] sm:$0xff] %vm332, 0.0
      %336 = vst.msk [vmem:[#allocation2 + $0x18] sm:$0xff] %vm332, 0.0
      %337 = vst.msk [vmem:[#allocation2 + $0x20] sm:$0xff] %vm332, 0.0
      %338 = vst.msk [vmem:[#allocation2 + $0x28] sm:$0xff] %vm332, 0.0
      %339 = vst.msk [vmem:[#allocation2 + $0x30] sm:$0xff] %vm332, 0.0
      %340 = vst.msk [vmem:[#allocation2 + $0x38] sm:$0xff] %vm332, 0.0
      %341 = vst.msk [vmem:[#allocation2 + $0x40] sm:$0xff] %vm332, 0.0
      %342 = vst.msk [vmem:[#allocation2 + $0x48] sm:$0xff] %vm332, 0.0
      %343 = vst.msk [vmem:[#allocation2 + $0x50] sm:$0xff] %vm332, 0.0
      %344 = vst.msk [vmem:[#allocation2 + $0x58] sm:$0xff] %vm332, 0.0
      %345 = vst.msk [vmem:[#allocation2 + $0x60] sm:$0xff] %vm332, 0.0
      %346 = vst.msk [vmem:[#allocation2 + $0x68] sm:$0xff] %vm332, 0.0
      %347 = vst.msk [vmem:[#allocation2 + $0x70] sm:$0xff] %vm332, 0.0
      %348 = vst.msk [vmem:[#allocation2 + $0x78] sm:$0xff] %vm332, 0.0
      %349 = vst.msk [vmem:[#allocation2 + $0x80] sm:$0xff] %vm332, 0.0
      %350 = vst.msk [vmem:[#allocation2 + $0x88] sm:$0xff] %vm332, 0.0
      %351 = vst.msk [vmem:[#allocation2 + $0x90] sm:$0xff] %vm332, 0.0
      %352 = vst.msk [vmem:[#allocation2 + $0x98] sm:$0xff] %vm332, 0.0
      %353 = vst.msk [vmem:[#allocation2 + $0xa0] sm:$0xff] %vm332, 0.0
      %354 = vst.msk [vmem:[#allocation2 + $0xa8] sm:$0xff] %vm332, 0.0
      %355 = vst.msk [vmem:[#allocation2 + $0xb0] sm:$0xff] %vm332, 0.0
      %356 = vst.msk [vmem:[#allocation2 + $0xb8] sm:$0xff] %vm332, 0.0
      %357 = vst.msk [vmem:[#allocation2 + $0xc0] sm:$0xff] %vm332, 0.0
      %358 = vst.msk [vmem:[#allocation2 + $0xc8] sm:$0xff] %vm332, 0.0
      %359 = vst.msk [vmem:[#allocation2 + $0xd0] sm:$0xff] %vm332, 0.0
      %360 = vst.msk [vmem:[#allocation2 + $0xd8] sm:$0xff] %vm332, 0.0
      %361 = vst.msk [vmem:[#allocation2 + $0xe0] sm:$0xff] %vm332, 0.0
      %362 = vst.msk [vmem:[#allocation2 + $0xe8] sm:$0xff] %vm332, 0.0
      %363 = vst.msk [vmem:[#allocation2 + $0xf0] sm:$0xff] %vm332, 0.0
      %364 = vst.msk [vmem:[#allocation2 + $0xf8] sm:$0xff] %vm332, 0.0
      %v365 = vld [vmem:[%s326] sm:$0xff]
      %v366 = vld [vmem:[%s326 + $0x8] sm:$0xff]
      %v367 = vld [vmem:[%s326 + $0x18] sm:$0xff]
      %v368 = vld [vmem:[%s326 + $0x20] sm:$0xff]
      %v369 = vld [vmem:[%s326 + $0x30] sm:$0xff]
      %v370 = vld [vmem:[%s326 + $0x38] sm:$0xff]
      %v371 = vld [vmem:[%s326 + $0x48] sm:$0xff]
      %v372 = vld [vmem:[%s326 + $0x50] sm:$0xff]
      %v373 = vld [vmem:[%s326 + $0x60] sm:$0xff]
      %v374 = vld [vmem:[%s326 + $0x68] sm:$0xff]
      %v375 = vld [vmem:[%s326 + $0x78] sm:$0xff]
      %v376 = vld [vmem:[%s326 + $0x80] sm:$0xff]
      %v377 = vld [vmem:[%s326 + $0x90] sm:$0xff]
      %v378 = vld [vmem:[%s326 + $0x98] sm:$0xff]
      %v379 = vld [vmem:[%s326 + $0xa8] sm:$0xff]
      %v380 = vld [vmem:[%s326 + $0xb0] sm:$0xff]
      %v381 = vld [vmem:[%s326 + $0xc0] sm:$0xff]
      %v382 = vld [vmem:[%s326 + $0xc8] sm:$0xff]
      %v383 = vld [vmem:[%s326 + $0xd8] sm:$0xff]
      %v384 = vld [vmem:[%s326 + $0xe0] sm:$0xff]
      %v385 = vld [vmem:[%s326 + $0xf0] sm:$0xff]
      %v386 = vld [vmem:[%s326 + $0xf8] sm:$0xff]
      %v387 = vld [vmem:[%s326 + $0x108] sm:$0xff]
      %v388 = vld [vmem:[%s326 + $0x110] sm:$0xff]
      %v389 = vld [vmem:[%s326 + $0x120] sm:$0xff]
      %v390 = vld [vmem:[%s326 + $0x128] sm:$0xff]
      %v391 = vld [vmem:[%s326 + $0x138] sm:$0xff]
      %v392 = vld [vmem:[%s326 + $0x140] sm:$0xff]
      %v393 = vld [vmem:[%s326 + $0x150] sm:$0xff]
      %v394 = vld [vmem:[%s326 + $0x158] sm:$0xff]
      %v395 = vld [vmem:[%s326 + $0x168] sm:$0xff]
      %v396 = vld [vmem:[%s326 + $0x170] sm:$0xff]
      %v397 = vld [vmem:[#allocation2] sm:$0xff]
      %v398 = vld [vmem:[#allocation2 + $0x8] sm:$0xff]
      %v399 = vld [vmem:[#allocation2 + $0x10] sm:$0xff]
      %v400 = vld [vmem:[#allocation2 + $0x18] sm:$0xff]
      %v401 = vld [vmem:[#allocation2 + $0x20] sm:$0xff]
      %v402 = vld [vmem:[#allocation2 + $0x28] sm:$0xff]
      %v403 = vld [vmem:[#allocation2 + $0x30] sm:$0xff]
      %v404 = vld [vmem:[#allocation2 + $0x38] sm:$0xff]
      %v405 = vld [vmem:[#allocation2 + $0x40] sm:$0xff]
      %v406 = vld [vmem:[#allocation2 + $0x48] sm:$0xff]
      %v407 = vld [vmem:[#allocation2 + $0x50] sm:$0xff]
      %v408 = vld [vmem:[#allocation2 + $0x58] sm:$0xff]
      %v409 = vld [vmem:[#allocation2 + $0x60] sm:$0xff]
      %v410 = vld [vmem:[#allocation2 + $0x68] sm:$0xff]
      %v411 = vld [vmem:[#allocation2 + $0x70] sm:$0xff]
      %v412 = vld [vmem:[#allocation2 + $0x78] sm:$0xff]
      %v413 = vld [vmem:[#allocation2 + $0x80] sm:$0xff]
      %v414 = vld [vmem:[#allocation2 + $0x88] sm:$0xff]
      %v415 = vld [vmem:[#allocation2 + $0x90] sm:$0xff]
      %v416 = vld [vmem:[#allocation2 + $0x98] sm:$0xff]
      %v417 = vld [vmem:[#allocation2 + $0xa0] sm:$0xff]
      %v418 = vld [vmem:[#allocation2 + $0xa8] sm:$0xff]
      %v419 = vld [vmem:[#allocation2 + $0xb0] sm:$0xff]
      %v420 = vld [vmem:[#allocation2 + $0xb8] sm:$0xff]
      %v421 = vld [vmem:[#allocation2 + $0xc0] sm:$0xff]
      %v422 = vld [vmem:[#allocation2 + $0xc8] sm:$0xff]
      %v423 = vld [vmem:[#allocation2 + $0xd0] sm:$0xff]
      %v424 = vld [vmem:[#allocation2 + $0xd8] sm:$0xff]
      %v425 = vld [vmem:[#allocation2 + $0xe0] sm:$0xff]
      %v426 = vld [vmem:[#allocation2 + $0xe8] sm:$0xff]
      %v427 = vld [vmem:[#allocation2 + $0xf0] sm:$0xff]
      %v428 = vld [vmem:[#allocation2 + $0xf8] sm:$0xff]
      %v429 = vpack.c.bf16 %v366, %v365
      %v430 = vpack.c.bf16 %v368, %v367
      %v431 = vpack.c.bf16 %v370, %v369
      %v432 = vpack.c.bf16 %v372, %v371
      %v433 = vpack.c.bf16 %v374, %v373
      %v434 = vpack.c.bf16 %v376, %v375
      %v435 = vpack.c.bf16 %v378, %v377
      %v436 = vpack.c.bf16 %v380, %v379
      %v437 = vpack.c.bf16 %v382, %v381
      %v438 = vpack.c.bf16 %v384, %v383
      %v439 = vpack.c.bf16 %v386, %v385
      %v440 = vpack.c.bf16 %v388, %v387
      %v441 = vpack.c.bf16 %v390, %v389
      %v442 = vpack.c.bf16 %v392, %v391
      %v443 = vpack.c.bf16 %v394, %v393
      %v444 = vpack.c.bf16 %v396, %v395
      %v445 = vld [vmem:[%s1] sm:$0x3]
      %vm446 = vcmask 31744
      %v448 = vsel %vm446, %v429, 0
      %v451 = vsel %vm446, %v430, 0
      %v454 = vsel %vm446, %v431, 0
      %v457 = vsel %vm446, %v432, 0
      %v460 = vsel %vm446, %v433, 0
      %v463 = vsel %vm446, %v434, 0
      %v466 = vsel %vm446, %v435, 0
      %v469 = vsel %vm446, %v436, 0
      %v472 = vsel %vm446, %v437, 0
      %v475 = vsel %vm446, %v438, 0
      %v478 = vsel %vm446, %v439, 0
      %v481 = vsel %vm446, %v440, 0
      %v484 = vsel %vm446, %v441, 0
      %v487 = vsel %vm446, %v442, 0
      %v490 = vsel %vm446, %v443, 0
      %v493 = vsel %vm446, %v444, 0
      %vm495 = vcmask 1041408
      %v497 = vsel %vm495, %v445, 0
      %499 = vmatprep.subr.bf16.mxu0 0
      %500 = vmatpush1.bf16.msra.mxu0 %v497
      %501 = vmatprep.subr.bf16.mxu0 0
      %502 = vmatpush1.bf16.msra.mxu0 0
      %503 = vmatprep.subr.bf16.mxu0 0
      %504 = vmatpush1.bf16.msra.mxu0 0
      %505 = vmatprep.subr.bf16.mxu0 0
      %506 = vmatpush1.bf16.msra.mxu0 0
      %507 = vmatprep.subr.bf16.mxu0 0
      %508 = vmatpush1.bf16.msra.mxu0 0
      %509 = vmatprep.subr.bf16.mxu0 0
      %510 = vmatpush1.bf16.msra.mxu0 0
      %511 = vmatprep.subr.bf16.mxu0 0
      %512 = vmatpush1.bf16.msra.mxu0 0
      %513 = vmatprep.subr.bf16.mxu0 0
      %514 = vmatpush1.bf16.msra.mxu0 0
      %515 = vmatprep.subr.bf16.mxu0 0
      %516 = vmatpush1.bf16.msra.mxu0 0
      %517 = vmatprep.subr.bf16.mxu0 0
      %518 = vmatpush1.bf16.msra.mxu0 0
      %519 = vmatprep.subr.bf16.mxu0 0
      %520 = vmatpush1.bf16.msra.mxu0 0
      %521 = vmatprep.subr.bf16.mxu0 0
      %522 = vmatpush1.bf16.msra.mxu0 0
      %523 = vmatprep.subr.bf16.mxu0 0
      %524 = vmatpush1.bf16.msra.mxu0 0
      %525 = vmatprep.subr.bf16.mxu0 0
      %526 = vmatpush1.bf16.msra.mxu0 0
      %527 = vmatprep.subr.bf16.mxu0 0
      %528 = vmatpush1.bf16.msra.mxu0 0
      %529 = vmatprep.subr.bf16.mxu0 0
      %530 = vmatpush1.bf16.msra.mxu0 0
      %531 = vmatprep.mubr.bf16.mxu0 0
      %532 = vmatmul.mubr.bf16.gmra.mrb[0].mxu0 %v448
      %v533 = vpop.f32.mrb[0].mxu0
      %v534 = vadd.f32 0.0, %v533
      %v535 = vpop.f32.mrb[0].mxu0
      %v536 = vpop.f32.mrb[0].mxu0
      %v537 = vadd.f32 0.0, %v536
      %v538 = vpop.f32.mrb[0].mxu0
      %539 = vmatprep.mubr.bf16.mxu0 0
      %540 = vmatmul.mubr.bf16.gmra.mrb[0].mxu0 %v451
      %v541 = vpop.f32.mrb[0].mxu0
      %v542 = vadd.f32 0.0, %v541
      %v543 = vpop.f32.mrb[0].mxu0
      %v544 = vpop.f32.mrb[0].mxu0
      %v545 = vadd.f32 0.0, %v544
      %v546 = vpop.f32.mrb[0].mxu0
      %547 = vmatprep.mubr.bf16.mxu0 0
      %548 = vmatmul.mubr.bf16.gmra.mrb[0].mxu0 %v454
      %v549 = vpop.f32.mrb[0].mxu0
      %v550 = vadd.f32 0.0, %v549
      %v551 = vpop.f32.mrb[0].mxu0
      %v552 = vpop.f32.mrb[0].mxu0
      %v553 = vadd.f32 0.0, %v552
      %v554 = vpop.f32.mrb[0].mxu0
      %555 = vmatprep.mubr.bf16.mxu0 0
      %556 = vmatmul.mubr.bf16.gmra.mrb[0].mxu0 %v457
      %v557 = vpop.f32.mrb[0].mxu0
      %v558 = vadd.f32 0.0, %v557
      %v559 = vpop.f32.mrb[0].mxu0
      %v560 = vpop.f32.mrb[0].mxu0
      %v561 = vadd.f32 0.0, %v560
      %v562 = vpop.f32.mrb[0].mxu0
      %563 = vmatprep.mubr.bf16.mxu0 0
      %564 = vmatmul.mubr.bf16.gmra.mrb[0].mxu0 %v460
      %v565 = vpop.f32.mrb[0].mxu0
      %v566 = vadd.f32 0.0, %v565
      %v567 = vpop.f32.mrb[0].mxu0
      %v568 = vpop.f32.mrb[0].mxu0
      %v569 = vadd.f32 0.0, %v568
      %v570 = vpop.f32.mrb[0].mxu0
      %571 = vmatprep.mubr.bf16.mxu0 0
      %572 = vmatmul.mubr.bf16.gmra.mrb[0].mxu0 %v463
      %v573 = vpop.f32.mrb[0].mxu0
      %v574 = vadd.f32 0.0, %v573
      %v575 = vpop.f32.mrb[0].mxu0
      %v576 = vpop.f32.mrb[0].mxu0
      %v577 = vadd.f32 0.0, %v576
      %v578 = vpop.f32.mrb[0].mxu0
      %579 = vmatprep.mubr.bf16.mxu0 0
      %580 = vmatmul.mubr.bf16.gmra.mrb[0].mxu0 %v466
      %v581 = vpop.f32.mrb[0].mxu0
      %v582 = vadd.f32 0.0, %v581
      %v583 = vpop.f32.mrb[0].mxu0
      %v584 = vpop.f32.mrb[0].mxu0
      %v585 = vadd.f32 0.0, %v584
      %v586 = vpop.f32.mrb[0].mxu0
      %587 = vmatprep.mubr.bf16.mxu0 0
      %588 = vmatmul.mubr.bf16.gmra.mrb[0].mxu0 %v469
      %v589 = vpop.f32.mrb[0].mxu0
      %v590 = vadd.f32 0.0, %v589
      %v591 = vpop.f32.mrb[0].mxu0
      %v592 = vpop.f32.mrb[0].mxu0
      %v593 = vadd.f32 0.0, %v592
      %v594 = vpop.f32.mrb[0].mxu0
      %595 = vmatprep.mubr.bf16.mxu0 0
      %596 = vmatmul.mubr.bf16.gmra.mrb[0].mxu0 %v472
      %v597 = vpop.f32.mrb[0].mxu0
      %v598 = vadd.f32 0.0, %v597
      %v599 = vpop.f32.mrb[0].mxu0
      %v600 = vpop.f32.mrb[0].mxu0
      %v601 = vadd.f32 0.0, %v600
      %v602 = vpop.f32.mrb[0].mxu0
      %603 = vmatprep.mubr.bf16.mxu0 0
      %604 = vmatmul.mubr.bf16.gmra.mrb[0].mxu0 %v475
      %v605 = vpop.f32.mrb[0].mxu0
      %v606 = vadd.f32 0.0, %v605
      %v607 = vpop.f32.mrb[0].mxu0
      %v608 = vpop.f32.mrb[0].mxu0
      %v609 = vadd.f32 0.0, %v608
      %v610 = vpop.f32.mrb[0].mxu0
      %611 = vmatprep.mubr.bf16.mxu0 0
      %612 = vmatmul.mubr.bf16.gmra.mrb[0].mxu0 %v478
      %v613 = vpop.f32.mrb[0].mxu0
      %v614 = vadd.f32 0.0, %v613
      %v615 = vpop.f32.mrb[0].mxu0
      %v616 = vpop.f32.mrb[0].mxu0
      %v617 = vadd.f32 0.0, %v616
      %v618 = vpop.f32.mrb[0].mxu0
      %619 = vmatprep.mubr.bf16.mxu0 0
      %620 = vmatmul.mubr.bf16.gmra.mrb[0].mxu0 %v481
      %v621 = vpop.f32.mrb[0].mxu0
      %v622 = vadd.f32 0.0, %v621
      %v623 = vpop.f32.mrb[0].mxu0
      %v624 = vpop.f32.mrb[0].mxu0
      %v625 = vadd.f32 0.0, %v624
      %v626 = vpop.f32.mrb[0].mxu0
      %627 = vmatprep.mubr.bf16.mxu0 0
      %628 = vmatmul.mubr.bf16.gmra.mrb[0].mxu0 %v484
      %v629 = vpop.f32.mrb[0].mxu0
      %v630 = vadd.f32 0.0, %v629
      %v631 = vpop.f32.mrb[0].mxu0
      %v632 = vpop.f32.mrb[0].mxu0
      %v633 = vadd.f32 0.0, %v632
      %v634 = vpop.f32.mrb[0].mxu0
      %635 = vmatprep.mubr.bf16.mxu0 0
      %636 = vmatmul.mubr.bf16.gmra.mrb[0].mxu0 %v487
      %v637 = vpop.f32.mrb[0].mxu0
      %v638 = vadd.f32 0.0, %v637
      %v639 = vpop.f32.mrb[0].mxu0
      %v640 = vpop.f32.mrb[0].mxu0
      %v641 = vadd.f32 0.0, %v640
      %v642 = vpop.f32.mrb[0].mxu0
      %643 = vmatprep.mubr.bf16.mxu0 0
      %644 = vmatmul.mubr.bf16.gmra.mrb[0].mxu0 %v490
      %v645 = vpop.f32.mrb[0].mxu0
      %v646 = vadd.f32 0.0, %v645
      %v647 = vpop.f32.mrb[0].mxu0
      %v648 = vpop.f32.mrb[0].mxu0
      %v649 = vadd.f32 0.0, %v648
      %v650 = vpop.f32.mrb[0].mxu0
      %651 = vmatprep.mubr.bf16.mxu0 0
      %652 = vmatmul.mubr.bf16.gmra.mrb[0].mxu0 %v493
      %v653 = vpop.f32.mrb[0].mxu0
      %v654 = vadd.f32 0.0, %v653
      %v655 = vpop.f32.mrb[0].mxu0
      %v656 = vpop.f32.mrb[0].mxu0
      %v657 = vadd.f32 0.0, %v656
      %v658 = vpop.f32.mrb[0].mxu0
      %659 = vdwg.mxu0
      %v660 = vadd.f32 %v397, %v534
      %v661 = vadd.f32 %v398, %v537
      %v662 = vadd.f32 %v399, %v542
      %v663 = vadd.f32 %v400, %v545
      %v664 = vadd.f32 %v401, %v550
      %v665 = vadd.f32 %v402, %v553
      %v666 = vadd.f32 %v403, %v558
      %v667 = vadd.f32 %v404, %v561
      %v668 = vadd.f32 %v405, %v566
      %v669 = vadd.f32 %v406, %v569
      %v670 = vadd.f32 %v407, %v574
      %v671 = vadd.f32 %v408, %v577
      %v672 = vadd.f32 %v409, %v582
      %v673 = vadd.f32 %v410, %v585
      %v674 = vadd.f32 %v411, %v590
      %v675 = vadd.f32 %v412, %v593
      %v676 = vadd.f32 %v413, %v598
      %v677 = vadd.f32 %v414, %v601
      %v678 = vadd.f32 %v415, %v606
      %v679 = vadd.f32 %v416, %v609
      %v680 = vadd.f32 %v417, %v614
      %v681 = vadd.f32 %v418, %v617
      %v682 = vadd.f32 %v419, %v622
      %v683 = vadd.f32 %v420, %v625
      %v684 = vadd.f32 %v421, %v630
      %v685 = vadd.f32 %v422, %v633
      %v686 = vadd.f32 %v423, %v638
      %v687 = vadd.f32 %v424, %v641
      %v688 = vadd.f32 %v425, %v646
      %v689 = vadd.f32 %v426, %v649
      %v690 = vadd.f32 %v427, %v654
      %v691 = vadd.f32 %v428, %v657
      %692 = vst.msk [vmem:[#allocation2] sm:$0xff] %vm332, %v660
      %693 = vst.msk [vmem:[#allocation2 + $0x8] sm:$0xff] %vm332, %v661
      %694 = vst.msk [vmem:[#allocation2 + $0x10] sm:$0xff] %vm332, %v662
      %695 = vst.msk [vmem:[#allocation2 + $0x18] sm:$0xff] %vm332, %v663
      %696 = vst.msk [vmem:[#allocation2 + $0x20] sm:$0xff] %vm332, %v664
      %697 = vst.msk [vmem:[#allocation2 + $0x28] sm:$0xff] %vm332, %v665
      %698 = vst.msk [vmem:[#allocation2 + $0x30] sm:$0xff] %vm332, %v666
      %699 = vst.msk [vmem:[#allocation2 + $0x38] sm:$0xff] %vm332, %v667
      %700 = vst.msk [vmem:[#allocation2 + $0x40] sm:$0xff] %vm332, %v668
      %701 = vst.msk [vmem:[#allocation2 + $0x48] sm:$0xff] %vm332, %v669
      %702 = vst.msk [vmem:[#allocation2 + $0x50] sm:$0xff] %vm332, %v670
      %703 = vst.msk [vmem:[#allocation2 + $0x58] sm:$0xff] %vm332, %v671
      %704 = vst.msk [vmem:[#allocation2 + $0x60] sm:$0xff] %vm332, %v672
      %705 = vst.msk [vmem:[#allocation2 + $0x68] sm:$0xff] %vm332, %v673
      %706 = vst.msk [vmem:[#allocation2 + $0x70] sm:$0xff] %vm332, %v674
      %707 = vst.msk [vmem:[#allocation2 + $0x78] sm:$0xff] %vm332, %v675
      %708 = vst.msk [vmem:[#allocation2 + $0x80] sm:$0xff] %vm332, %v676
      %709 = vst.msk [vmem:[#allocation2 + $0x88] sm:$0xff] %vm332, %v677
      %710 = vst.msk [vmem:[#allocation2 + $0x90] sm:$0xff] %vm332, %v678
      %711 = vst.msk [vmem:[#allocation2 + $0x98] sm:$0xff] %vm332, %v679
      %712 = vst.msk [vmem:[#allocation2 + $0xa0] sm:$0xff] %vm332, %v680
      %713 = vst.msk [vmem:[#allocation2 + $0xa8] sm:$0xff] %vm332, %v681
      %714 = vst.msk [vmem:[#allocation2 + $0xb0] sm:$0xff] %vm332, %v682
      %715 = vst.msk [vmem:[#allocation2 + $0xb8] sm:$0xff] %vm332, %v683
      %716 = vst.msk [vmem:[#allocation2 + $0xc0] sm:$0xff] %vm332, %v684
      %717 = vst.msk [vmem:[#allocation2 + $0xc8] sm:$0xff] %vm332, %v685
      %718 = vst.msk [vmem:[#allocation2 + $0xd0] sm:$0xff] %vm332, %v686
      %719 = vst.msk [vmem:[#allocation2 + $0xd8] sm:$0xff] %vm332, %v687
      %720 = vst.msk [vmem:[#allocation2 + $0xe0] sm:$0xff] %vm332, %v688
      %721 = vst.msk [vmem:[#allocation2 + $0xe8] sm:$0xff] %vm332, %v689
      %722 = vst.msk [vmem:[#allocation2 + $0xf0] sm:$0xff] %vm332, %v690
      %723 = vst.msk [vmem:[#allocation2 + $0xf8] sm:$0xff] %vm332, %v691
      %v724 = vld [vmem:[%s326 + $0x1] sm:$0xff]
      %v725 = vld [vmem:[%s326 + $0x9] sm:$0xff]
      %v726 = vld [vmem:[%s326 + $0x19] sm:$0xff]
      %v727 = vld [vmem:[%s326 + $0x21] sm:$0xff]
      %v728 = vld [vmem:[%s326 + $0x31] sm:$0xff]
      %v729 = vld [vmem:[%s326 + $0x39] sm:$0xff]
      %v730 = vld [vmem:[%s326 + $0x49] sm:$0xff]
      %v731 = vld [vmem:[%s326 + $0x51] sm:$0xff]
      %v732 = vld [vmem:[%s326 + $0x61] sm:$0xff]
      %v733 = vld [vmem:[%s326 + $0x69] sm:$0xff]
      %v734 = vld [vmem:[%s326 + $0x79] sm:$0xff]
      %v735 = vld [vmem:[%s326 + $0x81] sm:$0xff]
      %v736 = vld [vmem:[%s326 + $0x91] sm:$0xff]
      %v737 = vld [vmem:[%s326 + $0x99] sm:$0xff]
      %v738 = vld [vmem:[%s326 + $0xa9] sm:$0xff]
      %v739 = vld [vmem:[%s326 + $0xb1] sm:$0xff]
      %v740 = vld [vmem:[%s326 + $0xc1] sm:$0xff]
      %v741 = vld [vmem:[%s326 + $0xc9] sm:$0xff]
      %v742 = vld [vmem:[%s326 + $0xd9] sm:$0xff]
      %v743 = vld [vmem:[%s326 + $0xe1] sm:$0xff]
      %v744 = vld [vmem:[%s326 + $0xf1] sm:$0xff]
      %v745 = vld [vmem:[%s326 + $0xf9] sm:$0xff]
      %v746 = vld [vmem:[%s326 + $0x109] sm:$0xff]
      %v747 = vld [vmem:[%s326 + $0x111] sm:$0xff]
      %v748 = vld [vmem:[%s326 + $0x121] sm:$0xff]
      %v749 = vld [vmem:[%s326 + $0x129] sm:$0xff]
      %v750 = vld [vmem:[%s326 + $0x139] sm:$0xff]
      %v751 = vld [vmem:[%s326 + $0x141] sm:$0xff]
      %v752 = vld [vmem:[%s326 + $0x151] sm:$0xff]
      %v753 = vld [vmem:[%s326 + $0x159] sm:$0xff]
      %v754 = vld [vmem:[%s326 + $0x169] sm:$0xff]
      %v755 = vld [vmem:[%s326 + $0x171] sm:$0xff]
      %v756 = vld [vmem:[#allocation2] sm:$0xff]
      %v757 = vld [vmem:[#allocation2 + $0x8] sm:$0xff]
      %v758 = vld [vmem:[#allocation2 + $0x10] sm:$0xff]
      %v759 = vld [vmem:[#allocation2 + $0x18] sm:$0xff]
      %v760 = vld [vmem:[#allocation2 + $0x20] sm:$0xff]
      %v761 = vld [vmem:[#allocation2 + $0x28] sm:$0xff]
      %v762 = vld [vmem:[#allocation2 + $0x30] sm:$0xff]
      %v763 = vld [vmem:[#allocation2 + $0x38] sm:$0xff]
      %v764 = vld [vmem:[#allocation2 + $0x40] sm:$0xff]
      %v765 = vld [vmem:[#allocation2 + $0x48] sm:$0xff]
      %v766 = vld [vmem:[#allocation2 + $0x50] sm:$0xff]
      %v767 = vld [vmem:[#allocation2 + $0x58] sm:$0xff]
      %v768 = vld [vmem:[#allocation2 + $0x60] sm:$0xff]
      %v769 = vld [vmem:[#allocation2 + $0x68] sm:$0xff]
      %v770 = vld [vmem:[#allocation2 + $0x70] sm:$0xff]
      %v771 = vld [vmem:[#allocation2 + $0x78] sm:$0xff]
      %v772 = vld [vmem:[#allocation2 + $0x80] sm:$0xff]
      %v773 = vld [vmem:[#allocation2 + $0x88] sm:$0xff]
      %v774 = vld [vmem:[#allocation2 + $0x90] sm:$0xff]
      %v775 = vld [vmem:[#allocation2 + $0x98] sm:$0xff]
      %v776 = vld [vmem:[#allocation2 + $0xa0] sm:$0xff]
      %v777 = vld [vmem:[#allocation2 + $0xa8] sm:$0xff]
      %v778 = vld [vmem:[#allocation2 + $0xb0] sm:$0xff]
      %v779 = vld [vmem:[#allocation2 + $0xb8] sm:$0xff]
      %v780 = vld [vmem:[#allocation2 + $0xc0] sm:$0xff]
      %v781 = vld [vmem:[#allocation2 + $0xc8] sm:$0xff]
      %v782 = vld [vmem:[#allocation2 + $0xd0] sm:$0xff]
      %v783 = vld [vmem:[#allocation2 + $0xd8] sm:$0xff]
      %v784 = vld [vmem:[#allocation2 + $0xe0] sm:$0xff]
      %v785 = vld [vmem:[#allocation2 + $0xe8] sm:$0xff]
      %v786 = vld [vmem:[#allocation2 + $0xf0] sm:$0xff]
      %v787 = vld [vmem:[#allocation2 + $0xf8] sm:$0xff]
      %v788 = vpack.c.bf16 %v725, %v724
      %v789 = vpack.c.bf16 %v727, %v726
      %v790 = vpack.c.bf16 %v729, %v728
      %v791 = vpack.c.bf16 %v731, %v730
      %v792 = vpack.c.bf16 %v733, %v732
      %v793 = vpack.c.bf16 %v735, %v734
      %v794 = vpack.c.bf16 %v737, %v736
      %v795 = vpack.c.bf16 %v739, %v738
      %v796 = vpack.c.bf16 %v741, %v740
      %v797 = vpack.c.bf16 %v743, %v742
      %v798 = vpack.c.bf16 %v745, %v744
      %v799 = vpack.c.bf16 %v747, %v746
      %v800 = vpack.c.bf16 %v749, %v748
      %v801 = vpack.c.bf16 %v751, %v750
      %v802 = vpack.c.bf16 %v753, %v752
      %v803 = vpack.c.bf16 %v755, %v754
      %s804 = scalar_lea.vmem %s1, 2
      %v805 = vld [vmem:[%s804] sm:$0x3]
      %v807 = vsel %vm446, %v788, 0
      %v810 = vsel %vm446, %v789, 0
      %v813 = vsel %vm446, %v790, 0
      %v816 = vsel %vm446, %v791, 0
      %v819 = vsel %vm446, %v792, 0
      %v822 = vsel %vm446, %v793, 0
      %v825 = vsel %vm446, %v794, 0
      %v828 = vsel %vm446, %v795, 0
      %v831 = vsel %vm446, %v796, 0
      %v834 = vsel %vm446, %v797, 0
      %v837 = vsel %vm446, %v798, 0
      %v840 = vsel %vm446, %v799, 0
      %v843 = vsel %vm446, %v800, 0
      %v846 = vsel %vm446, %v801, 0
      %v849 = vsel %vm446, %v802, 0
      %v852 = vsel %vm446, %v803, 0
      %v855 = vsel %vm495, %v805, 0
      %857 = vmatprep.subr.bf16.mxu0 0
      %858 = vmatpush1.bf16.msra.mxu0 %v855
      %859 = vmatprep.subr.bf16.mxu0 0
      %860 = vmatpush1.bf16.msra.mxu0 0
      %861 = vmatprep.subr.bf16.mxu0 0
      %862 = vmatpush1.bf16.msra.mxu0 0
      %863 = vmatprep.subr.bf16.mxu0 0
      %864 = vmatpush1.bf16.msra.mxu0 0
      %865 = vmatprep.subr.bf16.mxu0 0
      %866 = vmatpush1.bf16.msra.mxu0 0
      %867 = vmatprep.subr.bf16.mxu0 0
      %868 = vmatpush1.bf16.msra.mxu0 0
      %869 = vmatprep.subr.bf16.mxu0 0
      %870 = vmatpush1.bf16.msra.mxu0 0
      %871 = vmatprep.subr.bf16.mxu0 0
      %872 = vmatpush1.bf16.msra.mxu0 0
      %873 = vmatprep.subr.bf16.mxu0 0
      %874 = vmatpush1.bf16.msra.mxu0 0
      %875 = vmatprep.subr.bf16.mxu0 0
      %876 = vmatpush1.bf16.msra.mxu0 0
      %877 = vmatprep.subr.bf16.mxu0 0
      %878 = vmatpush1.bf16.msra.mxu0 0
      %879 = vmatprep.subr.bf16.mxu0 0
      %880 = vmatpush1.bf16.msra.mxu0 0
      %881 = vmatprep.subr.bf16.mxu0 0
      %882 = vmatpush1.bf16.msra.mxu0 0
      %883 = vmatprep.subr.bf16.mxu0 0
      %884 = vmatpush1.bf16.msra.mxu0 0
      %885 = vmatprep.subr.bf16.mxu0 0
      %886 = vmatpush1.bf16.msra.mxu0 0
      %887 = vmatprep.subr.bf16.mxu0 0
      %888 = vmatpush1.bf16.msra.mxu0 0
      %889 = vmatprep.mubr.bf16.mxu0 0
      %890 = vmatmul.mubr.bf16.gmra.mrb[0].mxu0 %v807
      %v891 = vpop.f32.mrb[0].mxu0
      %v892 = vadd.f32 0.0, %v891
      %v893 = vpop.f32.mrb[0].mxu0
      %v894 = vpop.f32.mrb[0].mxu0
      %v895 = vadd.f32 0.0, %v894
      %v896 = vpop.f32.mrb[0].mxu0
      %897 = vmatprep.mubr.bf16.mxu0 0
      %898 = vmatmul.mubr.bf16.gmra.mrb[0].mxu0 %v810
      %v899 = vpop.f32.mrb[0].mxu0
      %v900 = vadd.f32 0.0, %v899
      %v901 = vpop.f32.mrb[0].mxu0
      %v902 = vpop.f32.mrb[0].mxu0
      %v903 = vadd.f32 0.0, %v902
      %v904 = vpop.f32.mrb[0].mxu0
      %905 = vmatprep.mubr.bf16.mxu0 0
      %906 = vmatmul.mubr.bf16.gmra.mrb[0].mxu0 %v813
      %v907 = vpop.f32.mrb[0].mxu0
      %v908 = vadd.f32 0.0, %v907
      %v909 = vpop.f32.mrb[0].mxu0
      %v910 = vpop.f32.mrb[0].mxu0
      %v911 = vadd.f32 0.0, %v910
      %v912 = vpop.f32.mrb[0].mxu0
      %913 = vmatprep.mubr.bf16.mxu0 0
      %914 = vmatmul.mubr.bf16.gmra.mrb[0].mxu0 %v816
      %v915 = vpop.f32.mrb[0].mxu0
      %v916 = vadd.f32 0.0, %v915
      %v917 = vpop.f32.mrb[0].mxu0
      %v918 = vpop.f32.mrb[0].mxu0
      %v919 = vadd.f32 0.0, %v918
      %v920 = vpop.f32.mrb[0].mxu0
      %921 = vmatprep.mubr.bf16.mxu0 0
      %922 = vmatmul.mubr.bf16.gmra.mrb[0].mxu0 %v819
      %v923 = vpop.f32.mrb[0].mxu0
      %v924 = vadd.f32 0.0, %v923
      %v925 = vpop.f32.mrb[0].mxu0
      %v926 = vpop.f32.mrb[0].mxu0
      %v927 = vadd.f32 0.0, %v926
      %v928 = vpop.f32.mrb[0].mxu0
      %929 = vmatprep.mubr.bf16.mxu0 0
      %930 = vmatmul.mubr.bf16.gmra.mrb[0].mxu0 %v822
      %v931 = vpop.f32.mrb[0].mxu0
      %v932 = vadd.f32 0.0, %v931
      %v933 = vpop.f32.mrb[0].mxu0
      %v934 = vpop.f32.mrb[0].mxu0
      %v935 = vadd.f32 0.0, %v934
      %v936 = vpop.f32.mrb[0].mxu0
      %937 = vmatprep.mubr.bf16.mxu0 0
      %938 = vmatmul.mubr.bf16.gmra.mrb[0].mxu0 %v825
      %v939 = vpop.f32.mrb[0].mxu0
      %v940 = vadd.f32 0.0, %v939
      %v941 = vpop.f32.mrb[0].mxu0
      %v942 = vpop.f32.mrb[0].mxu0
      %v943 = vadd.f32 0.0, %v942
      %v944 = vpop.f32.mrb[0].mxu0
      %945 = vmatprep.mubr.bf16.mxu0 0
      %946 = vmatmul.mubr.bf16.gmra.mrb[0].mxu0 %v828
      %v947 = vpop.f32.mrb[0].mxu0
      %v948 = vadd.f32 0.0, %v947
      %v949 = vpop.f32.mrb[0].mxu0
      %v950 = vpop.f32.mrb[0].mxu0
      %v951 = vadd.f32 0.0, %v950
      %v952 = vpop.f32.mrb[0].mxu0
      %953 = vmatprep.mubr.bf16.mxu0 0
      %954 = vmatmul.mubr.bf16.gmra.mrb[0].mxu0 %v831
      %v955 = vpop.f32.mrb[0].mxu0
      %v956 = vadd.f32 0.0, %v955
      %v957 = vpop.f32.mrb[0].mxu0
      %v958 = vpop.f32.mrb[0].mxu0
      %v959 = vadd.f32 0.0, %v958
      %v960 = vpop.f32.mrb[0].mxu0
      %961 = vmatprep.mubr.bf16.mxu0 0
      %962 = vmatmul.mubr.bf16.gmra.mrb[0].mxu0 %v834
      %v963 = vpop.f32.mrb[0].mxu0
      %v964 = vadd.f32 0.0, %v963
      %v965 = vpop.f32.mrb[0].mxu0
      %v966 = vpop.f32.mrb[0].mxu0
      %v967 = vadd.f32 0.0, %v966
      %v968 = vpop.f32.mrb[0].mxu0
      %969 = vmatprep.mubr.bf16.mxu0 0
      %970 = vmatmul.mubr.bf16.gmra.mrb[0].mxu0 %v837
      %v971 = vpop.f32.mrb[0].mxu0
      %v972 = vadd.f32 0.0, %v971
      %v973 = vpop.f32.mrb[0].mxu0
      %v974 = vpop.f32.mrb[0].mxu0
      %v975 = vadd.f32 0.0, %v974
      %v976 = vpop.f32.mrb[0].mxu0
      %977 = vmatprep.mubr.bf16.mxu0 0
      %978 = vmatmul.mubr.bf16.gmra.mrb[0].mxu0 %v840
      %v979 = vpop.f32.mrb[0].mxu0
      %v980 = vadd.f32 0.0, %v979
      %v981 = vpop.f32.mrb[0].mxu0
      %v982 = vpop.f32.mrb[0].mxu0
      %v983 = vadd.f32 0.0, %v982
      %v984 = vpop.f32.mrb[0].mxu0
      %985 = vmatprep.mubr.bf16.mxu0 0
      %986 = vmatmul.mubr.bf16.gmra.mrb[0].mxu0 %v843
      %v987 = vpop.f32.mrb[0].mxu0
      %v988 = vadd.f32 0.0, %v987
      %v989 = vpop.f32.mrb[0].mxu0
      %v990 = vpop.f32.mrb[0].mxu0
      %v991 = vadd.f32 0.0, %v990
      %v992 = vpop.f32.mrb[0].mxu0
      %993 = vmatprep.mubr.bf16.mxu0 0
      %994 = vmatmul.mubr.bf16.gmra.mrb[0].mxu0 %v846
      %v995 = vpop.f32.mrb[0].mxu0
      %v996 = vadd.f32 0.0, %v995
      %v997 = vpop.f32.mrb[0].mxu0
      %v998 = vpop.f32.mrb[0].mxu0
      %v999 = vadd.f32 0.0, %v998
      %v1000 = vpop.f32.mrb[0].mxu0
      %1001 = vmatprep.mubr.bf16.mxu0 0
      %1002 = vmatmul.mubr.bf16.gmra.mrb[0].mxu0 %v849
      %v1003 = vpop.f32.mrb[0].mxu0
      %v1004 = vadd.f32 0.0, %v1003
      %v1005 = vpop.f32.mrb[0].mxu0
      %v1006 = vpop.f32.mrb[0].mxu0
      %v1007 = vadd.f32 0.0, %v1006
      %v1008 = vpop.f32.mrb[0].mxu0
      %1009 = vmatprep.mubr.bf16.mxu0 0
      %1010 = vmatmul.mubr.bf16.gmra.mrb[0].mxu0 %v852
      %v1011 = vpop.f32.mrb[0].mxu0
      %v1012 = vadd.f32 0.0, %v1011
      %v1013 = vpop.f32.mrb[0].mxu0
      %v1014 = vpop.f32.mrb[0].mxu0
      %v1015 = vadd.f32 0.0, %v1014
      %v1016 = vpop.f32.mrb[0].mxu0
      %1017 = vdwg.mxu0
      %v1018 = vadd.f32 %v756, %v892
      %v1019 = vadd.f32 %v757, %v895
      %v1020 = vadd.f32 %v758, %v900
      %v1021 = vadd.f32 %v759, %v903
      %v1022 = vadd.f32 %v760, %v908
      %v1023 = vadd.f32 %v761, %v911
      %v1024 = vadd.f32 %v762, %v916
      %v1025 = vadd.f32 %v763, %v919
      %v1026 = vadd.f32 %v764, %v924
      %v1027 = vadd.f32 %v765, %v927
      %v1028 = vadd.f32 %v766, %v932
      %v1029 = vadd.f32 %v767, %v935
      %v1030 = vadd.f32 %v768, %v940
      %v1031 = vadd.f32 %v769, %v943
      %v1032 = vadd.f32 %v770, %v948
      %v1033 = vadd.f32 %v771, %v951
      %v1034 = vadd.f32 %v772, %v956
      %v1035 = vadd.f32 %v773, %v959
      %v1036 = vadd.f32 %v774, %v964
      %v1037 = vadd.f32 %v775, %v967
      %v1038 = vadd.f32 %v776, %v972
      %v1039 = vadd.f32 %v777, %v975
      %v1040 = vadd.f32 %v778, %v980
      %v1041 = vadd.f32 %v779, %v983
      %v1042 = vadd.f32 %v780, %v988
      %v1043 = vadd.f32 %v781, %v991
      %v1044 = vadd.f32 %v782, %v996
      %v1045 = vadd.f32 %v783, %v999
      %v1046 = vadd.f32 %v784, %v1004
      %v1047 = vadd.f32 %v785, %v1007
      %v1048 = vadd.f32 %v786, %v1012
      %v1049 = vadd.f32 %v787, %v1015
      %1050 = vst.msk [vmem:[#allocation2] sm:$0xff] %vm332, %v1018
      %1051 = vst.msk [vmem:[#allocation2 + $0x8] sm:$0xff] %vm332, %v1019
      %1052 = vst.msk [vmem:[#allocation2 + $0x10] sm:$0xff] %vm332, %v1020
      %1053 = vst.msk [vmem:[#allocation2 + $0x18] sm:$0xff] %vm332, %v1021
      %1054 = vst.msk [vmem:[#allocation2 + $0x20] sm:$0xff] %vm332, %v1022
      %1055 = vst.msk [vmem:[#allocation2 + $0x28] sm:$0xff] %vm332, %v1023
      %1056 = vst.msk [vmem:[#allocation2 + $0x30] sm:$0xff] %vm332, %v1024
      %1057 = vst.msk [vmem:[#allocation2 + $0x38] sm:$0xff] %vm332, %v1025
      %1058 = vst.msk [vmem:[#allocation2 + $0x40] sm:$0xff] %vm332, %v1026
      %1059 = vst.msk [vmem:[#allocation2 + $0x48] sm:$0xff] %vm332, %v1027
      %1060 = vst.msk [vmem:[#allocation2 + $0x50] sm:$0xff] %vm332, %v1028
      %1061 = vst.msk [vmem:[#allocation2 + $0x58] sm:$0xff] %vm332, %v1029
      %1062 = vst.msk [vmem:[#allocation2 + $0x60] sm:$0xff] %vm332, %v1030
      %1063 = vst.msk [vmem:[#allocation2 + $0x68] sm:$0xff] %vm332, %v1031
      %1064 = vst.msk [vmem:[#allocation2 + $0x70] sm:$0xff] %vm332, %v1032
      %1065 = vst.msk [vmem:[#allocation2 + $0x78] sm:$0xff] %vm332, %v1033
      %1066 = vst.msk [vmem:[#allocation2 + $0x80] sm:$0xff] %vm332, %v1034
      %1067 = vst.msk [vmem:[#allocation2 + $0x88] sm:$0xff] %vm332, %v1035
      %1068 = vst.msk [vmem:[#allocation2 + $0x90] sm:$0xff] %vm332, %v1036
      %1069 = vst.msk [vmem:[#allocation2 + $0x98] sm:$0xff] %vm332, %v1037
      %1070 = vst.msk [vmem:[#allocation2 + $0xa0] sm:$0xff] %vm332, %v1038
      %1071 = vst.msk [vmem:[#allocation2 + $0xa8] sm:$0xff] %vm332, %v1039
      %1072 = vst.msk [vmem:[#allocation2 + $0xb0] sm:$0xff] %vm332, %v1040
      %1073 = vst.msk [vmem:[#allocation2 + $0xb8] sm:$0xff] %vm332, %v1041
      %1074 = vst.msk [vmem:[#allocation2 + $0xc0] sm:$0xff] %vm332, %v1042
      %1075 = vst.msk [vmem:[#allocation2 + $0xc8] sm:$0xff] %vm332, %v1043
      %1076 = vst.msk [vmem:[#allocation2 + $0xd0] sm:$0xff] %vm332, %v1044
      %1077 = vst.msk [vmem:[#allocation2 + $0xd8] sm:$0xff] %vm332, %v1045
      %1078 = vst.msk [vmem:[#allocation2 + $0xe0] sm:$0xff] %vm332, %v1046
      %1079 = vst.msk [vmem:[#allocation2 + $0xe8] sm:$0xff] %vm332, %v1047
      %1080 = vst.msk [vmem:[#allocation2 + $0xf0] sm:$0xff] %vm332, %v1048
      %1081 = vst.msk [vmem:[#allocation2 + $0xf8] sm:$0xff] %vm332, %v1049
      %v1082 = vld [vmem:[%s326 + $0x2] sm:$0xff]
      %v1083 = vld [vmem:[%s326 + $0xa] sm:$0xff]
      %v1084 = vld [vmem:[%s326 + $0x1a] sm:$0xff]
      %v1085 = vld [vmem:[%s326 + $0x22] sm:$0xff]
      %v1086 = vld [vmem:[%s326 + $0x32] sm:$0xff]
      %v1087 = vld [vmem:[%s326 + $0x3a] sm:$0xff]
      %v1088 = vld [vmem:[%s326 + $0x4a] sm:$0xff]
      %v1089 = vld [vmem:[%s326 + $0x52] sm:$0xff]
      %v1090 = vld [vmem:[%s326 + $0x62] sm:$0xff]
      %v1091 = vld [vmem:[%s326 + $0x6a] sm:$0xff]
      %v1092 = vld [vmem:[%s326 + $0x7a] sm:$0xff]
      %v1093 = vld [vmem:[%s326 + $0x82] sm:$0xff]
      %v1094 = vld [vmem:[%s326 + $0x92] sm:$0xff]
      %v1095 = vld [vmem:[%s326 + $0x9a] sm:$0xff]
      %v1096 = vld [vmem:[%s326 + $0xaa] sm:$0xff]
      %v1097 = vld [vmem:[%s326 + $0xb2] sm:$0xff]
      %v1098 = vld [vmem:[%s326 + $0xc2] sm:$0xff]
      %v1099 = vld [vmem:[%s326 + $0xca] sm:$0xff]
      %v1100 = vld [vmem:[%s326 + $0xda] sm:$0xff]
      %v1101 = vld [vmem:[%s326 + $0xe2] sm:$0xff]
      %v1102 = vld [vmem:[%s326 + $0xf2] sm:$0xff]
      %v1103 = vld [vmem:[%s326 + $0xfa] sm:$0xff]
      %v1104 = vld [vmem:[%s326 + $0x10a] sm:$0xff]
      %v1105 = vld [vmem:[%s326 + $0x112] sm:$0xff]
      %v1106 = vld [vmem:[%s326 + $0x122] sm:$0xff]
      %v1107 = vld [vmem:[%s326 + $0x12a] sm:$0xff]
      %v1108 = vld [vmem:[%s326 + $0x13a] sm:$0xff]
      %v1109 = vld [vmem:[%s326 + $0x142] sm:$0xff]
      %v1110 = vld [vmem:[%s326 + $0x152] sm:$0xff]
      %v1111 = vld [vmem:[%s326 + $0x15a] sm:$0xff]
      %v1112 = vld [vmem:[%s326 + $0x16a] sm:$0xff]
      %v1113 = vld [vmem:[%s326 + $0x172] sm:$0xff]
      %v1114 = vld [vmem:[#allocation2] sm:$0xff]
      %v1115 = vld [vmem:[#allocation2 + $0x8] sm:$0xff]
      %v1116 = vld [vmem:[#allocation2 + $0x10] sm:$0xff]
      %v1117 = vld [vmem:[#allocation2 + $0x18] sm:$0xff]
      %v1118 = vld [vmem:[#allocation2 + $0x20] sm:$0xff]
      %v1119 = vld [vmem:[#allocation2 + $0x28] sm:$0xff]
      %v1120 = vld [vmem:[#allocation2 + $0x30] sm:$0xff]
      %v1121 = vld [vmem:[#allocation2 + $0x38] sm:$0xff]
      %v1122 = vld [vmem:[#allocation2 + $0x40] sm:$0xff]
      %v1123 = vld [vmem:[#allocation2 + $0x48] sm:$0xff]
      %v1124 = vld [vmem:[#allocation2 + $0x50] sm:$0xff]
      %v1125 = vld [vmem:[#allocation2 + $0x58] sm:$0xff]
      %v1126 = vld [vmem:[#allocation2 + $0x60] sm:$0xff]
      %v1127 = vld [vmem:[#allocation2 + $0x68] sm:$0xff]
      %v1128 = vld [vmem:[#allocation2 + $0x70] sm:$0xff]
      %v1129 = vld [vmem:[#allocation2 + $0x78] sm:$0xff]
      %v1130 = vld [vmem:[#allocation2 + $0x80] sm:$0xff]
      %v1131 = vld [vmem:[#allocation2 + $0x88] sm:$0xff]
      %v1132 = vld [vmem:[#allocation2 + $0x90] sm:$0xff]
      %v1133 = vld [vmem:[#allocation2 + $0x98] sm:$0xff]
      %v1134 = vld [vmem:[#allocation2 + $0xa0] sm:$0xff]
      %v1135 = vld [vmem:[#allocation2 + $0xa8] sm:$0xff]
      %v1136 = vld [vmem:[#allocation2 + $0xb0] sm:$0xff]
      %v1137 = vld [vmem:[#allocation2 + $0xb8] sm:$0xff]
      %v1138 = vld [vmem:[#allocation2 + $0xc0] sm:$0xff]
      %v1139 = vld [vmem:[#allocation2 + $0xc8] sm:$0xff]
      %v1140 = vld [vmem:[#allocation2 + $0xd0] sm:$0xff]
      %v1141 = vld [vmem:[#allocation2 + $0xd8] sm:$0xff]
      %v1142 = vld [vmem:[#allocation2 + $0xe0] sm:$0xff]
      %v1143 = vld [vmem:[#allocation2 + $0xe8] sm:$0xff]
      %v1144 = vld [vmem:[#allocation2 + $0xf0] sm:$0xff]
      %v1145 = vld [vmem:[#allocation2 + $0xf8] sm:$0xff]
      %v1146 = vpack.c.bf16 %v1083, %v1082
      %v1147 = vpack.c.bf16 %v1085, %v1084
      %v1148 = vpack.c.bf16 %v1087, %v1086
      %v1149 = vpack.c.bf16 %v1089, %v1088
      %v1150 = vpack.c.bf16 %v1091, %v1090
      %v1151 = vpack.c.bf16 %v1093, %v1092
      %v1152 = vpack.c.bf16 %v1095, %v1094
      %v1153 = vpack.c.bf16 %v1097, %v1096
      %v1154 = vpack.c.bf16 %v1099, %v1098
      %v1155 = vpack.c.bf16 %v1101, %v1100
      %v1156 = vpack.c.bf16 %v1103, %v1102
      %v1157 = vpack.c.bf16 %v1105, %v1104
      %v1158 = vpack.c.bf16 %v1107, %v1106
      %v1159 = vpack.c.bf16 %v1109, %v1108
      %v1160 = vpack.c.bf16 %v1111, %v1110
      %v1161 = vpack.c.bf16 %v1113, %v1112
      %s1162 = scalar_lea.vmem %s1, 4
      %v1163 = vld [vmem:[%s1162] sm:$0x3]
      %v1165 = vsel %vm446, %v1146, 0
      %v1168 = vsel %vm446, %v1147, 0
      %v1171 = vsel %vm446, %v1148, 0
      %v1174 = vsel %vm446, %v1149, 0
      %v1177 = vsel %vm446, %v1150, 0
      %v1180 = vsel %vm446, %v1151, 0
      %v1183 = vsel %vm446, %v1152, 0
      %v1186 = vsel %vm446, %v1153, 0
      %v1189 = vsel %vm446, %v1154, 0
      %v1192 = vsel %vm446, %v1155, 0
      %v1195 = vsel %vm446, %v1156, 0
      %v1198 = vsel %vm446, %v1157, 0
      %v1201 = vsel %vm446, %v1158, 0
      %v1204 = vsel %vm446, %v1159, 0
      %v1207 = vsel %vm446, %v1160, 0
      %v1210 = vsel %vm446, %v1161, 0
      %v1213 = vsel %vm495, %v1163, 0
      %1215 = vmatprep.subr.bf16.mxu0 0
      %1216 = vmatpush1.bf16.msra.mxu0 %v1213
      %1217 = vmatprep.subr.bf16.mxu0 0
      %1218 = vmatpush1.bf16.msra.mxu0 0
      %1219 = vmatprep.subr.bf16.mxu0 0
      %1220 = vmatpush1.bf16.msra.mxu0 0
      %1221 = vmatprep.subr.bf16.mxu0 0
      %1222 = vmatpush1.bf16.msra.mxu0 0
      %1223 = vmatprep.subr.bf16.mxu0 0
      %1224 = vmatpush1.bf16.msra.mxu0 0
      %1225 = vmatprep.subr.bf16.mxu0 0
      %1226 = vmatpush1.bf16.msra.mxu0 0
      %1227 = vmatprep.subr.bf16.mxu0 0
      %1228 = vmatpush1.bf16.msra.mxu0 0
      %1229 = vmatprep.subr.bf16.mxu0 0
      %1230 = vmatpush1.bf16.msra.mxu0 0
      %1231 = vmatprep.subr.bf16.mxu0 0
      %1232 = vmatpush1.bf16.msra.mxu0 0
      %1233 = vmatprep.subr.bf16.mxu0 0
      %1234 = vmatpush1.bf16.msra.mxu0 0
      %1235 = vmatprep.subr.bf16.mxu0 0
      %1236 = vmatpush1.bf16.msra.mxu0 0
      %1237 = vmatprep.subr.bf16.mxu0 0
      %1238 = vmatpush1.bf16.msra.mxu0 0
      %1239 = vmatprep.subr.bf16.mxu0 0
      %1240 = vmatpush1.bf16.msra.mxu0 0
      %1241 = vmatprep.subr.bf16.mxu0 0
      %1242 = vmatpush1.bf16.msra.mxu0 0
      %1243 = vmatprep.subr.bf16.mxu0 0
      %1244 = vmatpush1.bf16.msra.mxu0 0
      %1245 = vmatprep.subr.bf16.mxu0 0
      %1246 = vmatpush1.bf16.msra.mxu0 0
      %1247 = vmatprep.mubr.bf16.mxu0 0
      %1248 = vmatmul.mubr.bf16.gmra.mrb[0].mxu0 %v1165
      %v1249 = vpop.f32.mrb[0].mxu0
      %v1250 = vadd.f32 0.0, %v1249
      %v1251 = vpop.f32.mrb[0].mxu0
      %v1252 = vpop.f32.mrb[0].mxu0
      %v1253 = vadd.f32 0.0, %v1252
      %v1254 = vpop.f32.mrb[0].mxu0
      %1255 = vmatprep.mubr.bf16.mxu0 0
      %1256 = vmatmul.mubr.bf16.gmra.mrb[0].mxu0 %v1168
      %v1257 = vpop.f32.mrb[0].mxu0
      %v1258 = vadd.f32 0.0, %v1257
      %v1259 = vpop.f32.mrb[0].mxu0
      %v1260 = vpop.f32.mrb[0].mxu0
      %v1261 = vadd.f32 0.0, %v1260
      %v1262 = vpop.f32.mrb[0].mxu0
      %1263 = vmatprep.mubr.bf16.mxu0 0
      %1264 = vmatmul.mubr.bf16.gmra.mrb[0].mxu0 %v1171
      %v1265 = vpop.f32.mrb[0].mxu0
      %v1266 = vadd.f32 0.0, %v1265
      %v1267 = vpop.f32.mrb[0].mxu0
      %v1268 = vpop.f32.mrb[0].mxu0
      %v1269 = vadd.f32 0.0, %v1268
      %v1270 = vpop.f32.mrb[0].mxu0
      %1271 = vmatprep.mubr.bf16.mxu0 0
      %1272 = vmatmul.mubr.bf16.gmra.mrb[0].mxu0 %v1174
      %v1273 = vpop.f32.mrb[0].mxu0
      %v1274 = vadd.f32 0.0, %v1273
      %v1275 = vpop.f32.mrb[0].mxu0
      %v1276 = vpop.f32.mrb[0].mxu0
      %v1277 = vadd.f32 0.0, %v1276
      %v1278 = vpop.f32.mrb[0].mxu0
      %1279 = vmatprep.mubr.bf16.mxu0 0
      %1280 = vmatmul.mubr.bf16.gmra.mrb[0].mxu0 %v1177
      %v1281 = vpop.f32.mrb[0].mxu0
      %v1282 = vadd.f32 0.0, %v1281
      %v1283 = vpop.f32.mrb[0].mxu0
      %v1284 = vpop.f32.mrb[0].mxu0
      %v1285 = vadd.f32 0.0, %v1284
      %v1286 = vpop.f32.mrb[0].mxu0
      %1287 = vmatprep.mubr.bf16.mxu0 0
      %1288 = vmatmul.mubr.bf16.gmra.mrb[0].mxu0 %v1180
      %v1289 = vpop.f32.mrb[0].mxu0
      %v1290 = vadd.f32 0.0, %v1289
      %v1291 = vpop.f32.mrb[0].mxu0
      %v1292 = vpop.f32.mrb[0].mxu0
      %v1293 = vadd.f32 0.0, %v1292
      %v1294 = vpop.f32.mrb[0].mxu0
      %1295 = vmatprep.mubr.bf16.mxu0 0
      %1296 = vmatmul.mubr.bf16.gmra.mrb[0].mxu0 %v1183
      %v1297 = vpop.f32.mrb[0].mxu0
      %v1298 = vadd.f32 0.0, %v1297
      %v1299 = vpop.f32.mrb[0].mxu0
      %v1300 = vpop.f32.mrb[0].mxu0
      %v1301 = vadd.f32 0.0, %v1300
      %v1302 = vpop.f32.mrb[0].mxu0
      %1303 = vmatprep.mubr.bf16.mxu0 0
      %1304 = vmatmul.mubr.bf16.gmra.mrb[0].mxu0 %v1186
      %v1305 = vpop.f32.mrb[0].mxu0
      %v1306 = vadd.f32 0.0, %v1305
      %v1307 = vpop.f32.mrb[0].mxu0
      %v1308 = vpop.f32.mrb[0].mxu0
      %v1309 = vadd.f32 0.0, %v1308
      %v1310 = vpop.f32.mrb[0].mxu0
      %1311 = vmatprep.mubr.bf16.mxu0 0
      %1312 = vmatmul.mubr.bf16.gmra.mrb[0].mxu0 %v1189
      %v1313 = vpop.f32.mrb[0].mxu0
      %v1314 = vadd.f32 0.0, %v1313
      %v1315 = vpop.f32.mrb[0].mxu0
      %v1316 = vpop.f32.mrb[0].mxu0
      %v1317 = vadd.f32 0.0, %v1316
      %v1318 = vpop.f32.mrb[0].mxu0
      %1319 = vmatprep.mubr.bf16.mxu0 0
      %1320 = vmatmul.mubr.bf16.gmra.mrb[0].mxu0 %v1192
      %v1321 = vpop.f32.mrb[0].mxu0
      %v1322 = vadd.f32 0.0, %v1321
      %v1323 = vpop.f32.mrb[0].mxu0
      %v1324 = vpop.f32.mrb[0].mxu0
      %v1325 = vadd.f32 0.0, %v1324
      %v1326 = vpop.f32.mrb[0].mxu0
      %1327 = vmatprep.mubr.bf16.mxu0 0
      %1328 = vmatmul.mubr.bf16.gmra.mrb[0].mxu0 %v1195
      %v1329 = vpop.f32.mrb[0].mxu0
      %v1330 = vadd.f32 0.0, %v1329
      %v1331 = vpop.f32.mrb[0].mxu0
      %v1332 = vpop.f32.mrb[0].mxu0
      %v1333 = vadd.f32 0.0, %v1332
      %v1334 = vpop.f32.mrb[0].mxu0
      %1335 = vmatprep.mubr.bf16.mxu0 0
      %1336 = vmatmul.mubr.bf16.gmra.mrb[0].mxu0 %v1198
      %v1337 = vpop.f32.mrb[0].mxu0
      %v1338 = vadd.f32 0.0, %v1337
      %v1339 = vpop.f32.mrb[0].mxu0
      %v1340 = vpop.f32.mrb[0].mxu0
      %v1341 = vadd.f32 0.0, %v1340
      %v1342 = vpop.f32.mrb[0].mxu0
      %1343 = vmatprep.mubr.bf16.mxu0 0
      %1344 = vmatmul.mubr.bf16.gmra.mrb[0].mxu0 %v1201
      %v1345 = vpop.f32.mrb[0].mxu0
      %v1346 = vadd.f32 0.0, %v1345
      %v1347 = vpop.f32.mrb[0].mxu0
      %v1348 = vpop.f32.mrb[0].mxu0
      %v1349 = vadd.f32 0.0, %v1348
      %v1350 = vpop.f32.mrb[0].mxu0
      %1351 = vmatprep.mubr.bf16.mxu0 0
      %1352 = vmatmul.mubr.bf16.gmra.mrb[0].mxu0 %v1204
      %v1353 = vpop.f32.mrb[0].mxu0
      %v1354 = vadd.f32 0.0, %v1353
      %v1355 = vpop.f32.mrb[0].mxu0
      %v1356 = vpop.f32.mrb[0].mxu0
      %v1357 = vadd.f32 0.0, %v1356
      %v1358 = vpop.f32.mrb[0].mxu0
      %1359 = vmatprep.mubr.bf16.mxu0 0
      %1360 = vmatmul.mubr.bf16.gmra.mrb[0].mxu0 %v1207
      %v1361 = vpop.f32.mrb[0].mxu0
      %v1362 = vadd.f32 0.0, %v1361
      %v1363 = vpop.f32.mrb[0].mxu0
      %v1364 = vpop.f32.mrb[0].mxu0
      %v1365 = vadd.f32 0.0, %v1364
      %v1366 = vpop.f32.mrb[0].mxu0
      %1367 = vmatprep.mubr.bf16.mxu0 0
      %1368 = vmatmul.mubr.bf16.gmra.mrb[0].mxu0 %v1210
      %v1369 = vpop.f32.mrb[0].mxu0
      %v1370 = vadd.f32 0.0, %v1369
      %v1371 = vpop.f32.mrb[0].mxu0
      %v1372 = vpop.f32.mrb[0].mxu0
      %v1373 = vadd.f32 0.0, %v1372
      %v1374 = vpop.f32.mrb[0].mxu0
      %1375 = vdwg.mxu0
      %v1376 = vadd.f32 %v1114, %v1250
      %v1377 = vadd.f32 %v1115, %v1253
      %v1378 = vadd.f32 %v1116, %v1258
      %v1379 = vadd.f32 %v1117, %v1261
      %v1380 = vadd.f32 %v1118, %v1266
      %v1381 = vadd.f32 %v1119, %v1269
      %v1382 = vadd.f32 %v1120, %v1274
      %v1383 = vadd.f32 %v1121, %v1277
      %v1384 = vadd.f32 %v1122, %v1282
      %v1385 = vadd.f32 %v1123, %v1285
      %v1386 = vadd.f32 %v1124, %v1290
      %v1387 = vadd.f32 %v1125, %v1293
      %v1388 = vadd.f32 %v1126, %v1298
      %v1389 = vadd.f32 %v1127, %v1301
      %v1390 = vadd.f32 %v1128, %v1306
      %v1391 = vadd.f32 %v1129, %v1309
      %v1392 = vadd.f32 %v1130, %v1314
      %v1393 = vadd.f32 %v1131, %v1317
      %v1394 = vadd.f32 %v1132, %v1322
      %v1395 = vadd.f32 %v1133, %v1325
      %v1396 = vadd.f32 %v1134, %v1330
      %v1397 = vadd.f32 %v1135, %v1333
      %v1398 = vadd.f32 %v1136, %v1338
      %v1399 = vadd.f32 %v1137, %v1341
      %v1400 = vadd.f32 %v1138, %v1346
      %v1401 = vadd.f32 %v1139, %v1349
      %v1402 = vadd.f32 %v1140, %v1354
      %v1403 = vadd.f32 %v1141, %v1357
      %v1404 = vadd.f32 %v1142, %v1362
      %v1405 = vadd.f32 %v1143, %v1365
      %v1406 = vadd.f32 %v1144, %v1370
      %v1407 = vadd.f32 %v1145, %v1373
      %1408 = vst.msk [vmem:[#allocation2] sm:$0xff] %vm332, %v1376
      %1409 = vst.msk [vmem:[#allocation2 + $0x8] sm:$0xff] %vm332, %v1377
      %1410 = vst.msk [vmem:[#allocation2 + $0x10] sm:$0xff] %vm332, %v1378
      %1411 = vst.msk [vmem:[#allocation2 + $0x18] sm:$0xff] %vm332, %v1379
      %1412 = vst.msk [vmem:[#allocation2 + $0x20] sm:$0xff] %vm332, %v1380
      %1413 = vst.msk [vmem:[#allocation2 + $0x28] sm:$0xff] %vm332, %v1381
      %1414 = vst.msk [vmem:[#allocation2 + $0x30] sm:$0xff] %vm332, %v1382
      %1415 = vst.msk [vmem:[#allocation2 + $0x38] sm:$0xff] %vm332, %v1383
      %1416 = vst.msk [vmem:[#allocation2 + $0x40] sm:$0xff] %vm332, %v1384
      %1417 = vst.msk [vmem:[#allocation2 + $0x48] sm:$0xff] %vm332, %v1385
      %1418 = vst.msk [vmem:[#allocation2 + $0x50] sm:$0xff] %vm332, %v1386
      %1419 = vst.msk [vmem:[#allocation2 + $0x58] sm:$0xff] %vm332, %v1387
      %1420 = vst.msk [vmem:[#allocation2 + $0x60] sm:$0xff] %vm332, %v1388
      %1421 = vst.msk [vmem:[#allocation2 + $0x68] sm:$0xff] %vm332, %v1389
      %1422 = vst.msk [vmem:[#allocation2 + $0x70] sm:$0xff] %vm332, %v1390
      %1423 = vst.msk [vmem:[#allocation2 + $0x78] sm:$0xff] %vm332, %v1391
      %1424 = vst.msk [vmem:[#allocation2 + $0x80] sm:$0xff] %vm332, %v1392
      %1425 = vst.msk [vmem:[#allocation2 + $0x88] sm:$0xff] %vm332, %v1393
      %1426 = vst.msk [vmem:[#allocation2 + $0x90] sm:$0xff] %vm332, %v1394
      %1427 = vst.msk [vmem:[#allocation2 + $0x98] sm:$0xff] %vm332, %v1395
      %1428 = vst.msk [vmem:[#allocation2 + $0xa0] sm:$0xff] %vm332, %v1396
      %1429 = vst.msk [vmem:[#allocation2 + $0xa8] sm:$0xff] %vm332, %v1397
      %1430 = vst.msk [vmem:[#allocation2 + $0xb0] sm:$0xff] %vm332, %v1398
      %1431 = vst.msk [vmem:[#allocation2 + $0xb8] sm:$0xff] %vm332, %v1399
      %1432 = vst.msk [vmem:[#allocation2 + $0xc0] sm:$0xff] %vm332, %v1400
      %1433 = vst.msk [vmem:[#allocation2 + $0xc8] sm:$0xff] %vm332, %v1401
      %1434 = vst.msk [vmem:[#allocation2 + $0xd0] sm:$0xff] %vm332, %v1402
      %1435 = vst.msk [vmem:[#allocation2 + $0xd8] sm:$0xff] %vm332, %v1403
      %1436 = vst.msk [vmem:[#allocation2 + $0xe0] sm:$0xff] %vm332, %v1404
      %1437 = vst.msk [vmem:[#allocation2 + $0xe8] sm:$0xff] %vm332, %v1405
      %1438 = vst.msk [vmem:[#allocation2 + $0xf0] sm:$0xff] %vm332, %v1406
      %1439 = vst.msk [vmem:[#allocation2 + $0xf8] sm:$0xff] %vm332, %v1407
      %s1440 = scalar_lea.vmem %s326, 24
      %v1441 = vld [vmem:[%s1440] sm:$0xff]
      %v1442 = vld [vmem:[%s1440 + $0x8] sm:$0xff]
      %v1443 = vld [vmem:[%s1440 + $0x18] sm:$0xff]
      %v1444 = vld [vmem:[%s1440 + $0x20] sm:$0xff]
      %v1445 = vld [vmem:[%s1440 + $0x30] sm:$0xff]
      %v1446 = vld [vmem:[%s1440 + $0x38] sm:$0xff]
      %v1447 = vld [vmem:[%s1440 + $0x48] sm:$0xff]
      %v1448 = vld [vmem:[%s1440 + $0x50] sm:$0xff]
      %v1449 = vld [vmem:[%s1440 + $0x60] sm:$0xff]
      %v1450 = vld [vmem:[%s1440 + $0x68] sm:$0xff]
      %v1451 = vld [vmem:[%s1440 + $0x78] sm:$0xff]
      %v1452 = vld [vmem:[%s1440 + $0x80] sm:$0xff]
      %v1453 = vld [vmem:[%s1440 + $0x90] sm:$0xff]
      %v1454 = vld [vmem:[%s1440 + $0x98] sm:$0xff]
      %v1455 = vld [vmem:[%s1440 + $0xa8] sm:$0xff]
      %v1456 = vld [vmem:[%s1440 + $0xb0] sm:$0xff]
      %v1457 = vld [vmem:[%s1440 + $0xc0] sm:$0xff]
      %v1458 = vld [vmem:[%s1440 + $0xc8] sm:$0xff]
      %v1459 = vld [vmem:[%s1440 + $0xd8] sm:$0xff]
      %v1460 = vld [vmem:[%s1440 + $0xe0] sm:$0xff]
      %v1461 = vld [vmem:[%s1440 + $0xf0] sm:$0xff]
      %v1462 = vld [vmem:[%s1440 + $0xf8] sm:$0xff]
      %v1463 = vld [vmem:[%s1440 + $0x108] sm:$0xff]
      %v1464 = vld [vmem:[%s1440 + $0x110] sm:$0xff]
      %v1465 = vld [vmem:[%s1440 + $0x120] sm:$0xff]
      %v1466 = vld [vmem:[%s1440 + $0x128] sm:$0xff]
      %v1467 = vld [vmem:[%s1440 + $0x138] sm:$0xff]
      %v1468 = vld [vmem:[%s1440 + $0x140] sm:$0xff]
      %v1469 = vld [vmem:[%s1440 + $0x150] sm:$0xff]
      %v1470 = vld [vmem:[%s1440 + $0x158] sm:$0xff]
      %v1471 = vld [vmem:[%s1440 + $0x168] sm:$0xff]
      %v1472 = vld [vmem:[%s1440 + $0x170] sm:$0xff]
      %v1473 = vld [vmem:[#allocation2] sm:$0xff]
      %v1474 = vld [vmem:[#allocation2 + $0x8] sm:$0xff]
      %v1475 = vld [vmem:[#allocation2 + $0x10] sm:$0xff]
      %v1476 = vld [vmem:[#allocation2 + $0x18] sm:$0xff]
      %v1477 = vld [vmem:[#allocation2 + $0x20] sm:$0xff]
      %v1478 = vld [vmem:[#allocation2 + $0x28] sm:$0xff]
      %v1479 = vld [vmem:[#allocation2 + $0x30] sm:$0xff]
      %v1480 = vld [vmem:[#allocation2 + $0x38] sm:$0xff]
      %v1481 = vld [vmem:[#allocation2 + $0x40] sm:$0xff]
      %v1482 = vld [vmem:[#allocation2 + $0x48] sm:$0xff]
      %v1483 = vld [vmem:[#allocation2 + $0x50] sm:$0xff]
      %v1484 = vld [vmem:[#allocation2 + $0x58] sm:$0xff]
      %v1485 = vld [vmem:[#allocation2 + $0x60] sm:$0xff]
      %v1486 = vld [vmem:[#allocation2 + $0x68] sm:$0xff]
      %v1487 = vld [vmem:[#allocation2 + $0x70] sm:$0xff]
      %v1488 = vld [vmem:[#allocation2 + $0x78] sm:$0xff]
      %v1489 = vld [vmem:[#allocation2 + $0x80] sm:$0xff]
      %v1490 = vld [vmem:[#allocation2 + $0x88] sm:$0xff]
      %v1491 = vld [vmem:[#allocation2 + $0x90] sm:$0xff]
      %v1492 = vld [vmem:[#allocation2 + $0x98] sm:$0xff]
      %v1493 = vld [vmem:[#allocation2 + $0xa0] sm:$0xff]
      %v1494 = vld [vmem:[#allocation2 + $0xa8] sm:$0xff]
      %v1495 = vld [vmem:[#allocation2 + $0xb0] sm:$0xff]
      %v1496 = vld [vmem:[#allocation2 + $0xb8] sm:$0xff]
      %v1497 = vld [vmem:[#allocation2 + $0xc0] sm:$0xff]
      %v1498 = vld [vmem:[#allocation2 + $0xc8] sm:$0xff]
      %v1499 = vld [vmem:[#allocation2 + $0xd0] sm:$0xff]
      %v1500 = vld [vmem:[#allocation2 + $0xd8] sm:$0xff]
      %v1501 = vld [vmem:[#allocation2 + $0xe0] sm:$0xff]
      %v1502 = vld [vmem:[#allocation2 + $0xe8] sm:$0xff]
      %v1503 = vld [vmem:[#allocation2 + $0xf0] sm:$0xff]
      %v1504 = vld [vmem:[#allocation2 + $0xf8] sm:$0xff]
      %v1505 = vpack.c.bf16 %v1442, %v1441
      %v1506 = vpack.c.bf16 %v1444, %v1443
      %v1507 = vpack.c.bf16 %v1446, %v1445
      %v1508 = vpack.c.bf16 %v1448, %v1447
      %v1509 = vpack.c.bf16 %v1450, %v1449
      %v1510 = vpack.c.bf16 %v1452, %v1451
      %v1511 = vpack.c.bf16 %v1454, %v1453
      %v1512 = vpack.c.bf16 %v1456, %v1455
      %v1513 = vpack.c.bf16 %v1458, %v1457
      %v1514 = vpack.c.bf16 %v1460, %v1459
      %v1515 = vpack.c.bf16 %v1462, %v1461
      %v1516 = vpack.c.bf16 %v1464, %v1463
      %v1517 = vpack.c.bf16 %v1466, %v1465
      %v1518 = vpack.c.bf16 %v1468, %v1467
      %v1519 = vpack.c.bf16 %v1470, %v1469
      %v1520 = vpack.c.bf16 %v1472, %v1471
      %s1521 = scalar_lea.vmem %s1, 6
      %v1522 = vld [vmem:[%s1521] sm:$0x3]
      %v1524 = vsel %vm446, %v1505, 0
      %v1527 = vsel %vm446, %v1506, 0
      %v1530 = vsel %vm446, %v1507, 0
      %v1533 = vsel %vm446, %v1508, 0
      %v1536 = vsel %vm446, %v1509, 0
      %v1539 = vsel %vm446, %v1510, 0
      %v1542 = vsel %vm446, %v1511, 0
      %v1545 = vsel %vm446, %v1512, 0
      %v1548 = vsel %vm446, %v1513, 0
      %v1551 = vsel %vm446, %v1514, 0
      %v1554 = vsel %vm446, %v1515, 0
      %v1557 = vsel %vm446, %v1516, 0
      %v1560 = vsel %vm446, %v1517, 0
      %v1563 = vsel %vm446, %v1518, 0
      %v1566 = vsel %vm446, %v1519, 0
      %v1569 = vsel %vm446, %v1520, 0
      %v1572 = vsel %vm495, %v1522, 0
      %1574 = vmatprep.subr.bf16.mxu0 0
      %1575 = vmatpush1.bf16.msra.mxu0 %v1572
      %1576 = vmatprep.subr.bf16.mxu0 0
      %1577 = vmatpush1.bf16.msra.mxu0 0
      %1578 = vmatprep.subr.bf16.mxu0 0
      %1579 = vmatpush1.bf16.msra.mxu0 0
      %1580 = vmatprep.subr.bf16.mxu0 0
      %1581 = vmatpush1.bf16.msra.mxu0 0
      %1582 = vmatprep.subr.bf16.mxu0 0
      %1583 = vmatpush1.bf16.msra.mxu0 0
      %1584 = vmatprep.subr.bf16.mxu0 0
      %1585 = vmatpush1.bf16.msra.mxu0 0
      %1586 = vmatprep.subr.bf16.mxu0 0
      %1587 = vmatpush1.bf16.msra.mxu0 0
      %1588 = vmatprep.subr.bf16.mxu0 0
      %1589 = vmatpush1.bf16.msra.mxu0 0
      %1590 = vmatprep.subr.bf16.mxu0 0
      %1591 = vmatpush1.bf16.msra.mxu0 0
      %1592 = vmatprep.subr.bf16.mxu0 0
      %1593 = vmatpush1.bf16.msra.mxu0 0
      %1594 = vmatprep.subr.bf16.mxu0 0
      %1595 = vmatpush1.bf16.msra.mxu0 0
      %1596 = vmatprep.subr.bf16.mxu0 0
      %1597 = vmatpush1.bf16.msra.mxu0 0
      %1598 = vmatprep.subr.bf16.mxu0 0
      %1599 = vmatpush1.bf16.msra.mxu0 0
      %1600 = vmatprep.subr.bf16.mxu0 0
      %1601 = vmatpush1.bf16.msra.mxu0 0
      %1602 = vmatprep.subr.bf16.mxu0 0
      %1603 = vmatpush1.bf16.msra.mxu0 0
      %1604 = vmatprep.subr.bf16.mxu0 0
      %1605 = vmatpush1.bf16.msra.mxu0 0
      %1606 = vmatprep.mubr.bf16.mxu0 0
      %1607 = vmatmul.mubr.bf16.gmra.mrb[0].mxu0 %v1524
      %v1608 = vpop.f32.mrb[0].mxu0
      %v1609 = vadd.f32 0.0, %v1608
      %v1610 = vpop.f32.mrb[0].mxu0
      %v1611 = vpop.f32.mrb[0].mxu0
      %v1612 = vadd.f32 0.0, %v1611
      %v1613 = vpop.f32.mrb[0].mxu0
      %1614 = vmatprep.mubr.bf16.mxu0 0
      %1615 = vmatmul.mubr.bf16.gmra.mrb[0].mxu0 %v1527
      %v1616 = vpop.f32.mrb[0].mxu0
      %v1617 = vadd.f32 0.0, %v1616
      %v1618 = vpop.f32.mrb[0].mxu0
      %v1619 = vpop.f32.mrb[0].mxu0
      %v1620 = vadd.f32 0.0, %v1619
      %v1621 = vpop.f32.mrb[0].mxu0
      %1622 = vmatprep.mubr.bf16.mxu0 0
      %1623 = vmatmul.mubr.bf16.gmra.mrb[0].mxu0 %v1530
      %v1624 = vpop.f32.mrb[0].mxu0
      %v1625 = vadd.f32 0.0, %v1624
      %v1626 = vpop.f32.mrb[0].mxu0
      %v1627 = vpop.f32.mrb[0].mxu0
      %v1628 = vadd.f32 0.0, %v1627
      %v1629 = vpop.f32.mrb[0].mxu0
      %1630 = vmatprep.mubr.bf16.mxu0 0
      %1631 = vmatmul.mubr.bf16.gmra.mrb[0].mxu0 %v1533
      %v1632 = vpop.f32.mrb[0].mxu0
      %v1633 = vadd.f32 0.0, %v1632
      %v1634 = vpop.f32.mrb[0].mxu0
      %v1635 = vpop.f32.mrb[0].mxu0
      %v1636 = vadd.f32 0.0, %v1635
      %v1637 = vpop.f32.mrb[0].mxu0
      %1638 = vmatprep.mubr.bf16.mxu0 0
      %1639 = vmatmul.mubr.bf16.gmra.mrb[0].mxu0 %v1536
      %v1640 = vpop.f32.mrb[0].mxu0
      %v1641 = vadd.f32 0.0, %v1640
      %v1642 = vpop.f32.mrb[0].mxu0
      %v1643 = vpop.f32.mrb[0].mxu0
      %v1644 = vadd.f32 0.0, %v1643
      %v1645 = vpop.f32.mrb[0].mxu0
      %1646 = vmatprep.mubr.bf16.mxu0 0
      %1647 = vmatmul.mubr.bf16.gmra.mrb[0].mxu0 %v1539
      %v1648 = vpop.f32.mrb[0].mxu0
      %v1649 = vadd.f32 0.0, %v1648
      %v1650 = vpop.f32.mrb[0].mxu0
      %v1651 = vpop.f32.mrb[0].mxu0
      %v1652 = vadd.f32 0.0, %v1651
      %v1653 = vpop.f32.mrb[0].mxu0
      %1654 = vmatprep.mubr.bf16.mxu0 0
      %1655 = vmatmul.mubr.bf16.gmra.mrb[0].mxu0 %v1542
      %v1656 = vpop.f32.mrb[0].mxu0
      %v1657 = vadd.f32 0.0, %v1656
      %v1658 = vpop.f32.mrb[0].mxu0
      %v1659 = vpop.f32.mrb[0].mxu0
      %v1660 = vadd.f32 0.0, %v1659
      %v1661 = vpop.f32.mrb[0].mxu0
      %1662 = vmatprep.mubr.bf16.mxu0 0
      %1663 = vmatmul.mubr.bf16.gmra.mrb[0].mxu0 %v1545
      %v1664 = vpop.f32.mrb[0].mxu0
      %v1665 = vadd.f32 0.0, %v1664
      %v1666 = vpop.f32.mrb[0].mxu0
      %v1667 = vpop.f32.mrb[0].mxu0
      %v1668 = vadd.f32 0.0, %v1667
      %v1669 = vpop.f32.mrb[0].mxu0
      %1670 = vmatprep.mubr.bf16.mxu0 0
      %1671 = vmatmul.mubr.bf16.gmra.mrb[0].mxu0 %v1548
      %v1672 = vpop.f32.mrb[0].mxu0
      %v1673 = vadd.f32 0.0, %v1672
      %v1674 = vpop.f32.mrb[0].mxu0
      %v1675 = vpop.f32.mrb[0].mxu0
      %v1676 = vadd.f32 0.0, %v1675
      %v1677 = vpop.f32.mrb[0].mxu0
      %1678 = vmatprep.mubr.bf16.mxu0 0
      %1679 = vmatmul.mubr.bf16.gmra.mrb[0].mxu0 %v1551
      %v1680 = vpop.f32.mrb[0].mxu0
      %v1681 = vadd.f32 0.0, %v1680
      %v1682 = vpop.f32.mrb[0].mxu0
      %v1683 = vpop.f32.mrb[0].mxu0
      %v1684 = vadd.f32 0.0, %v1683
      %v1685 = vpop.f32.mrb[0].mxu0
      %1686 = vmatprep.mubr.bf16.mxu0 0
      %1687 = vmatmul.mubr.bf16.gmra.mrb[0].mxu0 %v1554
      %v1688 = vpop.f32.mrb[0].mxu0
      %v1689 = vadd.f32 0.0, %v1688
      %v1690 = vpop.f32.mrb[0].mxu0
      %v1691 = vpop.f32.mrb[0].mxu0
      %v1692 = vadd.f32 0.0, %v1691
      %v1693 = vpop.f32.mrb[0].mxu0
      %1694 = vmatprep.mubr.bf16.mxu0 0
      %1695 = vmatmul.mubr.bf16.gmra.mrb[0].mxu0 %v1557
      %v1696 = vpop.f32.mrb[0].mxu0
      %v1697 = vadd.f32 0.0, %v1696
      %v1698 = vpop.f32.mrb[0].mxu0
      %v1699 = vpop.f32.mrb[0].mxu0
      %v1700 = vadd.f32 0.0, %v1699
      %v1701 = vpop.f32.mrb[0].mxu0
      %1702 = vmatprep.mubr.bf16.mxu0 0
      %1703 = vmatmul.mubr.bf16.gmra.mrb[0].mxu0 %v1560
      %v1704 = vpop.f32.mrb[0].mxu0
      %v1705 = vadd.f32 0.0, %v1704
      %v1706 = vpop.f32.mrb[0].mxu0
      %v1707 = vpop.f32.mrb[0].mxu0
      %v1708 = vadd.f32 0.0, %v1707
      %v1709 = vpop.f32.mrb[0].mxu0
      %1710 = vmatprep.mubr.bf16.mxu0 0
      %1711 = vmatmul.mubr.bf16.gmra.mrb[0].mxu0 %v1563
      %v1712 = vpop.f32.mrb[0].mxu0
      %v1713 = vadd.f32 0.0, %v1712
      %v1714 = vpop.f32.mrb[0].mxu0
      %v1715 = vpop.f32.mrb[0].mxu0
      %v1716 = vadd.f32 0.0, %v1715
      %v1717 = vpop.f32.mrb[0].mxu0
      %1718 = vmatprep.mubr.bf16.mxu0 0
      %1719 = vmatmul.mubr.bf16.gmra.mrb[0].mxu0 %v1566
      %v1720 = vpop.f32.mrb[0].mxu0
      %v1721 = vadd.f32 0.0, %v1720
      %v1722 = vpop.f32.mrb[0].mxu0
      %v1723 = vpop.f32.mrb[0].mxu0
      %v1724 = vadd.f32 0.0, %v1723
      %v1725 = vpop.f32.mrb[0].mxu0
      %1726 = vmatprep.mubr.bf16.mxu0 0
      %1727 = vmatmul.mubr.bf16.gmra.mrb[0].mxu0 %v1569
      %v1728 = vpop.f32.mrb[0].mxu0
      %v1729 = vadd.f32 0.0, %v1728
      %v1730 = vpop.f32.mrb[0].mxu0
      %v1731 = vpop.f32.mrb[0].mxu0
      %v1732 = vadd.f32 0.0, %v1731
      %v1733 = vpop.f32.mrb[0].mxu0
      %1734 = vdwg.mxu0
      %v1735 = vadd.f32 %v1473, %v1609
      %v1736 = vadd.f32 %v1474, %v1612
      %v1737 = vadd.f32 %v1475, %v1617
      %v1738 = vadd.f32 %v1476, %v1620
      %v1739 = vadd.f32 %v1477, %v1625
      %v1740 = vadd.f32 %v1478, %v1628
      %v1741 = vadd.f32 %v1479, %v1633
      %v1742 = vadd.f32 %v1480, %v1636
      %v1743 = vadd.f32 %v1481, %v1641
      %v1744 = vadd.f32 %v1482, %v1644
      %v1745 = vadd.f32 %v1483, %v1649
      %v1746 = vadd.f32 %v1484, %v1652
      %v1747 = vadd.f32 %v1485, %v1657
      %v1748 = vadd.f32 %v1486, %v1660
      %v1749 = vadd.f32 %v1487, %v1665
      %v1750 = vadd.f32 %v1488, %v1668
      %v1751 = vadd.f32 %v1489, %v1673
      %v1752 = vadd.f32 %v1490, %v1676
      %v1753 = vadd.f32 %v1491, %v1681
      %v1754 = vadd.f32 %v1492, %v1684
      %v1755 = vadd.f32 %v1493, %v1689
      %v1756 = vadd.f32 %v1494, %v1692
      %v1757 = vadd.f32 %v1495, %v1697
      %v1758 = vadd.f32 %v1496, %v1700
      %v1759 = vadd.f32 %v1497, %v1705
      %v1760 = vadd.f32 %v1498, %v1708
      %v1761 = vadd.f32 %v1499, %v1713
      %v1762 = vadd.f32 %v1500, %v1716
      %v1763 = vadd.f32 %v1501, %v1721
      %v1764 = vadd.f32 %v1502, %v1724
      %v1765 = vadd.f32 %v1503, %v1729
      %v1766 = vadd.f32 %v1504, %v1732
      %1767 = vst.msk [vmem:[#allocation2] sm:$0xff] %vm332, %v1735
      %1768 = vst.msk [vmem:[#allocation2 + $0x8] sm:$0xff] %vm332, %v1736
      %1769 = vst.msk [vmem:[#allocation2 + $0x10] sm:$0xff] %vm332, %v1737
      %1770 = vst.msk [vmem:[#allocation2 + $0x18] sm:$0xff] %vm332, %v1738
      %1771 = vst.msk [vmem:[#allocation2 + $0x20] sm:$0xff] %vm332, %v1739
      %1772 = vst.msk [vmem:[#allocation2 + $0x28] sm:$0xff] %vm332, %v1740
      %1773 = vst.msk [vmem:[#allocation2 + $0x30] sm:$0xff] %vm332, %v1741
      %1774 = vst.msk [vmem:[#allocation2 + $0x38] sm:$0xff] %vm332, %v1742
      %1775 = vst.msk [vmem:[#allocation2 + $0x40] sm:$0xff] %vm332, %v1743
      %1776 = vst.msk [vmem:[#allocation2 + $0x48] sm:$0xff] %vm332, %v1744
      %1777 = vst.msk [vmem:[#allocation2 + $0x50] sm:$0xff] %vm332, %v1745
      %1778 = vst.msk [vmem:[#allocation2 + $0x58] sm:$0xff] %vm332, %v1746
      %1779 = vst.msk [vmem:[#allocation2 + $0x60] sm:$0xff] %vm332, %v1747
      %1780 = vst.msk [vmem:[#allocation2 + $0x68] sm:$0xff] %vm332, %v1748
      %1781 = vst.msk [vmem:[#allocation2 + $0x70] sm:$0xff] %vm332, %v1749
      %1782 = vst.msk [vmem:[#allocation2 + $0x78] sm:$0xff] %vm332, %v1750
      %1783 = vst.msk [vmem:[#allocation2 + $0x80] sm:$0xff] %vm332, %v1751
      %1784 = vst.msk [vmem:[#allocation2 + $0x88] sm:$0xff] %vm332, %v1752
      %1785 = vst.msk [vmem:[#allocation2 + $0x90] sm:$0xff] %vm332, %v1753
      %1786 = vst.msk [vmem:[#allocation2 + $0x98] sm:$0xff] %vm332, %v1754
      %1787 = vst.msk [vmem:[#allocation2 + $0xa0] sm:$0xff] %vm332, %v1755
      %1788 = vst.msk [vmem:[#allocation2 + $0xa8] sm:$0xff] %vm332, %v1756
      %1789 = vst.msk [vmem:[#allocation2 + $0xb0] sm:$0xff] %vm332, %v1757
      %1790 = vst.msk [vmem:[#allocation2 + $0xb8] sm:$0xff] %vm332, %v1758
      %1791 = vst.msk [vmem:[#allocation2 + $0xc0] sm:$0xff] %vm332, %v1759
      %1792 = vst.msk [vmem:[#allocation2 + $0xc8] sm:$0xff] %vm332, %v1760
      %1793 = vst.msk [vmem:[#allocation2 + $0xd0] sm:$0xff] %vm332, %v1761
      %1794 = vst.msk [vmem:[#allocation2 + $0xd8] sm:$0xff] %vm332, %v1762
      %1795 = vst.msk [vmem:[#allocation2 + $0xe0] sm:$0xff] %vm332, %v1763
      %1796 = vst.msk [vmem:[#allocation2 + $0xe8] sm:$0xff] %vm332, %v1764
      %1797 = vst.msk [vmem:[#allocation2 + $0xf0] sm:$0xff] %vm332, %v1765
      %1798 = vst.msk [vmem:[#allocation2 + $0xf8] sm:$0xff] %vm332, %v1766
      %v1799 = vld [vmem:[%s1440 + $0x1] sm:$0xff]
      %v1800 = vld [vmem:[%s1440 + $0x9] sm:$0xff]
      %v1801 = vld [vmem:[%s1440 + $0x19] sm:$0xff]
      %v1802 = vld [vmem:[%s1440 + $0x21] sm:$0xff]
      %v1803 = vld [vmem:[%s1440 + $0x31] sm:$0xff]
      %v1804 = vld [vmem:[%s1440 + $0x39] sm:$0xff]
      %v1805 = vld [vmem:[%s1440 + $0x49] sm:$0xff]
      %v1806 = vld [vmem:[%s1440 + $0x51] sm:$0xff]
      %v1807 = vld [vmem:[%s1440 + $0x61] sm:$0xff]
      %v1808 = vld [vmem:[%s1440 + $0x69] sm:$0xff]
      %v1809 = vld [vmem:[%s1440 + $0x79] sm:$0xff]
      %v1810 = vld [vmem:[%s1440 + $0x81] sm:$0xff]
      %v1811 = vld [vmem:[%s1440 + $0x91] sm:$0xff]
      %v1812 = vld [vmem:[%s1440 + $0x99] sm:$0xff]
      %v1813 = vld [vmem:[%s1440 + $0xa9] sm:$0xff]
      %v1814 = vld [vmem:[%s1440 + $0xb1] sm:$0xff]
      %v1815 = vld [vmem:[%s1440 + $0xc1] sm:$0xff]
      %v1816 = vld [vmem:[%s1440 + $0xc9] sm:$0xff]
      %v1817 = vld [vmem:[%s1440 + $0xd9] sm:$0xff]
      %v1818 = vld [vmem:[%s1440 + $0xe1] sm:$0xff]
      %v1819 = vld [vmem:[%s1440 + $0xf1] sm:$0xff]
      %v1820 = vld [vmem:[%s1440 + $0xf9] sm:$0xff]
      %v1821 = vld [vmem:[%s1440 + $0x109] sm:$0xff]
      %v1822 = vld [vmem:[%s1440 + $0x111] sm:$0xff]
      %v1823 = vld [vmem:[%s1440 + $0x121] sm:$0xff]
      %v1824 = vld [vmem:[%s1440 + $0x129] sm:$0xff]
      %v1825 = vld [vmem:[%s1440 + $0x139] sm:$0xff]
      %v1826 = vld [vmem:[%s1440 + $0x141] sm:$0xff]
      %v1827 = vld [vmem:[%s1440 + $0x151] sm:$0xff]
      %v1828 = vld [vmem:[%s1440 + $0x159] sm:$0xff]
      %v1829 = vld [vmem:[%s1440 + $0x169] sm:$0xff]
      %v1830 = vld [vmem:[%s1440 + $0x171] sm:$0xff]
      %v1831 = vld [vmem:[#allocation2] sm:$0xff]
      %v1832 = vld [vmem:[#allocation2 + $0x8] sm:$0xff]
      %v1833 = vld [vmem:[#allocation2 + $0x10] sm:$0xff]
      %v1834 = vld [vmem:[#allocation2 + $0x18] sm:$0xff]
      %v1835 = vld [vmem:[#allocation2 + $0x20] sm:$0xff]
      %v1836 = vld [vmem:[#allocation2 + $0x28] sm:$0xff]
      %v1837 = vld [vmem:[#allocation2 + $0x30] sm:$0xff]
      %v1838 = vld [vmem:[#allocation2 + $0x38] sm:$0xff]
      %v1839 = vld [vmem:[#allocation2 + $0x40] sm:$0xff]
      %v1840 = vld [vmem:[#allocation2 + $0x48] sm:$0xff]
      %v1841 = vld [vmem:[#allocation2 + $0x50] sm:$0xff]
      %v1842 = vld [vmem:[#allocation2 + $0x58] sm:$0xff]
      %v1843 = vld [vmem:[#allocation2 + $0x60] sm:$0xff]
      %v1844 = vld [vmem:[#allocation2 + $0x68] sm:$0xff]
      %v1845 = vld [vmem:[#allocation2 + $0x70] sm:$0xff]
      %v1846 = vld [vmem:[#allocation2 + $0x78] sm:$0xff]
      %v1847 = vld [vmem:[#allocation2 + $0x80] sm:$0xff]
      %v1848 = vld [vmem:[#allocation2 + $0x88] sm:$0xff]
      %v1849 = vld [vmem:[#allocation2 + $0x90] sm:$0xff]
      %v1850 = vld [vmem:[#allocation2 + $0x98] sm:$0xff]
      %v1851 = vld [vmem:[#allocation2 + $0xa0] sm:$0xff]
      %v1852 = vld [vmem:[#allocation2 + $0xa8] sm:$0xff]
      %v1853 = vld [vmem:[#allocation2 + $0xb0] sm:$0xff]
      %v1854 = vld [vmem:[#allocation2 + $0xb8] sm:$0xff]
      %v1855 = vld [vmem:[#allocation2 + $0xc0] sm:$0xff]
      %v1856 = vld [vmem:[#allocation2 + $0xc8] sm:$0xff]
      %v1857 = vld [vmem:[#allocation2 + $0xd0] sm:$0xff]
      %v1858 = vld [vmem:[#allocation2 + $0xd8] sm:$0xff]
      %v1859 = vld [vmem:[#allocation2 + $0xe0] sm:$0xff]
      %v1860 = vld [vmem:[#allocation2 + $0xe8] sm:$0xff]
      %v1861 = vld [vmem:[#allocation2 + $0xf0] sm:$0xff]
      %v1862 = vld [vmem:[#allocation2 + $0xf8] sm:$0xff]
      %v1863 = vpack.c.bf16 %v1800, %v1799
      %v1864 = vpack.c.bf16 %v1802, %v1801
      %v1865 = vpack.c.bf16 %v1804, %v1803
      %v1866 = vpack.c.bf16 %v1806, %v1805
      %v1867 = vpack.c.bf16 %v1808, %v1807
      %v1868 = vpack.c.bf16 %v1810, %v1809
      %v1869 = vpack.c.bf16 %v1812, %v1811
      %v1870 = vpack.c.bf16 %v1814, %v1813
      %v1871 = vpack.c.bf16 %v1816, %v1815
      %v1872 = vpack.c.bf16 %v1818, %v1817
      %v1873 = vpack.c.bf16 %v1820, %v1819
      %v1874 = vpack.c.bf16 %v1822, %v1821
      %v1875 = vpack.c.bf16 %v1824, %v1823
      %v1876 = vpack.c.bf16 %v1826, %v1825
      %v1877 = vpack.c.bf16 %v1828, %v1827
      %v1878 = vpack.c.bf16 %v1830, %v1829
      %s1879 = scalar_lea.vmem %s1, 8
      %v1880 = vld [vmem:[%s1879] sm:$0x3]
      %v1882 = vsel %vm446, %v1863, 0
      %v1885 = vsel %vm446, %v1864, 0
      %v1888 = vsel %vm446, %v1865, 0
      %v1891 = vsel %vm446, %v1866, 0
      %v1894 = vsel %vm446, %v1867, 0
      %v1897 = vsel %vm446, %v1868, 0
      %v1900 = vsel %vm446, %v1869, 0
      %v1903 = vsel %vm446, %v1870, 0
      %v1906 = vsel %vm446, %v1871, 0
      %v1909 = vsel %vm446, %v1872, 0
      %v1912 = vsel %vm446, %v1873, 0
      %v1915 = vsel %vm446, %v1874, 0
      %v1918 = vsel %vm446, %v1875, 0
      %v1921 = vsel %vm446, %v1876, 0
      %v1924 = vsel %vm446, %v1877, 0
      %v1927 = vsel %vm446, %v1878, 0
      %v1930 = vsel %vm495, %v1880, 0
      %1932 = vmatprep.subr.bf16.mxu0 0
      %1933 = vmatpush1.bf16.msra.mxu0 %v1930
      %1934 = vmatprep.subr.bf16.mxu0 0
      %1935 = vmatpush1.bf16.msra.mxu0 0
      %1936 = vmatprep.subr.bf16.mxu0 0
      %1937 = vmatpush1.bf16.msra.mxu0 0
      %1938 = vmatprep.subr.bf16.mxu0 0
      %1939 = vmatpush1.bf16.msra.mxu0 0
      %1940 = vmatprep.subr.bf16.mxu0 0
      %1941 = vmatpush1.bf16.msra.mxu0 0
      %1942 = vmatprep.subr.bf16.mxu0 0
      %1943 = vmatpush1.bf16.msra.mxu0 0
      %1944 = vmatprep.subr.bf16.mxu0 0
      %1945 = vmatpush1.bf16.msra.mxu0 0
      %1946 = vmatprep.subr.bf16.mxu0 0
      %1947 = vmatpush1.bf16.msra.mxu0 0
      %1948 = vmatprep.subr.bf16.mxu0 0
      %1949 = vmatpush1.bf16.msra.mxu0 0
      %1950 = vmatprep.subr.bf16.mxu0 0
      %1951 = vmatpush1.bf16.msra.mxu0 0
      %1952 = vmatprep.subr.bf16.mxu0 0
      %1953 = vmatpush1.bf16.msra.mxu0 0
      %1954 = vmatprep.subr.bf16.mxu0 0
      %1955 = vmatpush1.bf16.msra.mxu0 0
      %1956 = vmatprep.subr.bf16.mxu0 0
      %1957 = vmatpush1.bf16.msra.mxu0 0
      %1958 = vmatprep.subr.bf16.mxu0 0
      %1959 = vmatpush1.bf16.msra.mxu0 0
      %1960 = vmatprep.subr.bf16.mxu0 0
      %1961 = vmatpush1.bf16.msra.mxu0 0
      %1962 = vmatprep.subr.bf16.mxu0 0
      %1963 = vmatpush1.bf16.msra.mxu0 0
      %1964 = vmatprep.mubr.bf16.mxu0 0
      %1965 = vmatmul.mubr.bf16.gmra.mrb[0].mxu0 %v1882
      %v1966 = vpop.f32.mrb[0].mxu0
      %v1967 = vadd.f32 0.0, %v1966
      %v1968 = vpop.f32.mrb[0].mxu0
      %v1969 = vpop.f32.mrb[0].mxu0
      %v1970 = vadd.f32 0.0, %v1969
      %v1971 = vpop.f32.mrb[0].mxu0
      %1972 = vmatprep.mubr.bf16.mxu0 0
      %1973 = vmatmul.mubr.bf16.gmra.mrb[0].mxu0 %v1885
      %v1974 = vpop.f32.mrb[0].mxu0
      %v1975 = vadd.f32 0.0, %v1974
      %v1976 = vpop.f32.mrb[0].mxu0
      %v1977 = vpop.f32.mrb[0].mxu0
      %v1978 = vadd.f32 0.0, %v1977
      %v1979 = vpop.f32.mrb[0].mxu0
      %1980 = vmatprep.mubr.bf16.mxu0 0
      %1981 = vmatmul.mubr.bf16.gmra.mrb[0].mxu0 %v1888
      %v1982 = vpop.f32.mrb[0].mxu0
      %v1983 = vadd.f32 0.0, %v1982
      %v1984 = vpop.f32.mrb[0].mxu0
      %v1985 = vpop.f32.mrb[0].mxu0
      %v1986 = vadd.f32 0.0, %v1985
      %v1987 = vpop.f32.mrb[0].mxu0
      %1988 = vmatprep.mubr.bf16.mxu0 0
      %1989 = vmatmul.mubr.bf16.gmra.mrb[0].mxu0 %v1891
      %v1990 = vpop.f32.mrb[0].mxu0
      %v1991 = vadd.f32 0.0, %v1990
      %v1992 = vpop.f32.mrb[0].mxu0
      %v1993 = vpop.f32.mrb[0].mxu0
      %v1994 = vadd.f32 0.0, %v1993
      %v1995 = vpop.f32.mrb[0].mxu0
      %1996 = vmatprep.mubr.bf16.mxu0 0
      %1997 = vmatmul.mubr.bf16.gmra.mrb[0].mxu0 %v1894
      %v1998 = vpop.f32.mrb[0].mxu0
      %v1999 = vadd.f32 0.0, %v1998
      %v2000 = vpop.f32.mrb[0].mxu0
      %v2001 = vpop.f32.mrb[0].mxu0
      %v2002 = vadd.f32 0.0, %v2001
      %v2003 = vpop.f32.mrb[0].mxu0
      %2004 = vmatprep.mubr.bf16.mxu0 0
      %2005 = vmatmul.mubr.bf16.gmra.mrb[0].mxu0 %v1897
      %v2006 = vpop.f32.mrb[0].mxu0
      %v2007 = vadd.f32 0.0, %v2006
      %v2008 = vpop.f32.mrb[0].mxu0
      %v2009 = vpop.f32.mrb[0].mxu0
      %v2010 = vadd.f32 0.0, %v2009
      %v2011 = vpop.f32.mrb[0].mxu0
      %2012 = vmatprep.mubr.bf16.mxu0 0
      %2013 = vmatmul.mubr.bf16.gmra.mrb[0].mxu0 %v1900
      %v2014 = vpop.f32.mrb[0].mxu0
      %v2015 = vadd.f32 0.0, %v2014
      %v2016 = vpop.f32.mrb[0].mxu0
      %v2017 = vpop.f32.mrb[0].mxu0
      %v2018 = vadd.f32 0.0, %v2017
      %v2019 = vpop.f32.mrb[0].mxu0
      %2020 = vmatprep.mubr.bf16.mxu0 0
      %2021 = vmatmul.mubr.bf16.gmra.mrb[0].mxu0 %v1903
      %v2022 = vpop.f32.mrb[0].mxu0
      %v2023 = vadd.f32 0.0, %v2022
      %v2024 = vpop.f32.mrb[0].mxu0
      %v2025 = vpop.f32.mrb[0].mxu0
      %v2026 = vadd.f32 0.0, %v2025
      %v2027 = vpop.f32.mrb[0].mxu0
      %2028 = vmatprep.mubr.bf16.mxu0 0
      %2029 = vmatmul.mubr.bf16.gmra.mrb[0].mxu0 %v1906
      %v2030 = vpop.f32.mrb[0].mxu0
      %v2031 = vadd.f32 0.0, %v2030
      %v2032 = vpop.f32.mrb[0].mxu0
      %v2033 = vpop.f32.mrb[0].mxu0
      %v2034 = vadd.f32 0.0, %v2033
      %v2035 = vpop.f32.mrb[0].mxu0
      %2036 = vmatprep.mubr.bf16.mxu0 0
      %2037 = vmatmul.mubr.bf16.gmra.mrb[0].mxu0 %v1909
      %v2038 = vpop.f32.mrb[0].mxu0
      %v2039 = vadd.f32 0.0, %v2038
      %v2040 = vpop.f32.mrb[0].mxu0
      %v2041 = vpop.f32.mrb[0].mxu0
      %v2042 = vadd.f32 0.0, %v2041
      %v2043 = vpop.f32.mrb[0].mxu0
      %2044 = vmatprep.mubr.bf16.mxu0 0
      %2045 = vmatmul.mubr.bf16.gmra.mrb[0].mxu0 %v1912
      %v2046 = vpop.f32.mrb[0].mxu0
      %v2047 = vadd.f32 0.0, %v2046
      %v2048 = vpop.f32.mrb[0].mxu0
      %v2049 = vpop.f32.mrb[0].mxu0
      %v2050 = vadd.f32 0.0, %v2049
      %v2051 = vpop.f32.mrb[0].mxu0
      %2052 = vmatprep.mubr.bf16.mxu0 0
      %2053 = vmatmul.mubr.bf16.gmra.mrb[0].mxu0 %v1915
      %v2054 = vpop.f32.mrb[0].mxu0
      %v2055 = vadd.f32 0.0, %v2054
      %v2056 = vpop.f32.mrb[0].mxu0
      %v2057 = vpop.f32.mrb[0].mxu0
      %v2058 = vadd.f32 0.0, %v2057
      %v2059 = vpop.f32.mrb[0].mxu0
      %2060 = vmatprep.mubr.bf16.mxu0 0
      %2061 = vmatmul.mubr.bf16.gmra.mrb[0].mxu0 %v1918
      %v2062 = vpop.f32.mrb[0].mxu0
      %v2063 = vadd.f32 0.0, %v2062
      %v2064 = vpop.f32.mrb[0].mxu0
      %v2065 = vpop.f32.mrb[0].mxu0
      %v2066 = vadd.f32 0.0, %v2065
      %v2067 = vpop.f32.mrb[0].mxu0
      %2068 = vmatprep.mubr.bf16.mxu0 0
      %2069 = vmatmul.mubr.bf16.gmra.mrb[0].mxu0 %v1921
      %v2070 = vpop.f32.mrb[0].mxu0
      %v2071 = vadd.f32 0.0, %v2070
      %v2072 = vpop.f32.mrb[0].mxu0
      %v2073 = vpop.f32.mrb[0].mxu0
      %v2074 = vadd.f32 0.0, %v2073
      %v2075 = vpop.f32.mrb[0].mxu0
      %2076 = vmatprep.mubr.bf16.mxu0 0
      %2077 = vmatmul.mubr.bf16.gmra.mrb[0].mxu0 %v1924
      %v2078 = vpop.f32.mrb[0].mxu0
      %v2079 = vadd.f32 0.0, %v2078
      %v2080 = vpop.f32.mrb[0].mxu0
      %v2081 = vpop.f32.mrb[0].mxu0
      %v2082 = vadd.f32 0.0, %v2081
      %v2083 = vpop.f32.mrb[0].mxu0
      %2084 = vmatprep.mubr.bf16.mxu0 0
      %2085 = vmatmul.mubr.bf16.gmra.mrb[0].mxu0 %v1927
      %v2086 = vpop.f32.mrb[0].mxu0
      %v2087 = vadd.f32 0.0, %v2086
      %v2088 = vpop.f32.mrb[0].mxu0
      %v2089 = vpop.f32.mrb[0].mxu0
      %v2090 = vadd.f32 0.0, %v2089
      %v2091 = vpop.f32.mrb[0].mxu0
      %2092 = vdwg.mxu0
      %v2093 = vadd.f32 %v1831, %v1967
      %v2094 = vadd.f32 %v1832, %v1970
      %v2095 = vadd.f32 %v1833, %v1975
      %v2096 = vadd.f32 %v1834, %v1978
      %v2097 = vadd.f32 %v1835, %v1983
      %v2098 = vadd.f32 %v1836, %v1986
      %v2099 = vadd.f32 %v1837, %v1991
      %v2100 = vadd.f32 %v1838, %v1994
      %v2101 = vadd.f32 %v1839, %v1999
      %v2102 = vadd.f32 %v1840, %v2002
      %v2103 = vadd.f32 %v1841, %v2007
      %v2104 = vadd.f32 %v1842, %v2010
      %v2105 = vadd.f32 %v1843, %v2015
      %v2106 = vadd.f32 %v1844, %v2018
      %v2107 = vadd.f32 %v1845, %v2023
      %v2108 = vadd.f32 %v1846, %v2026
      %v2109 = vadd.f32 %v1847, %v2031
      %v2110 = vadd.f32 %v1848, %v2034
      %v2111 = vadd.f32 %v1849, %v2039
      %v2112 = vadd.f32 %v1850, %v2042
      %v2113 = vadd.f32 %v1851, %v2047
      %v2114 = vadd.f32 %v1852, %v2050
      %v2115 = vadd.f32 %v1853, %v2055
      %v2116 = vadd.f32 %v1854, %v2058
      %v2117 = vadd.f32 %v1855, %v2063
      %v2118 = vadd.f32 %v1856, %v2066
      %v2119 = vadd.f32 %v1857, %v2071
      %v2120 = vadd.f32 %v1858, %v2074
      %v2121 = vadd.f32 %v1859, %v2079
      %v2122 = vadd.f32 %v1860, %v2082
      %v2123 = vadd.f32 %v1861, %v2087
      %v2124 = vadd.f32 %v1862, %v2090
      %2125 = vst.msk [vmem:[#allocation2] sm:$0xff] %vm332, %v2093
      %2126 = vst.msk [vmem:[#allocation2 + $0x8] sm:$0xff] %vm332, %v2094
      %2127 = vst.msk [vmem:[#allocation2 + $0x10] sm:$0xff] %vm332, %v2095
      %2128 = vst.msk [vmem:[#allocation2 + $0x18] sm:$0xff] %vm332, %v2096
      %2129 = vst.msk [vmem:[#allocation2 + $0x20] sm:$0xff] %vm332, %v2097
      %2130 = vst.msk [vmem:[#allocation2 + $0x28] sm:$0xff] %vm332, %v2098
      %2131 = vst.msk [vmem:[#allocation2 + $0x30] sm:$0xff] %vm332, %v2099
      %2132 = vst.msk [vmem:[#allocation2 + $0x38] sm:$0xff] %vm332, %v2100
      %2133 = vst.msk [vmem:[#allocation2 + $0x40] sm:$0xff] %vm332, %v2101
      %2134 = vst.msk [vmem:[#allocation2 + $0x48] sm:$0xff] %vm332, %v2102
      %2135 = vst.msk [vmem:[#allocation2 + $0x50] sm:$0xff] %vm332, %v2103
      %2136 = vst.msk [vmem:[#allocation2 + $0x58] sm:$0xff] %vm332, %v2104
      %2137 = vst.msk [vmem:[#allocation2 + $0x60] sm:$0xff] %vm332, %v2105
      %2138 = vst.msk [vmem:[#allocation2 + $0x68] sm:$0xff] %vm332, %v2106
      %2139 = vst.msk [vmem:[#allocation2 + $0x70] sm:$0xff] %vm332, %v2107
      %2140 = vst.msk [vmem:[#allocation2 + $0x78] sm:$0xff] %vm332, %v2108
      %2141 = vst.msk [vmem:[#allocation2 + $0x80] sm:$0xff] %vm332, %v2109
      %2142 = vst.msk [vmem:[#allocation2 + $0x88] sm:$0xff] %vm332, %v2110
      %2143 = vst.msk [vmem:[#allocation2 + $0x90] sm:$0xff] %vm332, %v2111
      %2144 = vst.msk [vmem:[#allocation2 + $0x98] sm:$0xff] %vm332, %v2112
      %2145 = vst.msk [vmem:[#allocation2 + $0xa0] sm:$0xff] %vm332, %v2113
      %2146 = vst.msk [vmem:[#allocation2 + $0xa8] sm:$0xff] %vm332, %v2114
      %2147 = vst.msk [vmem:[#allocation2 + $0xb0] sm:$0xff] %vm332, %v2115
      %2148 = vst.msk [vmem:[#allocation2 + $0xb8] sm:$0xff] %vm332, %v2116
      %2149 = vst.msk [vmem:[#allocation2 + $0xc0] sm:$0xff] %vm332, %v2117
      %2150 = vst.msk [vmem:[#allocation2 + $0xc8] sm:$0xff] %vm332, %v2118
      %2151 = vst.msk [vmem:[#allocation2 + $0xd0] sm:$0xff] %vm332, %v2119
      %2152 = vst.msk [vmem:[#allocation2 + $0xd8] sm:$0xff] %vm332, %v2120
      %2153 = vst.msk [vmem:[#allocation2 + $0xe0] sm:$0xff] %vm332, %v2121
      %2154 = vst.msk [vmem:[#allocation2 + $0xe8] sm:$0xff] %vm332, %v2122
      %2155 = vst.msk [vmem:[#allocation2 + $0xf0] sm:$0xff] %vm332, %v2123
      %2156 = vst.msk [vmem:[#allocation2 + $0xf8] sm:$0xff] %vm332, %v2124
      %v2157 = vld [vmem:[%s1440 + $0x2] sm:$0xff]
      %v2158 = vld [vmem:[%s1440 + $0xa] sm:$0xff]
      %v2159 = vld [vmem:[%s1440 + $0x1a] sm:$0xff]
      %v2160 = vld [vmem:[%s1440 + $0x22] sm:$0xff]
      %v2161 = vld [vmem:[%s1440 + $0x32] sm:$0xff]
      %v2162 = vld [vmem:[%s1440 + $0x3a] sm:$0xff]
      %v2163 = vld [vmem:[%s1440 + $0x4a] sm:$0xff]
      %v2164 = vld [vmem:[%s1440 + $0x52] sm:$0xff]
      %v2165 = vld [vmem:[%s1440 + $0x62] sm:$0xff]
      %v2166 = vld [vmem:[%s1440 + $0x6a] sm:$0xff]
      %v2167 = vld [vmem:[%s1440 + $0x7a] sm:$0xff]
      %v2168 = vld [vmem:[%s1440 + $0x82] sm:$0xff]
      %v2169 = vld [vmem:[%s1440 + $0x92] sm:$0xff]
      %v2170 = vld [vmem:[%s1440 + $0x9a] sm:$0xff]
      %v2171 = vld [vmem:[%s1440 + $0xaa] sm:$0xff]
      %v2172 = vld [vmem:[%s1440 + $0xb2] sm:$0xff]
      %v2173 = vld [vmem:[%s1440 + $0xc2] sm:$0xff]
      %v2174 = vld [vmem:[%s1440 + $0xca] sm:$0xff]
      %v2175 = vld [vmem:[%s1440 + $0xda] sm:$0xff]
      %v2176 = vld [vmem:[%s1440 + $0xe2] sm:$0xff]
      %v2177 = vld [vmem:[%s1440 + $0xf2] sm:$0xff]
      %v2178 = vld [vmem:[%s1440 + $0xfa] sm:$0xff]
      %v2179 = vld [vmem:[%s1440 + $0x10a] sm:$0xff]
      %v2180 = vld [vmem:[%s1440 + $0x112] sm:$0xff]
      %v2181 = vld [vmem:[%s1440 + $0x122] sm:$0xff]
      %v2182 = vld [vmem:[%s1440 + $0x12a] sm:$0xff]
      %v2183 = vld [vmem:[%s1440 + $0x13a] sm:$0xff]
      %v2184 = vld [vmem:[%s1440 + $0x142] sm:$0xff]
      %v2185 = vld [vmem:[%s1440 + $0x152] sm:$0xff]
      %v2186 = vld [vmem:[%s1440 + $0x15a] sm:$0xff]
      %v2187 = vld [vmem:[%s1440 + $0x16a] sm:$0xff]
      %v2188 = vld [vmem:[%s1440 + $0x172] sm:$0xff]
      %v2189 = vld [vmem:[#allocation2] sm:$0xff]
      %v2190 = vld [vmem:[#allocation2 + $0x8] sm:$0xff]
      %v2191 = vld [vmem:[#allocation2 + $0x10] sm:$0xff]
      %v2192 = vld [vmem:[#allocation2 + $0x18] sm:$0xff]
      %v2193 = vld [vmem:[#allocation2 + $0x20] sm:$0xff]
      %v2194 = vld [vmem:[#allocation2 + $0x28] sm:$0xff]
      %v2195 = vld [vmem:[#allocation2 + $0x30] sm:$0xff]
      %v2196 = vld [vmem:[#allocation2 + $0x38] sm:$0xff]
      %v2197 = vld [vmem:[#allocation2 + $0x40] sm:$0xff]
      %v2198 = vld [vmem:[#allocation2 + $0x48] sm:$0xff]
      %v2199 = vld [vmem:[#allocation2 + $0x50] sm:$0xff]
      %v2200 = vld [vmem:[#allocation2 + $0x58] sm:$0xff]
      %v2201 = vld [vmem:[#allocation2 + $0x60] sm:$0xff]
      %v2202 = vld [vmem:[#allocation2 + $0x68] sm:$0xff]
      %v2203 = vld [vmem:[#allocation2 + $0x70] sm:$0xff]
      %v2204 = vld [vmem:[#allocation2 + $0x78] sm:$0xff]
      %v2205 = vld [vmem:[#allocation2 + $0x80] sm:$0xff]
      %v2206 = vld [vmem:[#allocation2 + $0x88] sm:$0xff]
      %v2207 = vld [vmem:[#allocation2 + $0x90] sm:$0xff]
      %v2208 = vld [vmem:[#allocation2 + $0x98] sm:$0xff]
      %v2209 = vld [vmem:[#allocation2 + $0xa0] sm:$0xff]
      %v2210 = vld [vmem:[#allocation2 + $0xa8] sm:$0xff]
      %v2211 = vld [vmem:[#allocation2 + $0xb0] sm:$0xff]
      %v2212 = vld [vmem:[#allocation2 + $0xb8] sm:$0xff]
      %v2213 = vld [vmem:[#allocation2 + $0xc0] sm:$0xff]
      %v2214 = vld [vmem:[#allocation2 + $0xc8] sm:$0xff]
      %v2215 = vld [vmem:[#allocation2 + $0xd0] sm:$0xff]
      %v2216 = vld [vmem:[#allocation2 + $0xd8] sm:$0xff]
      %v2217 = vld [vmem:[#allocation2 + $0xe0] sm:$0xff]
      %v2218 = vld [vmem:[#allocation2 + $0xe8] sm:$0xff]
      %v2219 = vld [vmem:[#allocation2 + $0xf0] sm:$0xff]
      %v2220 = vld [vmem:[#allocation2 + $0xf8] sm:$0xff]
      %v2221 = vpack.c.bf16 %v2158, %v2157
      %v2222 = vpack.c.bf16 %v2160, %v2159
      %v2223 = vpack.c.bf16 %v2162, %v2161
      %v2224 = vpack.c.bf16 %v2164, %v2163
      %v2225 = vpack.c.bf16 %v2166, %v2165
      %v2226 = vpack.c.bf16 %v2168, %v2167
      %v2227 = vpack.c.bf16 %v2170, %v2169
      %v2228 = vpack.c.bf16 %v2172, %v2171
      %v2229 = vpack.c.bf16 %v2174, %v2173
      %v2230 = vpack.c.bf16 %v2176, %v2175
      %v2231 = vpack.c.bf16 %v2178, %v2177
      %v2232 = vpack.c.bf16 %v2180, %v2179
      %v2233 = vpack.c.bf16 %v2182, %v2181
      %v2234 = vpack.c.bf16 %v2184, %v2183
      %v2235 = vpack.c.bf16 %v2186, %v2185
      %v2236 = vpack.c.bf16 %v2188, %v2187
      %s2237 = scalar_lea.vmem %s1, 10
      %v2238 = vld [vmem:[%s2237] sm:$0x3]
      %v2240 = vsel %vm446, %v2221, 0
      %v2243 = vsel %vm446, %v2222, 0
      %v2246 = vsel %vm446, %v2223, 0
      %v2249 = vsel %vm446, %v2224, 0
      %v2252 = vsel %vm446, %v2225, 0
      %v2255 = vsel %vm446, %v2226, 0
      %v2258 = vsel %vm446, %v2227, 0
      %v2261 = vsel %vm446, %v2228, 0
      %v2264 = vsel %vm446, %v2229, 0
      %v2267 = vsel %vm446, %v2230, 0
      %v2270 = vsel %vm446, %v2231, 0
      %v2273 = vsel %vm446, %v2232, 0
      %v2276 = vsel %vm446, %v2233, 0
      %v2279 = vsel %vm446, %v2234, 0
      %v2282 = vsel %vm446, %v2235, 0
      %v2285 = vsel %vm446, %v2236, 0
      %v2288 = vsel %vm495, %v2238, 0
      %2290 = vmatprep.subr.bf16.mxu0 0
      %2291 = vmatpush1.bf16.msra.mxu0 %v2288
      %2292 = vmatprep.subr.bf16.mxu0 0
      %2293 = vmatpush1.bf16.msra.mxu0 0
      %2294 = vmatprep.subr.bf16.mxu0 0
      %2295 = vmatpush1.bf16.msra.mxu0 0
      %2296 = vmatprep.subr.bf16.mxu0 0
      %2297 = vmatpush1.bf16.msra.mxu0 0
      %2298 = vmatprep.subr.bf16.mxu0 0
      %2299 = vmatpush1.bf16.msra.mxu0 0
      %2300 = vmatprep.subr.bf16.mxu0 0
      %2301 = vmatpush1.bf16.msra.mxu0 0
      %2302 = vmatprep.subr.bf16.mxu0 0
      %2303 = vmatpush1.bf16.msra.mxu0 0
      %2304 = vmatprep.subr.bf16.mxu0 0
      %2305 = vmatpush1.bf16.msra.mxu0 0
      %2306 = vmatprep.subr.bf16.mxu0 0
      %2307 = vmatpush1.bf16.msra.mxu0 0
      %2308 = vmatprep.subr.bf16.mxu0 0
      %2309 = vmatpush1.bf16.msra.mxu0 0
      %2310 = vmatprep.subr.bf16.mxu0 0
      %2311 = vmatpush1.bf16.msra.mxu0 0
      %2312 = vmatprep.subr.bf16.mxu0 0
      %2313 = vmatpush1.bf16.msra.mxu0 0
      %2314 = vmatprep.subr.bf16.mxu0 0
      %2315 = vmatpush1.bf16.msra.mxu0 0
      %2316 = vmatprep.subr.bf16.mxu0 0
      %2317 = vmatpush1.bf16.msra.mxu0 0
      %2318 = vmatprep.subr.bf16.mxu0 0
      %2319 = vmatpush1.bf16.msra.mxu0 0
      %2320 = vmatprep.subr.bf16.mxu0 0
      %2321 = vmatpush1.bf16.msra.mxu0 0
      %2322 = vmatprep.mubr.bf16.mxu0 0
      %2323 = vmatmul.mubr.bf16.gmra.mrb[0].mxu0 %v2240
      %v2324 = vpop.f32.mrb[0].mxu0
      %v2325 = vadd.f32 0.0, %v2324
      %v2326 = vpop.f32.mrb[0].mxu0
      %v2327 = vpop.f32.mrb[0].mxu0
      %v2328 = vadd.f32 0.0, %v2327
      %v2329 = vpop.f32.mrb[0].mxu0
      %2330 = vmatprep.mubr.bf16.mxu0 0
      %2331 = vmatmul.mubr.bf16.gmra.mrb[0].mxu0 %v2243
      %v2332 = vpop.f32.mrb[0].mxu0
      %v2333 = vadd.f32 0.0, %v2332
      %v2334 = vpop.f32.mrb[0].mxu0
      %v2335 = vpop.f32.mrb[0].mxu0
      %v2336 = vadd.f32 0.0, %v2335
      %v2337 = vpop.f32.mrb[0].mxu0
      %2338 = vmatprep.mubr.bf16.mxu0 0
      %2339 = vmatmul.mubr.bf16.gmra.mrb[0].mxu0 %v2246
      %v2340 = vpop.f32.mrb[0].mxu0
      %v2341 = vadd.f32 0.0, %v2340
      %v2342 = vpop.f32.mrb[0].mxu0
      %v2343 = vpop.f32.mrb[0].mxu0
      %v2344 = vadd.f32 0.0, %v2343
      %v2345 = vpop.f32.mrb[0].mxu0
      %2346 = vmatprep.mubr.bf16.mxu0 0
      %2347 = vmatmul.mubr.bf16.gmra.mrb[0].mxu0 %v2249
      %v2348 = vpop.f32.mrb[0].mxu0
      %v2349 = vadd.f32 0.0, %v2348
      %v2350 = vpop.f32.mrb[0].mxu0
      %v2351 = vpop.f32.mrb[0].mxu0
      %v2352 = vadd.f32 0.0, %v2351
      %v2353 = vpop.f32.mrb[0].mxu0
      %2354 = vmatprep.mubr.bf16.mxu0 0
      %2355 = vmatmul.mubr.bf16.gmra.mrb[0].mxu0 %v2252
      %v2356 = vpop.f32.mrb[0].mxu0
      %v2357 = vadd.f32 0.0, %v2356
      %v2358 = vpop.f32.mrb[0].mxu0
      %v2359 = vpop.f32.mrb[0].mxu0
      %v2360 = vadd.f32 0.0, %v2359
      %v2361 = vpop.f32.mrb[0].mxu0
      %2362 = vmatprep.mubr.bf16.mxu0 0
      %2363 = vmatmul.mubr.bf16.gmra.mrb[0].mxu0 %v2255
      %v2364 = vpop.f32.mrb[0].mxu0
      %v2365 = vadd.f32 0.0, %v2364
      %v2366 = vpop.f32.mrb[0].mxu0
      %v2367 = vpop.f32.mrb[0].mxu0
      %v2368 = vadd.f32 0.0, %v2367
      %v2369 = vpop.f32.mrb[0].mxu0
      %2370 = vmatprep.mubr.bf16.mxu0 0
      %2371 = vmatmul.mubr.bf16.gmra.mrb[0].mxu0 %v2258
      %v2372 = vpop.f32.mrb[0].mxu0
      %v2373 = vadd.f32 0.0, %v2372
      %v2374 = vpop.f32.mrb[0].mxu0
      %v2375 = vpop.f32.mrb[0].mxu0
      %v2376 = vadd.f32 0.0, %v2375
      %v2377 = vpop.f32.mrb[0].mxu0
      %2378 = vmatprep.mubr.bf16.mxu0 0
      %2379 = vmatmul.mubr.bf16.gmra.mrb[0].mxu0 %v2261
      %v2380 = vpop.f32.mrb[0].mxu0
      %v2381 = vadd.f32 0.0, %v2380
      %v2382 = vpop.f32.mrb[0].mxu0
      %v2383 = vpop.f32.mrb[0].mxu0
      %v2384 = vadd.f32 0.0, %v2383
      %v2385 = vpop.f32.mrb[0].mxu0
      %2386 = vmatprep.mubr.bf16.mxu0 0
      %2387 = vmatmul.mubr.bf16.gmra.mrb[0].mxu0 %v2264
      %v2388 = vpop.f32.mrb[0].mxu0
      %v2389 = vadd.f32 0.0, %v2388
      %v2390 = vpop.f32.mrb[0].mxu0
      %v2391 = vpop.f32.mrb[0].mxu0
      %v2392 = vadd.f32 0.0, %v2391
      %v2393 = vpop.f32.mrb[0].mxu0
      %2394 = vmatprep.mubr.bf16.mxu0 0
      %2395 = vmatmul.mubr.bf16.gmra.mrb[0].mxu0 %v2267
      %v2396 = vpop.f32.mrb[0].mxu0
      %v2397 = vadd.f32 0.0, %v2396
      %v2398 = vpop.f32.mrb[0].mxu0
      %v2399 = vpop.f32.mrb[0].mxu0
      %v2400 = vadd.f32 0.0, %v2399
      %v2401 = vpop.f32.mrb[0].mxu0
      %2402 = vmatprep.mubr.bf16.mxu0 0
      %2403 = vmatmul.mubr.bf16.gmra.mrb[0].mxu0 %v2270
      %v2404 = vpop.f32.mrb[0].mxu0
      %v2405 = vadd.f32 0.0, %v2404
      %v2406 = vpop.f32.mrb[0].mxu0
      %v2407 = vpop.f32.mrb[0].mxu0
      %v2408 = vadd.f32 0.0, %v2407
      %v2409 = vpop.f32.mrb[0].mxu0
      %2410 = vmatprep.mubr.bf16.mxu0 0
      %2411 = vmatmul.mubr.bf16.gmra.mrb[0].mxu0 %v2273
      %v2412 = vpop.f32.mrb[0].mxu0
      %v2413 = vadd.f32 0.0, %v2412
      %v2414 = vpop.f32.mrb[0].mxu0
      %v2415 = vpop.f32.mrb[0].mxu0
      %v2416 = vadd.f32 0.0, %v2415
      %v2417 = vpop.f32.mrb[0].mxu0
      %2418 = vmatprep.mubr.bf16.mxu0 0
      %2419 = vmatmul.mubr.bf16.gmra.mrb[0].mxu0 %v2276
      %v2420 = vpop.f32.mrb[0].mxu0
      %v2421 = vadd.f32 0.0, %v2420
      %v2422 = vpop.f32.mrb[0].mxu0
      %v2423 = vpop.f32.mrb[0].mxu0
      %v2424 = vadd.f32 0.0, %v2423
      %v2425 = vpop.f32.mrb[0].mxu0
      %2426 = vmatprep.mubr.bf16.mxu0 0
      %2427 = vmatmul.mubr.bf16.gmra.mrb[0].mxu0 %v2279
      %v2428 = vpop.f32.mrb[0].mxu0
      %v2429 = vadd.f32 0.0, %v2428
      %v2430 = vpop.f32.mrb[0].mxu0
      %v2431 = vpop.f32.mrb[0].mxu0
      %v2432 = vadd.f32 0.0, %v2431
      %v2433 = vpop.f32.mrb[0].mxu0
      %2434 = vmatprep.mubr.bf16.mxu0 0
      %2435 = vmatmul.mubr.bf16.gmra.mrb[0].mxu0 %v2282
      %v2436 = vpop.f32.mrb[0].mxu0
      %v2437 = vadd.f32 0.0, %v2436
      %v2438 = vpop.f32.mrb[0].mxu0
      %v2439 = vpop.f32.mrb[0].mxu0
      %v2440 = vadd.f32 0.0, %v2439
      %v2441 = vpop.f32.mrb[0].mxu0
      %2442 = vmatprep.mubr.bf16.mxu0 0
      %2443 = vmatmul.mubr.bf16.gmra.mrb[0].mxu0 %v2285
      %v2444 = vpop.f32.mrb[0].mxu0
      %v2445 = vadd.f32 0.0, %v2444
      %v2446 = vpop.f32.mrb[0].mxu0
      %v2447 = vpop.f32.mrb[0].mxu0
      %v2448 = vadd.f32 0.0, %v2447
      %v2449 = vpop.f32.mrb[0].mxu0
      %2450 = vdwg.mxu0
      %v2451 = vadd.f32 %v2189, %v2325
      %v2452 = vadd.f32 %v2190, %v2328
      %v2453 = vadd.f32 %v2191, %v2333
      %v2454 = vadd.f32 %v2192, %v2336
      %v2455 = vadd.f32 %v2193, %v2341
      %v2456 = vadd.f32 %v2194, %v2344
      %v2457 = vadd.f32 %v2195, %v2349
      %v2458 = vadd.f32 %v2196, %v2352
      %v2459 = vadd.f32 %v2197, %v2357
      %v2460 = vadd.f32 %v2198, %v2360
      %v2461 = vadd.f32 %v2199, %v2365
      %v2462 = vadd.f32 %v2200, %v2368
      %v2463 = vadd.f32 %v2201, %v2373
      %v2464 = vadd.f32 %v2202, %v2376
      %v2465 = vadd.f32 %v2203, %v2381
      %v2466 = vadd.f32 %v2204, %v2384
      %v2467 = vadd.f32 %v2205, %v2389
      %v2468 = vadd.f32 %v2206, %v2392
      %v2469 = vadd.f32 %v2207, %v2397
      %v2470 = vadd.f32 %v2208, %v2400
      %v2471 = vadd.f32 %v2209, %v2405
      %v2472 = vadd.f32 %v2210, %v2408
      %v2473 = vadd.f32 %v2211, %v2413
      %v2474 = vadd.f32 %v2212, %v2416
      %v2475 = vadd.f32 %v2213, %v2421
      %v2476 = vadd.f32 %v2214, %v2424
      %v2477 = vadd.f32 %v2215, %v2429
      %v2478 = vadd.f32 %v2216, %v2432
      %v2479 = vadd.f32 %v2217, %v2437
      %v2480 = vadd.f32 %v2218, %v2440
      %v2481 = vadd.f32 %v2219, %v2445
      %v2482 = vadd.f32 %v2220, %v2448
      %2483 = vst.msk [vmem:[#allocation2] sm:$0xff] %vm332, %v2451
      %2484 = vst.msk [vmem:[#allocation2 + $0x8] sm:$0xff] %vm332, %v2452
      %2485 = vst.msk [vmem:[#allocation2 + $0x10] sm:$0xff] %vm332, %v2453
      %2486 = vst.msk [vmem:[#allocation2 + $0x18] sm:$0xff] %vm332, %v2454
      %2487 = vst.msk [vmem:[#allocation2 + $0x20] sm:$0xff] %vm332, %v2455
      %2488 = vst.msk [vmem:[#allocation2 + $0x28] sm:$0xff] %vm332, %v2456
      %2489 = vst.msk [vmem:[#allocation2 + $0x30] sm:$0xff] %vm332, %v2457
      %2490 = vst.msk [vmem:[#allocation2 + $0x38] sm:$0xff] %vm332, %v2458
      %2491 = vst.msk [vmem:[#allocation2 + $0x40] sm:$0xff] %vm332, %v2459
      %2492 = vst.msk [vmem:[#allocation2 + $0x48] sm:$0xff] %vm332, %v2460
      %2493 = vst.msk [vmem:[#allocation2 + $0x50] sm:$0xff] %vm332, %v2461
      %2494 = vst.msk [vmem:[#allocation2 + $0x58] sm:$0xff] %vm332, %v2462
      %2495 = vst.msk [vmem:[#allocation2 + $0x60] sm:$0xff] %vm332, %v2463
      %2496 = vst.msk [vmem:[#allocation2 + $0x68] sm:$0xff] %vm332, %v2464
      %2497 = vst.msk [vmem:[#allocation2 + $0x70] sm:$0xff] %vm332, %v2465
      %2498 = vst.msk [vmem:[#allocation2 + $0x78] sm:$0xff] %vm332, %v2466
      %2499 = vst.msk [vmem:[#allocation2 + $0x80] sm:$0xff] %vm332, %v2467
      %2500 = vst.msk [vmem:[#allocation2 + $0x88] sm:$0xff] %vm332, %v2468
      %2501 = vst.msk [vmem:[#allocation2 + $0x90] sm:$0xff] %vm332, %v2469
      %2502 = vst.msk [vmem:[#allocation2 + $0x98] sm:$0xff] %vm332, %v2470
      %2503 = vst.msk [vmem:[#allocation2 + $0xa0] sm:$0xff] %vm332, %v2471
      %2504 = vst.msk [vmem:[#allocation2 + $0xa8] sm:$0xff] %vm332, %v2472
      %2505 = vst.msk [vmem:[#allocation2 + $0xb0] sm:$0xff] %vm332, %v2473
      %2506 = vst.msk [vmem:[#allocation2 + $0xb8] sm:$0xff] %vm332, %v2474
      %2507 = vst.msk [vmem:[#allocation2 + $0xc0] sm:$0xff] %vm332, %v2475
      %2508 = vst.msk [vmem:[#allocation2 + $0xc8] sm:$0xff] %vm332, %v2476
      %2509 = vst.msk [vmem:[#allocation2 + $0xd0] sm:$0xff] %vm332, %v2477
      %2510 = vst.msk [vmem:[#allocation2 + $0xd8] sm:$0xff] %vm332, %v2478
      %2511 = vst.msk [vmem:[#allocation2 + $0xe0] sm:$0xff] %vm332, %v2479
      %2512 = vst.msk [vmem:[#allocation2 + $0xe8] sm:$0xff] %vm332, %v2480
      %2513 = vst.msk [vmem:[#allocation2 + $0xf0] sm:$0xff] %vm332, %v2481
      %2514 = vst.msk [vmem:[#allocation2 + $0xf8] sm:$0xff] %vm332, %v2482
      %s2515 = scalar_lea.vmem %s326, 48
      %v2516 = vld [vmem:[%s2515] sm:$0xff]
      %v2517 = vld [vmem:[%s2515 + $0x8] sm:$0xff]
      %v2518 = vld [vmem:[%s2515 + $0x18] sm:$0xff]
      %v2519 = vld [vmem:[%s2515 + $0x20] sm:$0xff]
      %v2520 = vld [vmem:[%s2515 + $0x30] sm:$0xff]
      %v2521 = vld [vmem:[%s2515 + $0x38] sm:$0xff]
      %v2522 = vld [vmem:[%s2515 + $0x48] sm:$0xff]
      %v2523 = vld [vmem:[%s2515 + $0x50] sm:$0xff]
      %v2524 = vld [vmem:[%s2515 + $0x60] sm:$0xff]
      %v2525 = vld [vmem:[%s2515 + $0x68] sm:$0xff]
      %v2526 = vld [vmem:[%s2515 + $0x78] sm:$0xff]
      %v2527 = vld [vmem:[%s2515 + $0x80] sm:$0xff]
      %v2528 = vld [vmem:[%s2515 + $0x90] sm:$0xff]
      %v2529 = vld [vmem:[%s2515 + $0x98] sm:$0xff]
      %v2530 = vld [vmem:[%s2515 + $0xa8] sm:$0xff]
      %v2531 = vld [vmem:[%s2515 + $0xb0] sm:$0xff]
      %v2532 = vld [vmem:[%s2515 + $0xc0] sm:$0xff]
      %v2533 = vld [vmem:[%s2515 + $0xc8] sm:$0xff]
      %v2534 = vld [vmem:[%s2515 + $0xd8] sm:$0xff]
      %v2535 = vld [vmem:[%s2515 + $0xe0] sm:$0xff]
      %v2536 = vld [vmem:[%s2515 + $0xf0] sm:$0xff]
      %v2537 = vld [vmem:[%s2515 + $0xf8] sm:$0xff]
      %v2538 = vld [vmem:[%s2515 + $0x108] sm:$0xff]
      %v2539 = vld [vmem:[%s2515 + $0x110] sm:$0xff]
      %v2540 = vld [vmem:[%s2515 + $0x120] sm:$0xff]
      %v2541 = vld [vmem:[%s2515 + $0x128] sm:$0xff]
      %v2542 = vld [vmem:[%s2515 + $0x138] sm:$0xff]
      %v2543 = vld [vmem:[%s2515 + $0x140] sm:$0xff]
      %v2544 = vld [vmem:[%s2515 + $0x150] sm:$0xff]
      %v2545 = vld [vmem:[%s2515 + $0x158] sm:$0xff]
      %v2546 = vld [vmem:[%s2515 + $0x168] sm:$0xff]
      %v2547 = vld [vmem:[%s2515 + $0x170] sm:$0xff]
      %v2548 = vld [vmem:[#allocation2] sm:$0xff]
      %v2549 = vld [vmem:[#allocation2 + $0x8] sm:$0xff]
      %v2550 = vld [vmem:[#allocation2 + $0x10] sm:$0xff]
      %v2551 = vld [vmem:[#allocation2 + $0x18] sm:$0xff]
      %v2552 = vld [vmem:[#allocation2 + $0x20] sm:$0xff]
      %v2553 = vld [vmem:[#allocation2 + $0x28] sm:$0xff]
      %v2554 = vld [vmem:[#allocation2 + $0x30] sm:$0xff]
      %v2555 = vld [vmem:[#allocation2 + $0x38] sm:$0xff]
      %v2556 = vld [vmem:[#allocation2 + $0x40] sm:$0xff]
      %v2557 = vld [vmem:[#allocation2 + $0x48] sm:$0xff]
      %v2558 = vld [vmem:[#allocation2 + $0x50] sm:$0xff]
      %v2559 = vld [vmem:[#allocation2 + $0x58] sm:$0xff]
      %v2560 = vld [vmem:[#allocation2 + $0x60] sm:$0xff]
      %v2561 = vld [vmem:[#allocation2 + $0x68] sm:$0xff]
      %v2562 = vld [vmem:[#allocation2 + $0x70] sm:$0xff]
      %v2563 = vld [vmem:[#allocation2 + $0x78] sm:$0xff]
      %v2564 = vld [vmem:[#allocation2 + $0x80] sm:$0xff]
      %v2565 = vld [vmem:[#allocation2 + $0x88] sm:$0xff]
      %v2566 = vld [vmem:[#allocation2 + $0x90] sm:$0xff]
      %v2567 = vld [vmem:[#allocation2 + $0x98] sm:$0xff]
      %v2568 = vld [vmem:[#allocation2 + $0xa0] sm:$0xff]
      %v2569 = vld [vmem:[#allocation2 + $0xa8] sm:$0xff]
      %v2570 = vld [vmem:[#allocation2 + $0xb0] sm:$0xff]
      %v2571 = vld [vmem:[#allocation2 + $0xb8] sm:$0xff]
      %v2572 = vld [vmem:[#allocation2 + $0xc0] sm:$0xff]
      %v2573 = vld [vmem:[#allocation2 + $0xc8] sm:$0xff]
      %v2574 = vld [vmem:[#allocation2 + $0xd0] sm:$0xff]
      %v2575 = vld [vmem:[#allocation2 + $0xd8] sm:$0xff]
      %v2576 = vld [vmem:[#allocation2 + $0xe0] sm:$0xff]
      %v2577 = vld [vmem:[#allocation2 + $0xe8] sm:$0xff]
      %v2578 = vld [vmem:[#allocation2 + $0xf0] sm:$0xff]
      %v2579 = vld [vmem:[#allocation2 + $0xf8] sm:$0xff]
      %v2580 = vpack.c.bf16 %v2517, %v2516
      %v2581 = vpack.c.bf16 %v2519, %v2518
      %v2582 = vpack.c.bf16 %v2521, %v2520
      %v2583 = vpack.c.bf16 %v2523, %v2522
      %v2584 = vpack.c.bf16 %v2525, %v2524
      %v2585 = vpack.c.bf16 %v2527, %v2526
      %v2586 = vpack.c.bf16 %v2529, %v2528
      %v2587 = vpack.c.bf16 %v2531, %v2530
      %v2588 = vpack.c.bf16 %v2533, %v2532
      %v2589 = vpack.c.bf16 %v2535, %v2534
      %v2590 = vpack.c.bf16 %v2537, %v2536
      %v2591 = vpack.c.bf16 %v2539, %v2538
      %v2592 = vpack.c.bf16 %v2541, %v2540
      %v2593 = vpack.c.bf16 %v2543, %v2542
      %v2594 = vpack.c.bf16 %v2545, %v2544
      %v2595 = vpack.c.bf16 %v2547, %v2546
      %s2596 = scalar_lea.vmem %s1, 12
      %v2597 = vld [vmem:[%s2596] sm:$0x3]
      %v2599 = vsel %vm446, %v2580, 0
      %v2602 = vsel %vm446, %v2581, 0
      %v2605 = vsel %vm446, %v2582, 0
      %v2608 = vsel %vm446, %v2583, 0
      %v2611 = vsel %vm446, %v2584, 0
      %v2614 = vsel %vm446, %v2585, 0
      %v2617 = vsel %vm446, %v2586, 0
      %v2620 = vsel %vm446, %v2587, 0
      %v2623 = vsel %vm446, %v2588, 0
      %v2626 = vsel %vm446, %v2589, 0
      %v2629 = vsel %vm446, %v2590, 0
      %v2632 = vsel %vm446, %v2591, 0
      %v2635 = vsel %vm446, %v2592, 0
      %v2638 = vsel %vm446, %v2593, 0
      %v2641 = vsel %vm446, %v2594, 0
      %v2644 = vsel %vm446, %v2595, 0
      %v2647 = vsel %vm495, %v2597, 0
      %2649 = vmatprep.subr.bf16.mxu0 0
      %2650 = vmatpush1.bf16.msra.mxu0 %v2647
      %2651 = vmatprep.subr.bf16.mxu0 0
      %2652 = vmatpush1.bf16.msra.mxu0 0
      %2653 = vmatprep.subr.bf16.mxu0 0
      %2654 = vmatpush1.bf16.msra.mxu0 0
      %2655 = vmatprep.subr.bf16.mxu0 0
      %2656 = vmatpush1.bf16.msra.mxu0 0
      %2657 = vmatprep.subr.bf16.mxu0 0
      %2658 = vmatpush1.bf16.msra.mxu0 0
      %2659 = vmatprep.subr.bf16.mxu0 0
      %2660 = vmatpush1.bf16.msra.mxu0 0
      %2661 = vmatprep.subr.bf16.mxu0 0
      %2662 = vmatpush1.bf16.msra.mxu0 0
      %2663 = vmatprep.subr.bf16.mxu0 0
      %2664 = vmatpush1.bf16.msra.mxu0 0
      %2665 = vmatprep.subr.bf16.mxu0 0
      %2666 = vmatpush1.bf16.msra.mxu0 0
      %2667 = vmatprep.subr.bf16.mxu0 0
      %2668 = vmatpush1.bf16.msra.mxu0 0
      %2669 = vmatprep.subr.bf16.mxu0 0
      %2670 = vmatpush1.bf16.msra.mxu0 0
      %2671 = vmatprep.subr.bf16.mxu0 0
      %2672 = vmatpush1.bf16.msra.mxu0 0
      %2673 = vmatprep.subr.bf16.mxu0 0
      %2674 = vmatpush1.bf16.msra.mxu0 0
      %2675 = vmatprep.subr.bf16.mxu0 0
      %2676 = vmatpush1.bf16.msra.mxu0 0
      %2677 = vmatprep.subr.bf16.mxu0 0
      %2678 = vmatpush1.bf16.msra.mxu0 0
      %2679 = vmatprep.subr.bf16.mxu0 0
      %2680 = vmatpush1.bf16.msra.mxu0 0
      %2681 = vmatprep.mubr.bf16.mxu0 0
      %2682 = vmatmul.mubr.bf16.gmra.mrb[0].mxu0 %v2599
      %v2683 = vpop.f32.mrb[0].mxu0
      %v2684 = vadd.f32 0.0, %v2683
      %v2685 = vpop.f32.mrb[0].mxu0
      %v2686 = vpop.f32.mrb[0].mxu0
      %v2687 = vadd.f32 0.0, %v2686
      %v2688 = vpop.f32.mrb[0].mxu0
      %2689 = vmatprep.mubr.bf16.mxu0 0
      %2690 = vmatmul.mubr.bf16.gmra.mrb[0].mxu0 %v2602
      %v2691 = vpop.f32.mrb[0].mxu0
      %v2692 = vadd.f32 0.0, %v2691
      %v2693 = vpop.f32.mrb[0].mxu0
      %v2694 = vpop.f32.mrb[0].mxu0
      %v2695 = vadd.f32 0.0, %v2694
      %v2696 = vpop.f32.mrb[0].mxu0
      %2697 = vmatprep.mubr.bf16.mxu0 0
      %2698 = vmatmul.mubr.bf16.gmra.mrb[0].mxu0 %v2605
      %v2699 = vpop.f32.mrb[0].mxu0
      %v2700 = vadd.f32 0.0, %v2699
      %v2701 = vpop.f32.mrb[0].mxu0
      %v2702 = vpop.f32.mrb[0].mxu0
      %v2703 = vadd.f32 0.0, %v2702
      %v2704 = vpop.f32.mrb[0].mxu0
      %2705 = vmatprep.mubr.bf16.mxu0 0
      %2706 = vmatmul.mubr.bf16.gmra.mrb[0].mxu0 %v2608
      %v2707 = vpop.f32.mrb[0].mxu0
      %v2708 = vadd.f32 0.0, %v2707
      %v2709 = vpop.f32.mrb[0].mxu0
      %v2710 = vpop.f32.mrb[0].mxu0
      %v2711 = vadd.f32 0.0, %v2710
      %v2712 = vpop.f32.mrb[0].mxu0
      %2713 = vmatprep.mubr.bf16.mxu0 0
      %2714 = vmatmul.mubr.bf16.gmra.mrb[0].mxu0 %v2611
      %v2715 = vpop.f32.mrb[0].mxu0
      %v2716 = vadd.f32 0.0, %v2715
      %v2717 = vpop.f32.mrb[0].mxu0
      %v2718 = vpop.f32.mrb[0].mxu0
      %v2719 = vadd.f32 0.0, %v2718
      %v2720 = vpop.f32.mrb[0].mxu0
      %2721 = vmatprep.mubr.bf16.mxu0 0
      %2722 = vmatmul.mubr.bf16.gmra.mrb[0].mxu0 %v2614
      %v2723 = vpop.f32.mrb[0].mxu0
      %v2724 = vadd.f32 0.0, %v2723
      %v2725 = vpop.f32.mrb[0].mxu0
      %v2726 = vpop.f32.mrb[0].mxu0
      %v2727 = vadd.f32 0.0, %v2726
      %v2728 = vpop.f32.mrb[0].mxu0
      %2729 = vmatprep.mubr.bf16.mxu0 0
      %2730 = vmatmul.mubr.bf16.gmra.mrb[0].mxu0 %v2617
      %v2731 = vpop.f32.mrb[0].mxu0
      %v2732 = vadd.f32 0.0, %v2731
      %v2733 = vpop.f32.mrb[0].mxu0
      %v2734 = vpop.f32.mrb[0].mxu0
      %v2735 = vadd.f32 0.0, %v2734
      %v2736 = vpop.f32.mrb[0].mxu0
      %2737 = vmatprep.mubr.bf16.mxu0 0
      %2738 = vmatmul.mubr.bf16.gmra.mrb[0].mxu0 %v2620
      %v2739 = vpop.f32.mrb[0].mxu0
      %v2740 = vadd.f32 0.0, %v2739
      %v2741 = vpop.f32.mrb[0].mxu0
      %v2742 = vpop.f32.mrb[0].mxu0
      %v2743 = vadd.f32 0.0, %v2742
      %v2744 = vpop.f32.mrb[0].mxu0
      %2745 = vmatprep.mubr.bf16.mxu0 0
      %2746 = vmatmul.mubr.bf16.gmra.mrb[0].mxu0 %v2623
      %v2747 = vpop.f32.mrb[0].mxu0
      %v2748 = vadd.f32 0.0, %v2747
      %v2749 = vpop.f32.mrb[0].mxu0
      %v2750 = vpop.f32.mrb[0].mxu0
      %v2751 = vadd.f32 0.0, %v2750
      %v2752 = vpop.f32.mrb[0].mxu0
      %2753 = vmatprep.mubr.bf16.mxu0 0
      %2754 = vmatmul.mubr.bf16.gmra.mrb[0].mxu0 %v2626
      %v2755 = vpop.f32.mrb[0].mxu0
      %v2756 = vadd.f32 0.0, %v2755
      %v2757 = vpop.f32.mrb[0].mxu0
      %v2758 = vpop.f32.mrb[0].mxu0
      %v2759 = vadd.f32 0.0, %v2758
      %v2760 = vpop.f32.mrb[0].mxu0
      %2761 = vmatprep.mubr.bf16.mxu0 0
      %2762 = vmatmul.mubr.bf16.gmra.mrb[0].mxu0 %v2629
      %v2763 = vpop.f32.mrb[0].mxu0
      %v2764 = vadd.f32 0.0, %v2763
      %v2765 = vpop.f32.mrb[0].mxu0
      %v2766 = vpop.f32.mrb[0].mxu0
      %v2767 = vadd.f32 0.0, %v2766
      %v2768 = vpop.f32.mrb[0].mxu0
      %2769 = vmatprep.mubr.bf16.mxu0 0
      %2770 = vmatmul.mubr.bf16.gmra.mrb[0].mxu0 %v2632
      %v2771 = vpop.f32.mrb[0].mxu0
      %v2772 = vadd.f32 0.0, %v2771
      %v2773 = vpop.f32.mrb[0].mxu0
      %v2774 = vpop.f32.mrb[0].mxu0
      %v2775 = vadd.f32 0.0, %v2774
      %v2776 = vpop.f32.mrb[0].mxu0
      %2777 = vmatprep.mubr.bf16.mxu0 0
      %2778 = vmatmul.mubr.bf16.gmra.mrb[0].mxu0 %v2635
      %v2779 = vpop.f32.mrb[0].mxu0
      %v2780 = vadd.f32 0.0, %v2779
      %v2781 = vpop.f32.mrb[0].mxu0
      %v2782 = vpop.f32.mrb[0].mxu0
      %v2783 = vadd.f32 0.0, %v2782
      %v2784 = vpop.f32.mrb[0].mxu0
      %2785 = vmatprep.mubr.bf16.mxu0 0
      %2786 = vmatmul.mubr.bf16.gmra.mrb[0].mxu0 %v2638
      %v2787 = vpop.f32.mrb[0].mxu0
      %v2788 = vadd.f32 0.0, %v2787
      %v2789 = vpop.f32.mrb[0].mxu0
      %v2790 = vpop.f32.mrb[0].mxu0
      %v2791 = vadd.f32 0.0, %v2790
      %v2792 = vpop.f32.mrb[0].mxu0
      %2793 = vmatprep.mubr.bf16.mxu0 0
      %2794 = vmatmul.mubr.bf16.gmra.mrb[0].mxu0 %v2641
      %v2795 = vpop.f32.mrb[0].mxu0
      %v2796 = vadd.f32 0.0, %v2795
      %v2797 = vpop.f32.mrb[0].mxu0
      %v2798 = vpop.f32.mrb[0].mxu0
      %v2799 = vadd.f32 0.0, %v2798
      %v2800 = vpop.f32.mrb[0].mxu0
      %2801 = vmatprep.mubr.bf16.mxu0 0
      %2802 = vmatmul.mubr.bf16.gmra.mrb[0].mxu0 %v2644
      %v2803 = vpop.f32.mrb[0].mxu0
      %v2804 = vadd.f32 0.0, %v2803
      %v2805 = vpop.f32.mrb[0].mxu0
      %v2806 = vpop.f32.mrb[0].mxu0
      %v2807 = vadd.f32 0.0, %v2806
      %v2808 = vpop.f32.mrb[0].mxu0
      %2809 = vdwg.mxu0
      %v2810 = vadd.f32 %v2548, %v2684
      %v2811 = vadd.f32 %v2549, %v2687
      %v2812 = vadd.f32 %v2550, %v2692
      %v2813 = vadd.f32 %v2551, %v2695
      %v2814 = vadd.f32 %v2552, %v2700
      %v2815 = vadd.f32 %v2553, %v2703
      %v2816 = vadd.f32 %v2554, %v2708
      %v2817 = vadd.f32 %v2555, %v2711
      %v2818 = vadd.f32 %v2556, %v2716
      %v2819 = vadd.f32 %v2557, %v2719
      %v2820 = vadd.f32 %v2558, %v2724
      %v2821 = vadd.f32 %v2559, %v2727
      %v2822 = vadd.f32 %v2560, %v2732
      %v2823 = vadd.f32 %v2561, %v2735
      %v2824 = vadd.f32 %v2562, %v2740
      %v2825 = vadd.f32 %v2563, %v2743
      %v2826 = vadd.f32 %v2564, %v2748
      %v2827 = vadd.f32 %v2565, %v2751
      %v2828 = vadd.f32 %v2566, %v2756
      %v2829 = vadd.f32 %v2567, %v2759
      %v2830 = vadd.f32 %v2568, %v2764
      %v2831 = vadd.f32 %v2569, %v2767
      %v2832 = vadd.f32 %v2570, %v2772
      %v2833 = vadd.f32 %v2571, %v2775
      %v2834 = vadd.f32 %v2572, %v2780
      %v2835 = vadd.f32 %v2573, %v2783
      %v2836 = vadd.f32 %v2574, %v2788
      %v2837 = vadd.f32 %v2575, %v2791
      %v2838 = vadd.f32 %v2576, %v2796
      %v2839 = vadd.f32 %v2577, %v2799
      %v2840 = vadd.f32 %v2578, %v2804
      %v2841 = vadd.f32 %v2579, %v2807
      %2842 = vst.msk [vmem:[#allocation2] sm:$0xff] %vm332, %v2810
      %2843 = vst.msk [vmem:[#allocation2 + $0x8] sm:$0xff] %vm332, %v2811
      %2844 = vst.msk [vmem:[#allocation2 + $0x10] sm:$0xff] %vm332, %v2812
      %2845 = vst.msk [vmem:[#allocation2 + $0x18] sm:$0xff] %vm332, %v2813
      %2846 = vst.msk [vmem:[#allocation2 + $0x20] sm:$0xff] %vm332, %v2814
      %2847 = vst.msk [vmem:[#allocation2 + $0x28] sm:$0xff] %vm332, %v2815
      %2848 = vst.msk [vmem:[#allocation2 + $0x30] sm:$0xff] %vm332, %v2816
      %2849 = vst.msk [vmem:[#allocation2 + $0x38] sm:$0xff] %vm332, %v2817
      %2850 = vst.msk [vmem:[#allocation2 + $0x40] sm:$0xff] %vm332, %v2818
      %2851 = vst.msk [vmem:[#allocation2 + $0x48] sm:$0xff] %vm332, %v2819
      %2852 = vst.msk [vmem:[#allocation2 + $0x50] sm:$0xff] %vm332, %v2820
      %2853 = vst.msk [vmem:[#allocation2 + $0x58] sm:$0xff] %vm332, %v2821
      %2854 = vst.msk [vmem:[#allocation2 + $0x60] sm:$0xff] %vm332, %v2822
      %2855 = vst.msk [vmem:[#allocation2 + $0x68] sm:$0xff] %vm332, %v2823
      %2856 = vst.msk [vmem:[#allocation2 + $0x70] sm:$0xff] %vm332, %v2824
      %2857 = vst.msk [vmem:[#allocation2 + $0x78] sm:$0xff] %vm332, %v2825
      %2858 = vst.msk [vmem:[#allocation2 + $0x80] sm:$0xff] %vm332, %v2826
      %2859 = vst.msk [vmem:[#allocation2 + $0x88] sm:$0xff] %vm332, %v2827
      %2860 = vst.msk [vmem:[#allocation2 + $0x90] sm:$0xff] %vm332, %v2828
      %2861 = vst.msk [vmem:[#allocation2 + $0x98] sm:$0xff] %vm332, %v2829
      %2862 = vst.msk [vmem:[#allocation2 + $0xa0] sm:$0xff] %vm332, %v2830
      %2863 = vst.msk [vmem:[#allocation2 + $0xa8] sm:$0xff] %vm332, %v2831
      %2864 = vst.msk [vmem:[#allocation2 + $0xb0] sm:$0xff] %vm332, %v2832
      %2865 = vst.msk [vmem:[#allocation2 + $0xb8] sm:$0xff] %vm332, %v2833
      %2866 = vst.msk [vmem:[#allocation2 + $0xc0] sm:$0xff] %vm332, %v2834
      %2867 = vst.msk [vmem:[#allocation2 + $0xc8] sm:$0xff] %vm332, %v2835
      %2868 = vst.msk [vmem:[#allocation2 + $0xd0] sm:$0xff] %vm332, %v2836
      %2869 = vst.msk [vmem:[#allocation2 + $0xd8] sm:$0xff] %vm332, %v2837
      %2870 = vst.msk [vmem:[#allocation2 + $0xe0] sm:$0xff] %vm332, %v2838
      %2871 = vst.msk [vmem:[#allocation2 + $0xe8] sm:$0xff] %vm332, %v2839
      %2872 = vst.msk [vmem:[#allocation2 + $0xf0] sm:$0xff] %vm332, %v2840
      %2873 = vst.msk [vmem:[#allocation2 + $0xf8] sm:$0xff] %vm332, %v2841
      %v2874 = vld [vmem:[%s2515 + $0x1] sm:$0xff]
      %v2875 = vld [vmem:[%s2515 + $0x9] sm:$0xff]
      %v2876 = vld [vmem:[%s2515 + $0x19] sm:$0xff]
      %v2877 = vld [vmem:[%s2515 + $0x21] sm:$0xff]
      %v2878 = vld [vmem:[%s2515 + $0x31] sm:$0xff]
      %v2879 = vld [vmem:[%s2515 + $0x39] sm:$0xff]
      %v2880 = vld [vmem:[%s2515 + $0x49] sm:$0xff]
      %v2881 = vld [vmem:[%s2515 + $0x51] sm:$0xff]
      %v2882 = vld [vmem:[%s2515 + $0x61] sm:$0xff]
      %v2883 = vld [vmem:[%s2515 + $0x69] sm:$0xff]
      %v2884 = vld [vmem:[%s2515 + $0x79] sm:$0xff]
      %v2885 = vld [vmem:[%s2515 + $0x81] sm:$0xff]
      %v2886 = vld [vmem:[%s2515 + $0x91] sm:$0xff]
      %v2887 = vld [vmem:[%s2515 + $0x99] sm:$0xff]
      %v2888 = vld [vmem:[%s2515 + $0xa9] sm:$0xff]
      %v2889 = vld [vmem:[%s2515 + $0xb1] sm:$0xff]
      %v2890 = vld [vmem:[%s2515 + $0xc1] sm:$0xff]
      %v2891 = vld [vmem:[%s2515 + $0xc9] sm:$0xff]
      %v2892 = vld [vmem:[%s2515 + $0xd9] sm:$0xff]
      %v2893 = vld [vmem:[%s2515 + $0xe1] sm:$0xff]
      %v2894 = vld [vmem:[%s2515 + $0xf1] sm:$0xff]
      %v2895 = vld [vmem:[%s2515 + $0xf9] sm:$0xff]
      %v2896 = vld [vmem:[%s2515 + $0x109] sm:$0xff]
      %v2897 = vld [vmem:[%s2515 + $0x111] sm:$0xff]
      %v2898 = vld [vmem:[%s2515 + $0x121] sm:$0xff]
      %v2899 = vld [vmem:[%s2515 + $0x129] sm:$0xff]
      %v2900 = vld [vmem:[%s2515 + $0x139] sm:$0xff]
      %v2901 = vld [vmem:[%s2515 + $0x141] sm:$0xff]
      %v2902 = vld [vmem:[%s2515 + $0x151] sm:$0xff]
      %v2903 = vld [vmem:[%s2515 + $0x159] sm:$0xff]
      %v2904 = vld [vmem:[%s2515 + $0x169] sm:$0xff]
      %v2905 = vld [vmem:[%s2515 + $0x171] sm:$0xff]
      %v2906 = vld [vmem:[#allocation2] sm:$0xff]
      %v2907 = vld [vmem:[#allocation2 + $0x8] sm:$0xff]
      %v2908 = vld [vmem:[#allocation2 + $0x10] sm:$0xff]
      %v2909 = vld [vmem:[#allocation2 + $0x18] sm:$0xff]
      %v2910 = vld [vmem:[#allocation2 + $0x20] sm:$0xff]
      %v2911 = vld [vmem:[#allocation2 + $0x28] sm:$0xff]
      %v2912 = vld [vmem:[#allocation2 + $0x30] sm:$0xff]
      %v2913 = vld [vmem:[#allocation2 + $0x38] sm:$0xff]
      %v2914 = vld [vmem:[#allocation2 + $0x40] sm:$0xff]
      %v2915 = vld [vmem:[#allocation2 + $0x48] sm:$0xff]
      %v2916 = vld [vmem:[#allocation2 + $0x50] sm:$0xff]
      %v2917 = vld [vmem:[#allocation2 + $0x58] sm:$0xff]
      %v2918 = vld [vmem:[#allocation2 + $0x60] sm:$0xff]
      %v2919 = vld [vmem:[#allocation2 + $0x68] sm:$0xff]
      %v2920 = vld [vmem:[#allocation2 + $0x70] sm:$0xff]
      %v2921 = vld [vmem:[#allocation2 + $0x78] sm:$0xff]
      %v2922 = vld [vmem:[#allocation2 + $0x80] sm:$0xff]
      %v2923 = vld [vmem:[#allocation2 + $0x88] sm:$0xff]
      %v2924 = vld [vmem:[#allocation2 + $0x90] sm:$0xff]
      %v2925 = vld [vmem:[#allocation2 + $0x98] sm:$0xff]
      %v2926 = vld [vmem:[#allocation2 + $0xa0] sm:$0xff]
      %v2927 = vld [vmem:[#allocation2 + $0xa8] sm:$0xff]
      %v2928 = vld [vmem:[#allocation2 + $0xb0] sm:$0xff]
      %v2929 = vld [vmem:[#allocation2 + $0xb8] sm:$0xff]
      %v2930 = vld [vmem:[#allocation2 + $0xc0] sm:$0xff]
      %v2931 = vld [vmem:[#allocation2 + $0xc8] sm:$0xff]
      %v2932 = vld [vmem:[#allocation2 + $0xd0] sm:$0xff]
      %v2933 = vld [vmem:[#allocation2 + $0xd8] sm:$0xff]
      %v2934 = vld [vmem:[#allocation2 + $0xe0] sm:$0xff]
      %v2935 = vld [vmem:[#allocation2 + $0xe8] sm:$0xff]
      %v2936 = vld [vmem:[#allocation2 + $0xf0] sm:$0xff]
      %v2937 = vld [vmem:[#allocation2 + $0xf8] sm:$0xff]
      %v2938 = vpack.c.bf16 %v2875, %v2874
      %v2939 = vpack.c.bf16 %v2877, %v2876
      %v2940 = vpack.c.bf16 %v2879, %v2878
      %v2941 = vpack.c.bf16 %v2881, %v2880
      %v2942 = vpack.c.bf16 %v2883, %v2882
      %v2943 = vpack.c.bf16 %v2885, %v2884
      %v2944 = vpack.c.bf16 %v2887, %v2886
      %v2945 = vpack.c.bf16 %v2889, %v2888
      %v2946 = vpack.c.bf16 %v2891, %v2890
      %v2947 = vpack.c.bf16 %v2893, %v2892
      %v2948 = vpack.c.bf16 %v2895, %v2894
      %v2949 = vpack.c.bf16 %v2897, %v2896
      %v2950 = vpack.c.bf16 %v2899, %v2898
      %v2951 = vpack.c.bf16 %v2901, %v2900
      %v2952 = vpack.c.bf16 %v2903, %v2902
      %v2953 = vpack.c.bf16 %v2905, %v2904
      %s2954 = scalar_lea.vmem %s1, 14
      %v2955 = vld [vmem:[%s2954] sm:$0x3]
      %v2957 = vsel %vm446, %v2938, 0
      %v2960 = vsel %vm446, %v2939, 0
      %v2963 = vsel %vm446, %v2940, 0
      %v2966 = vsel %vm446, %v2941, 0
      %v2969 = vsel %vm446, %v2942, 0
      %v2972 = vsel %vm446, %v2943, 0
      %v2975 = vsel %vm446, %v2944, 0
      %v2978 = vsel %vm446, %v2945, 0
      %v2981 = vsel %vm446, %v2946, 0
      %v2984 = vsel %vm446, %v2947, 0
      %v2987 = vsel %vm446, %v2948, 0
      %v2990 = vsel %vm446, %v2949, 0
      %v2993 = vsel %vm446, %v2950, 0
      %v2996 = vsel %vm446, %v2951, 0
      %v2999 = vsel %vm446, %v2952, 0
      %v3002 = vsel %vm446, %v2953, 0
      %v3005 = vsel %vm495, %v2955, 0
      %3007 = vmatprep.subr.bf16.mxu0 0
      %3008 = vmatpush1.bf16.msra.mxu0 %v3005
      %3009 = vmatprep.subr.bf16.mxu0 0
      %3010 = vmatpush1.bf16.msra.mxu0 0
      %3011 = vmatprep.subr.bf16.mxu0 0
      %3012 = vmatpush1.bf16.msra.mxu0 0
      %3013 = vmatprep.subr.bf16.mxu0 0
      %3014 = vmatpush1.bf16.msra.mxu0 0
      %3015 = vmatprep.subr.bf16.mxu0 0
      %3016 = vmatpush1.bf16.msra.mxu0 0
      %3017 = vmatprep.subr.bf16.mxu0 0
      %3018 = vmatpush1.bf16.msra.mxu0 0
      %3019 = vmatprep.subr.bf16.mxu0 0
      %3020 = vmatpush1.bf16.msra.mxu0 0
      %3021 = vmatprep.subr.bf16.mxu0 0
      %3022 = vmatpush1.bf16.msra.mxu0 0
      %3023 = vmatprep.subr.bf16.mxu0 0
      %3024 = vmatpush1.bf16.msra.mxu0 0
      %3025 = vmatprep.subr.bf16.mxu0 0
      %3026 = vmatpush1.bf16.msra.mxu0 0
      %3027 = vmatprep.subr.bf16.mxu0 0
      %3028 = vmatpush1.bf16.msra.mxu0 0
      %3029 = vmatprep.subr.bf16.mxu0 0
      %3030 = vmatpush1.bf16.msra.mxu0 0
      %3031 = vmatprep.subr.bf16.mxu0 0
      %3032 = vmatpush1.bf16.msra.mxu0 0
      %3033 = vmatprep.subr.bf16.mxu0 0
      %3034 = vmatpush1.bf16.msra.mxu0 0
      %3035 = vmatprep.subr.bf16.mxu0 0
      %3036 = vmatpush1.bf16.msra.mxu0 0
      %3037 = vmatprep.subr.bf16.mxu0 0
      %3038 = vmatpush1.bf16.msra.mxu0 0
      %3039 = vmatprep.mubr.bf16.mxu0 0
      %3040 = vmatmul.mubr.bf16.gmra.mrb[0].mxu0 %v2957
      %v3041 = vpop.f32.mrb[0].mxu0
      %v3042 = vadd.f32 0.0, %v3041
      %v3043 = vpop.f32.mrb[0].mxu0
      %v3044 = vpop.f32.mrb[0].mxu0
      %v3045 = vadd.f32 0.0, %v3044
      %v3046 = vpop.f32.mrb[0].mxu0
      %3047 = vmatprep.mubr.bf16.mxu0 0
      %3048 = vmatmul.mubr.bf16.gmra.mrb[0].mxu0 %v2960
      %v3049 = vpop.f32.mrb[0].mxu0
      %v3050 = vadd.f32 0.0, %v3049
      %v3051 = vpop.f32.mrb[0].mxu0
      %v3052 = vpop.f32.mrb[0].mxu0
      %v3053 = vadd.f32 0.0, %v3052
      %v3054 = vpop.f32.mrb[0].mxu0
      %3055 = vmatprep.mubr.bf16.mxu0 0
      %3056 = vmatmul.mubr.bf16.gmra.mrb[0].mxu0 %v2963
      %v3057 = vpop.f32.mrb[0].mxu0
      %v3058 = vadd.f32 0.0, %v3057
      %v3059 = vpop.f32.mrb[0].mxu0
      %v3060 = vpop.f32.mrb[0].mxu0
      %v3061 = vadd.f32 0.0, %v3060
      %v3062 = vpop.f32.mrb[0].mxu0
      %3063 = vmatprep.mubr.bf16.mxu0 0
      %3064 = vmatmul.mubr.bf16.gmra.mrb[0].mxu0 %v2966
      %v3065 = vpop.f32.mrb[0].mxu0
      %v3066 = vadd.f32 0.0, %v3065
      %v3067 = vpop.f32.mrb[0].mxu0
      %v3068 = vpop.f32.mrb[0].mxu0
      %v3069 = vadd.f32 0.0, %v3068
      %v3070 = vpop.f32.mrb[0].mxu0
      %3071 = vmatprep.mubr.bf16.mxu0 0
      %3072 = vmatmul.mubr.bf16.gmra.mrb[0].mxu0 %v2969
      %v3073 = vpop.f32.mrb[0].mxu0
      %v3074 = vadd.f32 0.0, %v3073
      %v3075 = vpop.f32.mrb[0].mxu0
      %v3076 = vpop.f32.mrb[0].mxu0
      %v3077 = vadd.f32 0.0, %v3076
      %v3078 = vpop.f32.mrb[0].mxu0
      %3079 = vmatprep.mubr.bf16.mxu0 0
      %3080 = vmatmul.mubr.bf16.gmra.mrb[0].mxu0 %v2972
      %v3081 = vpop.f32.mrb[0].mxu0
      %v3082 = vadd.f32 0.0, %v3081
      %v3083 = vpop.f32.mrb[0].mxu0
      %v3084 = vpop.f32.mrb[0].mxu0
      %v3085 = vadd.f32 0.0, %v3084
      %v3086 = vpop.f32.mrb[0].mxu0
      %3087 = vmatprep.mubr.bf16.mxu0 0
      %3088 = vmatmul.mubr.bf16.gmra.mrb[0].mxu0 %v2975
      %v3089 = vpop.f32.mrb[0].mxu0
      %v3090 = vadd.f32 0.0, %v3089
      %v3091 = vpop.f32.mrb[0].mxu0
      %v3092 = vpop.f32.mrb[0].mxu0
      %v3093 = vadd.f32 0.0, %v3092
      %v3094 = vpop.f32.mrb[0].mxu0
      %3095 = vmatprep.mubr.bf16.mxu0 0
      %3096 = vmatmul.mubr.bf16.gmra.mrb[0].mxu0 %v2978
      %v3097 = vpop.f32.mrb[0].mxu0
      %v3098 = vadd.f32 0.0, %v3097
      %v3099 = vpop.f32.mrb[0].mxu0
      %v3100 = vpop.f32.mrb[0].mxu0
      %v3101 = vadd.f32 0.0, %v3100
      %v3102 = vpop.f32.mrb[0].mxu0
      %3103 = vmatprep.mubr.bf16.mxu0 0
      %3104 = vmatmul.mubr.bf16.gmra.mrb[0].mxu0 %v2981
      %v3105 = vpop.f32.mrb[0].mxu0
      %v3106 = vadd.f32 0.0, %v3105
      %v3107 = vpop.f32.mrb[0].mxu0
      %v3108 = vpop.f32.mrb[0].mxu0
      %v3109 = vadd.f32 0.0, %v3108
      %v3110 = vpop.f32.mrb[0].mxu0
      %3111 = vmatprep.mubr.bf16.mxu0 0
      %3112 = vmatmul.mubr.bf16.gmra.mrb[0].mxu0 %v2984
      %v3113 = vpop.f32.mrb[0].mxu0
      %v3114 = vadd.f32 0.0, %v3113
      %v3115 = vpop.f32.mrb[0].mxu0
      %v3116 = vpop.f32.mrb[0].mxu0
      %v3117 = vadd.f32 0.0, %v3116
      %v3118 = vpop.f32.mrb[0].mxu0
      %3119 = vmatprep.mubr.bf16.mxu0 0
      %3120 = vmatmul.mubr.bf16.gmra.mrb[0].mxu0 %v2987
      %v3121 = vpop.f32.mrb[0].mxu0
      %v3122 = vadd.f32 0.0, %v3121
      %v3123 = vpop.f32.mrb[0].mxu0
      %v3124 = vpop.f32.mrb[0].mxu0
      %v3125 = vadd.f32 0.0, %v3124
      %v3126 = vpop.f32.mrb[0].mxu0
      %3127 = vmatprep.mubr.bf16.mxu0 0
      %3128 = vmatmul.mubr.bf16.gmra.mrb[0].mxu0 %v2990
      %v3129 = vpop.f32.mrb[0].mxu0
      %v3130 = vadd.f32 0.0, %v3129
      %v3131 = vpop.f32.mrb[0].mxu0
      %v3132 = vpop.f32.mrb[0].mxu0
      %v3133 = vadd.f32 0.0, %v3132
      %v3134 = vpop.f32.mrb[0].mxu0
      %3135 = vmatprep.mubr.bf16.mxu0 0
      %3136 = vmatmul.mubr.bf16.gmra.mrb[0].mxu0 %v2993
      %v3137 = vpop.f32.mrb[0].mxu0
      %v3138 = vadd.f32 0.0, %v3137
      %v3139 = vpop.f32.mrb[0].mxu0
      %v3140 = vpop.f32.mrb[0].mxu0
      %v3141 = vadd.f32 0.0, %v3140
      %v3142 = vpop.f32.mrb[0].mxu0
      %3143 = vmatprep.mubr.bf16.mxu0 0
      %3144 = vmatmul.mubr.bf16.gmra.mrb[0].mxu0 %v2996
      %v3145 = vpop.f32.mrb[0].mxu0
      %v3146 = vadd.f32 0.0, %v3145
      %v3147 = vpop.f32.mrb[0].mxu0
      %v3148 = vpop.f32.mrb[0].mxu0
      %v3149 = vadd.f32 0.0, %v3148
      %v3150 = vpop.f32.mrb[0].mxu0
      %3151 = vmatprep.mubr.bf16.mxu0 0
      %3152 = vmatmul.mubr.bf16.gmra.mrb[0].mxu0 %v2999
      %v3153 = vpop.f32.mrb[0].mxu0
      %v3154 = vadd.f32 0.0, %v3153
      %v3155 = vpop.f32.mrb[0].mxu0
      %v3156 = vpop.f32.mrb[0].mxu0
      %v3157 = vadd.f32 0.0, %v3156
      %v3158 = vpop.f32.mrb[0].mxu0
      %3159 = vmatprep.mubr.bf16.mxu0 0
      %3160 = vmatmul.mubr.bf16.gmra.mrb[0].mxu0 %v3002
      %v3161 = vpop.f32.mrb[0].mxu0
      %v3162 = vadd.f32 0.0, %v3161
      %v3163 = vpop.f32.mrb[0].mxu0
      %v3164 = vpop.f32.mrb[0].mxu0
      %v3165 = vadd.f32 0.0, %v3164
      %v3166 = vpop.f32.mrb[0].mxu0
      %3167 = vdwg.mxu0
      %v3168 = vadd.f32 %v2906, %v3042
      %v3169 = vadd.f32 %v2907, %v3045
      %v3170 = vadd.f32 %v2908, %v3050
      %v3171 = vadd.f32 %v2909, %v3053
      %v3172 = vadd.f32 %v2910, %v3058
      %v3173 = vadd.f32 %v2911, %v3061
      %v3174 = vadd.f32 %v2912, %v3066
      %v3175 = vadd.f32 %v2913, %v3069
      %v3176 = vadd.f32 %v2914, %v3074
      %v3177 = vadd.f32 %v2915, %v3077
      %v3178 = vadd.f32 %v2916, %v3082
      %v3179 = vadd.f32 %v2917, %v3085
      %v3180 = vadd.f32 %v2918, %v3090
      %v3181 = vadd.f32 %v2919, %v3093
      %v3182 = vadd.f32 %v2920, %v3098
      %v3183 = vadd.f32 %v2921, %v3101
      %v3184 = vadd.f32 %v2922, %v3106
      %v3185 = vadd.f32 %v2923, %v3109
      %v3186 = vadd.f32 %v2924, %v3114
      %v3187 = vadd.f32 %v2925, %v3117
      %v3188 = vadd.f32 %v2926, %v3122
      %v3189 = vadd.f32 %v2927, %v3125
      %v3190 = vadd.f32 %v2928, %v3130
      %v3191 = vadd.f32 %v2929, %v3133
      %v3192 = vadd.f32 %v2930, %v3138
      %v3193 = vadd.f32 %v2931, %v3141
      %v3194 = vadd.f32 %v2932, %v3146
      %v3195 = vadd.f32 %v2933, %v3149
      %v3196 = vadd.f32 %v2934, %v3154
      %v3197 = vadd.f32 %v2935, %v3157
      %v3198 = vadd.f32 %v2936, %v3162
      %v3199 = vadd.f32 %v2937, %v3165
      %3200 = vst.msk [vmem:[#allocation2] sm:$0xff] %vm332, %v3168
      %3201 = vst.msk [vmem:[#allocation2 + $0x8] sm:$0xff] %vm332, %v3169
      %3202 = vst.msk [vmem:[#allocation2 + $0x10] sm:$0xff] %vm332, %v3170
      %3203 = vst.msk [vmem:[#allocation2 + $0x18] sm:$0xff] %vm332, %v3171
      %3204 = vst.msk [vmem:[#allocation2 + $0x20] sm:$0xff] %vm332, %v3172
      %3205 = vst.msk [vmem:[#allocation2 + $0x28] sm:$0xff] %vm332, %v3173
      %3206 = vst.msk [vmem:[#allocation2 + $0x30] sm:$0xff] %vm332, %v3174
      %3207 = vst.msk [vmem:[#allocation2 + $0x38] sm:$0xff] %vm332, %v3175
      %3208 = vst.msk [vmem:[#allocation2 + $0x40] sm:$0xff] %vm332, %v3176
      %3209 = vst.msk [vmem:[#allocation2 + $0x48] sm:$0xff] %vm332, %v3177
      %3210 = vst.msk [vmem:[#allocation2 + $0x50] sm:$0xff] %vm332, %v3178
      %3211 = vst.msk [vmem:[#allocation2 + $0x58] sm:$0xff] %vm332, %v3179
      %3212 = vst.msk [vmem:[#allocation2 + $0x60] sm:$0xff] %vm332, %v3180
      %3213 = vst.msk [vmem:[#allocation2 + $0x68] sm:$0xff] %vm332, %v3181
      %3214 = vst.msk [vmem:[#allocation2 + $0x70] sm:$0xff] %vm332, %v3182
      %3215 = vst.msk [vmem:[#allocation2 + $0x78] sm:$0xff] %vm332, %v3183
      %3216 = vst.msk [vmem:[#allocation2 + $0x80] sm:$0xff] %vm332, %v3184
      %3217 = vst.msk [vmem:[#allocation2 + $0x88] sm:$0xff] %vm332, %v3185
      %3218 = vst.msk [vmem:[#allocation2 + $0x90] sm:$0xff] %vm332, %v3186
      %3219 = vst.msk [vmem:[#allocation2 + $0x98] sm:$0xff] %vm332, %v3187
      %3220 = vst.msk [vmem:[#allocation2 + $0xa0] sm:$0xff] %vm332, %v3188
      %3221 = vst.msk [vmem:[#allocation2 + $0xa8] sm:$0xff] %vm332, %v3189
      %3222 = vst.msk [vmem:[#allocation2 + $0xb0] sm:$0xff] %vm332, %v3190
      %3223 = vst.msk [vmem:[#allocation2 + $0xb8] sm:$0xff] %vm332, %v3191
      %3224 = vst.msk [vmem:[#allocation2 + $0xc0] sm:$0xff] %vm332, %v3192
      %3225 = vst.msk [vmem:[#allocation2 + $0xc8] sm:$0xff] %vm332, %v3193
      %3226 = vst.msk [vmem:[#allocation2 + $0xd0] sm:$0xff] %vm332, %v3194
      %3227 = vst.msk [vmem:[#allocation2 + $0xd8] sm:$0xff] %vm332, %v3195
      %3228 = vst.msk [vmem:[#allocation2 + $0xe0] sm:$0xff] %vm332, %v3196
      %3229 = vst.msk [vmem:[#allocation2 + $0xe8] sm:$0xff] %vm332, %v3197
      %3230 = vst.msk [vmem:[#allocation2 + $0xf0] sm:$0xff] %vm332, %v3198
      %3231 = vst.msk [vmem:[#allocation2 + $0xf8] sm:$0xff] %vm332, %v3199
      %v3232 = vld [vmem:[%s2515 + $0x2] sm:$0xff]
      %v3233 = vld [vmem:[%s2515 + $0xa] sm:$0xff]
      %v3234 = vld [vmem:[%s2515 + $0x1a] sm:$0xff]
      %v3235 = vld [vmem:[%s2515 + $0x22] sm:$0xff]
      %v3236 = vld [vmem:[%s2515 + $0x32] sm:$0xff]
      %v3237 = vld [vmem:[%s2515 + $0x3a] sm:$0xff]
      %v3238 = vld [vmem:[%s2515 + $0x4a] sm:$0xff]
      %v3239 = vld [vmem:[%s2515 + $0x52] sm:$0xff]
      %v3240 = vld [vmem:[%s2515 + $0x62] sm:$0xff]
      %v3241 = vld [vmem:[%s2515 + $0x6a] sm:$0xff]
      %v3242 = vld [vmem:[%s2515 + $0x7a] sm:$0xff]
      %v3243 = vld [vmem:[%s2515 + $0x82] sm:$0xff]
      %v3244 = vld [vmem:[%s2515 + $0x92] sm:$0xff]
      %v3245 = vld [vmem:[%s2515 + $0x9a] sm:$0xff]
      %v3246 = vld [vmem:[%s2515 + $0xaa] sm:$0xff]
      %v3247 = vld [vmem:[%s2515 + $0xb2] sm:$0xff]
      %v3248 = vld [vmem:[%s2515 + $0xc2] sm:$0xff]
      %v3249 = vld [vmem:[%s2515 + $0xca] sm:$0xff]
      %v3250 = vld [vmem:[%s2515 + $0xda] sm:$0xff]
      %v3251 = vld [vmem:[%s2515 + $0xe2] sm:$0xff]
      %v3252 = vld [vmem:[%s2515 + $0xf2] sm:$0xff]
      %v3253 = vld [vmem:[%s2515 + $0xfa] sm:$0xff]
      %v3254 = vld [vmem:[%s2515 + $0x10a] sm:$0xff]
      %v3255 = vld [vmem:[%s2515 + $0x112] sm:$0xff]
      %v3256 = vld [vmem:[%s2515 + $0x122] sm:$0xff]
      %v3257 = vld [vmem:[%s2515 + $0x12a] sm:$0xff]
      %v3258 = vld [vmem:[%s2515 + $0x13a] sm:$0xff]
      %v3259 = vld [vmem:[%s2515 + $0x142] sm:$0xff]
      %v3260 = vld [vmem:[%s2515 + $0x152] sm:$0xff]
      %v3261 = vld [vmem:[%s2515 + $0x15a] sm:$0xff]
      %v3262 = vld [vmem:[%s2515 + $0x16a] sm:$0xff]
      %v3263 = vld [vmem:[%s2515 + $0x172] sm:$0xff]
      %v3264 = vld [vmem:[#allocation2] sm:$0xff]
      %v3265 = vld [vmem:[#allocation2 + $0x8] sm:$0xff]
      %v3266 = vld [vmem:[#allocation2 + $0x10] sm:$0xff]
      %v3267 = vld [vmem:[#allocation2 + $0x18] sm:$0xff]
      %v3268 = vld [vmem:[#allocation2 + $0x20] sm:$0xff]
      %v3269 = vld [vmem:[#allocation2 + $0x28] sm:$0xff]
      %v3270 = vld [vmem:[#allocation2 + $0x30] sm:$0xff]
      %v3271 = vld [vmem:[#allocation2 + $0x38] sm:$0xff]
      %v3272 = vld [vmem:[#allocation2 + $0x40] sm:$0xff]
      %v3273 = vld [vmem:[#allocation2 + $0x48] sm:$0xff]
      %v3274 = vld [vmem:[#allocation2 + $0x50] sm:$0xff]
      %v3275 = vld [vmem:[#allocation2 + $0x58] sm:$0xff]
      %v3276 = vld [vmem:[#allocation2 + $0x60] sm:$0xff]
      %v3277 = vld [vmem:[#allocation2 + $0x68] sm:$0xff]
      %v3278 = vld [vmem:[#allocation2 + $0x70] sm:$0xff]
      %v3279 = vld [vmem:[#allocation2 + $0x78] sm:$0xff]
      %v3280 = vld [vmem:[#allocation2 + $0x80] sm:$0xff]
      %v3281 = vld [vmem:[#allocation2 + $0x88] sm:$0xff]
      %v3282 = vld [vmem:[#allocation2 + $0x90] sm:$0xff]
      %v3283 = vld [vmem:[#allocation2 + $0x98] sm:$0xff]
      %v3284 = vld [vmem:[#allocation2 + $0xa0] sm:$0xff]
      %v3285 = vld [vmem:[#allocation2 + $0xa8] sm:$0xff]
      %v3286 = vld [vmem:[#allocation2 + $0xb0] sm:$0xff]
      %v3287 = vld [vmem:[#allocation2 + $0xb8] sm:$0xff]
      %v3288 = vld [vmem:[#allocation2 + $0xc0] sm:$0xff]
      %v3289 = vld [vmem:[#allocation2 + $0xc8] sm:$0xff]
      %v3290 = vld [vmem:[#allocation2 + $0xd0] sm:$0xff]
      %v3291 = vld [vmem:[#allocation2 + $0xd8] sm:$0xff]
      %v3292 = vld [vmem:[#allocation2 + $0xe0] sm:$0xff]
      %v3293 = vld [vmem:[#allocation2 + $0xe8] sm:$0xff]
      %v3294 = vld [vmem:[#allocation2 + $0xf0] sm:$0xff]
      %v3295 = vld [vmem:[#allocation2 + $0xf8] sm:$0xff]
      %v3296 = vpack.c.bf16 %v3233, %v3232
      %v3297 = vpack.c.bf16 %v3235, %v3234
      %v3298 = vpack.c.bf16 %v3237, %v3236
      %v3299 = vpack.c.bf16 %v3239, %v3238
      %v3300 = vpack.c.bf16 %v3241, %v3240
      %v3301 = vpack.c.bf16 %v3243, %v3242
      %v3302 = vpack.c.bf16 %v3245, %v3244
      %v3303 = vpack.c.bf16 %v3247, %v3246
      %v3304 = vpack.c.bf16 %v3249, %v3248
      %v3305 = vpack.c.bf16 %v3251, %v3250
      %v3306 = vpack.c.bf16 %v3253, %v3252
      %v3307 = vpack.c.bf16 %v3255, %v3254
      %v3308 = vpack.c.bf16 %v3257, %v3256
      %v3309 = vpack.c.bf16 %v3259, %v3258
      %v3310 = vpack.c.bf16 %v3261, %v3260
      %v3311 = vpack.c.bf16 %v3263, %v3262
      %s3312 = scalar_lea.vmem %s1, 16
      %v3313 = vld [vmem:[%s3312] sm:$0x3]
      %v3315 = vsel %vm446, %v3296, 0
      %v3318 = vsel %vm446, %v3297, 0
      %v3321 = vsel %vm446, %v3298, 0
      %v3324 = vsel %vm446, %v3299, 0
      %v3327 = vsel %vm446, %v3300, 0
      %v3330 = vsel %vm446, %v3301, 0
      %v3333 = vsel %vm446, %v3302, 0
      %v3336 = vsel %vm446, %v3303, 0
      %v3339 = vsel %vm446, %v3304, 0
      %v3342 = vsel %vm446, %v3305, 0
      %v3345 = vsel %vm446, %v3306, 0
      %v3348 = vsel %vm446, %v3307, 0
      %v3351 = vsel %vm446, %v3308, 0
      %v3354 = vsel %vm446, %v3309, 0
      %v3357 = vsel %vm446, %v3310, 0
      %v3360 = vsel %vm446, %v3311, 0
      %v3363 = vsel %vm495, %v3313, 0
      %3365 = vmatprep.subr.bf16.mxu0 0
      %3366 = vmatpush1.bf16.msra.mxu0 %v3363
      %3367 = vmatprep.subr.bf16.mxu0 0
      %3368 = vmatpush1.bf16.msra.mxu0 0
      %3369 = vmatprep.subr.bf16.mxu0 0
      %3370 = vmatpush1.bf16.msra.mxu0 0
      %3371 = vmatprep.subr.bf16.mxu0 0
      %3372 = vmatpush1.bf16.msra.mxu0 0
      %3373 = vmatprep.subr.bf16.mxu0 0
      %3374 = vmatpush1.bf16.msra.mxu0 0
      %3375 = vmatprep.subr.bf16.mxu0 0
      %3376 = vmatpush1.bf16.msra.mxu0 0
      %3377 = vmatprep.subr.bf16.mxu0 0
      %3378 = vmatpush1.bf16.msra.mxu0 0
      %3379 = vmatprep.subr.bf16.mxu0 0
      %3380 = vmatpush1.bf16.msra.mxu0 0
      %3381 = vmatprep.subr.bf16.mxu0 0
      %3382 = vmatpush1.bf16.msra.mxu0 0
      %3383 = vmatprep.subr.bf16.mxu0 0
      %3384 = vmatpush1.bf16.msra.mxu0 0
      %3385 = vmatprep.subr.bf16.mxu0 0
      %3386 = vmatpush1.bf16.msra.mxu0 0
      %3387 = vmatprep.subr.bf16.mxu0 0
      %3388 = vmatpush1.bf16.msra.mxu0 0
      %3389 = vmatprep.subr.bf16.mxu0 0
      %3390 = vmatpush1.bf16.msra.mxu0 0
      %3391 = vmatprep.subr.bf16.mxu0 0
      %3392 = vmatpush1.bf16.msra.mxu0 0
      %3393 = vmatprep.subr.bf16.mxu0 0
      %3394 = vmatpush1.bf16.msra.mxu0 0
      %3395 = vmatprep.subr.bf16.mxu0 0
      %3396 = vmatpush1.bf16.msra.mxu0 0
      %3397 = vmatprep.mubr.bf16.mxu0 0
      %3398 = vmatmul.mubr.bf16.gmra.mrb[0].mxu0 %v3315
      %v3399 = vpop.f32.mrb[0].mxu0
      %v3400 = vadd.f32 0.0, %v3399
      %v3401 = vpop.f32.mrb[0].mxu0
      %v3402 = vpop.f32.mrb[0].mxu0
      %v3403 = vadd.f32 0.0, %v3402
      %v3404 = vpop.f32.mrb[0].mxu0
      %3405 = vmatprep.mubr.bf16.mxu0 0
      %3406 = vmatmul.mubr.bf16.gmra.mrb[0].mxu0 %v3318
      %v3407 = vpop.f32.mrb[0].mxu0
      %v3408 = vadd.f32 0.0, %v3407
      %v3409 = vpop.f32.mrb[0].mxu0
      %v3410 = vpop.f32.mrb[0].mxu0
      %v3411 = vadd.f32 0.0, %v3410
      %v3412 = vpop.f32.mrb[0].mxu0
      %3413 = vmatprep.mubr.bf16.mxu0 0
      %3414 = vmatmul.mubr.bf16.gmra.mrb[0].mxu0 %v3321
      %v3415 = vpop.f32.mrb[0].mxu0
      %v3416 = vadd.f32 0.0, %v3415
      %v3417 = vpop.f32.mrb[0].mxu0
      %v3418 = vpop.f32.mrb[0].mxu0
      %v3419 = vadd.f32 0.0, %v3418
      %v3420 = vpop.f32.mrb[0].mxu0
      %3421 = vmatprep.mubr.bf16.mxu0 0
      %3422 = vmatmul.mubr.bf16.gmra.mrb[0].mxu0 %v3324
      %v3423 = vpop.f32.mrb[0].mxu0
      %v3424 = vadd.f32 0.0, %v3423
      %v3425 = vpop.f32.mrb[0].mxu0
      %v3426 = vpop.f32.mrb[0].mxu0
      %v3427 = vadd.f32 0.0, %v3426
      %v3428 = vpop.f32.mrb[0].mxu0
      %3429 = vmatprep.mubr.bf16.mxu0 0
      %3430 = vmatmul.mubr.bf16.gmra.mrb[0].mxu0 %v3327
      %v3431 = vpop.f32.mrb[0].mxu0
      %v3432 = vadd.f32 0.0, %v3431
      %v3433 = vpop.f32.mrb[0].mxu0
      %v3434 = vpop.f32.mrb[0].mxu0
      %v3435 = vadd.f32 0.0, %v3434
      %v3436 = vpop.f32.mrb[0].mxu0
      %3437 = vmatprep.mubr.bf16.mxu0 0
      %3438 = vmatmul.mubr.bf16.gmra.mrb[0].mxu0 %v3330
      %v3439 = vpop.f32.mrb[0].mxu0
      %v3440 = vadd.f32 0.0, %v3439
      %v3441 = vpop.f32.mrb[0].mxu0
      %v3442 = vpop.f32.mrb[0].mxu0
      %v3443 = vadd.f32 0.0, %v3442
      %v3444 = vpop.f32.mrb[0].mxu0
      %3445 = vmatprep.mubr.bf16.mxu0 0
      %3446 = vmatmul.mubr.bf16.gmra.mrb[0].mxu0 %v3333
      %v3447 = vpop.f32.mrb[0].mxu0
      %v3448 = vadd.f32 0.0, %v3447
      %v3449 = vpop.f32.mrb[0].mxu0
      %v3450 = vpop.f32.mrb[0].mxu0
      %v3451 = vadd.f32 0.0, %v3450
      %v3452 = vpop.f32.mrb[0].mxu0
      %3453 = vmatprep.mubr.bf16.mxu0 0
      %3454 = vmatmul.mubr.bf16.gmra.mrb[0].mxu0 %v3336
      %v3455 = vpop.f32.mrb[0].mxu0
      %v3456 = vadd.f32 0.0, %v3455
      %v3457 = vpop.f32.mrb[0].mxu0
      %v3458 = vpop.f32.mrb[0].mxu0
      %v3459 = vadd.f32 0.0, %v3458
      %v3460 = vpop.f32.mrb[0].mxu0
      %3461 = vmatprep.mubr.bf16.mxu0 0
      %3462 = vmatmul.mubr.bf16.gmra.mrb[0].mxu0 %v3339
      %v3463 = vpop.f32.mrb[0].mxu0
      %v3464 = vadd.f32 0.0, %v3463
      %v3465 = vpop.f32.mrb[0].mxu0
      %v3466 = vpop.f32.mrb[0].mxu0
      %v3467 = vadd.f32 0.0, %v3466
      %v3468 = vpop.f32.mrb[0].mxu0
      %3469 = vmatprep.mubr.bf16.mxu0 0
      %3470 = vmatmul.mubr.bf16.gmra.mrb[0].mxu0 %v3342
      %v3471 = vpop.f32.mrb[0].mxu0
      %v3472 = vadd.f32 0.0, %v3471
      %v3473 = vpop.f32.mrb[0].mxu0
      %v3474 = vpop.f32.mrb[0].mxu0
      %v3475 = vadd.f32 0.0, %v3474
      %v3476 = vpop.f32.mrb[0].mxu0
      %3477 = vmatprep.mubr.bf16.mxu0 0
      %3478 = vmatmul.mubr.bf16.gmra.mrb[0].mxu0 %v3345
      %v3479 = vpop.f32.mrb[0].mxu0
      %v3480 = vadd.f32 0.0, %v3479
      %v3481 = vpop.f32.mrb[0].mxu0
      %v3482 = vpop.f32.mrb[0].mxu0
      %v3483 = vadd.f32 0.0, %v3482
      %v3484 = vpop.f32.mrb[0].mxu0
      %3485 = vmatprep.mubr.bf16.mxu0 0
      %3486 = vmatmul.mubr.bf16.gmra.mrb[0].mxu0 %v3348
      %v3487 = vpop.f32.mrb[0].mxu0
      %v3488 = vadd.f32 0.0, %v3487
      %v3489 = vpop.f32.mrb[0].mxu0
      %v3490 = vpop.f32.mrb[0].mxu0
      %v3491 = vadd.f32 0.0, %v3490
      %v3492 = vpop.f32.mrb[0].mxu0
      %3493 = vmatprep.mubr.bf16.mxu0 0
      %3494 = vmatmul.mubr.bf16.gmra.mrb[0].mxu0 %v3351
      %v3495 = vpop.f32.mrb[0].mxu0
      %v3496 = vadd.f32 0.0, %v3495
      %v3497 = vpop.f32.mrb[0].mxu0
      %v3498 = vpop.f32.mrb[0].mxu0
      %v3499 = vadd.f32 0.0, %v3498
      %v3500 = vpop.f32.mrb[0].mxu0
      %3501 = vmatprep.mubr.bf16.mxu0 0
      %3502 = vmatmul.mubr.bf16.gmra.mrb[0].mxu0 %v3354
      %v3503 = vpop.f32.mrb[0].mxu0
      %v3504 = vadd.f32 0.0, %v3503
      %v3505 = vpop.f32.mrb[0].mxu0
      %v3506 = vpop.f32.mrb[0].mxu0
      %v3507 = vadd.f32 0.0, %v3506
      %v3508 = vpop.f32.mrb[0].mxu0
      %3509 = vmatprep.mubr.bf16.mxu0 0
      %3510 = vmatmul.mubr.bf16.gmra.mrb[0].mxu0 %v3357
      %v3511 = vpop.f32.mrb[0].mxu0
      %v3512 = vadd.f32 0.0, %v3511
      %v3513 = vpop.f32.mrb[0].mxu0
      %v3514 = vpop.f32.mrb[0].mxu0
      %v3515 = vadd.f32 0.0, %v3514
      %v3516 = vpop.f32.mrb[0].mxu0
      %3517 = vmatprep.mubr.bf16.mxu0 0
      %3518 = vmatmul.mubr.bf16.gmra.mrb[0].mxu0 %v3360
      %v3519 = vpop.f32.mrb[0].mxu0
      %v3520 = vadd.f32 0.0, %v3519
      %v3521 = vpop.f32.mrb[0].mxu0
      %v3522 = vpop.f32.mrb[0].mxu0
      %v3523 = vadd.f32 0.0, %v3522
      %v3524 = vpop.f32.mrb[0].mxu0
      %3525 = vdwg.mxu0
      %v3526 = vadd.f32 %v3264, %v3400
      %v3527 = vadd.f32 %v3265, %v3403
      %v3528 = vadd.f32 %v3266, %v3408
      %v3529 = vadd.f32 %v3267, %v3411
      %v3530 = vadd.f32 %v3268, %v3416
      %v3531 = vadd.f32 %v3269, %v3419
      %v3532 = vadd.f32 %v3270, %v3424
      %v3533 = vadd.f32 %v3271, %v3427
      %v3534 = vadd.f32 %v3272, %v3432
      %v3535 = vadd.f32 %v3273, %v3435
      %v3536 = vadd.f32 %v3274, %v3440
      %v3537 = vadd.f32 %v3275, %v3443
      %v3538 = vadd.f32 %v3276, %v3448
      %v3539 = vadd.f32 %v3277, %v3451
      %v3540 = vadd.f32 %v3278, %v3456
      %v3541 = vadd.f32 %v3279, %v3459
      %v3542 = vadd.f32 %v3280, %v3464
      %v3543 = vadd.f32 %v3281, %v3467
      %v3544 = vadd.f32 %v3282, %v3472
      %v3545 = vadd.f32 %v3283, %v3475
      %v3546 = vadd.f32 %v3284, %v3480
      %v3547 = vadd.f32 %v3285, %v3483
      %v3548 = vadd.f32 %v3286, %v3488
      %v3549 = vadd.f32 %v3287, %v3491
      %v3550 = vadd.f32 %v3288, %v3496
      %v3551 = vadd.f32 %v3289, %v3499
      %v3552 = vadd.f32 %v3290, %v3504
      %v3553 = vadd.f32 %v3291, %v3507
      %v3554 = vadd.f32 %v3292, %v3512
      %v3555 = vadd.f32 %v3293, %v3515
      %v3556 = vadd.f32 %v3294, %v3520
      %v3557 = vadd.f32 %v3295, %v3523
      %3558 = vst.msk [vmem:[#allocation2] sm:$0xff] %vm332, %v3526
      %3559 = vst.msk [vmem:[#allocation2 + $0x8] sm:$0xff] %vm332, %v3527
      %3560 = vst.msk [vmem:[#allocation2 + $0x10] sm:$0xff] %vm332, %v3528
      %3561 = vst.msk [vmem:[#allocation2 + $0x18] sm:$0xff] %vm332, %v3529
      %3562 = vst.msk [vmem:[#allocation2 + $0x20] sm:$0xff] %vm332, %v3530
      %3563 = vst.msk [vmem:[#allocation2 + $0x28] sm:$0xff] %vm332, %v3531
      %3564 = vst.msk [vmem:[#allocation2 + $0x30] sm:$0xff] %vm332, %v3532
      %3565 = vst.msk [vmem:[#allocation2 + $0x38] sm:$0xff] %vm332, %v3533
      %3566 = vst.msk [vmem:[#allocation2 + $0x40] sm:$0xff] %vm332, %v3534
      %3567 = vst.msk [vmem:[#allocation2 + $0x48] sm:$0xff] %vm332, %v3535
      %3568 = vst.msk [vmem:[#allocation2 + $0x50] sm:$0xff] %vm332, %v3536
      %3569 = vst.msk [vmem:[#allocation2 + $0x58] sm:$0xff] %vm332, %v3537
      %3570 = vst.msk [vmem:[#allocation2 + $0x60] sm:$0xff] %vm332, %v3538
      %3571 = vst.msk [vmem:[#allocation2 + $0x68] sm:$0xff] %vm332, %v3539
      %3572 = vst.msk [vmem:[#allocation2 + $0x70] sm:$0xff] %vm332, %v3540
      %3573 = vst.msk [vmem:[#allocation2 + $0x78] sm:$0xff] %vm332, %v3541
      %3574 = vst.msk [vmem:[#allocation2 + $0x80] sm:$0xff] %vm332, %v3542
      %3575 = vst.msk [vmem:[#allocation2 + $0x88] sm:$0xff] %vm332, %v3543
      %3576 = vst.msk [vmem:[#allocation2 + $0x90] sm:$0xff] %vm332, %v3544
      %3577 = vst.msk [vmem:[#allocation2 + $0x98] sm:$0xff] %vm332, %v3545
      %3578 = vst.msk [vmem:[#allocation2 + $0xa0] sm:$0xff] %vm332, %v3546
      %3579 = vst.msk [vmem:[#allocation2 + $0xa8] sm:$0xff] %vm332, %v3547
      %3580 = vst.msk [vmem:[#allocation2 + $0xb0] sm:$0xff] %vm332, %v3548
      %3581 = vst.msk [vmem:[#allocation2 + $0xb8] sm:$0xff] %vm332, %v3549
      %3582 = vst.msk [vmem:[#allocation2 + $0xc0] sm:$0xff] %vm332, %v3550
      %3583 = vst.msk [vmem:[#allocation2 + $0xc8] sm:$0xff] %vm332, %v3551
      %3584 = vst.msk [vmem:[#allocation2 + $0xd0] sm:$0xff] %vm332, %v3552
      %3585 = vst.msk [vmem:[#allocation2 + $0xd8] sm:$0xff] %vm332, %v3553
      %3586 = vst.msk [vmem:[#allocation2 + $0xe0] sm:$0xff] %vm332, %v3554
      %3587 = vst.msk [vmem:[#allocation2 + $0xe8] sm:$0xff] %vm332, %v3555
      %3588 = vst.msk [vmem:[#allocation2 + $0xf0] sm:$0xff] %vm332, %v3556
      %3589 = vst.msk [vmem:[#allocation2 + $0xf8] sm:$0xff] %vm332, %v3557
      %v3590 = vld [vmem:[#allocation2] sm:$0xff]
      %v3591 = vld [vmem:[#allocation2 + $0x8] sm:$0xff]
      %v3592 = vld [vmem:[#allocation2 + $0x10] sm:$0xff]
      %v3593 = vld [vmem:[#allocation2 + $0x18] sm:$0xff]
      %v3594 = vld [vmem:[#allocation2 + $0x20] sm:$0xff]
      %v3595 = vld [vmem:[#allocation2 + $0x28] sm:$0xff]
      %v3596 = vld [vmem:[#allocation2 + $0x30] sm:$0xff]
      %v3597 = vld [vmem:[#allocation2 + $0x38] sm:$0xff]
      %v3598 = vld [vmem:[#allocation2 + $0x40] sm:$0xff]
      %v3599 = vld [vmem:[#allocation2 + $0x48] sm:$0xff]
      %v3600 = vld [vmem:[#allocation2 + $0x50] sm:$0xff]
      %v3601 = vld [vmem:[#allocation2 + $0x58] sm:$0xff]
      %v3602 = vld [vmem:[#allocation2 + $0x60] sm:$0xff]
      %v3603 = vld [vmem:[#allocation2 + $0x68] sm:$0xff]
      %v3604 = vld [vmem:[#allocation2 + $0x70] sm:$0xff]
      %v3605 = vld [vmem:[#allocation2 + $0x78] sm:$0xff]
      %v3606 = vld [vmem:[#allocation2 + $0x80] sm:$0xff]
      %v3607 = vld [vmem:[#allocation2 + $0x88] sm:$0xff]
      %v3608 = vld [vmem:[#allocation2 + $0x90] sm:$0xff]
      %v3609 = vld [vmem:[#allocation2 + $0x98] sm:$0xff]
      %v3610 = vld [vmem:[#allocation2 + $0xa0] sm:$0xff]
      %v3611 = vld [vmem:[#allocation2 + $0xa8] sm:$0xff]
      %v3612 = vld [vmem:[#allocation2 + $0xb0] sm:$0xff]
      %v3613 = vld [vmem:[#allocation2 + $0xb8] sm:$0xff]
      %v3614 = vld [vmem:[#allocation2 + $0xc0] sm:$0xff]
      %v3615 = vld [vmem:[#allocation2 + $0xc8] sm:$0xff]
      %v3616 = vld [vmem:[#allocation2 + $0xd0] sm:$0xff]
      %v3617 = vld [vmem:[#allocation2 + $0xd8] sm:$0xff]
      %v3618 = vld [vmem:[#allocation2 + $0xe0] sm:$0xff]
      %v3619 = vld [vmem:[#allocation2 + $0xe8] sm:$0xff]
      %v3620 = vld [vmem:[#allocation2 + $0xf0] sm:$0xff]
      %v3621 = vld [vmem:[#allocation2 + $0xf8] sm:$0xff]
      %v3622 = vld [vmem:[%s2] sm:$0x1]
      %v3624 = vlaneseq
      %v3625 = vshrl.u32 %v3624, 7
      %v3626 = vsub.s32 0, %v3625
      %v3627 = vrot.slane %v3622, %v3626
      %v3629 = vadd.f32 %v3590, %v3627
      %v3630 = vadd.f32 %v3591, %v3627
      %v3631 = vadd.f32 %v3592, %v3627
      %v3632 = vadd.f32 %v3593, %v3627
      %v3633 = vadd.f32 %v3594, %v3627
      %v3634 = vadd.f32 %v3595, %v3627
      %v3635 = vadd.f32 %v3596, %v3627
      %v3636 = vadd.f32 %v3597, %v3627
      %v3637 = vadd.f32 %v3598, %v3627
      %v3638 = vadd.f32 %v3599, %v3627
      %v3639 = vadd.f32 %v3600, %v3627
      %v3640 = vadd.f32 %v3601, %v3627
      %v3641 = vadd.f32 %v3602, %v3627
      %v3642 = vadd.f32 %v3603, %v3627
      %v3643 = vadd.f32 %v3604, %v3627
      %v3644 = vadd.f32 %v3605, %v3627
      %v3645 = vadd.f32 %v3606, %v3627
      %v3646 = vadd.f32 %v3607, %v3627
      %v3647 = vadd.f32 %v3608, %v3627
      %v3648 = vadd.f32 %v3609, %v3627
      %v3649 = vadd.f32 %v3610, %v3627
      %v3650 = vadd.f32 %v3611, %v3627
      %v3651 = vadd.f32 %v3612, %v3627
      %v3652 = vadd.f32 %v3613, %v3627
      %v3653 = vadd.f32 %v3614, %v3627
      %v3654 = vadd.f32 %v3615, %v3627
      %v3655 = vadd.f32 %v3616, %v3627
      %v3656 = vadd.f32 %v3617, %v3627
      %v3657 = vadd.f32 %v3618, %v3627
      %v3658 = vadd.f32 %v3619, %v3627
      %v3659 = vadd.f32 %v3620, %v3627
      %v3660 = vadd.f32 %v3621, %v3627
      %v3661 = vmax.f32 %v3629, 0.0
      %v3662 = vmax.f32 %v3630, 0.0
      %v3663 = vmax.f32 %v3631, 0.0
      %v3664 = vmax.f32 %v3632, 0.0
      %v3665 = vmax.f32 %v3633, 0.0
      %v3666 = vmax.f32 %v3634, 0.0
      %v3667 = vmax.f32 %v3635, 0.0
      %v3668 = vmax.f32 %v3636, 0.0
      %v3669 = vmax.f32 %v3637, 0.0
      %v3670 = vmax.f32 %v3638, 0.0
      %v3671 = vmax.f32 %v3639, 0.0
      %v3672 = vmax.f32 %v3640, 0.0
      %v3673 = vmax.f32 %v3641, 0.0
      %v3674 = vmax.f32 %v3642, 0.0
      %v3675 = vmax.f32 %v3643, 0.0
      %v3676 = vmax.f32 %v3644, 0.0
      %v3677 = vmax.f32 %v3645, 0.0
      %v3678 = vmax.f32 %v3646, 0.0
      %v3679 = vmax.f32 %v3647, 0.0
      %v3680 = vmax.f32 %v3648, 0.0
      %v3681 = vmax.f32 %v3649, 0.0
      %v3682 = vmax.f32 %v3650, 0.0
      %v3683 = vmax.f32 %v3651, 0.0
      %v3684 = vmax.f32 %v3652, 0.0
      %v3685 = vmax.f32 %v3653, 0.0
      %v3686 = vmax.f32 %v3654, 0.0
      %v3687 = vmax.f32 %v3655, 0.0
      %v3688 = vmax.f32 %v3656, 0.0
      %v3689 = vmax.f32 %v3657, 0.0
      %v3690 = vmax.f32 %v3658, 0.0
      %v3691 = vmax.f32 %v3659, 0.0
      %v3692 = vmax.f32 %v3660, 0.0
      %3693 = vst.msk [vmem:[#allocation3] sm:$0xff] %vm332, 0.0
      %3694 = vst.msk [vmem:[#allocation3 + $0x8] sm:$0xff] %vm332, 0.0
      %vm3695 = vcmask 254976
      %3696 = vst.msk [vmem:[#allocation3 + $0x10] sm:$0x3] %vm3695, 0.0
      %3697 = vst.msk [vmem:[#allocation3 + $0x18] sm:$0xff] %vm332, 0.0
      %3698 = vst.msk [vmem:[#allocation3 + $0x20] sm:$0xff] %vm332, 0.0
      %3699 = vst.msk [vmem:[#allocation3 + $0x28] sm:$0x3] %vm3695, 0.0
      %3700 = vst.msk [vmem:[#allocation3 + $0x30] sm:$0xff] %vm332, 0.0
      %3701 = vst.msk [vmem:[#allocation3 + $0x38] sm:$0xff] %vm332, 0.0
      %3702 = vst.msk [vmem:[#allocation3 + $0x40] sm:$0x3] %vm3695, 0.0
      %3703 = vst.msk [vmem:[#allocation3 + $0x48] sm:$0xff] %vm332, 0.0
      %3704 = vst.msk [vmem:[#allocation3 + $0x50] sm:$0xff] %vm332, 0.0
      %3705 = vst.msk [vmem:[#allocation3 + $0x58] sm:$0x3] %vm3695, 0.0
      %3706 = vst.msk [vmem:[#allocation3 + $0x60] sm:$0xff] %vm332, 0.0
      %3707 = vst.msk [vmem:[#allocation3 + $0x68] sm:$0xff] %vm332, 0.0
      %3708 = vst.msk [vmem:[#allocation3 + $0x70] sm:$0x3] %vm3695, 0.0
      %3709 = vst.msk [vmem:[#allocation3 + $0x78] sm:$0xff] %vm332, 0.0
      %3710 = vst.msk [vmem:[#allocation3 + $0x80] sm:$0xff] %vm332, 0.0
      %3711 = vst.msk [vmem:[#allocation3 + $0x88] sm:$0x3] %vm3695, 0.0
      %3712 = vst.msk [vmem:[#allocation3 + $0x90] sm:$0xff] %vm332, 0.0
      %3713 = vst.msk [vmem:[#allocation3 + $0x98] sm:$0xff] %vm332, 0.0
      %3714 = vst.msk [vmem:[#allocation3 + $0xa0] sm:$0x3] %vm3695, 0.0
      %3715 = vst.msk [vmem:[#allocation3 + $0xa8] sm:$0xff] %vm332, 0.0
      %3716 = vst.msk [vmem:[#allocation3 + $0xb0] sm:$0xff] %vm332, 0.0
      %3717 = vst.msk [vmem:[#allocation3 + $0xb8] sm:$0x3] %vm3695, 0.0
      %3718 = vst.msk [vmem:[#allocation3 + $0xc0] sm:$0xff] %vm332, 0.0
      %3719 = vst.msk [vmem:[#allocation3 + $0xc8] sm:$0xff] %vm332, 0.0
      %3720 = vst.msk [vmem:[#allocation3 + $0xd0] sm:$0x3] %vm3695, 0.0
      %3721 = vst.msk [vmem:[#allocation3 + $0xd8] sm:$0xff] %vm332, 0.0
      %3722 = vst.msk [vmem:[#allocation3 + $0xe0] sm:$0xff] %vm332, 0.0
      %3723 = vst.msk [vmem:[#allocation3 + $0xe8] sm:$0x3] %vm3695, 0.0
      %3724 = vst.msk [vmem:[#allocation3 + $0xf0] sm:$0xff] %vm332, 0.0
      %3725 = vst.msk [vmem:[#allocation3 + $0xf8] sm:$0xff] %vm332, 0.0
      %3726 = vst.msk [vmem:[#allocation3 + $0x100] sm:$0x3] %vm3695, 0.0
      %3727 = vst.msk [vmem:[#allocation3 + $0x108] sm:$0xff] %vm332, 0.0
      %3728 = vst.msk [vmem:[#allocation3 + $0x110] sm:$0xff] %vm332, 0.0
      %3729 = vst.msk [vmem:[#allocation3 + $0x118] sm:$0x3] %vm3695, 0.0
      %3730 = vst.msk [vmem:[#allocation3 + $0x120] sm:$0xff] %vm332, 0.0
      %3731 = vst.msk [vmem:[#allocation3 + $0x128] sm:$0xff] %vm332, 0.0
      %3732 = vst.msk [vmem:[#allocation3 + $0x130] sm:$0x3] %vm3695, 0.0
      %3733 = vst.msk [vmem:[#allocation3 + $0x138] sm:$0xff] %vm332, 0.0
      %3734 = vst.msk [vmem:[#allocation3 + $0x140] sm:$0xff] %vm332, 0.0
      %3735 = vst.msk [vmem:[#allocation3 + $0x148] sm:$0x3] %vm3695, 0.0
      %3736 = vst.msk [vmem:[#allocation3 + $0x150] sm:$0xff] %vm332, 0.0
      %3737 = vst.msk [vmem:[#allocation3 + $0x158] sm:$0xff] %vm332, 0.0
      %3738 = vst.msk [vmem:[#allocation3 + $0x160] sm:$0x3] %vm3695, 0.0
      %3739 = vst.msk [vmem:[#allocation3 + $0x168] sm:$0xff] %vm332, 0.0
      %3740 = vst.msk [vmem:[#allocation3 + $0x170] sm:$0xff] %vm332, 0.0
      %3741 = vst.msk [vmem:[#allocation3 + $0x178] sm:$0x3] %vm3695, 0.0
      %3742 = vst.msk [vmem:[#allocation3 + $0x180] sm:$0xff] %vm332, 0.0
      %3743 = vst.msk [vmem:[#allocation3 + $0x188] sm:$0xff] %vm332, 0.0
      %3744 = vst.msk [vmem:[#allocation3 + $0x190] sm:$0x3] %vm3695, 0.0
      %3745 = vst.msk [vmem:[#allocation3 + $0x198] sm:$0xff] %vm332, 0.0
      %3746 = vst.msk [vmem:[#allocation3 + $0x1a0] sm:$0xff] %vm332, 0.0
      %3747 = vst.msk [vmem:[#allocation3 + $0x1a8] sm:$0x3] %vm3695, 0.0
      %s3748 = scalar_lea.vmem [#allocation3], 24
      %3749 = vst.msk [vmem:[%s3748 + $0x1] sm:$0xff] %vm332, %v3661
      %3750 = vst.msk [vmem:[%s3748 + $0x9] sm:$0xff] %vm332, %v3662
      %3751 = vst.msk [vmem:[%s3748 + $0x19] sm:$0xff] %vm332, %v3663
      %3752 = vst.msk [vmem:[%s3748 + $0x21] sm:$0xff] %vm332, %v3664
      %3753 = vst.msk [vmem:[%s3748 + $0x31] sm:$0xff] %vm332, %v3665
      %3754 = vst.msk [vmem:[%s3748 + $0x39] sm:$0xff] %vm332, %v3666
      %3755 = vst.msk [vmem:[%s3748 + $0x49] sm:$0xff] %vm332, %v3667
      %3756 = vst.msk [vmem:[%s3748 + $0x51] sm:$0xff] %vm332, %v3668
      %3757 = vst.msk [vmem:[%s3748 + $0x61] sm:$0xff] %vm332, %v3669
      %3758 = vst.msk [vmem:[%s3748 + $0x69] sm:$0xff] %vm332, %v3670
      %3759 = vst.msk [vmem:[%s3748 + $0x79] sm:$0xff] %vm332, %v3671
      %3760 = vst.msk [vmem:[%s3748 + $0x81] sm:$0xff] %vm332, %v3672
      %3761 = vst.msk [vmem:[%s3748 + $0x91] sm:$0xff] %vm332, %v3673
      %3762 = vst.msk [vmem:[%s3748 + $0x99] sm:$0xff] %vm332, %v3674
      %3763 = vst.msk [vmem:[%s3748 + $0xa9] sm:$0xff] %vm332, %v3675
      %3764 = vst.msk [vmem:[%s3748 + $0xb1] sm:$0xff] %vm332, %v3676
      %3765 = vst.msk [vmem:[%s3748 + $0xc1] sm:$0xff] %vm332, %v3677
      %3766 = vst.msk [vmem:[%s3748 + $0xc9] sm:$0xff] %vm332, %v3678
      %3767 = vst.msk [vmem:[%s3748 + $0xd9] sm:$0xff] %vm332, %v3679
      %3768 = vst.msk [vmem:[%s3748 + $0xe1] sm:$0xff] %vm332, %v3680
      %3769 = vst.msk [vmem:[%s3748 + $0xf1] sm:$0xff] %vm332, %v3681
      %3770 = vst.msk [vmem:[%s3748 + $0xf9] sm:$0xff] %vm332, %v3682
      %3771 = vst.msk [vmem:[%s3748 + $0x109] sm:$0xff] %vm332, %v3683
      %3772 = vst.msk [vmem:[%s3748 + $0x111] sm:$0xff] %vm332, %v3684
      %3773 = vst.msk [vmem:[%s3748 + $0x121] sm:$0xff] %vm332, %v3685
      %3774 = vst.msk [vmem:[%s3748 + $0x129] sm:$0xff] %vm332, %v3686
      %3775 = vst.msk [vmem:[%s3748 + $0x139] sm:$0xff] %vm332, %v3687
      %3776 = vst.msk [vmem:[%s3748 + $0x141] sm:$0xff] %vm332, %v3688
      %3777 = vst.msk [vmem:[%s3748 + $0x151] sm:$0xff] %vm332, %v3689
      %3778 = vst.msk [vmem:[%s3748 + $0x159] sm:$0xff] %vm332, %v3690
      %3779 = vst.msk [vmem:[%s3748 + $0x169] sm:$0xff] %vm332, %v3691
      %3780 = vst.msk [vmem:[%s3748 + $0x171] sm:$0xff] %vm332, %v3692
      %vm3781 = vcmask 523264
      %3782 = vst.msk [vmem:[#allocation4] sm:$0xff] %vm3781, 0.0
      %3783 = vst.msk [vmem:[#allocation4 + $0x8] sm:$0xff] %vm3781, 0.0
      %3784 = vst.msk [vmem:[#allocation4 + $0x10] sm:$0xff] %vm3781, 0.0
      %3785 = vst.msk [vmem:[#allocation4 + $0x18] sm:$0xff] %vm3781, 0.0
      %3786 = vst.msk [vmem:[#allocation4 + $0x20] sm:$0xff] %vm3781, 0.0
      %3787 = vst.msk [vmem:[#allocation4 + $0x28] sm:$0xff] %vm3781, 0.0
      %3788 = vst.msk [vmem:[#allocation4 + $0x30] sm:$0xff] %vm3781, 0.0
      %3789 = vst.msk [vmem:[#allocation4 + $0x38] sm:$0xff] %vm3781, 0.0
      %3790 = vst.msk [vmem:[#allocation4 + $0x40] sm:$0xff] %vm3781, 0.0
      %3791 = vst.msk [vmem:[#allocation4 + $0x48] sm:$0xff] %vm3781, 0.0
      %3792 = vst.msk [vmem:[#allocation4 + $0x50] sm:$0xff] %vm3781, 0.0
      %3793 = vst.msk [vmem:[#allocation4 + $0x58] sm:$0xff] %vm3781, 0.0
      %3794 = vst.msk [vmem:[#allocation4 + $0x60] sm:$0xff] %vm3781, 0.0
      %3795 = vst.msk [vmem:[#allocation4 + $0x68] sm:$0xff] %vm3781, 0.0
      %3796 = vst.msk [vmem:[#allocation4 + $0x70] sm:$0xff] %vm3781, 0.0
      %3797 = vst.msk [vmem:[#allocation4 + $0x78] sm:$0xff] %vm3781, 0.0
      %3798 = vst.msk [vmem:[#allocation4 + $0x80] sm:$0xff] %vm3781, 0.0
      %3799 = vst.msk [vmem:[#allocation4 + $0x88] sm:$0xff] %vm3781, 0.0
      %3800 = vst.msk [vmem:[#allocation4 + $0x90] sm:$0xff] %vm3781, 0.0
      %3801 = vst.msk [vmem:[#allocation4 + $0x98] sm:$0xff] %vm3781, 0.0
      %3802 = vst.msk [vmem:[#allocation4 + $0xa0] sm:$0xff] %vm3781, 0.0
      %3803 = vst.msk [vmem:[#allocation4 + $0xa8] sm:$0xff] %vm3781, 0.0
      %3804 = vst.msk [vmem:[#allocation4 + $0xb0] sm:$0xff] %vm3781, 0.0
      %3805 = vst.msk [vmem:[#allocation4 + $0xb8] sm:$0xff] %vm3781, 0.0
      %3806 = vst.msk [vmem:[#allocation4 + $0xc0] sm:$0xff] %vm3781, 0.0
      %3807 = vst.msk [vmem:[#allocation4 + $0xc8] sm:$0xff] %vm3781, 0.0
      %3808 = vst.msk [vmem:[#allocation4 + $0xd0] sm:$0xff] %vm3781, 0.0
      %3809 = vst.msk [vmem:[#allocation4 + $0xd8] sm:$0xff] %vm3781, 0.0
      %3810 = vst.msk [vmem:[#allocation4 + $0xe0] sm:$0xff] %vm3781, 0.0
      %3811 = vst.msk [vmem:[#allocation4 + $0xe8] sm:$0xff] %vm3781, 0.0
      %3812 = vst.msk [vmem:[#allocation4 + $0xf0] sm:$0xff] %vm3781, 0.0
      %3813 = vst.msk [vmem:[#allocation4 + $0xf8] sm:$0xff] %vm3781, 0.0
      %v3814 = vld [vmem:[#allocation3] sm:$0xff]
      %v3815 = vld [vmem:[#allocation3 + $0x8] sm:$0xff]
      %v3816 = vld [vmem:[#allocation3 + $0x18] sm:$0xff]
      %v3817 = vld [vmem:[#allocation3 + $0x20] sm:$0xff]
      %v3818 = vld [vmem:[#allocation3 + $0x30] sm:$0xff]
      %v3819 = vld [vmem:[#allocation3 + $0x38] sm:$0xff]
      %v3820 = vld [vmem:[#allocation3 + $0x48] sm:$0xff]
      %v3821 = vld [vmem:[#allocation3 + $0x50] sm:$0xff]
      %v3822 = vld [vmem:[#allocation3 + $0x60] sm:$0xff]
      %v3823 = vld [vmem:[#allocation3 + $0x68] sm:$0xff]
      %v3824 = vld [vmem:[#allocation3 + $0x78] sm:$0xff]
      %v3825 = vld [vmem:[#allocation3 + $0x80] sm:$0xff]
      %v3826 = vld [vmem:[#allocation3 + $0x90] sm:$0xff]
      %v3827 = vld [vmem:[#allocation3 + $0x98] sm:$0xff]
      %v3828 = vld [vmem:[#allocation3 + $0xa8] sm:$0xff]
      %v3829 = vld [vmem:[#allocation3 + $0xb0] sm:$0xff]
      %v3830 = vld [vmem:[#allocation3 + $0xc0] sm:$0xff]
      %v3831 = vld [vmem:[#allocation3 + $0xc8] sm:$0xff]
      %v3832 = vld [vmem:[#allocation3 + $0xd8] sm:$0xff]
      %v3833 = vld [vmem:[#allocation3 + $0xe0] sm:$0xff]
      %v3834 = vld [vmem:[#allocation3 + $0xf0] sm:$0xff]
      %v3835 = vld [vmem:[#allocation3 + $0xf8] sm:$0xff]
      %v3836 = vld [vmem:[#allocation3 + $0x108] sm:$0xff]
      %v3837 = vld [vmem:[#allocation3 + $0x110] sm:$0xff]
      %v3838 = vld [vmem:[#allocation3 + $0x120] sm:$0xff]
      %v3839 = vld [vmem:[#allocation3 + $0x128] sm:$0xff]
      %v3840 = vld [vmem:[#allocation3 + $0x138] sm:$0xff]
      %v3841 = vld [vmem:[#allocation3 + $0x140] sm:$0xff]
      %v3842 = vld [vmem:[#allocation3 + $0x150] sm:$0xff]
      %v3843 = vld [vmem:[#allocation3 + $0x158] sm:$0xff]
      %v3844 = vld [vmem:[#allocation3 + $0x168] sm:$0xff]
      %v3845 = vld [vmem:[#allocation3 + $0x170] sm:$0xff]
      %v3846 = vld [vmem:[#allocation4] sm:$0xff]
      %v3847 = vld [vmem:[#allocation4 + $0x8] sm:$0xff]
      %v3848 = vld [vmem:[#allocation4 + $0x10] sm:$0xff]
      %v3849 = vld [vmem:[#allocation4 + $0x18] sm:$0xff]
      %v3850 = vld [vmem:[#allocation4 + $0x20] sm:$0xff]
      %v3851 = vld [vmem:[#allocation4 + $0x28] sm:$0xff]
      %v3852 = vld [vmem:[#allocation4 + $0x30] sm:$0xff]
      %v3853 = vld [vmem:[#allocation4 + $0x38] sm:$0xff]
      %v3854 = vld [vmem:[#allocation4 + $0x40] sm:$0xff]
      %v3855 = vld [vmem:[#allocation4 + $0x48] sm:$0xff]
      %v3856 = vld [vmem:[#allocation4 + $0x50] sm:$0xff]
      %v3857 = vld [vmem:[#allocation4 + $0x58] sm:$0xff]
      %v3858 = vld [vmem:[#allocation4 + $0x60] sm:$0xff]
      %v3859 = vld [vmem:[#allocation4 + $0x68] sm:$0xff]
      %v3860 = vld [vmem:[#allocation4 + $0x70] sm:$0xff]
      %v3861 = vld [vmem:[#allocation4 + $0x78] sm:$0xff]
      %v3862 = vld [vmem:[#allocation4 + $0x80] sm:$0xff]
      %v3863 = vld [vmem:[#allocation4 + $0x88] sm:$0xff]
      %v3864 = vld [vmem:[#allocation4 + $0x90] sm:$0xff]
      %v3865 = vld [vmem:[#allocation4 + $0x98] sm:$0xff]
      %v3866 = vld [vmem:[#allocation4 + $0xa0] sm:$0xff]
      %v3867 = vld [vmem:[#allocation4 + $0xa8] sm:$0xff]
      %v3868 = vld [vmem:[#allocation4 + $0xb0] sm:$0xff]
      %v3869 = vld [vmem:[#allocation4 + $0xb8] sm:$0xff]
      %v3870 = vld [vmem:[#allocation4 + $0xc0] sm:$0xff]
      %v3871 = vld [vmem:[#allocation4 + $0xc8] sm:$0xff]
      %v3872 = vld [vmem:[#allocation4 + $0xd0] sm:$0xff]
      %v3873 = vld [vmem:[#allocation4 + $0xd8] sm:$0xff]
      %v3874 = vld [vmem:[#allocation4 + $0xe0] sm:$0xff]
      %v3875 = vld [vmem:[#allocation4 + $0xe8] sm:$0xff]
      %v3876 = vld [vmem:[#allocation4 + $0xf0] sm:$0xff]
      %v3877 = vld [vmem:[#allocation4 + $0xf8] sm:$0xff]
      %v3878 = vpack.c.bf16 %v3815, %v3814
      %v3879 = vpack.c.bf16 %v3817, %v3816
      %v3880 = vpack.c.bf16 %v3819, %v3818
      %v3881 = vpack.c.bf16 %v3821, %v3820
      %v3882 = vpack.c.bf16 %v3823, %v3822
      %v3883 = vpack.c.bf16 %v3825, %v3824
      %v3884 = vpack.c.bf16 %v3827, %v3826
      %v3885 = vpack.c.bf16 %v3829, %v3828
      %v3886 = vpack.c.bf16 %v3831, %v3830
      %v3887 = vpack.c.bf16 %v3833, %v3832
      %v3888 = vpack.c.bf16 %v3835, %v3834
      %v3889 = vpack.c.bf16 %v3837, %v3836
      %v3890 = vpack.c.bf16 %v3839, %v3838
      %v3891 = vpack.c.bf16 %v3841, %v3840
      %v3892 = vpack.c.bf16 %v3843, %v3842
      %v3893 = vpack.c.bf16 %v3845, %v3844
      %v3894 = vld [vmem:[%s3] sm:$0xf]
      %v3895 = vld [vmem:[%s3 + $0x4] sm:$0xf]
      %v3896 = vld [vmem:[%s3 + $0x8] sm:$0xf]
      %v3897 = vld [vmem:[%s3 + $0xc] sm:$0xf]
      %v3902 = vunpack.c.l.b16 %v3894
      %v3903 = vunpack.c.l.b16 %v3895
      %v3904 = vunpack.c.l.b16 %v3896
      %v3905 = vunpack.c.l.b16 %v3897
      %v3906 = vpack.c.b16 %v3903, %v3902
      %v3907 = vpack.c.b16 %v3905, %v3904
      %v3911 = vsel %vm332, %v3878, 0
      %v3914 = vsel %vm332, %v3879, 0
      %v3917 = vsel %vm332, %v3880, 0
      %v3920 = vsel %vm332, %v3881, 0
      %v3923 = vsel %vm332, %v3882, 0
      %v3926 = vsel %vm332, %v3883, 0
      %v3929 = vsel %vm332, %v3884, 0
      %v3932 = vsel %vm332, %v3885, 0
      %v3935 = vsel %vm332, %v3886, 0
      %v3938 = vsel %vm332, %v3887, 0
      %v3941 = vsel %vm332, %v3888, 0
      %v3944 = vsel %vm332, %v3889, 0
      %v3947 = vsel %vm332, %v3890, 0
      %v3950 = vsel %vm332, %v3891, 0
      %v3953 = vsel %vm332, %v3892, 0
      %v3956 = vsel %vm332, %v3893, 0
      %3958 = vmatprep.subr.bf16.mxu0 0
      %3959 = vmatpush1.bf16.msra.mxu0 %v3906
      %3960 = vmatprep.subr.bf16.mxu0 0
      %3961 = vmatpush1.bf16.msra.mxu0 %v3907
      %3962 = vmatprep.subr.bf16.mxu0 0
      %3963 = vmatpush1.bf16.msra.mxu0 0
      %3964 = vmatprep.subr.bf16.mxu0 0
      %3965 = vmatpush1.bf16.msra.mxu0 0
      %3966 = vmatprep.subr.bf16.mxu0 0
      %3967 = vmatpush1.bf16.msra.mxu0 0
      %3968 = vmatprep.subr.bf16.mxu0 0
      %3969 = vmatpush1.bf16.msra.mxu0 0
      %3970 = vmatprep.subr.bf16.mxu0 0
      %3971 = vmatpush1.bf16.msra.mxu0 0
      %3972 = vmatprep.subr.bf16.mxu0 0
      %3973 = vmatpush1.bf16.msra.mxu0 0
      %3974 = vmatprep.subr.bf16.mxu0 0
      %3975 = vmatpush1.bf16.msra.mxu0 0
      %3976 = vmatprep.subr.bf16.mxu0 0
      %3977 = vmatpush1.bf16.msra.mxu0 0
      %3978 = vmatprep.subr.bf16.mxu0 0
      %3979 = vmatpush1.bf16.msra.mxu0 0
      %3980 = vmatprep.subr.bf16.mxu0 0
      %3981 = vmatpush1.bf16.msra.mxu0 0
      %3982 = vmatprep.subr.bf16.mxu0 0
      %3983 = vmatpush1.bf16.msra.mxu0 0
      %3984 = vmatprep.subr.bf16.mxu0 0
      %3985 = vmatpush1.bf16.msra.mxu0 0
      %3986 = vmatprep.subr.bf16.mxu0 0
      %3987 = vmatpush1.bf16.msra.mxu0 0
      %3988 = vmatprep.subr.bf16.mxu0 0
      %3989 = vmatpush1.bf16.msra.mxu0 0
      %3990 = vmatprep.mubr.bf16.mxu0 0
      %3991 = vmatmul.mubr.bf16.gmra.mrb[0].mxu0 %v3911
      %v3992 = vpop.f32.mrb[0].mxu0
      %v3993 = vadd.f32 0.0, %v3992
      %v3994 = vpop.f32.mrb[0].mxu0
      %v3995 = vpop.f32.mrb[0].mxu0
      %v3996 = vadd.f32 0.0, %v3995
      %v3997 = vpop.f32.mrb[0].mxu0
      %3998 = vmatprep.mubr.bf16.mxu0 0
      %3999 = vmatmul.mubr.bf16.gmra.mrb[0].mxu0 %v3914
      %v4000 = vpop.f32.mrb[0].mxu0
      %v4001 = vadd.f32 0.0, %v4000
      %v4002 = vpop.f32.mrb[0].mxu0
      %v4003 = vpop.f32.mrb[0].mxu0
      %v4004 = vadd.f32 0.0, %v4003
      %v4005 = vpop.f32.mrb[0].mxu0
      %4006 = vmatprep.mubr.bf16.mxu0 0
      %4007 = vmatmul.mubr.bf16.gmra.mrb[0].mxu0 %v3917
      %v4008 = vpop.f32.mrb[0].mxu0
      %v4009 = vadd.f32 0.0, %v4008
      %v4010 = vpop.f32.mrb[0].mxu0
      %v4011 = vpop.f32.mrb[0].mxu0
      %v4012 = vadd.f32 0.0, %v4011
      %v4013 = vpop.f32.mrb[0].mxu0
      %4014 = vmatprep.mubr.bf16.mxu0 0
      %4015 = vmatmul.mubr.bf16.gmra.mrb[0].mxu0 %v3920
      %v4016 = vpop.f32.mrb[0].mxu0
      %v4017 = vadd.f32 0.0, %v4016
      %v4018 = vpop.f32.mrb[0].mxu0
      %v4019 = vpop.f32.mrb[0].mxu0
      %v4020 = vadd.f32 0.0, %v4019
      %v4021 = vpop.f32.mrb[0].mxu0
      %4022 = vmatprep.mubr.bf16.mxu0 0
      %4023 = vmatmul.mubr.bf16.gmra.mrb[0].mxu0 %v3923
      %v4024 = vpop.f32.mrb[0].mxu0
      %v4025 = vadd.f32 0.0, %v4024
      %v4026 = vpop.f32.mrb[0].mxu0
      %v4027 = vpop.f32.mrb[0].mxu0
      %v4028 = vadd.f32 0.0, %v4027
      %v4029 = vpop.f32.mrb[0].mxu0
      %4030 = vmatprep.mubr.bf16.mxu0 0
      %4031 = vmatmul.mubr.bf16.gmra.mrb[0].mxu0 %v3926
      %v4032 = vpop.f32.mrb[0].mxu0
      %v4033 = vadd.f32 0.0, %v4032
      %v4034 = vpop.f32.mrb[0].mxu0
      %v4035 = vpop.f32.mrb[0].mxu0
      %v4036 = vadd.f32 0.0, %v4035
      %v4037 = vpop.f32.mrb[0].mxu0
      %4038 = vmatprep.mubr.bf16.mxu0 0
      %4039 = vmatmul.mubr.bf16.gmra.mrb[0].mxu0 %v3929
      %v4040 = vpop.f32.mrb[0].mxu0
      %v4041 = vadd.f32 0.0, %v4040
      %v4042 = vpop.f32.mrb[0].mxu0
      %v4043 = vpop.f32.mrb[0].mxu0
      %v4044 = vadd.f32 0.0, %v4043
      %v4045 = vpop.f32.mrb[0].mxu0
      %4046 = vmatprep.mubr.bf16.mxu0 0
      %4047 = vmatmul.mubr.bf16.gmra.mrb[0].mxu0 %v3932
      %v4048 = vpop.f32.mrb[0].mxu0
      %v4049 = vadd.f32 0.0, %v4048
      %v4050 = vpop.f32.mrb[0].mxu0
      %v4051 = vpop.f32.mrb[0].mxu0
      %v4052 = vadd.f32 0.0, %v4051
      %v4053 = vpop.f32.mrb[0].mxu0
      %4054 = vmatprep.mubr.bf16.mxu0 0
      %4055 = vmatmul.mubr.bf16.gmra.mrb[0].mxu0 %v3935
      %v4056 = vpop.f32.mrb[0].mxu0
      %v4057 = vadd.f32 0.0, %v4056
      %v4058 = vpop.f32.mrb[0].mxu0
      %v4059 = vpop.f32.mrb[0].mxu0
      %v4060 = vadd.f32 0.0, %v4059
      %v4061 = vpop.f32.mrb[0].mxu0
      %4062 = vmatprep.mubr.bf16.mxu0 0
      %4063 = vmatmul.mubr.bf16.gmra.mrb[0].mxu0 %v3938
      %v4064 = vpop.f32.mrb[0].mxu0
      %v4065 = vadd.f32 0.0, %v4064
      %v4066 = vpop.f32.mrb[0].mxu0
      %v4067 = vpop.f32.mrb[0].mxu0
      %v4068 = vadd.f32 0.0, %v4067
      %v4069 = vpop.f32.mrb[0].mxu0
      %4070 = vmatprep.mubr.bf16.mxu0 0
      %4071 = vmatmul.mubr.bf16.gmra.mrb[0].mxu0 %v3941
      %v4072 = vpop.f32.mrb[0].mxu0
      %v4073 = vadd.f32 0.0, %v4072
      %v4074 = vpop.f32.mrb[0].mxu0
      %v4075 = vpop.f32.mrb[0].mxu0
      %v4076 = vadd.f32 0.0, %v4075
      %v4077 = vpop.f32.mrb[0].mxu0
      %4078 = vmatprep.mubr.bf16.mxu0 0
      %4079 = vmatmul.mubr.bf16.gmra.mrb[0].mxu0 %v3944
      %v4080 = vpop.f32.mrb[0].mxu0
      %v4081 = vadd.f32 0.0, %v4080
      %v4082 = vpop.f32.mrb[0].mxu0
      %v4083 = vpop.f32.mrb[0].mxu0
      %v4084 = vadd.f32 0.0, %v4083
      %v4085 = vpop.f32.mrb[0].mxu0
      %4086 = vmatprep.mubr.bf16.mxu0 0
      %4087 = vmatmul.mubr.bf16.gmra.mrb[0].mxu0 %v3947
      %v4088 = vpop.f32.mrb[0].mxu0
      %v4089 = vadd.f32 0.0, %v4088
      %v4090 = vpop.f32.mrb[0].mxu0
      %v4091 = vpop.f32.mrb[0].mxu0
      %v4092 = vadd.f32 0.0, %v4091
      %v4093 = vpop.f32.mrb[0].mxu0
      %4094 = vmatprep.mubr.bf16.mxu0 0
      %4095 = vmatmul.mubr.bf16.gmra.mrb[0].mxu0 %v3950
      %v4096 = vpop.f32.mrb[0].mxu0
      %v4097 = vadd.f32 0.0, %v4096
      %v4098 = vpop.f32.mrb[0].mxu0
      %v4099 = vpop.f32.mrb[0].mxu0
      %v4100 = vadd.f32 0.0, %v4099
      %v4101 = vpop.f32.mrb[0].mxu0
      %4102 = vmatprep.mubr.bf16.mxu0 0
      %4103 = vmatmul.mubr.bf16.gmra.mrb[0].mxu0 %v3953
      %v4104 = vpop.f32.mrb[0].mxu0
      %v4105 = vadd.f32 0.0, %v4104
      %v4106 = vpop.f32.mrb[0].mxu0
      %v4107 = vpop.f32.mrb[0].mxu0
      %v4108 = vadd.f32 0.0, %v4107
      %v4109 = vpop.f32.mrb[0].mxu0
      %4110 = vmatprep.mubr.bf16.mxu0 0
      %4111 = vmatmul.mubr.bf16.gmra.mrb[0].mxu0 %v3956
      %v4112 = vpop.f32.mrb[0].mxu0
      %v4113 = vadd.f32 0.0, %v4112
      %v4114 = vpop.f32.mrb[0].mxu0
      %v4115 = vpop.f32.mrb[0].mxu0
      %v4116 = vadd.f32 0.0, %v4115
      %v4117 = vpop.f32.mrb[0].mxu0
      %4118 = vdwg.mxu0
      %v4119 = vadd.f32 %v3846, %v3993
      %v4120 = vadd.f32 %v3847, %v3996
      %v4121 = vadd.f32 %v3848, %v4001
      %v4122 = vadd.f32 %v3849, %v4004
      %v4123 = vadd.f32 %v3850, %v4009
      %v4124 = vadd.f32 %v3851, %v4012
      %v4125 = vadd.f32 %v3852, %v4017
      %v4126 = vadd.f32 %v3853, %v4020
      %v4127 = vadd.f32 %v3854, %v4025
      %v4128 = vadd.f32 %v3855, %v4028
      %v4129 = vadd.f32 %v3856, %v4033
      %v4130 = vadd.f32 %v3857, %v4036
      %v4131 = vadd.f32 %v3858, %v4041
      %v4132 = vadd.f32 %v3859, %v4044
      %v4133 = vadd.f32 %v3860, %v4049
      %v4134 = vadd.f32 %v3861, %v4052
      %v4135 = vadd.f32 %v3862, %v4057
      %v4136 = vadd.f32 %v3863, %v4060
      %v4137 = vadd.f32 %v3864, %v4065
      %v4138 = vadd.f32 %v3865, %v4068
      %v4139 = vadd.f32 %v3866, %v4073
      %v4140 = vadd.f32 %v3867, %v4076
      %v4141 = vadd.f32 %v3868, %v4081
      %v4142 = vadd.f32 %v3869, %v4084
      %v4143 = vadd.f32 %v3870, %v4089
      %v4144 = vadd.f32 %v3871, %v4092
      %v4145 = vadd.f32 %v3872, %v4097
      %v4146 = vadd.f32 %v3873, %v4100
      %v4147 = vadd.f32 %v3874, %v4105
      %v4148 = vadd.f32 %v3875, %v4108
      %v4149 = vadd.f32 %v3876, %v4113
      %v4150 = vadd.f32 %v3877, %v4116
      %4151 = vst.msk [vmem:[#allocation4] sm:$0xff] %vm3781, %v4119
      %4152 = vst.msk [vmem:[#allocation4 + $0x8] sm:$0xff] %vm3781, %v4120
      %4153 = vst.msk [vmem:[#allocation4 + $0x10] sm:$0xff] %vm3781, %v4121
      %4154 = vst.msk [vmem:[#allocation4 + $0x18] sm:$0xff] %vm3781, %v4122
      %4155 = vst.msk [vmem:[#allocation4 + $0x20] sm:$0xff] %vm3781, %v4123
      %4156 = vst.msk [vmem:[#allocation4 + $0x28] sm:$0xff] %vm3781, %v4124
      %4157 = vst.msk [vmem:[#allocation4 + $0x30] sm:$0xff] %vm3781, %v4125
      %4158 = vst.msk [vmem:[#allocation4 + $0x38] sm:$0xff] %vm3781, %v4126
      %4159 = vst.msk [vmem:[#allocation4 + $0x40] sm:$0xff] %vm3781, %v4127
      %4160 = vst.msk [vmem:[#allocation4 + $0x48] sm:$0xff] %vm3781, %v4128
      %4161 = vst.msk [vmem:[#allocation4 + $0x50] sm:$0xff] %vm3781, %v4129
      %4162 = vst.msk [vmem:[#allocation4 + $0x58] sm:$0xff] %vm3781, %v4130
      %4163 = vst.msk [vmem:[#allocation4 + $0x60] sm:$0xff] %vm3781, %v4131
      %4164 = vst.msk [vmem:[#allocation4 + $0x68] sm:$0xff] %vm3781, %v4132
      %4165 = vst.msk [vmem:[#allocation4 + $0x70] sm:$0xff] %vm3781, %v4133
      %4166 = vst.msk [vmem:[#allocation4 + $0x78] sm:$0xff] %vm3781, %v4134
      %4167 = vst.msk [vmem:[#allocation4 + $0x80] sm:$0xff] %vm3781, %v4135
      %4168 = vst.msk [vmem:[#allocation4 + $0x88] sm:$0xff] %vm3781, %v4136
      %4169 = vst.msk [vmem:[#allocation4 + $0x90] sm:$0xff] %vm3781, %v4137
      %4170 = vst.msk [vmem:[#allocation4 + $0x98] sm:$0xff] %vm3781, %v4138
      %4171 = vst.msk [vmem:[#allocation4 + $0xa0] sm:$0xff] %vm3781, %v4139
      %4172 = vst.msk [vmem:[#allocation4 + $0xa8] sm:$0xff] %vm3781, %v4140
      %4173 = vst.msk [vmem:[#allocation4 + $0xb0] sm:$0xff] %vm3781, %v4141
      %4174 = vst.msk [vmem:[#allocation4 + $0xb8] sm:$0xff] %vm3781, %v4142
      %4175 = vst.msk [vmem:[#allocation4 + $0xc0] sm:$0xff] %vm3781, %v4143
      %4176 = vst.msk [vmem:[#allocation4 + $0xc8] sm:$0xff] %vm3781, %v4144
      %4177 = vst.msk [vmem:[#allocation4 + $0xd0] sm:$0xff] %vm3781, %v4145
      %4178 = vst.msk [vmem:[#allocation4 + $0xd8] sm:$0xff] %vm3781, %v4146
      %4179 = vst.msk [vmem:[#allocation4 + $0xe0] sm:$0xff] %vm3781, %v4147
      %4180 = vst.msk [vmem:[#allocation4 + $0xe8] sm:$0xff] %vm3781, %v4148
      %4181 = vst.msk [vmem:[#allocation4 + $0xf0] sm:$0xff] %vm3781, %v4149
      %4182 = vst.msk [vmem:[#allocation4 + $0xf8] sm:$0xff] %vm3781, %v4150
      %v4183 = vld [vmem:[#allocation3 + $0x1] sm:$0xff]
      %v4184 = vld [vmem:[#allocation3 + $0x9] sm:$0xff]
      %v4185 = vld [vmem:[#allocation3 + $0x19] sm:$0xff]
      %v4186 = vld [vmem:[#allocation3 + $0x21] sm:$0xff]
      %v4187 = vld [vmem:[#allocation3 + $0x31] sm:$0xff]
      %v4188 = vld [vmem:[#allocation3 + $0x39] sm:$0xff]
      %v4189 = vld [vmem:[#allocation3 + $0x49] sm:$0xff]
      %v4190 = vld [vmem:[#allocation3 + $0x51] sm:$0xff]
      %v4191 = vld [vmem:[#allocation3 + $0x61] sm:$0xff]
      %v4192 = vld [vmem:[#allocation3 + $0x69] sm:$0xff]
      %v4193 = vld [vmem:[#allocation3 + $0x79] sm:$0xff]
      %v4194 = vld [vmem:[#allocation3 + $0x81] sm:$0xff]
      %v4195 = vld [vmem:[#allocation3 + $0x91] sm:$0xff]
      %v4196 = vld [vmem:[#allocation3 + $0x99] sm:$0xff]
      %v4197 = vld [vmem:[#allocation3 + $0xa9] sm:$0xff]
      %v4198 = vld [vmem:[#allocation3 + $0xb1] sm:$0xff]
      %v4199 = vld [vmem:[#allocation3 + $0xc1] sm:$0xff]
      %v4200 = vld [vmem:[#allocation3 + $0xc9] sm:$0xff]
      %v4201 = vld [vmem:[#allocation3 + $0xd9] sm:$0xff]
      %v4202 = vld [vmem:[#allocation3 + $0xe1] sm:$0xff]
      %v4203 = vld [vmem:[#allocation3 + $0xf1] sm:$0xff]
      %v4204 = vld [vmem:[#allocation3 + $0xf9] sm:$0xff]
      %v4205 = vld [vmem:[#allocation3 + $0x109] sm:$0xff]
      %v4206 = vld [vmem:[#allocation3 + $0x111] sm:$0xff]
      %v4207 = vld [vmem:[#allocation3 + $0x121] sm:$0xff]
      %v4208 = vld [vmem:[#allocation3 + $0x129] sm:$0xff]
      %v4209 = vld [vmem:[#allocation3 + $0x139] sm:$0xff]
      %v4210 = vld [vmem:[#allocation3 + $0x141] sm:$0xff]
      %v4211 = vld [vmem:[#allocation3 + $0x151] sm:$0xff]
      %v4212 = vld [vmem:[#allocation3 + $0x159] sm:$0xff]
      %v4213 = vld [vmem:[#allocation3 + $0x169] sm:$0xff]
      %v4214 = vld [vmem:[#allocation3 + $0x171] sm:$0xff]
      %v4215 = vld [vmem:[#allocation4] sm:$0xff]
      %v4216 = vld [vmem:[#allocation4 + $0x8] sm:$0xff]
      %v4217 = vld [vmem:[#allocation4 + $0x10] sm:$0xff]
      %v4218 = vld [vmem:[#allocation4 + $0x18] sm:$0xff]
      %v4219 = vld [vmem:[#allocation4 + $0x20] sm:$0xff]
      %v4220 = vld [vmem:[#allocation4 + $0x28] sm:$0xff]
      %v4221 = vld [vmem:[#allocation4 + $0x30] sm:$0xff]
      %v4222 = vld [vmem:[#allocation4 + $0x38] sm:$0xff]
      %v4223 = vld [vmem:[#allocation4 + $0x40] sm:$0xff]
      %v4224 = vld [vmem:[#allocation4 + $0x48] sm:$0xff]
      %v4225 = vld [vmem:[#allocation4 + $0x50] sm:$0xff]
      %v4226 = vld [vmem:[#allocation4 + $0x58] sm:$0xff]
      %v4227 = vld [vmem:[#allocation4 + $0x60] sm:$0xff]
      %v4228 = vld [vmem:[#allocation4 + $0x68] sm:$0xff]
      %v4229 = vld [vmem:[#allocation4 + $0x70] sm:$0xff]
      %v4230 = vld [vmem:[#allocation4 + $0x78] sm:$0xff]
      %v4231 = vld [vmem:[#allocation4 + $0x80] sm:$0xff]
      %v4232 = vld [vmem:[#allocation4 + $0x88] sm:$0xff]
      %v4233 = vld [vmem:[#allocation4 + $0x90] sm:$0xff]
      %v4234 = vld [vmem:[#allocation4 + $0x98] sm:$0xff]
      %v4235 = vld [vmem:[#allocation4 + $0xa0] sm:$0xff]
      %v4236 = vld [vmem:[#allocation4 + $0xa8] sm:$0xff]
      %v4237 = vld [vmem:[#allocation4 + $0xb0] sm:$0xff]
      %v4238 = vld [vmem:[#allocation4 + $0xb8] sm:$0xff]
      %v4239 = vld [vmem:[#allocation4 + $0xc0] sm:$0xff]
      %v4240 = vld [vmem:[#allocation4 + $0xc8] sm:$0xff]
      %v4241 = vld [vmem:[#allocation4 + $0xd0] sm:$0xff]
      %v4242 = vld [vmem:[#allocation4 + $0xd8] sm:$0xff]
      %v4243 = vld [vmem:[#allocation4 + $0xe0] sm:$0xff]
      %v4244 = vld [vmem:[#allocation4 + $0xe8] sm:$0xff]
      %v4245 = vld [vmem:[#allocation4 + $0xf0] sm:$0xff]
      %v4246 = vld [vmem:[#allocation4 + $0xf8] sm:$0xff]
      %v4247 = vpack.c.bf16 %v4184, %v4183
      %v4248 = vpack.c.bf16 %v4186, %v4185
      %v4249 = vpack.c.bf16 %v4188, %v4187
      %v4250 = vpack.c.bf16 %v4190, %v4189
      %v4251 = vpack.c.bf16 %v4192, %v4191
      %v4252 = vpack.c.bf16 %v4194, %v4193
      %v4253 = vpack.c.bf16 %v4196, %v4195
      %v4254 = vpack.c.bf16 %v4198, %v4197
      %v4255 = vpack.c.bf16 %v4200, %v4199
      %v4256 = vpack.c.bf16 %v4202, %v4201
      %v4257 = vpack.c.bf16 %v4204, %v4203
      %v4258 = vpack.c.bf16 %v4206, %v4205
      %v4259 = vpack.c.bf16 %v4208, %v4207
      %v4260 = vpack.c.bf16 %v4210, %v4209
      %v4261 = vpack.c.bf16 %v4212, %v4211
      %v4262 = vpack.c.bf16 %v4214, %v4213
      %s4263 = scalar_lea.vmem %s3, 16
      %v4264 = vld [vmem:[%s4263] sm:$0xf]
      %v4265 = vld [vmem:[%s4263 + $0x4] sm:$0xf]
      %v4266 = vld [vmem:[%s4263 + $0x8] sm:$0xf]
      %v4267 = vld [vmem:[%s4263 + $0xc] sm:$0xf]
      %v4272 = vunpack.c.l.b16 %v4264
      %v4273 = vunpack.c.l.b16 %v4265
      %v4274 = vunpack.c.l.b16 %v4266
      %v4275 = vunpack.c.l.b16 %v4267
      %v4276 = vpack.c.b16 %v4273, %v4272
      %v4277 = vpack.c.b16 %v4275, %v4274
      %v4281 = vsel %vm332, %v4247, 0
      %v4284 = vsel %vm332, %v4248, 0
      %v4287 = vsel %vm332, %v4249, 0
      %v4290 = vsel %vm332, %v4250, 0
      %v4293 = vsel %vm332, %v4251, 0
      %v4296 = vsel %vm332, %v4252, 0
      %v4299 = vsel %vm332, %v4253, 0
      %v4302 = vsel %vm332, %v4254, 0
      %v4305 = vsel %vm332, %v4255, 0
      %v4308 = vsel %vm332, %v4256, 0
      %v4311 = vsel %vm332, %v4257, 0
      %v4314 = vsel %vm332, %v4258, 0
      %v4317 = vsel %vm332, %v4259, 0
      %v4320 = vsel %vm332, %v4260, 0
      %v4323 = vsel %vm332, %v4261, 0
      %v4326 = vsel %vm332, %v4262, 0
      %4328 = vmatprep.subr.bf16.mxu0 0
      %4329 = vmatpush1.bf16.msra.mxu0 %v4276
      %4330 = vmatprep.subr.bf16.mxu0 0
      %4331 = vmatpush1.bf16.msra.mxu0 %v4277
      %4332 = vmatprep.subr.bf16.mxu0 0
      %4333 = vmatpush1.bf16.msra.mxu0 0
      %4334 = vmatprep.subr.bf16.mxu0 0
      %4335 = vmatpush1.bf16.msra.mxu0 0
      %4336 = vmatprep.subr.bf16.mxu0 0
      %4337 = vmatpush1.bf16.msra.mxu0 0
      %4338 = vmatprep.subr.bf16.mxu0 0
      %4339 = vmatpush1.bf16.msra.mxu0 0
      %4340 = vmatprep.subr.bf16.mxu0 0
      %4341 = vmatpush1.bf16.msra.mxu0 0
      %4342 = vmatprep.subr.bf16.mxu0 0
      %4343 = vmatpush1.bf16.msra.mxu0 0
      %4344 = vmatprep.subr.bf16.mxu0 0
      %4345 = vmatpush1.bf16.msra.mxu0 0
      %4346 = vmatprep.subr.bf16.mxu0 0
      %4347 = vmatpush1.bf16.msra.mxu0 0
      %4348 = vmatprep.subr.bf16.mxu0 0
      %4349 = vmatpush1.bf16.msra.mxu0 0
      %4350 = vmatprep.subr.bf16.mxu0 0
      %4351 = vmatpush1.bf16.msra.mxu0 0
      %4352 = vmatprep.subr.bf16.mxu0 0
      %4353 = vmatpush1.bf16.msra.mxu0 0
      %4354 = vmatprep.subr.bf16.mxu0 0
      %4355 = vmatpush1.bf16.msra.mxu0 0
      %4356 = vmatprep.subr.bf16.mxu0 0
      %4357 = vmatpush1.bf16.msra.mxu0 0
      %4358 = vmatprep.subr.bf16.mxu0 0
      %4359 = vmatpush1.bf16.msra.mxu0 0
      %4360 = vmatprep.mubr.bf16.mxu0 0
      %4361 = vmatmul.mubr.bf16.gmra.mrb[0].mxu0 %v4281
      %v4362 = vpop.f32.mrb[0].mxu0
      %v4363 = vadd.f32 0.0, %v4362
      %v4364 = vpop.f32.mrb[0].mxu0
      %v4365 = vpop.f32.mrb[0].mxu0
      %v4366 = vadd.f32 0.0, %v4365
      %v4367 = vpop.f32.mrb[0].mxu0
      %4368 = vmatprep.mubr.bf16.mxu0 0
      %4369 = vmatmul.mubr.bf16.gmra.mrb[0].mxu0 %v4284
      %v4370 = vpop.f32.mrb[0].mxu0
      %v4371 = vadd.f32 0.0, %v4370
      %v4372 = vpop.f32.mrb[0].mxu0
      %v4373 = vpop.f32.mrb[0].mxu0
      %v4374 = vadd.f32 0.0, %v4373
      %v4375 = vpop.f32.mrb[0].mxu0
      %4376 = vmatprep.mubr.bf16.mxu0 0
      %4377 = vmatmul.mubr.bf16.gmra.mrb[0].mxu0 %v4287
      %v4378 = vpop.f32.mrb[0].mxu0
      %v4379 = vadd.f32 0.0, %v4378
      %v4380 = vpop.f32.mrb[0].mxu0
      %v4381 = vpop.f32.mrb[0].mxu0
      %v4382 = vadd.f32 0.0, %v4381
      %v4383 = vpop.f32.mrb[0].mxu0
      %4384 = vmatprep.mubr.bf16.mxu0 0
      %4385 = vmatmul.mubr.bf16.gmra.mrb[0].mxu0 %v4290
      %v4386 = vpop.f32.mrb[0].mxu0
      %v4387 = vadd.f32 0.0, %v4386
      %v4388 = vpop.f32.mrb[0].mxu0
      %v4389 = vpop.f32.mrb[0].mxu0
      %v4390 = vadd.f32 0.0, %v4389
      %v4391 = vpop.f32.mrb[0].mxu0
      %4392 = vmatprep.mubr.bf16.mxu0 0
      %4393 = vmatmul.mubr.bf16.gmra.mrb[0].mxu0 %v4293
      %v4394 = vpop.f32.mrb[0].mxu0
      %v4395 = vadd.f32 0.0, %v4394
      %v4396 = vpop.f32.mrb[0].mxu0
      %v4397 = vpop.f32.mrb[0].mxu0
      %v4398 = vadd.f32 0.0, %v4397
      %v4399 = vpop.f32.mrb[0].mxu0
      %4400 = vmatprep.mubr.bf16.mxu0 0
      %4401 = vmatmul.mubr.bf16.gmra.mrb[0].mxu0 %v4296
      %v4402 = vpop.f32.mrb[0].mxu0
      %v4403 = vadd.f32 0.0, %v4402
      %v4404 = vpop.f32.mrb[0].mxu0
      %v4405 = vpop.f32.mrb[0].mxu0
      %v4406 = vadd.f32 0.0, %v4405
      %v4407 = vpop.f32.mrb[0].mxu0
      %4408 = vmatprep.mubr.bf16.mxu0 0
      %4409 = vmatmul.mubr.bf16.gmra.mrb[0].mxu0 %v4299
      %v4410 = vpop.f32.mrb[0].mxu0
      %v4411 = vadd.f32 0.0, %v4410
      %v4412 = vpop.f32.mrb[0].mxu0
      %v4413 = vpop.f32.mrb[0].mxu0
      %v4414 = vadd.f32 0.0, %v4413
      %v4415 = vpop.f32.mrb[0].mxu0
      %4416 = vmatprep.mubr.bf16.mxu0 0
      %4417 = vmatmul.mubr.bf16.gmra.mrb[0].mxu0 %v4302
      %v4418 = vpop.f32.mrb[0].mxu0
      %v4419 = vadd.f32 0.0, %v4418
      %v4420 = vpop.f32.mrb[0].mxu0
      %v4421 = vpop.f32.mrb[0].mxu0
      %v4422 = vadd.f32 0.0, %v4421
      %v4423 = vpop.f32.mrb[0].mxu0
      %4424 = vmatprep.mubr.bf16.mxu0 0
      %4425 = vmatmul.mubr.bf16.gmra.mrb[0].mxu0 %v4305
      %v4426 = vpop.f32.mrb[0].mxu0
      %v4427 = vadd.f32 0.0, %v4426
      %v4428 = vpop.f32.mrb[0].mxu0
      %v4429 = vpop.f32.mrb[0].mxu0
      %v4430 = vadd.f32 0.0, %v4429
      %v4431 = vpop.f32.mrb[0].mxu0
      %4432 = vmatprep.mubr.bf16.mxu0 0
      %4433 = vmatmul.mubr.bf16.gmra.mrb[0].mxu0 %v4308
      %v4434 = vpop.f32.mrb[0].mxu0
      %v4435 = vadd.f32 0.0, %v4434
      %v4436 = vpop.f32.mrb[0].mxu0
      %v4437 = vpop.f32.mrb[0].mxu0
      %v4438 = vadd.f32 0.0, %v4437
      %v4439 = vpop.f32.mrb[0].mxu0
      %4440 = vmatprep.mubr.bf16.mxu0 0
      %4441 = vmatmul.mubr.bf16.gmra.mrb[0].mxu0 %v4311
      %v4442 = vpop.f32.mrb[0].mxu0
      %v4443 = vadd.f32 0.0, %v4442
      %v4444 = vpop.f32.mrb[0].mxu0
      %v4445 = vpop.f32.mrb[0].mxu0
      %v4446 = vadd.f32 0.0, %v4445
      %v4447 = vpop.f32.mrb[0].mxu0
      %4448 = vmatprep.mubr.bf16.mxu0 0
      %4449 = vmatmul.mubr.bf16.gmra.mrb[0].mxu0 %v4314
      %v4450 = vpop.f32.mrb[0].mxu0
      %v4451 = vadd.f32 0.0, %v4450
      %v4452 = vpop.f32.mrb[0].mxu0
      %v4453 = vpop.f32.mrb[0].mxu0
      %v4454 = vadd.f32 0.0, %v4453
      %v4455 = vpop.f32.mrb[0].mxu0
      %4456 = vmatprep.mubr.bf16.mxu0 0
      %4457 = vmatmul.mubr.bf16.gmra.mrb[0].mxu0 %v4317
      %v4458 = vpop.f32.mrb[0].mxu0
      %v4459 = vadd.f32 0.0, %v4458
      %v4460 = vpop.f32.mrb[0].mxu0
      %v4461 = vpop.f32.mrb[0].mxu0
      %v4462 = vadd.f32 0.0, %v4461
      %v4463 = vpop.f32.mrb[0].mxu0
      %4464 = vmatprep.mubr.bf16.mxu0 0
      %4465 = vmatmul.mubr.bf16.gmra.mrb[0].mxu0 %v4320
      %v4466 = vpop.f32.mrb[0].mxu0
      %v4467 = vadd.f32 0.0, %v4466
      %v4468 = vpop.f32.mrb[0].mxu0
      %v4469 = vpop.f32.mrb[0].mxu0
      %v4470 = vadd.f32 0.0, %v4469
      %v4471 = vpop.f32.mrb[0].mxu0
      %4472 = vmatprep.mubr.bf16.mxu0 0
      %4473 = vmatmul.mubr.bf16.gmra.mrb[0].mxu0 %v4323
      %v4474 = vpop.f32.mrb[0].mxu0
      %v4475 = vadd.f32 0.0, %v4474
      %v4476 = vpop.f32.mrb[0].mxu0
      %v4477 = vpop.f32.mrb[0].mxu0
      %v4478 = vadd.f32 0.0, %v4477
      %v4479 = vpop.f32.mrb[0].mxu0
      %4480 = vmatprep.mubr.bf16.mxu0 0
      %4481 = vmatmul.mubr.bf16.gmra.mrb[0].mxu0 %v4326
      %v4482 = vpop.f32.mrb[0].mxu0
      %v4483 = vadd.f32 0.0, %v4482
      %v4484 = vpop.f32.mrb[0].mxu0
      %v4485 = vpop.f32.mrb[0].mxu0
      %v4486 = vadd.f32 0.0, %v4485
      %v4487 = vpop.f32.mrb[0].mxu0
      %4488 = vdwg.mxu0
      %v4489 = vadd.f32 %v4215, %v4363
      %v4490 = vadd.f32 %v4216, %v4366
      %v4491 = vadd.f32 %v4217, %v4371
      %v4492 = vadd.f32 %v4218, %v4374
      %v4493 = vadd.f32 %v4219, %v4379
      %v4494 = vadd.f32 %v4220, %v4382
      %v4495 = vadd.f32 %v4221, %v4387
      %v4496 = vadd.f32 %v4222, %v4390
      %v4497 = vadd.f32 %v4223, %v4395
      %v4498 = vadd.f32 %v4224, %v4398
      %v4499 = vadd.f32 %v4225, %v4403
      %v4500 = vadd.f32 %v4226, %v4406
      %v4501 = vadd.f32 %v4227, %v4411
      %v4502 = vadd.f32 %v4228, %v4414
      %v4503 = vadd.f32 %v4229, %v4419
      %v4504 = vadd.f32 %v4230, %v4422
      %v4505 = vadd.f32 %v4231, %v4427
      %v4506 = vadd.f32 %v4232, %v4430
      %v4507 = vadd.f32 %v4233, %v4435
      %v4508 = vadd.f32 %v4234, %v4438
      %v4509 = vadd.f32 %v4235, %v4443
      %v4510 = vadd.f32 %v4236, %v4446
      %v4511 = vadd.f32 %v4237, %v4451
      %v4512 = vadd.f32 %v4238, %v4454
      %v4513 = vadd.f32 %v4239, %v4459
      %v4514 = vadd.f32 %v4240, %v4462
      %v4515 = vadd.f32 %v4241, %v4467
      %v4516 = vadd.f32 %v4242, %v4470
      %v4517 = vadd.f32 %v4243, %v4475
      %v4518 = vadd.f32 %v4244, %v4478
      %v4519 = vadd.f32 %v4245, %v4483
      %v4520 = vadd.f32 %v4246, %v4486
      %4521 = vst.msk [vmem:[#allocation4] sm:$0xff] %vm3781, %v4489
      %4522 = vst.msk [vmem:[#allocation4 + $0x8] sm:$0xff] %vm3781, %v4490
      %4523 = vst.msk [vmem:[#allocation4 + $0x10] sm:$0xff] %vm3781, %v4491
      %4524 = vst.msk [vmem:[#allocation4 + $0x18] sm:$0xff] %vm3781, %v4492
      %4525 = vst.msk [vmem:[#allocation4 + $0x20] sm:$0xff] %vm3781, %v4493
      %4526 = vst.msk [vmem:[#allocation4 + $0x28] sm:$0xff] %vm3781, %v4494
      %4527 = vst.msk [vmem:[#allocation4 + $0x30] sm:$0xff] %vm3781, %v4495
      %4528 = vst.msk [vmem:[#allocation4 + $0x38] sm:$0xff] %vm3781, %v4496
      %4529 = vst.msk [vmem:[#allocation4 + $0x40] sm:$0xff] %vm3781, %v4497
      %4530 = vst.msk [vmem:[#allocation4 + $0x48] sm:$0xff] %vm3781, %v4498
      %4531 = vst.msk [vmem:[#allocation4 + $0x50] sm:$0xff] %vm3781, %v4499
      %4532 = vst.msk [vmem:[#allocation4 + $0x58] sm:$0xff] %vm3781, %v4500
      %4533 = vst.msk [vmem:[#allocation4 + $0x60] sm:$0xff] %vm3781, %v4501
      %4534 = vst.msk [vmem:[#allocation4 + $0x68] sm:$0xff] %vm3781, %v4502
      %4535 = vst.msk [vmem:[#allocation4 + $0x70] sm:$0xff] %vm3781, %v4503
      %4536 = vst.msk [vmem:[#allocation4 + $0x78] sm:$0xff] %vm3781, %v4504
      %4537 = vst.msk [vmem:[#allocation4 + $0x80] sm:$0xff] %vm3781, %v4505
      %4538 = vst.msk [vmem:[#allocation4 + $0x88] sm:$0xff] %vm3781, %v4506
      %4539 = vst.msk [vmem:[#allocation4 + $0x90] sm:$0xff] %vm3781, %v4507
      %4540 = vst.msk [vmem:[#allocation4 + $0x98] sm:$0xff] %vm3781, %v4508
      %4541 = vst.msk [vmem:[#allocation4 + $0xa0] sm:$0xff] %vm3781, %v4509
      %4542 = vst.msk [vmem:[#allocation4 + $0xa8] sm:$0xff] %vm3781, %v4510
      %4543 = vst.msk [vmem:[#allocation4 + $0xb0] sm:$0xff] %vm3781, %v4511
      %4544 = vst.msk [vmem:[#allocation4 + $0xb8] sm:$0xff] %vm3781, %v4512
      %4545 = vst.msk [vmem:[#allocation4 + $0xc0] sm:$0xff] %vm3781, %v4513
      %4546 = vst.msk [vmem:[#allocation4 + $0xc8] sm:$0xff] %vm3781, %v4514
      %4547 = vst.msk [vmem:[#allocation4 + $0xd0] sm:$0xff] %vm3781, %v4515
      %4548 = vst.msk [vmem:[#allocation4 + $0xd8] sm:$0xff] %vm3781, %v4516
      %4549 = vst.msk [vmem:[#allocation4 + $0xe0] sm:$0xff] %vm3781, %v4517
      %4550 = vst.msk [vmem:[#allocation4 + $0xe8] sm:$0xff] %vm3781, %v4518
      %4551 = vst.msk [vmem:[#allocation4 + $0xf0] sm:$0xff] %vm3781, %v4519
      %4552 = vst.msk [vmem:[#allocation4 + $0xf8] sm:$0xff] %vm3781, %v4520
      %v4553 = vld [vmem:[#allocation3 + $0x2] sm:$0xff]
      %v4554 = vld [vmem:[#allocation3 + $0xa] sm:$0xff]
      %v4555 = vld [vmem:[#allocation3 + $0x1a] sm:$0xff]
      %v4556 = vld [vmem:[#allocation3 + $0x22] sm:$0xff]
      %v4557 = vld [vmem:[#allocation3 + $0x32] sm:$0xff]
      %v4558 = vld [vmem:[#allocation3 + $0x3a] sm:$0xff]
      %v4559 = vld [vmem:[#allocation3 + $0x4a] sm:$0xff]
      %v4560 = vld [vmem:[#allocation3 + $0x52] sm:$0xff]
      %v4561 = vld [vmem:[#allocation3 + $0x62] sm:$0xff]
      %v4562 = vld [vmem:[#allocation3 + $0x6a] sm:$0xff]
      %v4563 = vld [vmem:[#allocation3 + $0x7a] sm:$0xff]
      %v4564 = vld [vmem:[#allocation3 + $0x82] sm:$0xff]
      %v4565 = vld [vmem:[#allocation3 + $0x92] sm:$0xff]
      %v4566 = vld [vmem:[#allocation3 + $0x9a] sm:$0xff]
      %v4567 = vld [vmem:[#allocation3 + $0xaa] sm:$0xff]
      %v4568 = vld [vmem:[#allocation3 + $0xb2] sm:$0xff]
      %v4569 = vld [vmem:[#allocation3 + $0xc2] sm:$0xff]
      %v4570 = vld [vmem:[#allocation3 + $0xca] sm:$0xff]
      %v4571 = vld [vmem:[#allocation3 + $0xda] sm:$0xff]
      %v4572 = vld [vmem:[#allocation3 + $0xe2] sm:$0xff]
      %v4573 = vld [vmem:[#allocation3 + $0xf2] sm:$0xff]
      %v4574 = vld [vmem:[#allocation3 + $0xfa] sm:$0xff]
      %v4575 = vld [vmem:[#allocation3 + $0x10a] sm:$0xff]
      %v4576 = vld [vmem:[#allocation3 + $0x112] sm:$0xff]
      %v4577 = vld [vmem:[#allocation3 + $0x122] sm:$0xff]
      %v4578 = vld [vmem:[#allocation3 + $0x12a] sm:$0xff]
      %v4579 = vld [vmem:[#allocation3 + $0x13a] sm:$0xff]
      %v4580 = vld [vmem:[#allocation3 + $0x142] sm:$0xff]
      %v4581 = vld [vmem:[#allocation3 + $0x152] sm:$0xff]
      %v4582 = vld [vmem:[#allocation3 + $0x15a] sm:$0xff]
      %v4583 = vld [vmem:[#allocation3 + $0x16a] sm:$0xff]
      %v4584 = vld [vmem:[#allocation3 + $0x172] sm:$0xff]
      %v4585 = vld [vmem:[#allocation4] sm:$0xff]
      %v4586 = vld [vmem:[#allocation4 + $0x8] sm:$0xff]
      %v4587 = vld [vmem:[#allocation4 + $0x10] sm:$0xff]
      %v4588 = vld [vmem:[#allocation4 + $0x18] sm:$0xff]
      %v4589 = vld [vmem:[#allocation4 + $0x20] sm:$0xff]
      %v4590 = vld [vmem:[#allocation4 + $0x28] sm:$0xff]
      %v4591 = vld [vmem:[#allocation4 + $0x30] sm:$0xff]
      %v4592 = vld [vmem:[#allocation4 + $0x38] sm:$0xff]
      %v4593 = vld [vmem:[#allocation4 + $0x40] sm:$0xff]
      %v4594 = vld [vmem:[#allocation4 + $0x48] sm:$0xff]
      %v4595 = vld [vmem:[#allocation4 + $0x50] sm:$0xff]
      %v4596 = vld [vmem:[#allocation4 + $0x58] sm:$0xff]
      %v4597 = vld [vmem:[#allocation4 + $0x60] sm:$0xff]
      %v4598 = vld [vmem:[#allocation4 + $0x68] sm:$0xff]
      %v4599 = vld [vmem:[#allocation4 + $0x70] sm:$0xff]
      %v4600 = vld [vmem:[#allocation4 + $0x78] sm:$0xff]
      %v4601 = vld [vmem:[#allocation4 + $0x80] sm:$0xff]
      %v4602 = vld [vmem:[#allocation4 + $0x88] sm:$0xff]
      %v4603 = vld [vmem:[#allocation4 + $0x90] sm:$0xff]
      %v4604 = vld [vmem:[#allocation4 + $0x98] sm:$0xff]
      %v4605 = vld [vmem:[#allocation4 + $0xa0] sm:$0xff]
      %v4606 = vld [vmem:[#allocation4 + $0xa8] sm:$0xff]
      %v4607 = vld [vmem:[#allocation4 + $0xb0] sm:$0xff]
      %v4608 = vld [vmem:[#allocation4 + $0xb8] sm:$0xff]
      %v4609 = vld [vmem:[#allocation4 + $0xc0] sm:$0xff]
      %v4610 = vld [vmem:[#allocation4 + $0xc8] sm:$0xff]
      %v4611 = vld [vmem:[#allocation4 + $0xd0] sm:$0xff]
      %v4612 = vld [vmem:[#allocation4 + $0xd8] sm:$0xff]
      %v4613 = vld [vmem:[#allocation4 + $0xe0] sm:$0xff]
      %v4614 = vld [vmem:[#allocation4 + $0xe8] sm:$0xff]
      %v4615 = vld [vmem:[#allocation4 + $0xf0] sm:$0xff]
      %v4616 = vld [vmem:[#allocation4 + $0xf8] sm:$0xff]
      %v4617 = vpack.c.bf16 %v4554, %v4553
      %v4618 = vpack.c.bf16 %v4556, %v4555
      %v4619 = vpack.c.bf16 %v4558, %v4557
      %v4620 = vpack.c.bf16 %v4560, %v4559
      %v4621 = vpack.c.bf16 %v4562, %v4561
      %v4622 = vpack.c.bf16 %v4564, %v4563
      %v4623 = vpack.c.bf16 %v4566, %v4565
      %v4624 = vpack.c.bf16 %v4568, %v4567
      %v4625 = vpack.c.bf16 %v4570, %v4569
      %v4626 = vpack.c.bf16 %v4572, %v4571
      %v4627 = vpack.c.bf16 %v4574, %v4573
      %v4628 = vpack.c.bf16 %v4576, %v4575
      %v4629 = vpack.c.bf16 %v4578, %v4577
      %v4630 = vpack.c.bf16 %v4580, %v4579
      %v4631 = vpack.c.bf16 %v4582, %v4581
      %v4632 = vpack.c.bf16 %v4584, %v4583
      %s4633 = scalar_lea.vmem %s3, 32
      %v4634 = vld [vmem:[%s4633] sm:$0xf]
      %v4635 = vld [vmem:[%s4633 + $0x4] sm:$0xf]
      %v4636 = vld [vmem:[%s4633 + $0x8] sm:$0xf]
      %v4637 = vld [vmem:[%s4633 + $0xc] sm:$0xf]
      %v4642 = vunpack.c.l.b16 %v4634
      %v4643 = vunpack.c.l.b16 %v4635
      %v4644 = vunpack.c.l.b16 %v4636
      %v4645 = vunpack.c.l.b16 %v4637
      %v4646 = vpack.c.b16 %v4643, %v4642
      %v4647 = vpack.c.b16 %v4645, %v4644
      %v4651 = vsel %vm332, %v4617, 0
      %v4654 = vsel %vm332, %v4618, 0
      %v4657 = vsel %vm332, %v4619, 0
      %v4660 = vsel %vm332, %v4620, 0
      %v4663 = vsel %vm332, %v4621, 0
      %v4666 = vsel %vm332, %v4622, 0
      %v4669 = vsel %vm332, %v4623, 0
      %v4672 = vsel %vm332, %v4624, 0
      %v4675 = vsel %vm332, %v4625, 0
      %v4678 = vsel %vm332, %v4626, 0
      %v4681 = vsel %vm332, %v4627, 0
      %v4684 = vsel %vm332, %v4628, 0
      %v4687 = vsel %vm332, %v4629, 0
      %v4690 = vsel %vm332, %v4630, 0
      %v4693 = vsel %vm332, %v4631, 0
      %v4696 = vsel %vm332, %v4632, 0
      %4698 = vmatprep.subr.bf16.mxu0 0
      %4699 = vmatpush1.bf16.msra.mxu0 %v4646
      %4700 = vmatprep.subr.bf16.mxu0 0
      %4701 = vmatpush1.bf16.msra.mxu0 %v4647
      %4702 = vmatprep.subr.bf16.mxu0 0
      %4703 = vmatpush1.bf16.msra.mxu0 0
      %4704 = vmatprep.subr.bf16.mxu0 0
      %4705 = vmatpush1.bf16.msra.mxu0 0
      %4706 = vmatprep.subr.bf16.mxu0 0
      %4707 = vmatpush1.bf16.msra.mxu0 0
      %4708 = vmatprep.subr.bf16.mxu0 0
      %4709 = vmatpush1.bf16.msra.mxu0 0
      %4710 = vmatprep.subr.bf16.mxu0 0
      %4711 = vmatpush1.bf16.msra.mxu0 0
      %4712 = vmatprep.subr.bf16.mxu0 0
      %4713 = vmatpush1.bf16.msra.mxu0 0
      %4714 = vmatprep.subr.bf16.mxu0 0
      %4715 = vmatpush1.bf16.msra.mxu0 0
      %4716 = vmatprep.subr.bf16.mxu0 0
      %4717 = vmatpush1.bf16.msra.mxu0 0
      %4718 = vmatprep.subr.bf16.mxu0 0
      %4719 = vmatpush1.bf16.msra.mxu0 0
      %4720 = vmatprep.subr.bf16.mxu0 0
      %4721 = vmatpush1.bf16.msra.mxu0 0
      %4722 = vmatprep.subr.bf16.mxu0 0
      %4723 = vmatpush1.bf16.msra.mxu0 0
      %4724 = vmatprep.subr.bf16.mxu0 0
      %4725 = vmatpush1.bf16.msra.mxu0 0
      %4726 = vmatprep.subr.bf16.mxu0 0
      %4727 = vmatpush1.bf16.msra.mxu0 0
      %4728 = vmatprep.subr.bf16.mxu0 0
      %4729 = vmatpush1.bf16.msra.mxu0 0
      %4730 = vmatprep.mubr.bf16.mxu0 0
      %4731 = vmatmul.mubr.bf16.gmra.mrb[0].mxu0 %v4651
      %v4732 = vpop.f32.mrb[0].mxu0
      %v4733 = vadd.f32 0.0, %v4732
      %v4734 = vpop.f32.mrb[0].mxu0
      %v4735 = vpop.f32.mrb[0].mxu0
      %v4736 = vadd.f32 0.0, %v4735
      %v4737 = vpop.f32.mrb[0].mxu0
      %4738 = vmatprep.mubr.bf16.mxu0 0
      %4739 = vmatmul.mubr.bf16.gmra.mrb[0].mxu0 %v4654
      %v4740 = vpop.f32.mrb[0].mxu0
      %v4741 = vadd.f32 0.0, %v4740
      %v4742 = vpop.f32.mrb[0].mxu0
      %v4743 = vpop.f32.mrb[0].mxu0
      %v4744 = vadd.f32 0.0, %v4743
      %v4745 = vpop.f32.mrb[0].mxu0
      %4746 = vmatprep.mubr.bf16.mxu0 0
      %4747 = vmatmul.mubr.bf16.gmra.mrb[0].mxu0 %v4657
      %v4748 = vpop.f32.mrb[0].mxu0
      %v4749 = vadd.f32 0.0, %v4748
      %v4750 = vpop.f32.mrb[0].mxu0
      %v4751 = vpop.f32.mrb[0].mxu0
      %v4752 = vadd.f32 0.0, %v4751
      %v4753 = vpop.f32.mrb[0].mxu0
      %4754 = vmatprep.mubr.bf16.mxu0 0
      %4755 = vmatmul.mubr.bf16.gmra.mrb[0].mxu0 %v4660
      %v4756 = vpop.f32.mrb[0].mxu0
      %v4757 = vadd.f32 0.0, %v4756
      %v4758 = vpop.f32.mrb[0].mxu0
      %v4759 = vpop.f32.mrb[0].mxu0
      %v4760 = vadd.f32 0.0, %v4759
      %v4761 = vpop.f32.mrb[0].mxu0
      %4762 = vmatprep.mubr.bf16.mxu0 0
      %4763 = vmatmul.mubr.bf16.gmra.mrb[0].mxu0 %v4663
      %v4764 = vpop.f32.mrb[0].mxu0
      %v4765 = vadd.f32 0.0, %v4764
      %v4766 = vpop.f32.mrb[0].mxu0
      %v4767 = vpop.f32.mrb[0].mxu0
      %v4768 = vadd.f32 0.0, %v4767
      %v4769 = vpop.f32.mrb[0].mxu0
      %4770 = vmatprep.mubr.bf16.mxu0 0
      %4771 = vmatmul.mubr.bf16.gmra.mrb[0].mxu0 %v4666
      %v4772 = vpop.f32.mrb[0].mxu0
      %v4773 = vadd.f32 0.0, %v4772
      %v4774 = vpop.f32.mrb[0].mxu0
      %v4775 = vpop.f32.mrb[0].mxu0
      %v4776 = vadd.f32 0.0, %v4775
      %v4777 = vpop.f32.mrb[0].mxu0
      %4778 = vmatprep.mubr.bf16.mxu0 0
      %4779 = vmatmul.mubr.bf16.gmra.mrb[0].mxu0 %v4669
      %v4780 = vpop.f32.mrb[0].mxu0
      %v4781 = vadd.f32 0.0, %v4780
      %v4782 = vpop.f32.mrb[0].mxu0
      %v4783 = vpop.f32.mrb[0].mxu0
      %v4784 = vadd.f32 0.0, %v4783
      %v4785 = vpop.f32.mrb[0].mxu0
      %4786 = vmatprep.mubr.bf16.mxu0 0
      %4787 = vmatmul.mubr.bf16.gmra.mrb[0].mxu0 %v4672
      %v4788 = vpop.f32.mrb[0].mxu0
      %v4789 = vadd.f32 0.0, %v4788
      %v4790 = vpop.f32.mrb[0].mxu0
      %v4791 = vpop.f32.mrb[0].mxu0
      %v4792 = vadd.f32 0.0, %v4791
      %v4793 = vpop.f32.mrb[0].mxu0
      %4794 = vmatprep.mubr.bf16.mxu0 0
      %4795 = vmatmul.mubr.bf16.gmra.mrb[0].mxu0 %v4675
      %v4796 = vpop.f32.mrb[0].mxu0
      %v4797 = vadd.f32 0.0, %v4796
      %v4798 = vpop.f32.mrb[0].mxu0
      %v4799 = vpop.f32.mrb[0].mxu0
      %v4800 = vadd.f32 0.0, %v4799
      %v4801 = vpop.f32.mrb[0].mxu0
      %4802 = vmatprep.mubr.bf16.mxu0 0
      %4803 = vmatmul.mubr.bf16.gmra.mrb[0].mxu0 %v4678
      %v4804 = vpop.f32.mrb[0].mxu0
      %v4805 = vadd.f32 0.0, %v4804
      %v4806 = vpop.f32.mrb[0].mxu0
      %v4807 = vpop.f32.mrb[0].mxu0
      %v4808 = vadd.f32 0.0, %v4807
      %v4809 = vpop.f32.mrb[0].mxu0
      %4810 = vmatprep.mubr.bf16.mxu0 0
      %4811 = vmatmul.mubr.bf16.gmra.mrb[0].mxu0 %v4681
      %v4812 = vpop.f32.mrb[0].mxu0
      %v4813 = vadd.f32 0.0, %v4812
      %v4814 = vpop.f32.mrb[0].mxu0
      %v4815 = vpop.f32.mrb[0].mxu0
      %v4816 = vadd.f32 0.0, %v4815
      %v4817 = vpop.f32.mrb[0].mxu0
      %4818 = vmatprep.mubr.bf16.mxu0 0
      %4819 = vmatmul.mubr.bf16.gmra.mrb[0].mxu0 %v4684
      %v4820 = vpop.f32.mrb[0].mxu0
      %v4821 = vadd.f32 0.0, %v4820
      %v4822 = vpop.f32.mrb[0].mxu0
      %v4823 = vpop.f32.mrb[0].mxu0
      %v4824 = vadd.f32 0.0, %v4823
      %v4825 = vpop.f32.mrb[0].mxu0
      %4826 = vmatprep.mubr.bf16.mxu0 0
      %4827 = vmatmul.mubr.bf16.gmra.mrb[0].mxu0 %v4687
      %v4828 = vpop.f32.mrb[0].mxu0
      %v4829 = vadd.f32 0.0, %v4828
      %v4830 = vpop.f32.mrb[0].mxu0
      %v4831 = vpop.f32.mrb[0].mxu0
      %v4832 = vadd.f32 0.0, %v4831
      %v4833 = vpop.f32.mrb[0].mxu0
      %4834 = vmatprep.mubr.bf16.mxu0 0
      %4835 = vmatmul.mubr.bf16.gmra.mrb[0].mxu0 %v4690
      %v4836 = vpop.f32.mrb[0].mxu0
      %v4837 = vadd.f32 0.0, %v4836
      %v4838 = vpop.f32.mrb[0].mxu0
      %v4839 = vpop.f32.mrb[0].mxu0
      %v4840 = vadd.f32 0.0, %v4839
      %v4841 = vpop.f32.mrb[0].mxu0
      %4842 = vmatprep.mubr.bf16.mxu0 0
      %4843 = vmatmul.mubr.bf16.gmra.mrb[0].mxu0 %v4693
      %v4844 = vpop.f32.mrb[0].mxu0
      %v4845 = vadd.f32 0.0, %v4844
      %v4846 = vpop.f32.mrb[0].mxu0
      %v4847 = vpop.f32.mrb[0].mxu0
      %v4848 = vadd.f32 0.0, %v4847
      %v4849 = vpop.f32.mrb[0].mxu0
      %4850 = vmatprep.mubr.bf16.mxu0 0
      %4851 = vmatmul.mubr.bf16.gmra.mrb[0].mxu0 %v4696
      %v4852 = vpop.f32.mrb[0].mxu0
      %v4853 = vadd.f32 0.0, %v4852
      %v4854 = vpop.f32.mrb[0].mxu0
      %v4855 = vpop.f32.mrb[0].mxu0
      %v4856 = vadd.f32 0.0, %v4855
      %v4857 = vpop.f32.mrb[0].mxu0
      %4858 = vdwg.mxu0
      %v4859 = vadd.f32 %v4585, %v4733
      %v4860 = vadd.f32 %v4586, %v4736
      %v4861 = vadd.f32 %v4587, %v4741
      %v4862 = vadd.f32 %v4588, %v4744
      %v4863 = vadd.f32 %v4589, %v4749
      %v4864 = vadd.f32 %v4590, %v4752
      %v4865 = vadd.f32 %v4591, %v4757
      %v4866 = vadd.f32 %v4592, %v4760
      %v4867 = vadd.f32 %v4593, %v4765
      %v4868 = vadd.f32 %v4594, %v4768
      %v4869 = vadd.f32 %v4595, %v4773
      %v4870 = vadd.f32 %v4596, %v4776
      %v4871 = vadd.f32 %v4597, %v4781
      %v4872 = vadd.f32 %v4598, %v4784
      %v4873 = vadd.f32 %v4599, %v4789
      %v4874 = vadd.f32 %v4600, %v4792
      %v4875 = vadd.f32 %v4601, %v4797
      %v4876 = vadd.f32 %v4602, %v4800
      %v4877 = vadd.f32 %v4603, %v4805
      %v4878 = vadd.f32 %v4604, %v4808
      %v4879 = vadd.f32 %v4605, %v4813
      %v4880 = vadd.f32 %v4606, %v4816
      %v4881 = vadd.f32 %v4607, %v4821
      %v4882 = vadd.f32 %v4608, %v4824
      %v4883 = vadd.f32 %v4609, %v4829
      %v4884 = vadd.f32 %v4610, %v4832
      %v4885 = vadd.f32 %v4611, %v4837
      %v4886 = vadd.f32 %v4612, %v4840
      %v4887 = vadd.f32 %v4613, %v4845
      %v4888 = vadd.f32 %v4614, %v4848
      %v4889 = vadd.f32 %v4615, %v4853
      %v4890 = vadd.f32 %v4616, %v4856
      %4891 = vst.msk [vmem:[#allocation4] sm:$0xff] %vm3781, %v4859
      %4892 = vst.msk [vmem:[#allocation4 + $0x8] sm:$0xff] %vm3781, %v4860
      %4893 = vst.msk [vmem:[#allocation4 + $0x10] sm:$0xff] %vm3781, %v4861
      %4894 = vst.msk [vmem:[#allocation4 + $0x18] sm:$0xff] %vm3781, %v4862
      %4895 = vst.msk [vmem:[#allocation4 + $0x20] sm:$0xff] %vm3781, %v4863
      %4896 = vst.msk [vmem:[#allocation4 + $0x28] sm:$0xff] %vm3781, %v4864
      %4897 = vst.msk [vmem:[#allocation4 + $0x30] sm:$0xff] %vm3781, %v4865
      %4898 = vst.msk [vmem:[#allocation4 + $0x38] sm:$0xff] %vm3781, %v4866
      %4899 = vst.msk [vmem:[#allocation4 + $0x40] sm:$0xff] %vm3781, %v4867
      %4900 = vst.msk [vmem:[#allocation4 + $0x48] sm:$0xff] %vm3781, %v4868
      %4901 = vst.msk [vmem:[#allocation4 + $0x50] sm:$0xff] %vm3781, %v4869
      %4902 = vst.msk [vmem:[#allocation4 + $0x58] sm:$0xff] %vm3781, %v4870
      %4903 = vst.msk [vmem:[#allocation4 + $0x60] sm:$0xff] %vm3781, %v4871
      %4904 = vst.msk [vmem:[#allocation4 + $0x68] sm:$0xff] %vm3781, %v4872
      %4905 = vst.msk [vmem:[#allocation4 + $0x70] sm:$0xff] %vm3781, %v4873
      %4906 = vst.msk [vmem:[#allocation4 + $0x78] sm:$0xff] %vm3781, %v4874
      %4907 = vst.msk [vmem:[#allocation4 + $0x80] sm:$0xff] %vm3781, %v4875
      %4908 = vst.msk [vmem:[#allocation4 + $0x88] sm:$0xff] %vm3781, %v4876
      %4909 = vst.msk [vmem:[#allocation4 + $0x90] sm:$0xff] %vm3781, %v4877
      %4910 = vst.msk [vmem:[#allocation4 + $0x98] sm:$0xff] %vm3781, %v4878
      %4911 = vst.msk [vmem:[#allocation4 + $0xa0] sm:$0xff] %vm3781, %v4879
      %4912 = vst.msk [vmem:[#allocation4 + $0xa8] sm:$0xff] %vm3781, %v4880
      %4913 = vst.msk [vmem:[#allocation4 + $0xb0] sm:$0xff] %vm3781, %v4881
      %4914 = vst.msk [vmem:[#allocation4 + $0xb8] sm:$0xff] %vm3781, %v4882
      %4915 = vst.msk [vmem:[#allocation4 + $0xc0] sm:$0xff] %vm3781, %v4883
      %4916 = vst.msk [vmem:[#allocation4 + $0xc8] sm:$0xff] %vm3781, %v4884
      %4917 = vst.msk [vmem:[#allocation4 + $0xd0] sm:$0xff] %vm3781, %v4885
      %4918 = vst.msk [vmem:[#allocation4 + $0xd8] sm:$0xff] %vm3781, %v4886
      %4919 = vst.msk [vmem:[#allocation4 + $0xe0] sm:$0xff] %vm3781, %v4887
      %4920 = vst.msk [vmem:[#allocation4 + $0xe8] sm:$0xff] %vm3781, %v4888
      %4921 = vst.msk [vmem:[#allocation4 + $0xf0] sm:$0xff] %vm3781, %v4889
      %4922 = vst.msk [vmem:[#allocation4 + $0xf8] sm:$0xff] %vm3781, %v4890
      %v4923 = vld [vmem:[%s3748] sm:$0xff]
      %v4924 = vld [vmem:[%s3748 + $0x8] sm:$0xff]
      %v4925 = vld [vmem:[%s3748 + $0x18] sm:$0xff]
      %v4926 = vld [vmem:[%s3748 + $0x20] sm:$0xff]
      %v4927 = vld [vmem:[%s3748 + $0x30] sm:$0xff]
      %v4928 = vld [vmem:[%s3748 + $0x38] sm:$0xff]
      %v4929 = vld [vmem:[%s3748 + $0x48] sm:$0xff]
      %v4930 = vld [vmem:[%s3748 + $0x50] sm:$0xff]
      %v4931 = vld [vmem:[%s3748 + $0x60] sm:$0xff]
      %v4932 = vld [vmem:[%s3748 + $0x68] sm:$0xff]
      %v4933 = vld [vmem:[%s3748 + $0x78] sm:$0xff]
      %v4934 = vld [vmem:[%s3748 + $0x80] sm:$0xff]
      %v4935 = vld [vmem:[%s3748 + $0x90] sm:$0xff]
      %v4936 = vld [vmem:[%s3748 + $0x98] sm:$0xff]
      %v4937 = vld [vmem:[%s3748 + $0xa8] sm:$0xff]
      %v4938 = vld [vmem:[%s3748 + $0xb0] sm:$0xff]
      %v4939 = vld [vmem:[%s3748 + $0xc0] sm:$0xff]
      %v4940 = vld [vmem:[%s3748 + $0xc8] sm:$0xff]
      %v4941 = vld [vmem:[%s3748 + $0xd8] sm:$0xff]
      %v4942 = vld [vmem:[%s3748 + $0xe0] sm:$0xff]
      %v4943 = vld [vmem:[%s3748 + $0xf0] sm:$0xff]
      %v4944 = vld [vmem:[%s3748 + $0xf8] sm:$0xff]
      %v4945 = vld [vmem:[%s3748 + $0x108] sm:$0xff]
      %v4946 = vld [vmem:[%s3748 + $0x110] sm:$0xff]
      %v4947 = vld [vmem:[%s3748 + $0x120] sm:$0xff]
      %v4948 = vld [vmem:[%s3748 + $0x128] sm:$0xff]
      %v4949 = vld [vmem:[%s3748 + $0x138] sm:$0xff]
      %v4950 = vld [vmem:[%s3748 + $0x140] sm:$0xff]
      %v4951 = vld [vmem:[%s3748 + $0x150] sm:$0xff]
      %v4952 = vld [vmem:[%s3748 + $0x158] sm:$0xff]
      %v4953 = vld [vmem:[%s3748 + $0x168] sm:$0xff]
      %v4954 = vld [vmem:[%s3748 + $0x170] sm:$0xff]
      %v4955 = vld [vmem:[#allocation4] sm:$0xff]
      %v4956 = vld [vmem:[#allocation4 + $0x8] sm:$0xff]
      %v4957 = vld [vmem:[#allocation4 + $0x10] sm:$0xff]
      %v4958 = vld [vmem:[#allocation4 + $0x18] sm:$0xff]
      %v4959 = vld [vmem:[#allocation4 + $0x20] sm:$0xff]
      %v4960 = vld [vmem:[#allocation4 + $0x28] sm:$0xff]
      %v4961 = vld [vmem:[#allocation4 + $0x30] sm:$0xff]
      %v4962 = vld [vmem:[#allocation4 + $0x38] sm:$0xff]
      %v4963 = vld [vmem:[#allocation4 + $0x40] sm:$0xff]
      %v4964 = vld [vmem:[#allocation4 + $0x48] sm:$0xff]
      %v4965 = vld [vmem:[#allocation4 + $0x50] sm:$0xff]
      %v4966 = vld [vmem:[#allocation4 + $0x58] sm:$0xff]
      %v4967 = vld [vmem:[#allocation4 + $0x60] sm:$0xff]
      %v4968 = vld [vmem:[#allocation4 + $0x68] sm:$0xff]
      %v4969 = vld [vmem:[#allocation4 + $0x70] sm:$0xff]
      %v4970 = vld [vmem:[#allocation4 + $0x78] sm:$0xff]
      %v4971 = vld [vmem:[#allocation4 + $0x80] sm:$0xff]
      %v4972 = vld [vmem:[#allocation4 + $0x88] sm:$0xff]
      %v4973 = vld [vmem:[#allocation4 + $0x90] sm:$0xff]
      %v4974 = vld [vmem:[#allocation4 + $0x98] sm:$0xff]
      %v4975 = vld [vmem:[#allocation4 + $0xa0] sm:$0xff]
      %v4976 = vld [vmem:[#allocation4 + $0xa8] sm:$0xff]
      %v4977 = vld [vmem:[#allocation4 + $0xb0] sm:$0xff]
      %v4978 = vld [vmem:[#allocation4 + $0xb8] sm:$0xff]
      %v4979 = vld [vmem:[#allocation4 + $0xc0] sm:$0xff]
      %v4980 = vld [vmem:[#allocation4 + $0xc8] sm:$0xff]
      %v4981 = vld [vmem:[#allocation4 + $0xd0] sm:$0xff]
      %v4982 = vld [vmem:[#allocation4 + $0xd8] sm:$0xff]
      %v4983 = vld [vmem:[#allocation4 + $0xe0] sm:$0xff]
      %v4984 = vld [vmem:[#allocation4 + $0xe8] sm:$0xff]
      %v4985 = vld [vmem:[#allocation4 + $0xf0] sm:$0xff]
      %v4986 = vld [vmem:[#allocation4 + $0xf8] sm:$0xff]
      %v4987 = vpack.c.bf16 %v4924, %v4923
      %v4988 = vpack.c.bf16 %v4926, %v4925
      %v4989 = vpack.c.bf16 %v4928, %v4927
      %v4990 = vpack.c.bf16 %v4930, %v4929
      %v4991 = vpack.c.bf16 %v4932, %v4931
      %v4992 = vpack.c.bf16 %v4934, %v4933
      %v4993 = vpack.c.bf16 %v4936, %v4935
      %v4994 = vpack.c.bf16 %v4938, %v4937
      %v4995 = vpack.c.bf16 %v4940, %v4939
      %v4996 = vpack.c.bf16 %v4942, %v4941
      %v4997 = vpack.c.bf16 %v4944, %v4943
      %v4998 = vpack.c.bf16 %v4946, %v4945
      %v4999 = vpack.c.bf16 %v4948, %v4947
      %v5000 = vpack.c.bf16 %v4950, %v4949
      %v5001 = vpack.c.bf16 %v4952, %v4951
      %v5002 = vpack.c.bf16 %v4954, %v4953
      %s5003 = scalar_lea.vmem %s3, 48
      %v5004 = vld [vmem:[%s5003] sm:$0xf]
      %v5005 = vld [vmem:[%s5003 + $0x4] sm:$0xf]
      %v5006 = vld [vmem:[%s5003 + $0x8] sm:$0xf]
      %v5007 = vld [vmem:[%s5003 + $0xc] sm:$0xf]
      %v5012 = vunpack.c.l.b16 %v5004
      %v5013 = vunpack.c.l.b16 %v5005
      %v5014 = vunpack.c.l.b16 %v5006
      %v5015 = vunpack.c.l.b16 %v5007
      %v5016 = vpack.c.b16 %v5013, %v5012
      %v5017 = vpack.c.b16 %v5015, %v5014
      %v5021 = vsel %vm332, %v4987, 0
      %v5024 = vsel %vm332, %v4988, 0
      %v5027 = vsel %vm332, %v4989, 0
      %v5030 = vsel %vm332, %v4990, 0
      %v5033 = vsel %vm332, %v4991, 0
      %v5036 = vsel %vm332, %v4992, 0
      %v5039 = vsel %vm332, %v4993, 0
      %v5042 = vsel %vm332, %v4994, 0
      %v5045 = vsel %vm332, %v4995, 0
      %v5048 = vsel %vm332, %v4996, 0
      %v5051 = vsel %vm332, %v4997, 0
      %v5054 = vsel %vm332, %v4998, 0
      %v5057 = vsel %vm332, %v4999, 0
      %v5060 = vsel %vm332, %v5000, 0
      %v5063 = vsel %vm332, %v5001, 0
      %v5066 = vsel %vm332, %v5002, 0
      %5068 = vmatprep.subr.bf16.mxu0 0
      %5069 = vmatpush1.bf16.msra.mxu0 %v5016
      %5070 = vmatprep.subr.bf16.mxu0 0
      %5071 = vmatpush1.bf16.msra.mxu0 %v5017
      %5072 = vmatprep.subr.bf16.mxu0 0
      %5073 = vmatpush1.bf16.msra.mxu0 0
      %5074 = vmatprep.subr.bf16.mxu0 0
      %5075 = vmatpush1.bf16.msra.mxu0 0
      %5076 = vmatprep.subr.bf16.mxu0 0
      %5077 = vmatpush1.bf16.msra.mxu0 0
      %5078 = vmatprep.subr.bf16.mxu0 0
      %5079 = vmatpush1.bf16.msra.mxu0 0
      %5080 = vmatprep.subr.bf16.mxu0 0
      %5081 = vmatpush1.bf16.msra.mxu0 0
      %5082 = vmatprep.subr.bf16.mxu0 0
      %5083 = vmatpush1.bf16.msra.mxu0 0
      %5084 = vmatprep.subr.bf16.mxu0 0
      %5085 = vmatpush1.bf16.msra.mxu0 0
      %5086 = vmatprep.subr.bf16.mxu0 0
      %5087 = vmatpush1.bf16.msra.mxu0 0
      %5088 = vmatprep.subr.bf16.mxu0 0
      %5089 = vmatpush1.bf16.msra.mxu0 0
      %5090 = vmatprep.subr.bf16.mxu0 0
      %5091 = vmatpush1.bf16.msra.mxu0 0
      %5092 = vmatprep.subr.bf16.mxu0 0
      %5093 = vmatpush1.bf16.msra.mxu0 0
      %5094 = vmatprep.subr.bf16.mxu0 0
      %5095 = vmatpush1.bf16.msra.mxu0 0
      %5096 = vmatprep.subr.bf16.mxu0 0
      %5097 = vmatpush1.bf16.msra.mxu0 0
      %5098 = vmatprep.subr.bf16.mxu0 0
      %5099 = vmatpush1.bf16.msra.mxu0 0
      %5100 = vmatprep.mubr.bf16.mxu0 0
      %5101 = vmatmul.mubr.bf16.gmra.mrb[0].mxu0 %v5021
      %v5102 = vpop.f32.mrb[0].mxu0
      %v5103 = vadd.f32 0.0, %v5102
      %v5104 = vpop.f32.mrb[0].mxu0
      %v5105 = vpop.f32.mrb[0].mxu0
      %v5106 = vadd.f32 0.0, %v5105
      %v5107 = vpop.f32.mrb[0].mxu0
      %5108 = vmatprep.mubr.bf16.mxu0 0
      %5109 = vmatmul.mubr.bf16.gmra.mrb[0].mxu0 %v5024
      %v5110 = vpop.f32.mrb[0].mxu0
      %v5111 = vadd.f32 0.0, %v5110
      %v5112 = vpop.f32.mrb[0].mxu0
      %v5113 = vpop.f32.mrb[0].mxu0
      %v5114 = vadd.f32 0.0, %v5113
      %v5115 = vpop.f32.mrb[0].mxu0
      %5116 = vmatprep.mubr.bf16.mxu0 0
      %5117 = vmatmul.mubr.bf16.gmra.mrb[0].mxu0 %v5027
      %v5118 = vpop.f32.mrb[0].mxu0
      %v5119 = vadd.f32 0.0, %v5118
      %v5120 = vpop.f32.mrb[0].mxu0
      %v5121 = vpop.f32.mrb[0].mxu0
      %v5122 = vadd.f32 0.0, %v5121
      %v5123 = vpop.f32.mrb[0].mxu0
      %5124 = vmatprep.mubr.bf16.mxu0 0
      %5125 = vmatmul.mubr.bf16.gmra.mrb[0].mxu0 %v5030
      %v5126 = vpop.f32.mrb[0].mxu0
      %v5127 = vadd.f32 0.0, %v5126
      %v5128 = vpop.f32.mrb[0].mxu0
      %v5129 = vpop.f32.mrb[0].mxu0
      %v5130 = vadd.f32 0.0, %v5129
      %v5131 = vpop.f32.mrb[0].mxu0
      %5132 = vmatprep.mubr.bf16.mxu0 0
      %5133 = vmatmul.mubr.bf16.gmra.mrb[0].mxu0 %v5033
      %v5134 = vpop.f32.mrb[0].mxu0
      %v5135 = vadd.f32 0.0, %v5134
      %v5136 = vpop.f32.mrb[0].mxu0
      %v5137 = vpop.f32.mrb[0].mxu0
      %v5138 = vadd.f32 0.0, %v5137
      %v5139 = vpop.f32.mrb[0].mxu0
      %5140 = vmatprep.mubr.bf16.mxu0 0
      %5141 = vmatmul.mubr.bf16.gmra.mrb[0].mxu0 %v5036
      %v5142 = vpop.f32.mrb[0].mxu0
      %v5143 = vadd.f32 0.0, %v5142
      %v5144 = vpop.f32.mrb[0].mxu0
      %v5145 = vpop.f32.mrb[0].mxu0
      %v5146 = vadd.f32 0.0, %v5145
      %v5147 = vpop.f32.mrb[0].mxu0
      %5148 = vmatprep.mubr.bf16.mxu0 0
      %5149 = vmatmul.mubr.bf16.gmra.mrb[0].mxu0 %v5039
      %v5150 = vpop.f32.mrb[0].mxu0
      %v5151 = vadd.f32 0.0, %v5150
      %v5152 = vpop.f32.mrb[0].mxu0
      %v5153 = vpop.f32.mrb[0].mxu0
      %v5154 = vadd.f32 0.0, %v5153
      %v5155 = vpop.f32.mrb[0].mxu0
      %5156 = vmatprep.mubr.bf16.mxu0 0
      %5157 = vmatmul.mubr.bf16.gmra.mrb[0].mxu0 %v5042
      %v5158 = vpop.f32.mrb[0].mxu0
      %v5159 = vadd.f32 0.0, %v5158
      %v5160 = vpop.f32.mrb[0].mxu0
      %v5161 = vpop.f32.mrb[0].mxu0
      %v5162 = vadd.f32 0.0, %v5161
      %v5163 = vpop.f32.mrb[0].mxu0
      %5164 = vmatprep.mubr.bf16.mxu0 0
      %5165 = vmatmul.mubr.bf16.gmra.mrb[0].mxu0 %v5045
      %v5166 = vpop.f32.mrb[0].mxu0
      %v5167 = vadd.f32 0.0, %v5166
      %v5168 = vpop.f32.mrb[0].mxu0
      %v5169 = vpop.f32.mrb[0].mxu0
      %v5170 = vadd.f32 0.0, %v5169
      %v5171 = vpop.f32.mrb[0].mxu0
      %5172 = vmatprep.mubr.bf16.mxu0 0
      %5173 = vmatmul.mubr.bf16.gmra.mrb[0].mxu0 %v5048
      %v5174 = vpop.f32.mrb[0].mxu0
      %v5175 = vadd.f32 0.0, %v5174
      %v5176 = vpop.f32.mrb[0].mxu0
      %v5177 = vpop.f32.mrb[0].mxu0
      %v5178 = vadd.f32 0.0, %v5177
      %v5179 = vpop.f32.mrb[0].mxu0
      %5180 = vmatprep.mubr.bf16.mxu0 0
      %5181 = vmatmul.mubr.bf16.gmra.mrb[0].mxu0 %v5051
      %v5182 = vpop.f32.mrb[0].mxu0
      %v5183 = vadd.f32 0.0, %v5182
      %v5184 = vpop.f32.mrb[0].mxu0
      %v5185 = vpop.f32.mrb[0].mxu0
      %v5186 = vadd.f32 0.0, %v5185
      %v5187 = vpop.f32.mrb[0].mxu0
      %5188 = vmatprep.mubr.bf16.mxu0 0
      %5189 = vmatmul.mubr.bf16.gmra.mrb[0].mxu0 %v5054
      %v5190 = vpop.f32.mrb[0].mxu0
      %v5191 = vadd.f32 0.0, %v5190
      %v5192 = vpop.f32.mrb[0].mxu0
      %v5193 = vpop.f32.mrb[0].mxu0
      %v5194 = vadd.f32 0.0, %v5193
      %v5195 = vpop.f32.mrb[0].mxu0
      %5196 = vmatprep.mubr.bf16.mxu0 0
      %5197 = vmatmul.mubr.bf16.gmra.mrb[0].mxu0 %v5057
      %v5198 = vpop.f32.mrb[0].mxu0
      %v5199 = vadd.f32 0.0, %v5198
      %v5200 = vpop.f32.mrb[0].mxu0
      %v5201 = vpop.f32.mrb[0].mxu0
      %v5202 = vadd.f32 0.0, %v5201
      %v5203 = vpop.f32.mrb[0].mxu0
      %5204 = vmatprep.mubr.bf16.mxu0 0
      %5205 = vmatmul.mubr.bf16.gmra.mrb[0].mxu0 %v5060
      %v5206 = vpop.f32.mrb[0].mxu0
      %v5207 = vadd.f32 0.0, %v5206
      %v5208 = vpop.f32.mrb[0].mxu0
      %v5209 = vpop.f32.mrb[0].mxu0
      %v5210 = vadd.f32 0.0, %v5209
      %v5211 = vpop.f32.mrb[0].mxu0
      %5212 = vmatprep.mubr.bf16.mxu0 0
      %5213 = vmatmul.mubr.bf16.gmra.mrb[0].mxu0 %v5063
      %v5214 = vpop.f32.mrb[0].mxu0
      %v5215 = vadd.f32 0.0, %v5214
      %v5216 = vpop.f32.mrb[0].mxu0
      %v5217 = vpop.f32.mrb[0].mxu0
      %v5218 = vadd.f32 0.0, %v5217
      %v5219 = vpop.f32.mrb[0].mxu0
      %5220 = vmatprep.mubr.bf16.mxu0 0
      %5221 = vmatmul.mubr.bf16.gmra.mrb[0].mxu0 %v5066
      %v5222 = vpop.f32.mrb[0].mxu0
      %v5223 = vadd.f32 0.0, %v5222
      %v5224 = vpop.f32.mrb[0].mxu0
      %v5225 = vpop.f32.mrb[0].mxu0
      %v5226 = vadd.f32 0.0, %v5225
      %v5227 = vpop.f32.mrb[0].mxu0
      %5228 = vdwg.mxu0
      %v5229 = vadd.f32 %v4955, %v5103
      %v5230 = vadd.f32 %v4956, %v5106
      %v5231 = vadd.f32 %v4957, %v5111
      %v5232 = vadd.f32 %v4958, %v5114
      %v5233 = vadd.f32 %v4959, %v5119
      %v5234 = vadd.f32 %v4960, %v5122
      %v5235 = vadd.f32 %v4961, %v5127
      %v5236 = vadd.f32 %v4962, %v5130
      %v5237 = vadd.f32 %v4963, %v5135
      %v5238 = vadd.f32 %v4964, %v5138
      %v5239 = vadd.f32 %v4965, %v5143
      %v5240 = vadd.f32 %v4966, %v5146
      %v5241 = vadd.f32 %v4967, %v5151
      %v5242 = vadd.f32 %v4968, %v5154
      %v5243 = vadd.f32 %v4969, %v5159
      %v5244 = vadd.f32 %v4970, %v5162
      %v5245 = vadd.f32 %v4971, %v5167
      %v5246 = vadd.f32 %v4972, %v5170
      %v5247 = vadd.f32 %v4973, %v5175
      %v5248 = vadd.f32 %v4974, %v5178
      %v5249 = vadd.f32 %v4975, %v5183
      %v5250 = vadd.f32 %v4976, %v5186
      %v5251 = vadd.f32 %v4977, %v5191
      %v5252 = vadd.f32 %v4978, %v5194
      %v5253 = vadd.f32 %v4979, %v5199
      %v5254 = vadd.f32 %v4980, %v5202
      %v5255 = vadd.f32 %v4981, %v5207
      %v5256 = vadd.f32 %v4982, %v5210
      %v5257 = vadd.f32 %v4983, %v5215
      %v5258 = vadd.f32 %v4984, %v5218
      %v5259 = vadd.f32 %v4985, %v5223
      %v5260 = vadd.f32 %v4986, %v5226
      %5261 = vst.msk [vmem:[#allocation4] sm:$0xff] %vm3781, %v5229
      %5262 = vst.msk [vmem:[#allocation4 + $0x8] sm:$0xff] %vm3781, %v5230
      %5263 = vst.msk [vmem:[#allocation4 + $0x10] sm:$0xff] %vm3781, %v5231
      %5264 = vst.msk [vmem:[#allocation4 + $0x18] sm:$0xff] %vm3781, %v5232
      %5265 = vst.msk [vmem:[#allocation4 + $0x20] sm:$0xff] %vm3781, %v5233
      %5266 = vst.msk [vmem:[#allocation4 + $0x28] sm:$0xff] %vm3781, %v5234
      %5267 = vst.msk [vmem:[#allocation4 + $0x30] sm:$0xff] %vm3781, %v5235
      %5268 = vst.msk [vmem:[#allocation4 + $0x38] sm:$0xff] %vm3781, %v5236
      %5269 = vst.msk [vmem:[#allocation4 + $0x40] sm:$0xff] %vm3781, %v5237
      %5270 = vst.msk [vmem:[#allocation4 + $0x48] sm:$0xff] %vm3781, %v5238
      %5271 = vst.msk [vmem:[#allocation4 + $0x50] sm:$0xff] %vm3781, %v5239
      %5272 = vst.msk [vmem:[#allocation4 + $0x58] sm:$0xff] %vm3781, %v5240
      %5273 = vst.msk [vmem:[#allocation4 + $0x60] sm:$0xff] %vm3781, %v5241
      %5274 = vst.msk [vmem:[#allocation4 + $0x68] sm:$0xff] %vm3781, %v5242
      %5275 = vst.msk [vmem:[#allocation4 + $0x70] sm:$0xff] %vm3781, %v5243
      %5276 = vst.msk [vmem:[#allocation4 + $0x78] sm:$0xff] %vm3781, %v5244
      %5277 = vst.msk [vmem:[#allocation4 + $0x80] sm:$0xff] %vm3781, %v5245
      %5278 = vst.msk [vmem:[#allocation4 + $0x88] sm:$0xff] %vm3781, %v5246
      %5279 = vst.msk [vmem:[#allocation4 + $0x90] sm:$0xff] %vm3781, %v5247
      %5280 = vst.msk [vmem:[#allocation4 + $0x98] sm:$0xff] %vm3781, %v5248
      %5281 = vst.msk [vmem:[#allocation4 + $0xa0] sm:$0xff] %vm3781, %v5249
      %5282 = vst.msk [vmem:[#allocation4 + $0xa8] sm:$0xff] %vm3781, %v5250
      %5283 = vst.msk [vmem:[#allocation4 + $0xb0] sm:$0xff] %vm3781, %v5251
      %5284 = vst.msk [vmem:[#allocation4 + $0xb8] sm:$0xff] %vm3781, %v5252
      %5285 = vst.msk [vmem:[#allocation4 + $0xc0] sm:$0xff] %vm3781, %v5253
      %5286 = vst.msk [vmem:[#allocation4 + $0xc8] sm:$0xff] %vm3781, %v5254
      %5287 = vst.msk [vmem:[#allocation4 + $0xd0] sm:$0xff] %vm3781, %v5255
      %5288 = vst.msk [vmem:[#allocation4 + $0xd8] sm:$0xff] %vm3781, %v5256
      %5289 = vst.msk [vmem:[#allocation4 + $0xe0] sm:$0xff] %vm3781, %v5257
      %5290 = vst.msk [vmem:[#allocation4 + $0xe8] sm:$0xff] %vm3781, %v5258
      %5291 = vst.msk [vmem:[#allocation4 + $0xf0] sm:$0xff] %vm3781, %v5259
      %5292 = vst.msk [vmem:[#allocation4 + $0xf8] sm:$0xff] %vm3781, %v5260
      %v5293 = vld [vmem:[%s3748 + $0x1] sm:$0xff]
      %v5294 = vld [vmem:[%s3748 + $0x9] sm:$0xff]
      %v5295 = vld [vmem:[%s3748 + $0x19] sm:$0xff]
      %v5296 = vld [vmem:[%s3748 + $0x21] sm:$0xff]
      %v5297 = vld [vmem:[%s3748 + $0x31] sm:$0xff]
      %v5298 = vld [vmem:[%s3748 + $0x39] sm:$0xff]
      %v5299 = vld [vmem:[%s3748 + $0x49] sm:$0xff]
      %v5300 = vld [vmem:[%s3748 + $0x51] sm:$0xff]
      %v5301 = vld [vmem:[%s3748 + $0x61] sm:$0xff]
      %v5302 = vld [vmem:[%s3748 + $0x69] sm:$0xff]
      %v5303 = vld [vmem:[%s3748 + $0x79] sm:$0xff]
      %v5304 = vld [vmem:[%s3748 + $0x81] sm:$0xff]
      %v5305 = vld [vmem:[%s3748 + $0x91] sm:$0xff]
      %v5306 = vld [vmem:[%s3748 + $0x99] sm:$0xff]
      %v5307 = vld [vmem:[%s3748 + $0xa9] sm:$0xff]
      %v5308 = vld [vmem:[%s3748 + $0xb1] sm:$0xff]
      %v5309 = vld [vmem:[%s3748 + $0xc1] sm:$0xff]
      %v5310 = vld [vmem:[%s3748 + $0xc9] sm:$0xff]
      %v5311 = vld [vmem:[%s3748 + $0xd9] sm:$0xff]
      %v5312 = vld [vmem:[%s3748 + $0xe1] sm:$0xff]
      %v5313 = vld [vmem:[%s3748 + $0xf1] sm:$0xff]
      %v5314 = vld [vmem:[%s3748 + $0xf9] sm:$0xff]
      %v5315 = vld [vmem:[%s3748 + $0x109] sm:$0xff]
      %v5316 = vld [vmem:[%s3748 + $0x111] sm:$0xff]
      %v5317 = vld [vmem:[%s3748 + $0x121] sm:$0xff]
      %v5318 = vld [vmem:[%s3748 + $0x129] sm:$0xff]
      %v5319 = vld [vmem:[%s3748 + $0x139] sm:$0xff]
      %v5320 = vld [vmem:[%s3748 + $0x141] sm:$0xff]
      %v5321 = vld [vmem:[%s3748 + $0x151] sm:$0xff]
      %v5322 = vld [vmem:[%s3748 + $0x159] sm:$0xff]
      %v5323 = vld [vmem:[%s3748 + $0x169] sm:$0xff]
      %v5324 = vld [vmem:[%s3748 + $0x171] sm:$0xff]
      %v5325 = vld [vmem:[#allocation4] sm:$0xff]
      %v5326 = vld [vmem:[#allocation4 + $0x8] sm:$0xff]
      %v5327 = vld [vmem:[#allocation4 + $0x10] sm:$0xff]
      %v5328 = vld [vmem:[#allocation4 + $0x18] sm:$0xff]
      %v5329 = vld [vmem:[#allocation4 + $0x20] sm:$0xff]
      %v5330 = vld [vmem:[#allocation4 + $0x28] sm:$0xff]
      %v5331 = vld [vmem:[#allocation4 + $0x30] sm:$0xff]
      %v5332 = vld [vmem:[#allocation4 + $0x38] sm:$0xff]
      %v5333 = vld [vmem:[#allocation4 + $0x40] sm:$0xff]
      %v5334 = vld [vmem:[#allocation4 + $0x48] sm:$0xff]
      %v5335 = vld [vmem:[#allocation4 + $0x50] sm:$0xff]
      %v5336 = vld [vmem:[#allocation4 + $0x58] sm:$0xff]
      %v5337 = vld [vmem:[#allocation4 + $0x60] sm:$0xff]
      %v5338 = vld [vmem:[#allocation4 + $0x68] sm:$0xff]
      %v5339 = vld [vmem:[#allocation4 + $0x70] sm:$0xff]
      %v5340 = vld [vmem:[#allocation4 + $0x78] sm:$0xff]
      %v5341 = vld [vmem:[#allocation4 + $0x80] sm:$0xff]
      %v5342 = vld [vmem:[#allocation4 + $0x88] sm:$0xff]
      %v5343 = vld [vmem:[#allocation4 + $0x90] sm:$0xff]
      %v5344 = vld [vmem:[#allocation4 + $0x98] sm:$0xff]
      %v5345 = vld [vmem:[#allocation4 + $0xa0] sm:$0xff]
      %v5346 = vld [vmem:[#allocation4 + $0xa8] sm:$0xff]
      %v5347 = vld [vmem:[#allocation4 + $0xb0] sm:$0xff]
      %v5348 = vld [vmem:[#allocation4 + $0xb8] sm:$0xff]
      %v5349 = vld [vmem:[#allocation4 + $0xc0] sm:$0xff]
      %v5350 = vld [vmem:[#allocation4 + $0xc8] sm:$0xff]
      %v5351 = vld [vmem:[#allocation4 + $0xd0] sm:$0xff]
      %v5352 = vld [vmem:[#allocation4 + $0xd8] sm:$0xff]
      %v5353 = vld [vmem:[#allocation4 + $0xe0] sm:$0xff]
      %v5354 = vld [vmem:[#allocation4 + $0xe8] sm:$0xff]
      %v5355 = vld [vmem:[#allocation4 + $0xf0] sm:$0xff]
      %v5356 = vld [vmem:[#allocation4 + $0xf8] sm:$0xff]
      %v5357 = vpack.c.bf16 %v5294, %v5293
      %v5358 = vpack.c.bf16 %v5296, %v5295
      %v5359 = vpack.c.bf16 %v5298, %v5297
      %v5360 = vpack.c.bf16 %v5300, %v5299
      %v5361 = vpack.c.bf16 %v5302, %v5301
      %v5362 = vpack.c.bf16 %v5304, %v5303
      %v5363 = vpack.c.bf16 %v5306, %v5305
      %v5364 = vpack.c.bf16 %v5308, %v5307
      %v5365 = vpack.c.bf16 %v5310, %v5309
      %v5366 = vpack.c.bf16 %v5312, %v5311
      %v5367 = vpack.c.bf16 %v5314, %v5313
      %v5368 = vpack.c.bf16 %v5316, %v5315
      %v5369 = vpack.c.bf16 %v5318, %v5317
      %v5370 = vpack.c.bf16 %v5320, %v5319
      %v5371 = vpack.c.bf16 %v5322, %v5321
      %v5372 = vpack.c.bf16 %v5324, %v5323
      %s5373 = scalar_lea.vmem %s3, 64
      %v5374 = vld [vmem:[%s5373] sm:$0xf]
      %v5375 = vld [vmem:[%s5373 + $0x4] sm:$0xf]
      %v5376 = vld [vmem:[%s5373 + $0x8] sm:$0xf]
      %v5377 = vld [vmem:[%s5373 + $0xc] sm:$0xf]
      %v5382 = vunpack.c.l.b16 %v5374
      %v5383 = vunpack.c.l.b16 %v5375
      %v5384 = vunpack.c.l.b16 %v5376
      %v5385 = vunpack.c.l.b16 %v5377
      %v5386 = vpack.c.b16 %v5383, %v5382
      %v5387 = vpack.c.b16 %v5385, %v5384
      %v5391 = vsel %vm332, %v5357, 0
      %v5394 = vsel %vm332, %v5358, 0
      %v5397 = vsel %vm332, %v5359, 0
      %v5400 = vsel %vm332, %v5360, 0
      %v5403 = vsel %vm332, %v5361, 0
      %v5406 = vsel %vm332, %v5362, 0
      %v5409 = vsel %vm332, %v5363, 0
      %v5412 = vsel %vm332, %v5364, 0
      %v5415 = vsel %vm332, %v5365, 0
      %v5418 = vsel %vm332, %v5366, 0
      %v5421 = vsel %vm332, %v5367, 0
      %v5424 = vsel %vm332, %v5368, 0
      %v5427 = vsel %vm332, %v5369, 0
      %v5430 = vsel %vm332, %v5370, 0
      %v5433 = vsel %vm332, %v5371, 0
      %v5436 = vsel %vm332, %v5372, 0
      %5438 = vmatprep.subr.bf16.mxu0 0
      %5439 = vmatpush1.bf16.msra.mxu0 %v5386
      %5440 = vmatprep.subr.bf16.mxu0 0
      %5441 = vmatpush1.bf16.msra.mxu0 %v5387
      %5442 = vmatprep.subr.bf16.mxu0 0
      %5443 = vmatpush1.bf16.msra.mxu0 0
      %5444 = vmatprep.subr.bf16.mxu0 0
      %5445 = vmatpush1.bf16.msra.mxu0 0
      %5446 = vmatprep.subr.bf16.mxu0 0
      %5447 = vmatpush1.bf16.msra.mxu0 0
      %5448 = vmatprep.subr.bf16.mxu0 0
      %5449 = vmatpush1.bf16.msra.mxu0 0
      %5450 = vmatprep.subr.bf16.mxu0 0
      %5451 = vmatpush1.bf16.msra.mxu0 0
      %5452 = vmatprep.subr.bf16.mxu0 0
      %5453 = vmatpush1.bf16.msra.mxu0 0
      %5454 = vmatprep.subr.bf16.mxu0 0
      %5455 = vmatpush1.bf16.msra.mxu0 0
      %5456 = vmatprep.subr.bf16.mxu0 0
      %5457 = vmatpush1.bf16.msra.mxu0 0
      %5458 = vmatprep.subr.bf16.mxu0 0
      %5459 = vmatpush1.bf16.msra.mxu0 0
      %5460 = vmatprep.subr.bf16.mxu0 0
      %5461 = vmatpush1.bf16.msra.mxu0 0
      %5462 = vmatprep.subr.bf16.mxu0 0
      %5463 = vmatpush1.bf16.msra.mxu0 0
      %5464 = vmatprep.subr.bf16.mxu0 0
      %5465 = vmatpush1.bf16.msra.mxu0 0
      %5466 = vmatprep.subr.bf16.mxu0 0
      %5467 = vmatpush1.bf16.msra.mxu0 0
      %5468 = vmatprep.subr.bf16.mxu0 0
      %5469 = vmatpush1.bf16.msra.mxu0 0
      %5470 = vmatprep.mubr.bf16.mxu0 0
      %5471 = vmatmul.mubr.bf16.gmra.mrb[0].mxu0 %v5391
      %v5472 = vpop.f32.mrb[0].mxu0
      %v5473 = vadd.f32 0.0, %v5472
      %v5474 = vpop.f32.mrb[0].mxu0
      %v5475 = vpop.f32.mrb[0].mxu0
      %v5476 = vadd.f32 0.0, %v5475
      %v5477 = vpop.f32.mrb[0].mxu0
      %5478 = vmatprep.mubr.bf16.mxu0 0
      %5479 = vmatmul.mubr.bf16.gmra.mrb[0].mxu0 %v5394
      %v5480 = vpop.f32.mrb[0].mxu0
      %v5481 = vadd.f32 0.0, %v5480
      %v5482 = vpop.f32.mrb[0].mxu0
      %v5483 = vpop.f32.mrb[0].mxu0
      %v5484 = vadd.f32 0.0, %v5483
      %v5485 = vpop.f32.mrb[0].mxu0
      %5486 = vmatprep.mubr.bf16.mxu0 0
      %5487 = vmatmul.mubr.bf16.gmra.mrb[0].mxu0 %v5397
      %v5488 = vpop.f32.mrb[0].mxu0
      %v5489 = vadd.f32 0.0, %v5488
      %v5490 = vpop.f32.mrb[0].mxu0
      %v5491 = vpop.f32.mrb[0].mxu0
      %v5492 = vadd.f32 0.0, %v5491
      %v5493 = vpop.f32.mrb[0].mxu0
      %5494 = vmatprep.mubr.bf16.mxu0 0
      %5495 = vmatmul.mubr.bf16.gmra.mrb[0].mxu0 %v5400
      %v5496 = vpop.f32.mrb[0].mxu0
      %v5497 = vadd.f32 0.0, %v5496
      %v5498 = vpop.f32.mrb[0].mxu0
      %v5499 = vpop.f32.mrb[0].mxu0
      %v5500 = vadd.f32 0.0, %v5499
      %v5501 = vpop.f32.mrb[0].mxu0
      %5502 = vmatprep.mubr.bf16.mxu0 0
      %5503 = vmatmul.mubr.bf16.gmra.mrb[0].mxu0 %v5403
      %v5504 = vpop.f32.mrb[0].mxu0
      %v5505 = vadd.f32 0.0, %v5504
      %v5506 = vpop.f32.mrb[0].mxu0
      %v5507 = vpop.f32.mrb[0].mxu0
      %v5508 = vadd.f32 0.0, %v5507
      %v5509 = vpop.f32.mrb[0].mxu0
      %5510 = vmatprep.mubr.bf16.mxu0 0
      %5511 = vmatmul.mubr.bf16.gmra.mrb[0].mxu0 %v5406
      %v5512 = vpop.f32.mrb[0].mxu0
      %v5513 = vadd.f32 0.0, %v5512
      %v5514 = vpop.f32.mrb[0].mxu0
      %v5515 = vpop.f32.mrb[0].mxu0
      %v5516 = vadd.f32 0.0, %v5515
      %v5517 = vpop.f32.mrb[0].mxu0
      %5518 = vmatprep.mubr.bf16.mxu0 0
      %5519 = vmatmul.mubr.bf16.gmra.mrb[0].mxu0 %v5409
      %v5520 = vpop.f32.mrb[0].mxu0
      %v5521 = vadd.f32 0.0, %v5520
      %v5522 = vpop.f32.mrb[0].mxu0
      %v5523 = vpop.f32.mrb[0].mxu0
      %v5524 = vadd.f32 0.0, %v5523
      %v5525 = vpop.f32.mrb[0].mxu0
      %5526 = vmatprep.mubr.bf16.mxu0 0
      %5527 = vmatmul.mubr.bf16.gmra.mrb[0].mxu0 %v5412
      %v5528 = vpop.f32.mrb[0].mxu0
      %v5529 = vadd.f32 0.0, %v5528
      %v5530 = vpop.f32.mrb[0].mxu0
      %v5531 = vpop.f32.mrb[0].mxu0
      %v5532 = vadd.f32 0.0, %v5531
      %v5533 = vpop.f32.mrb[0].mxu0
      %5534 = vmatprep.mubr.bf16.mxu0 0
      %5535 = vmatmul.mubr.bf16.gmra.mrb[0].mxu0 %v5415
      %v5536 = vpop.f32.mrb[0].mxu0
      %v5537 = vadd.f32 0.0, %v5536
      %v5538 = vpop.f32.mrb[0].mxu0
      %v5539 = vpop.f32.mrb[0].mxu0
      %v5540 = vadd.f32 0.0, %v5539
      %v5541 = vpop.f32.mrb[0].mxu0
      %5542 = vmatprep.mubr.bf16.mxu0 0
      %5543 = vmatmul.mubr.bf16.gmra.mrb[0].mxu0 %v5418
      %v5544 = vpop.f32.mrb[0].mxu0
      %v5545 = vadd.f32 0.0, %v5544
      %v5546 = vpop.f32.mrb[0].mxu0
      %v5547 = vpop.f32.mrb[0].mxu0
      %v5548 = vadd.f32 0.0, %v5547
      %v5549 = vpop.f32.mrb[0].mxu0
      %5550 = vmatprep.mubr.bf16.mxu0 0
      %5551 = vmatmul.mubr.bf16.gmra.mrb[0].mxu0 %v5421
      %v5552 = vpop.f32.mrb[0].mxu0
      %v5553 = vadd.f32 0.0, %v5552
      %v5554 = vpop.f32.mrb[0].mxu0
      %v5555 = vpop.f32.mrb[0].mxu0
      %v5556 = vadd.f32 0.0, %v5555
      %v5557 = vpop.f32.mrb[0].mxu0
      %5558 = vmatprep.mubr.bf16.mxu0 0
      %5559 = vmatmul.mubr.bf16.gmra.mrb[0].mxu0 %v5424
      %v5560 = vpop.f32.mrb[0].mxu0
      %v5561 = vadd.f32 0.0, %v5560
      %v5562 = vpop.f32.mrb[0].mxu0
      %v5563 = vpop.f32.mrb[0].mxu0
      %v5564 = vadd.f32 0.0, %v5563
      %v5565 = vpop.f32.mrb[0].mxu0
      %5566 = vmatprep.mubr.bf16.mxu0 0
      %5567 = vmatmul.mubr.bf16.gmra.mrb[0].mxu0 %v5427
      %v5568 = vpop.f32.mrb[0].mxu0
      %v5569 = vadd.f32 0.0, %v5568
      %v5570 = vpop.f32.mrb[0].mxu0
      %v5571 = vpop.f32.mrb[0].mxu0
      %v5572 = vadd.f32 0.0, %v5571
      %v5573 = vpop.f32.mrb[0].mxu0
      %5574 = vmatprep.mubr.bf16.mxu0 0
      %5575 = vmatmul.mubr.bf16.gmra.mrb[0].mxu0 %v5430
      %v5576 = vpop.f32.mrb[0].mxu0
      %v5577 = vadd.f32 0.0, %v5576
      %v5578 = vpop.f32.mrb[0].mxu0
      %v5579 = vpop.f32.mrb[0].mxu0
      %v5580 = vadd.f32 0.0, %v5579
      %v5581 = vpop.f32.mrb[0].mxu0
      %5582 = vmatprep.mubr.bf16.mxu0 0
      %5583 = vmatmul.mubr.bf16.gmra.mrb[0].mxu0 %v5433
      %v5584 = vpop.f32.mrb[0].mxu0
      %v5585 = vadd.f32 0.0, %v5584
      %v5586 = vpop.f32.mrb[0].mxu0
      %v5587 = vpop.f32.mrb[0].mxu0
      %v5588 = vadd.f32 0.0, %v5587
      %v5589 = vpop.f32.mrb[0].mxu0
      %5590 = vmatprep.mubr.bf16.mxu0 0
      %5591 = vmatmul.mubr.bf16.gmra.mrb[0].mxu0 %v5436
      %v5592 = vpop.f32.mrb[0].mxu0
      %v5593 = vadd.f32 0.0, %v5592
      %v5594 = vpop.f32.mrb[0].mxu0
      %v5595 = vpop.f32.mrb[0].mxu0
      %v5596 = vadd.f32 0.0, %v5595
      %v5597 = vpop.f32.mrb[0].mxu0
      %5598 = vdwg.mxu0
      %v5599 = vadd.f32 %v5325, %v5473
      %v5600 = vadd.f32 %v5326, %v5476
      %v5601 = vadd.f32 %v5327, %v5481
      %v5602 = vadd.f32 %v5328, %v5484
      %v5603 = vadd.f32 %v5329, %v5489
      %v5604 = vadd.f32 %v5330, %v5492
      %v5605 = vadd.f32 %v5331, %v5497
      %v5606 = vadd.f32 %v5332, %v5500
      %v5607 = vadd.f32 %v5333, %v5505
      %v5608 = vadd.f32 %v5334, %v5508
      %v5609 = vadd.f32 %v5335, %v5513
      %v5610 = vadd.f32 %v5336, %v5516
      %v5611 = vadd.f32 %v5337, %v5521
      %v5612 = vadd.f32 %v5338, %v5524
      %v5613 = vadd.f32 %v5339, %v5529
      %v5614 = vadd.f32 %v5340, %v5532
      %v5615 = vadd.f32 %v5341, %v5537
      %v5616 = vadd.f32 %v5342, %v5540
      %v5617 = vadd.f32 %v5343, %v5545
      %v5618 = vadd.f32 %v5344, %v5548
      %v5619 = vadd.f32 %v5345, %v5553
      %v5620 = vadd.f32 %v5346, %v5556
      %v5621 = vadd.f32 %v5347, %v5561
      %v5622 = vadd.f32 %v5348, %v5564
      %v5623 = vadd.f32 %v5349, %v5569
      %v5624 = vadd.f32 %v5350, %v5572
      %v5625 = vadd.f32 %v5351, %v5577
      %v5626 = vadd.f32 %v5352, %v5580
      %v5627 = vadd.f32 %v5353, %v5585
      %v5628 = vadd.f32 %v5354, %v5588
      %v5629 = vadd.f32 %v5355, %v5593
      %v5630 = vadd.f32 %v5356, %v5596
      %5631 = vst.msk [vmem:[#allocation4] sm:$0xff] %vm3781, %v5599
      %5632 = vst.msk [vmem:[#allocation4 + $0x8] sm:$0xff] %vm3781, %v5600
      %5633 = vst.msk [vmem:[#allocation4 + $0x10] sm:$0xff] %vm3781, %v5601
      %5634 = vst.msk [vmem:[#allocation4 + $0x18] sm:$0xff] %vm3781, %v5602
      %5635 = vst.msk [vmem:[#allocation4 + $0x20] sm:$0xff] %vm3781, %v5603
      %5636 = vst.msk [vmem:[#allocation4 + $0x28] sm:$0xff] %vm3781, %v5604
      %5637 = vst.msk [vmem:[#allocation4 + $0x30] sm:$0xff] %vm3781, %v5605
      %5638 = vst.msk [vmem:[#allocation4 + $0x38] sm:$0xff] %vm3781, %v5606
      %5639 = vst.msk [vmem:[#allocation4 + $0x40] sm:$0xff] %vm3781, %v5607
      %5640 = vst.msk [vmem:[#allocation4 + $0x48] sm:$0xff] %vm3781, %v5608
      %5641 = vst.msk [vmem:[#allocation4 + $0x50] sm:$0xff] %vm3781, %v5609
      %5642 = vst.msk [vmem:[#allocation4 + $0x58] sm:$0xff] %vm3781, %v5610
      %5643 = vst.msk [vmem:[#allocation4 + $0x60] sm:$0xff] %vm3781, %v5611
      %5644 = vst.msk [vmem:[#allocation4 + $0x68] sm:$0xff] %vm3781, %v5612
      %5645 = vst.msk [vmem:[#allocation4 + $0x70] sm:$0xff] %vm3781, %v5613
      %5646 = vst.msk [vmem:[#allocation4 + $0x78] sm:$0xff] %vm3781, %v5614
      %5647 = vst.msk [vmem:[#allocation4 + $0x80] sm:$0xff] %vm3781, %v5615
      %5648 = vst.msk [vmem:[#allocation4 + $0x88] sm:$0xff] %vm3781, %v5616
      %5649 = vst.msk [vmem:[#allocation4 + $0x90] sm:$0xff] %vm3781, %v5617
      %5650 = vst.msk [vmem:[#allocation4 + $0x98] sm:$0xff] %vm3781, %v5618
      %5651 = vst.msk [vmem:[#allocation4 + $0xa0] sm:$0xff] %vm3781, %v5619
      %5652 = vst.msk [vmem:[#allocation4 + $0xa8] sm:$0xff] %vm3781, %v5620
      %5653 = vst.msk [vmem:[#allocation4 + $0xb0] sm:$0xff] %vm3781, %v5621
      %5654 = vst.msk [vmem:[#allocation4 + $0xb8] sm:$0xff] %vm3781, %v5622
      %5655 = vst.msk [vmem:[#allocation4 + $0xc0] sm:$0xff] %vm3781, %v5623
      %5656 = vst.msk [vmem:[#allocation4 + $0xc8] sm:$0xff] %vm3781, %v5624
      %5657 = vst.msk [vmem:[#allocation4 + $0xd0] sm:$0xff] %vm3781, %v5625
      %5658 = vst.msk [vmem:[#allocation4 + $0xd8] sm:$0xff] %vm3781, %v5626
      %5659 = vst.msk [vmem:[#allocation4 + $0xe0] sm:$0xff] %vm3781, %v5627
      %5660 = vst.msk [vmem:[#allocation4 + $0xe8] sm:$0xff] %vm3781, %v5628
      %5661 = vst.msk [vmem:[#allocation4 + $0xf0] sm:$0xff] %vm3781, %v5629
      %5662 = vst.msk [vmem:[#allocation4 + $0xf8] sm:$0xff] %vm3781, %v5630
      %v5663 = vld [vmem:[%s3748 + $0x2] sm:$0xff]
      %v5664 = vld [vmem:[%s3748 + $0xa] sm:$0xff]
      %v5665 = vld [vmem:[%s3748 + $0x1a] sm:$0xff]
      %v5666 = vld [vmem:[%s3748 + $0x22] sm:$0xff]
      %v5667 = vld [vmem:[%s3748 + $0x32] sm:$0xff]
      %v5668 = vld [vmem:[%s3748 + $0x3a] sm:$0xff]
      %v5669 = vld [vmem:[%s3748 + $0x4a] sm:$0xff]
      %v5670 = vld [vmem:[%s3748 + $0x52] sm:$0xff]
      %v5671 = vld [vmem:[%s3748 + $0x62] sm:$0xff]
      %v5672 = vld [vmem:[%s3748 + $0x6a] sm:$0xff]
      %v5673 = vld [vmem:[%s3748 + $0x7a] sm:$0xff]
      %v5674 = vld [vmem:[%s3748 + $0x82] sm:$0xff]
      %v5675 = vld [vmem:[%s3748 + $0x92] sm:$0xff]
      %v5676 = vld [vmem:[%s3748 + $0x9a] sm:$0xff]
      %v5677 = vld [vmem:[%s3748 + $0xaa] sm:$0xff]
      %v5678 = vld [vmem:[%s3748 + $0xb2] sm:$0xff]
      %v5679 = vld [vmem:[%s3748 + $0xc2] sm:$0xff]
      %v5680 = vld [vmem:[%s3748 + $0xca] sm:$0xff]
      %v5681 = vld [vmem:[%s3748 + $0xda] sm:$0xff]
      %v5682 = vld [vmem:[%s3748 + $0xe2] sm:$0xff]
      %v5683 = vld [vmem:[%s3748 + $0xf2] sm:$0xff]
      %v5684 = vld [vmem:[%s3748 + $0xfa] sm:$0xff]
      %v5685 = vld [vmem:[%s3748 + $0x10a] sm:$0xff]
      %v5686 = vld [vmem:[%s3748 + $0x112] sm:$0xff]
      %v5687 = vld [vmem:[%s3748 + $0x122] sm:$0xff]
      %v5688 = vld [vmem:[%s3748 + $0x12a] sm:$0xff]
      %v5689 = vld [vmem:[%s3748 + $0x13a] sm:$0xff]
      %v5690 = vld [vmem:[%s3748 + $0x142] sm:$0xff]
      %v5691 = vld [vmem:[%s3748 + $0x152] sm:$0xff]
      %v5692 = vld [vmem:[%s3748 + $0x15a] sm:$0xff]
      %v5693 = vld [vmem:[%s3748 + $0x16a] sm:$0xff]
      %v5694 = vld [vmem:[%s3748 + $0x172] sm:$0xff]
      %v5695 = vld [vmem:[#allocation4] sm:$0xff]
      %v5696 = vld [vmem:[#allocation4 + $0x8] sm:$0xff]
      %v5697 = vld [vmem:[#allocation4 + $0x10] sm:$0xff]
      %v5698 = vld [vmem:[#allocation4 + $0x18] sm:$0xff]
      %v5699 = vld [vmem:[#allocation4 + $0x20] sm:$0xff]
      %v5700 = vld [vmem:[#allocation4 + $0x28] sm:$0xff]
      %v5701 = vld [vmem:[#allocation4 + $0x30] sm:$0xff]
      %v5702 = vld [vmem:[#allocation4 + $0x38] sm:$0xff]
      %v5703 = vld [vmem:[#allocation4 + $0x40] sm:$0xff]
      %v5704 = vld [vmem:[#allocation4 + $0x48] sm:$0xff]
      %v5705 = vld [vmem:[#allocation4 + $0x50] sm:$0xff]
      %v5706 = vld [vmem:[#allocation4 + $0x58] sm:$0xff]
      %v5707 = vld [vmem:[#allocation4 + $0x60] sm:$0xff]
      %v5708 = vld [vmem:[#allocation4 + $0x68] sm:$0xff]
      %v5709 = vld [vmem:[#allocation4 + $0x70] sm:$0xff]
      %v5710 = vld [vmem:[#allocation4 + $0x78] sm:$0xff]
      %v5711 = vld [vmem:[#allocation4 + $0x80] sm:$0xff]
      %v5712 = vld [vmem:[#allocation4 + $0x88] sm:$0xff]
      %v5713 = vld [vmem:[#allocation4 + $0x90] sm:$0xff]
      %v5714 = vld [vmem:[#allocation4 + $0x98] sm:$0xff]
      %v5715 = vld [vmem:[#allocation4 + $0xa0] sm:$0xff]
      %v5716 = vld [vmem:[#allocation4 + $0xa8] sm:$0xff]
      %v5717 = vld [vmem:[#allocation4 + $0xb0] sm:$0xff]
      %v5718 = vld [vmem:[#allocation4 + $0xb8] sm:$0xff]
      %v5719 = vld [vmem:[#allocation4 + $0xc0] sm:$0xff]
      %v5720 = vld [vmem:[#allocation4 + $0xc8] sm:$0xff]
      %v5721 = vld [vmem:[#allocation4 + $0xd0] sm:$0xff]
      %v5722 = vld [vmem:[#allocation4 + $0xd8] sm:$0xff]
      %v5723 = vld [vmem:[#allocation4 + $0xe0] sm:$0xff]
      %v5724 = vld [vmem:[#allocation4 + $0xe8] sm:$0xff]
      %v5725 = vld [vmem:[#allocation4 + $0xf0] sm:$0xff]
      %v5726 = vld [vmem:[#allocation4 + $0xf8] sm:$0xff]
      %v5727 = vpack.c.bf16 %v5664, %v5663
      %v5728 = vpack.c.bf16 %v5666, %v5665
      %v5729 = vpack.c.bf16 %v5668, %v5667
      %v5730 = vpack.c.bf16 %v5670, %v5669
      %v5731 = vpack.c.bf16 %v5672, %v5671
      %v5732 = vpack.c.bf16 %v5674, %v5673
      %v5733 = vpack.c.bf16 %v5676, %v5675
      %v5734 = vpack.c.bf16 %v5678, %v5677
      %v5735 = vpack.c.bf16 %v5680, %v5679
      %v5736 = vpack.c.bf16 %v5682, %v5681
      %v5737 = vpack.c.bf16 %v5684, %v5683
      %v5738 = vpack.c.bf16 %v5686, %v5685
      %v5739 = vpack.c.bf16 %v5688, %v5687
      %v5740 = vpack.c.bf16 %v5690, %v5689
      %v5741 = vpack.c.bf16 %v5692, %v5691
      %v5742 = vpack.c.bf16 %v5694, %v5693
      %s5743 = scalar_lea.vmem %s3, 80
      %v5744 = vld [vmem:[%s5743] sm:$0xf]
      %v5745 = vld [vmem:[%s5743 + $0x4] sm:$0xf]
      %v5746 = vld [vmem:[%s5743 + $0x8] sm:$0xf]
      %v5747 = vld [vmem:[%s5743 + $0xc] sm:$0xf]
      %v5752 = vunpack.c.l.b16 %v5744
      %v5753 = vunpack.c.l.b16 %v5745
      %v5754 = vunpack.c.l.b16 %v5746
      %v5755 = vunpack.c.l.b16 %v5747
      %v5756 = vpack.c.b16 %v5753, %v5752
      %v5757 = vpack.c.b16 %v5755, %v5754
      %v5761 = vsel %vm332, %v5727, 0
      %v5764 = vsel %vm332, %v5728, 0
      %v5767 = vsel %vm332, %v5729, 0
      %v5770 = vsel %vm332, %v5730, 0
      %v5773 = vsel %vm332, %v5731, 0
      %v5776 = vsel %vm332, %v5732, 0
      %v5779 = vsel %vm332, %v5733, 0
      %v5782 = vsel %vm332, %v5734, 0
      %v5785 = vsel %vm332, %v5735, 0
      %v5788 = vsel %vm332, %v5736, 0
      %v5791 = vsel %vm332, %v5737, 0
      %v5794 = vsel %vm332, %v5738, 0
      %v5797 = vsel %vm332, %v5739, 0
      %v5800 = vsel %vm332, %v5740, 0
      %v5803 = vsel %vm332, %v5741, 0
      %v5806 = vsel %vm332, %v5742, 0
      %5808 = vmatprep.subr.bf16.mxu0 0
      %5809 = vmatpush1.bf16.msra.mxu0 %v5756
      %5810 = vmatprep.subr.bf16.mxu0 0
      %5811 = vmatpush1.bf16.msra.mxu0 %v5757
      %5812 = vmatprep.subr.bf16.mxu0 0
      %5813 = vmatpush1.bf16.msra.mxu0 0
      %5814 = vmatprep.subr.bf16.mxu0 0
      %5815 = vmatpush1.bf16.msra.mxu0 0
      %5816 = vmatprep.subr.bf16.mxu0 0
      %5817 = vmatpush1.bf16.msra.mxu0 0
      %5818 = vmatprep.subr.bf16.mxu0 0
      %5819 = vmatpush1.bf16.msra.mxu0 0
      %5820 = vmatprep.subr.bf16.mxu0 0
      %5821 = vmatpush1.bf16.msra.mxu0 0
      %5822 = vmatprep.subr.bf16.mxu0 0
      %5823 = vmatpush1.bf16.msra.mxu0 0
      %5824 = vmatprep.subr.bf16.mxu0 0
      %5825 = vmatpush1.bf16.msra.mxu0 0
      %5826 = vmatprep.subr.bf16.mxu0 0
      %5827 = vmatpush1.bf16.msra.mxu0 0
      %5828 = vmatprep.subr.bf16.mxu0 0
      %5829 = vmatpush1.bf16.msra.mxu0 0
      %5830 = vmatprep.subr.bf16.mxu0 0
      %5831 = vmatpush1.bf16.msra.mxu0 0
      %5832 = vmatprep.subr.bf16.mxu0 0
      %5833 = vmatpush1.bf16.msra.mxu0 0
      %5834 = vmatprep.subr.bf16.mxu0 0
      %5835 = vmatpush1.bf16.msra.mxu0 0
      %5836 = vmatprep.subr.bf16.mxu0 0
      %5837 = vmatpush1.bf16.msra.mxu0 0
      %5838 = vmatprep.subr.bf16.mxu0 0
      %5839 = vmatpush1.bf16.msra.mxu0 0
      %5840 = vmatprep.mubr.bf16.mxu0 0
      %5841 = vmatmul.mubr.bf16.gmra.mrb[0].mxu0 %v5761
      %v5842 = vpop.f32.mrb[0].mxu0
      %v5843 = vadd.f32 0.0, %v5842
      %v5844 = vpop.f32.mrb[0].mxu0
      %v5845 = vpop.f32.mrb[0].mxu0
      %v5846 = vadd.f32 0.0, %v5845
      %v5847 = vpop.f32.mrb[0].mxu0
      %5848 = vmatprep.mubr.bf16.mxu0 0
      %5849 = vmatmul.mubr.bf16.gmra.mrb[0].mxu0 %v5764
      %v5850 = vpop.f32.mrb[0].mxu0
      %v5851 = vadd.f32 0.0, %v5850
      %v5852 = vpop.f32.mrb[0].mxu0
      %v5853 = vpop.f32.mrb[0].mxu0
      %v5854 = vadd.f32 0.0, %v5853
      %v5855 = vpop.f32.mrb[0].mxu0
      %5856 = vmatprep.mubr.bf16.mxu0 0
      %5857 = vmatmul.mubr.bf16.gmra.mrb[0].mxu0 %v5767
      %v5858 = vpop.f32.mrb[0].mxu0
      %v5859 = vadd.f32 0.0, %v5858
      %v5860 = vpop.f32.mrb[0].mxu0
      %v5861 = vpop.f32.mrb[0].mxu0
      %v5862 = vadd.f32 0.0, %v5861
      %v5863 = vpop.f32.mrb[0].mxu0
      %5864 = vmatprep.mubr.bf16.mxu0 0
      %5865 = vmatmul.mubr.bf16.gmra.mrb[0].mxu0 %v5770
      %v5866 = vpop.f32.mrb[0].mxu0
      %v5867 = vadd.f32 0.0, %v5866
      %v5868 = vpop.f32.mrb[0].mxu0
      %v5869 = vpop.f32.mrb[0].mxu0
      %v5870 = vadd.f32 0.0, %v5869
      %v5871 = vpop.f32.mrb[0].mxu0
      %5872 = vmatprep.mubr.bf16.mxu0 0
      %5873 = vmatmul.mubr.bf16.gmra.mrb[0].mxu0 %v5773
      %v5874 = vpop.f32.mrb[0].mxu0
      %v5875 = vadd.f32 0.0, %v5874
      %v5876 = vpop.f32.mrb[0].mxu0
      %v5877 = vpop.f32.mrb[0].mxu0
      %v5878 = vadd.f32 0.0, %v5877
      %v5879 = vpop.f32.mrb[0].mxu0
      %5880 = vmatprep.mubr.bf16.mxu0 0
      %5881 = vmatmul.mubr.bf16.gmra.mrb[0].mxu0 %v5776
      %v5882 = vpop.f32.mrb[0].mxu0
      %v5883 = vadd.f32 0.0, %v5882
      %v5884 = vpop.f32.mrb[0].mxu0
      %v5885 = vpop.f32.mrb[0].mxu0
      %v5886 = vadd.f32 0.0, %v5885
      %v5887 = vpop.f32.mrb[0].mxu0
      %5888 = vmatprep.mubr.bf16.mxu0 0
      %5889 = vmatmul.mubr.bf16.gmra.mrb[0].mxu0 %v5779
      %v5890 = vpop.f32.mrb[0].mxu0
      %v5891 = vadd.f32 0.0, %v5890
      %v5892 = vpop.f32.mrb[0].mxu0
      %v5893 = vpop.f32.mrb[0].mxu0
      %v5894 = vadd.f32 0.0, %v5893
      %v5895 = vpop.f32.mrb[0].mxu0
      %5896 = vmatprep.mubr.bf16.mxu0 0
      %5897 = vmatmul.mubr.bf16.gmra.mrb[0].mxu0 %v5782
      %v5898 = vpop.f32.mrb[0].mxu0
      %v5899 = vadd.f32 0.0, %v5898
      %v5900 = vpop.f32.mrb[0].mxu0
      %v5901 = vpop.f32.mrb[0].mxu0
      %v5902 = vadd.f32 0.0, %v5901
      %v5903 = vpop.f32.mrb[0].mxu0
      %5904 = vmatprep.mubr.bf16.mxu0 0
      %5905 = vmatmul.mubr.bf16.gmra.mrb[0].mxu0 %v5785
      %v5906 = vpop.f32.mrb[0].mxu0
      %v5907 = vadd.f32 0.0, %v5906
      %v5908 = vpop.f32.mrb[0].mxu0
      %v5909 = vpop.f32.mrb[0].mxu0
      %v5910 = vadd.f32 0.0, %v5909
      %v5911 = vpop.f32.mrb[0].mxu0
      %5912 = vmatprep.mubr.bf16.mxu0 0
      %5913 = vmatmul.mubr.bf16.gmra.mrb[0].mxu0 %v5788
      %v5914 = vpop.f32.mrb[0].mxu0
      %v5915 = vadd.f32 0.0, %v5914
      %v5916 = vpop.f32.mrb[0].mxu0
      %v5917 = vpop.f32.mrb[0].mxu0
      %v5918 = vadd.f32 0.0, %v5917
      %v5919 = vpop.f32.mrb[0].mxu0
      %5920 = vmatprep.mubr.bf16.mxu0 0
      %5921 = vmatmul.mubr.bf16.gmra.mrb[0].mxu0 %v5791
      %v5922 = vpop.f32.mrb[0].mxu0
      %v5923 = vadd.f32 0.0, %v5922
      %v5924 = vpop.f32.mrb[0].mxu0
      %v5925 = vpop.f32.mrb[0].mxu0
      %v5926 = vadd.f32 0.0, %v5925
      %v5927 = vpop.f32.mrb[0].mxu0
      %5928 = vmatprep.mubr.bf16.mxu0 0
      %5929 = vmatmul.mubr.bf16.gmra.mrb[0].mxu0 %v5794
      %v5930 = vpop.f32.mrb[0].mxu0
      %v5931 = vadd.f32 0.0, %v5930
      %v5932 = vpop.f32.mrb[0].mxu0
      %v5933 = vpop.f32.mrb[0].mxu0
      %v5934 = vadd.f32 0.0, %v5933
      %v5935 = vpop.f32.mrb[0].mxu0
      %5936 = vmatprep.mubr.bf16.mxu0 0
      %5937 = vmatmul.mubr.bf16.gmra.mrb[0].mxu0 %v5797
      %v5938 = vpop.f32.mrb[0].mxu0
      %v5939 = vadd.f32 0.0, %v5938
      %v5940 = vpop.f32.mrb[0].mxu0
      %v5941 = vpop.f32.mrb[0].mxu0
      %v5942 = vadd.f32 0.0, %v5941
      %v5943 = vpop.f32.mrb[0].mxu0
      %5944 = vmatprep.mubr.bf16.mxu0 0
      %5945 = vmatmul.mubr.bf16.gmra.mrb[0].mxu0 %v5800
      %v5946 = vpop.f32.mrb[0].mxu0
      %v5947 = vadd.f32 0.0, %v5946
      %v5948 = vpop.f32.mrb[0].mxu0
      %v5949 = vpop.f32.mrb[0].mxu0
      %v5950 = vadd.f32 0.0, %v5949
      %v5951 = vpop.f32.mrb[0].mxu0
      %5952 = vmatprep.mubr.bf16.mxu0 0
      %5953 = vmatmul.mubr.bf16.gmra.mrb[0].mxu0 %v5803
      %v5954 = vpop.f32.mrb[0].mxu0
      %v5955 = vadd.f32 0.0, %v5954
      %v5956 = vpop.f32.mrb[0].mxu0
      %v5957 = vpop.f32.mrb[0].mxu0
      %v5958 = vadd.f32 0.0, %v5957
      %v5959 = vpop.f32.mrb[0].mxu0
      %5960 = vmatprep.mubr.bf16.mxu0 0
      %5961 = vmatmul.mubr.bf16.gmra.mrb[0].mxu0 %v5806
      %v5962 = vpop.f32.mrb[0].mxu0
      %v5963 = vadd.f32 0.0, %v5962
      %v5964 = vpop.f32.mrb[0].mxu0
      %v5965 = vpop.f32.mrb[0].mxu0
      %v5966 = vadd.f32 0.0, %v5965
      %v5967 = vpop.f32.mrb[0].mxu0
      %5968 = vdwg.mxu0
      %v5969 = vadd.f32 %v5695, %v5843
      %v5970 = vadd.f32 %v5696, %v5846
      %v5971 = vadd.f32 %v5697, %v5851
      %v5972 = vadd.f32 %v5698, %v5854
      %v5973 = vadd.f32 %v5699, %v5859
      %v5974 = vadd.f32 %v5700, %v5862
      %v5975 = vadd.f32 %v5701, %v5867
      %v5976 = vadd.f32 %v5702, %v5870
      %v5977 = vadd.f32 %v5703, %v5875
      %v5978 = vadd.f32 %v5704, %v5878
      %v5979 = vadd.f32 %v5705, %v5883
      %v5980 = vadd.f32 %v5706, %v5886
      %v5981 = vadd.f32 %v5707, %v5891
      %v5982 = vadd.f32 %v5708, %v5894
      %v5983 = vadd.f32 %v5709, %v5899
      %v5984 = vadd.f32 %v5710, %v5902
      %v5985 = vadd.f32 %v5711, %v5907
      %v5986 = vadd.f32 %v5712, %v5910
      %v5987 = vadd.f32 %v5713, %v5915
      %v5988 = vadd.f32 %v5714, %v5918
      %v5989 = vadd.f32 %v5715, %v5923
      %v5990 = vadd.f32 %v5716, %v5926
      %v5991 = vadd.f32 %v5717, %v5931
      %v5992 = vadd.f32 %v5718, %v5934
      %v5993 = vadd.f32 %v5719, %v5939
      %v5994 = vadd.f32 %v5720, %v5942
      %v5995 = vadd.f32 %v5721, %v5947
      %v5996 = vadd.f32 %v5722, %v5950
      %v5997 = vadd.f32 %v5723, %v5955
      %v5998 = vadd.f32 %v5724, %v5958
      %v5999 = vadd.f32 %v5725, %v5963
      %v6000 = vadd.f32 %v5726, %v5966
      %6001 = vst.msk [vmem:[#allocation4] sm:$0xff] %vm3781, %v5969
      %6002 = vst.msk [vmem:[#allocation4 + $0x8] sm:$0xff] %vm3781, %v5970
      %6003 = vst.msk [vmem:[#allocation4 + $0x10] sm:$0xff] %vm3781, %v5971
      %6004 = vst.msk [vmem:[#allocation4 + $0x18] sm:$0xff] %vm3781, %v5972
      %6005 = vst.msk [vmem:[#allocation4 + $0x20] sm:$0xff] %vm3781, %v5973
      %6006 = vst.msk [vmem:[#allocation4 + $0x28] sm:$0xff] %vm3781, %v5974
      %6007 = vst.msk [vmem:[#allocation4 + $0x30] sm:$0xff] %vm3781, %v5975
      %6008 = vst.msk [vmem:[#allocation4 + $0x38] sm:$0xff] %vm3781, %v5976
      %6009 = vst.msk [vmem:[#allocation4 + $0x40] sm:$0xff] %vm3781, %v5977
      %6010 = vst.msk [vmem:[#allocation4 + $0x48] sm:$0xff] %vm3781, %v5978
      %6011 = vst.msk [vmem:[#allocation4 + $0x50] sm:$0xff] %vm3781, %v5979
      %6012 = vst.msk [vmem:[#allocation4 + $0x58] sm:$0xff] %vm3781, %v5980
      %6013 = vst.msk [vmem:[#allocation4 + $0x60] sm:$0xff] %vm3781, %v5981
      %6014 = vst.msk [vmem:[#allocation4 + $0x68] sm:$0xff] %vm3781, %v5982
      %6015 = vst.msk [vmem:[#allocation4 + $0x70] sm:$0xff] %vm3781, %v5983
      %6016 = vst.msk [vmem:[#allocation4 + $0x78] sm:$0xff] %vm3781, %v5984
      %6017 = vst.msk [vmem:[#allocation4 + $0x80] sm:$0xff] %vm3781, %v5985
      %6018 = vst.msk [vmem:[#allocation4 + $0x88] sm:$0xff] %vm3781, %v5986
      %6019 = vst.msk [vmem:[#allocation4 + $0x90] sm:$0xff] %vm3781, %v5987
      %6020 = vst.msk [vmem:[#allocation4 + $0x98] sm:$0xff] %vm3781, %v5988
      %6021 = vst.msk [vmem:[#allocation4 + $0xa0] sm:$0xff] %vm3781, %v5989
      %6022 = vst.msk [vmem:[#allocation4 + $0xa8] sm:$0xff] %vm3781, %v5990
      %6023 = vst.msk [vmem:[#allocation4 + $0xb0] sm:$0xff] %vm3781, %v5991
      %6024 = vst.msk [vmem:[#allocation4 + $0xb8] sm:$0xff] %vm3781, %v5992
      %6025 = vst.msk [vmem:[#allocation4 + $0xc0] sm:$0xff] %vm3781, %v5993
      %6026 = vst.msk [vmem:[#allocation4 + $0xc8] sm:$0xff] %vm3781, %v5994
      %6027 = vst.msk [vmem:[#allocation4 + $0xd0] sm:$0xff] %vm3781, %v5995
      %6028 = vst.msk [vmem:[#allocation4 + $0xd8] sm:$0xff] %vm3781, %v5996
      %6029 = vst.msk [vmem:[#allocation4 + $0xe0] sm:$0xff] %vm3781, %v5997
      %6030 = vst.msk [vmem:[#allocation4 + $0xe8] sm:$0xff] %vm3781, %v5998
      %6031 = vst.msk [vmem:[#allocation4 + $0xf0] sm:$0xff] %vm3781, %v5999
      %6032 = vst.msk [vmem:[#allocation4 + $0xf8] sm:$0xff] %vm3781, %v6000
      %s6033 = scalar_lea.vmem [#allocation3], 48
      %v6034 = vld [vmem:[%s6033] sm:$0xff]
      %v6035 = vld [vmem:[%s6033 + $0x8] sm:$0xff]
      %v6036 = vld [vmem:[%s6033 + $0x18] sm:$0xff]
      %v6037 = vld [vmem:[%s6033 + $0x20] sm:$0xff]
      %v6038 = vld [vmem:[%s6033 + $0x30] sm:$0xff]
      %v6039 = vld [vmem:[%s6033 + $0x38] sm:$0xff]
      %v6040 = vld [vmem:[%s6033 + $0x48] sm:$0xff]
      %v6041 = vld [vmem:[%s6033 + $0x50] sm:$0xff]
      %v6042 = vld [vmem:[%s6033 + $0x60] sm:$0xff]
      %v6043 = vld [vmem:[%s6033 + $0x68] sm:$0xff]
      %v6044 = vld [vmem:[%s6033 + $0x78] sm:$0xff]
      %v6045 = vld [vmem:[%s6033 + $0x80] sm:$0xff]
      %v6046 = vld [vmem:[%s6033 + $0x90] sm:$0xff]
      %v6047 = vld [vmem:[%s6033 + $0x98] sm:$0xff]
      %v6048 = vld [vmem:[%s6033 + $0xa8] sm:$0xff]
      %v6049 = vld [vmem:[%s6033 + $0xb0] sm:$0xff]
      %v6050 = vld [vmem:[%s6033 + $0xc0] sm:$0xff]
      %v6051 = vld [vmem:[%s6033 + $0xc8] sm:$0xff]
      %v6052 = vld [vmem:[%s6033 + $0xd8] sm:$0xff]
      %v6053 = vld [vmem:[%s6033 + $0xe0] sm:$0xff]
      %v6054 = vld [vmem:[%s6033 + $0xf0] sm:$0xff]
      %v6055 = vld [vmem:[%s6033 + $0xf8] sm:$0xff]
      %v6056 = vld [vmem:[%s6033 + $0x108] sm:$0xff]
      %v6057 = vld [vmem:[%s6033 + $0x110] sm:$0xff]
      %v6058 = vld [vmem:[%s6033 + $0x120] sm:$0xff]
      %v6059 = vld [vmem:[%s6033 + $0x128] sm:$0xff]
      %v6060 = vld [vmem:[%s6033 + $0x138] sm:$0xff]
      %v6061 = vld [vmem:[%s6033 + $0x140] sm:$0xff]
      %v6062 = vld [vmem:[%s6033 + $0x150] sm:$0xff]
      %v6063 = vld [vmem:[%s6033 + $0x158] sm:$0xff]
      %v6064 = vld [vmem:[%s6033 + $0x168] sm:$0xff]
      %v6065 = vld [vmem:[%s6033 + $0x170] sm:$0xff]
      %v6066 = vld [vmem:[#allocation4] sm:$0xff]
      %v6067 = vld [vmem:[#allocation4 + $0x8] sm:$0xff]
      %v6068 = vld [vmem:[#allocation4 + $0x10] sm:$0xff]
      %v6069 = vld [vmem:[#allocation4 + $0x18] sm:$0xff]
      %v6070 = vld [vmem:[#allocation4 + $0x20] sm:$0xff]
      %v6071 = vld [vmem:[#allocation4 + $0x28] sm:$0xff]
      %v6072 = vld [vmem:[#allocation4 + $0x30] sm:$0xff]
      %v6073 = vld [vmem:[#allocation4 + $0x38] sm:$0xff]
      %v6074 = vld [vmem:[#allocation4 + $0x40] sm:$0xff]
      %v6075 = vld [vmem:[#allocation4 + $0x48] sm:$0xff]
      %v6076 = vld [vmem:[#allocation4 + $0x50] sm:$0xff]
      %v6077 = vld [vmem:[#allocation4 + $0x58] sm:$0xff]
      %v6078 = vld [vmem:[#allocation4 + $0x60] sm:$0xff]
      %v6079 = vld [vmem:[#allocation4 + $0x68] sm:$0xff]
      %v6080 = vld [vmem:[#allocation4 + $0x70] sm:$0xff]
      %v6081 = vld [vmem:[#allocation4 + $0x78] sm:$0xff]
      %v6082 = vld [vmem:[#allocation4 + $0x80] sm:$0xff]
      %v6083 = vld [vmem:[#allocation4 + $0x88] sm:$0xff]
      %v6084 = vld [vmem:[#allocation4 + $0x90] sm:$0xff]
      %v6085 = vld [vmem:[#allocation4 + $0x98] sm:$0xff]
      %v6086 = vld [vmem:[#allocation4 + $0xa0] sm:$0xff]
      %v6087 = vld [vmem:[#allocation4 + $0xa8] sm:$0xff]
      %v6088 = vld [vmem:[#allocation4 + $0xb0] sm:$0xff]
      %v6089 = vld [vmem:[#allocation4 + $0xb8] sm:$0xff]
      %v6090 = vld [vmem:[#allocation4 + $0xc0] sm:$0xff]
      %v6091 = vld [vmem:[#allocation4 + $0xc8] sm:$0xff]
      %v6092 = vld [vmem:[#allocation4 + $0xd0] sm:$0xff]
      %v6093 = vld [vmem:[#allocation4 + $0xd8] sm:$0xff]
      %v6094 = vld [vmem:[#allocation4 + $0xe0] sm:$0xff]
      %v6095 = vld [vmem:[#allocation4 + $0xe8] sm:$0xff]
      %v6096 = vld [vmem:[#allocation4 + $0xf0] sm:$0xff]
      %v6097 = vld [vmem:[#allocation4 + $0xf8] sm:$0xff]
      %v6098 = vpack.c.bf16 %v6035, %v6034
      %v6099 = vpack.c.bf16 %v6037, %v6036
      %v6100 = vpack.c.bf16 %v6039, %v6038
      %v6101 = vpack.c.bf16 %v6041, %v6040
      %v6102 = vpack.c.bf16 %v6043, %v6042
      %v6103 = vpack.c.bf16 %v6045, %v6044
      %v6104 = vpack.c.bf16 %v6047, %v6046
      %v6105 = vpack.c.bf16 %v6049, %v6048
      %v6106 = vpack.c.bf16 %v6051, %v6050
      %v6107 = vpack.c.bf16 %v6053, %v6052
      %v6108 = vpack.c.bf16 %v6055, %v6054
      %v6109 = vpack.c.bf16 %v6057, %v6056
      %v6110 = vpack.c.bf16 %v6059, %v6058
      %v6111 = vpack.c.bf16 %v6061, %v6060
      %v6112 = vpack.c.bf16 %v6063, %v6062
      %v6113 = vpack.c.bf16 %v6065, %v6064
      %s6114 = scalar_lea.vmem %s3, 96
      %v6115 = vld [vmem:[%s6114] sm:$0xf]
      %v6116 = vld [vmem:[%s6114 + $0x4] sm:$0xf]
      %v6117 = vld [vmem:[%s6114 + $0x8] sm:$0xf]
      %v6118 = vld [vmem:[%s6114 + $0xc] sm:$0xf]
      %v6123 = vunpack.c.l.b16 %v6115
      %v6124 = vunpack.c.l.b16 %v6116
      %v6125 = vunpack.c.l.b16 %v6117
      %v6126 = vunpack.c.l.b16 %v6118
      %v6127 = vpack.c.b16 %v6124, %v6123
      %v6128 = vpack.c.b16 %v6126, %v6125
      %v6132 = vsel %vm332, %v6098, 0
      %v6135 = vsel %vm332, %v6099, 0
      %v6138 = vsel %vm332, %v6100, 0
      %v6141 = vsel %vm332, %v6101, 0
      %v6144 = vsel %vm332, %v6102, 0
      %v6147 = vsel %vm332, %v6103, 0
      %v6150 = vsel %vm332, %v6104, 0
      %v6153 = vsel %vm332, %v6105, 0
      %v6156 = vsel %vm332, %v6106, 0
      %v6159 = vsel %vm332, %v6107, 0
      %v6162 = vsel %vm332, %v6108, 0
      %v6165 = vsel %vm332, %v6109, 0
      %v6168 = vsel %vm332, %v6110, 0
      %v6171 = vsel %vm332, %v6111, 0
      %v6174 = vsel %vm332, %v6112, 0
      %v6177 = vsel %vm332, %v6113, 0
      %6179 = vmatprep.subr.bf16.mxu0 0
      %6180 = vmatpush1.bf16.msra.mxu0 %v6127
      %6181 = vmatprep.subr.bf16.mxu0 0
      %6182 = vmatpush1.bf16.msra.mxu0 %v6128
      %6183 = vmatprep.subr.bf16.mxu0 0
      %6184 = vmatpush1.bf16.msra.mxu0 0
      %6185 = vmatprep.subr.bf16.mxu0 0
      %6186 = vmatpush1.bf16.msra.mxu0 0
      %6187 = vmatprep.subr.bf16.mxu0 0
      %6188 = vmatpush1.bf16.msra.mxu0 0
      %6189 = vmatprep.subr.bf16.mxu0 0
      %6190 = vmatpush1.bf16.msra.mxu0 0
      %6191 = vmatprep.subr.bf16.mxu0 0
      %6192 = vmatpush1.bf16.msra.mxu0 0
      %6193 = vmatprep.subr.bf16.mxu0 0
      %6194 = vmatpush1.bf16.msra.mxu0 0
      %6195 = vmatprep.subr.bf16.mxu0 0
      %6196 = vmatpush1.bf16.msra.mxu0 0
      %6197 = vmatprep.subr.bf16.mxu0 0
      %6198 = vmatpush1.bf16.msra.mxu0 0
      %6199 = vmatprep.subr.bf16.mxu0 0
      %6200 = vmatpush1.bf16.msra.mxu0 0
      %6201 = vmatprep.subr.bf16.mxu0 0
      %6202 = vmatpush1.bf16.msra.mxu0 0
      %6203 = vmatprep.subr.bf16.mxu0 0
      %6204 = vmatpush1.bf16.msra.mxu0 0
      %6205 = vmatprep.subr.bf16.mxu0 0
      %6206 = vmatpush1.bf16.msra.mxu0 0
      %6207 = vmatprep.subr.bf16.mxu0 0
      %6208 = vmatpush1.bf16.msra.mxu0 0
      %6209 = vmatprep.subr.bf16.mxu0 0
      %6210 = vmatpush1.bf16.msra.mxu0 0
      %6211 = vmatprep.mubr.bf16.mxu0 0
      %6212 = vmatmul.mubr.bf16.gmra.mrb[0].mxu0 %v6132
      %v6213 = vpop.f32.mrb[0].mxu0
      %v6214 = vadd.f32 0.0, %v6213
      %v6215 = vpop.f32.mrb[0].mxu0
      %v6216 = vpop.f32.mrb[0].mxu0
      %v6217 = vadd.f32 0.0, %v6216
      %v6218 = vpop.f32.mrb[0].mxu0
      %6219 = vmatprep.mubr.bf16.mxu0 0
      %6220 = vmatmul.mubr.bf16.gmra.mrb[0].mxu0 %v6135
      %v6221 = vpop.f32.mrb[0].mxu0
      %v6222 = vadd.f32 0.0, %v6221
      %v6223 = vpop.f32.mrb[0].mxu0
      %v6224 = vpop.f32.mrb[0].mxu0
      %v6225 = vadd.f32 0.0, %v6224
      %v6226 = vpop.f32.mrb[0].mxu0
      %6227 = vmatprep.mubr.bf16.mxu0 0
      %6228 = vmatmul.mubr.bf16.gmra.mrb[0].mxu0 %v6138
      %v6229 = vpop.f32.mrb[0].mxu0
      %v6230 = vadd.f32 0.0, %v6229
      %v6231 = vpop.f32.mrb[0].mxu0
      %v6232 = vpop.f32.mrb[0].mxu0
      %v6233 = vadd.f32 0.0, %v6232
      %v6234 = vpop.f32.mrb[0].mxu0
      %6235 = vmatprep.mubr.bf16.mxu0 0
      %6236 = vmatmul.mubr.bf16.gmra.mrb[0].mxu0 %v6141
      %v6237 = vpop.f32.mrb[0].mxu0
      %v6238 = vadd.f32 0.0, %v6237
      %v6239 = vpop.f32.mrb[0].mxu0
      %v6240 = vpop.f32.mrb[0].mxu0
      %v6241 = vadd.f32 0.0, %v6240
      %v6242 = vpop.f32.mrb[0].mxu0
      %6243 = vmatprep.mubr.bf16.mxu0 0
      %6244 = vmatmul.mubr.bf16.gmra.mrb[0].mxu0 %v6144
      %v6245 = vpop.f32.mrb[0].mxu0
      %v6246 = vadd.f32 0.0, %v6245
      %v6247 = vpop.f32.mrb[0].mxu0
      %v6248 = vpop.f32.mrb[0].mxu0
      %v6249 = vadd.f32 0.0, %v6248
      %v6250 = vpop.f32.mrb[0].mxu0
      %6251 = vmatprep.mubr.bf16.mxu0 0
      %6252 = vmatmul.mubr.bf16.gmra.mrb[0].mxu0 %v6147
      %v6253 = vpop.f32.mrb[0].mxu0
      %v6254 = vadd.f32 0.0, %v6253
      %v6255 = vpop.f32.mrb[0].mxu0
      %v6256 = vpop.f32.mrb[0].mxu0
      %v6257 = vadd.f32 0.0, %v6256
      %v6258 = vpop.f32.mrb[0].mxu0
      %6259 = vmatprep.mubr.bf16.mxu0 0
      %6260 = vmatmul.mubr.bf16.gmra.mrb[0].mxu0 %v6150
      %v6261 = vpop.f32.mrb[0].mxu0
      %v6262 = vadd.f32 0.0, %v6261
      %v6263 = vpop.f32.mrb[0].mxu0
      %v6264 = vpop.f32.mrb[0].mxu0
      %v6265 = vadd.f32 0.0, %v6264
      %v6266 = vpop.f32.mrb[0].mxu0
      %6267 = vmatprep.mubr.bf16.mxu0 0
      %6268 = vmatmul.mubr.bf16.gmra.mrb[0].mxu0 %v6153
      %v6269 = vpop.f32.mrb[0].mxu0
      %v6270 = vadd.f32 0.0, %v6269
      %v6271 = vpop.f32.mrb[0].mxu0
      %v6272 = vpop.f32.mrb[0].mxu0
      %v6273 = vadd.f32 0.0, %v6272
      %v6274 = vpop.f32.mrb[0].mxu0
      %6275 = vmatprep.mubr.bf16.mxu0 0
      %6276 = vmatmul.mubr.bf16.gmra.mrb[0].mxu0 %v6156
      %v6277 = vpop.f32.mrb[0].mxu0
      %v6278 = vadd.f32 0.0, %v6277
      %v6279 = vpop.f32.mrb[0].mxu0
      %v6280 = vpop.f32.mrb[0].mxu0
      %v6281 = vadd.f32 0.0, %v6280
      %v6282 = vpop.f32.mrb[0].mxu0
      %6283 = vmatprep.mubr.bf16.mxu0 0
      %6284 = vmatmul.mubr.bf16.gmra.mrb[0].mxu0 %v6159
      %v6285 = vpop.f32.mrb[0].mxu0
      %v6286 = vadd.f32 0.0, %v6285
      %v6287 = vpop.f32.mrb[0].mxu0
      %v6288 = vpop.f32.mrb[0].mxu0
      %v6289 = vadd.f32 0.0, %v6288
      %v6290 = vpop.f32.mrb[0].mxu0
      %6291 = vmatprep.mubr.bf16.mxu0 0
      %6292 = vmatmul.mubr.bf16.gmra.mrb[0].mxu0 %v6162
      %v6293 = vpop.f32.mrb[0].mxu0
      %v6294 = vadd.f32 0.0, %v6293
      %v6295 = vpop.f32.mrb[0].mxu0
      %v6296 = vpop.f32.mrb[0].mxu0
      %v6297 = vadd.f32 0.0, %v6296
      %v6298 = vpop.f32.mrb[0].mxu0
      %6299 = vmatprep.mubr.bf16.mxu0 0
      %6300 = vmatmul.mubr.bf16.gmra.mrb[0].mxu0 %v6165
      %v6301 = vpop.f32.mrb[0].mxu0
      %v6302 = vadd.f32 0.0, %v6301
      %v6303 = vpop.f32.mrb[0].mxu0
      %v6304 = vpop.f32.mrb[0].mxu0
      %v6305 = vadd.f32 0.0, %v6304
      %v6306 = vpop.f32.mrb[0].mxu0
      %6307 = vmatprep.mubr.bf16.mxu0 0
      %6308 = vmatmul.mubr.bf16.gmra.mrb[0].mxu0 %v6168
      %v6309 = vpop.f32.mrb[0].mxu0
      %v6310 = vadd.f32 0.0, %v6309
      %v6311 = vpop.f32.mrb[0].mxu0
      %v6312 = vpop.f32.mrb[0].mxu0
      %v6313 = vadd.f32 0.0, %v6312
      %v6314 = vpop.f32.mrb[0].mxu0
      %6315 = vmatprep.mubr.bf16.mxu0 0
      %6316 = vmatmul.mubr.bf16.gmra.mrb[0].mxu0 %v6171
      %v6317 = vpop.f32.mrb[0].mxu0
      %v6318 = vadd.f32 0.0, %v6317
      %v6319 = vpop.f32.mrb[0].mxu0
      %v6320 = vpop.f32.mrb[0].mxu0
      %v6321 = vadd.f32 0.0, %v6320
      %v6322 = vpop.f32.mrb[0].mxu0
      %6323 = vmatprep.mubr.bf16.mxu0 0
      %6324 = vmatmul.mubr.bf16.gmra.mrb[0].mxu0 %v6174
      %v6325 = vpop.f32.mrb[0].mxu0
      %v6326 = vadd.f32 0.0, %v6325
      %v6327 = vpop.f32.mrb[0].mxu0
      %v6328 = vpop.f32.mrb[0].mxu0
      %v6329 = vadd.f32 0.0, %v6328
      %v6330 = vpop.f32.mrb[0].mxu0
      %6331 = vmatprep.mubr.bf16.mxu0 0
      %6332 = vmatmul.mubr.bf16.gmra.mrb[0].mxu0 %v6177
      %v6333 = vpop.f32.mrb[0].mxu0
      %v6334 = vadd.f32 0.0, %v6333
      %v6335 = vpop.f32.mrb[0].mxu0
      %v6336 = vpop.f32.mrb[0].mxu0
      %v6337 = vadd.f32 0.0, %v6336
      %v6338 = vpop.f32.mrb[0].mxu0
      %6339 = vdwg.mxu0
      %v6340 = vadd.f32 %v6066, %v6214
      %v6341 = vadd.f32 %v6067, %v6217
      %v6342 = vadd.f32 %v6068, %v6222
      %v6343 = vadd.f32 %v6069, %v6225
      %v6344 = vadd.f32 %v6070, %v6230
      %v6345 = vadd.f32 %v6071, %v6233
      %v6346 = vadd.f32 %v6072, %v6238
      %v6347 = vadd.f32 %v6073, %v6241
      %v6348 = vadd.f32 %v6074, %v6246
      %v6349 = vadd.f32 %v6075, %v6249
      %v6350 = vadd.f32 %v6076, %v6254
      %v6351 = vadd.f32 %v6077, %v6257
      %v6352 = vadd.f32 %v6078, %v6262
      %v6353 = vadd.f32 %v6079, %v6265
      %v6354 = vadd.f32 %v6080, %v6270
      %v6355 = vadd.f32 %v6081, %v6273
      %v6356 = vadd.f32 %v6082, %v6278
      %v6357 = vadd.f32 %v6083, %v6281
      %v6358 = vadd.f32 %v6084, %v6286
      %v6359 = vadd.f32 %v6085, %v6289
      %v6360 = vadd.f32 %v6086, %v6294
      %v6361 = vadd.f32 %v6087, %v6297
      %v6362 = vadd.f32 %v6088, %v6302
      %v6363 = vadd.f32 %v6089, %v6305
      %v6364 = vadd.f32 %v6090, %v6310
      %v6365 = vadd.f32 %v6091, %v6313
      %v6366 = vadd.f32 %v6092, %v6318
      %v6367 = vadd.f32 %v6093, %v6321
      %v6368 = vadd.f32 %v6094, %v6326
      %v6369 = vadd.f32 %v6095, %v6329
      %v6370 = vadd.f32 %v6096, %v6334
      %v6371 = vadd.f32 %v6097, %v6337
      %6372 = vst.msk [vmem:[#allocation4] sm:$0xff] %vm3781, %v6340
      %6373 = vst.msk [vmem:[#allocation4 + $0x8] sm:$0xff] %vm3781, %v6341
      %6374 = vst.msk [vmem:[#allocation4 + $0x10] sm:$0xff] %vm3781, %v6342
      %6375 = vst.msk [vmem:[#allocation4 + $0x18] sm:$0xff] %vm3781, %v6343
      %6376 = vst.msk [vmem:[#allocation4 + $0x20] sm:$0xff] %vm3781, %v6344
      %6377 = vst.msk [vmem:[#allocation4 + $0x28] sm:$0xff] %vm3781, %v6345
      %6378 = vst.msk [vmem:[#allocation4 + $0x30] sm:$0xff] %vm3781, %v6346
      %6379 = vst.msk [vmem:[#allocation4 + $0x38] sm:$0xff] %vm3781, %v6347
      %6380 = vst.msk [vmem:[#allocation4 + $0x40] sm:$0xff] %vm3781, %v6348
      %6381 = vst.msk [vmem:[#allocation4 + $0x48] sm:$0xff] %vm3781, %v6349
      %6382 = vst.msk [vmem:[#allocation4 + $0x50] sm:$0xff] %vm3781, %v6350
      %6383 = vst.msk [vmem:[#allocation4 + $0x58] sm:$0xff] %vm3781, %v6351
      %6384 = vst.msk [vmem:[#allocation4 + $0x60] sm:$0xff] %vm3781, %v6352
      %6385 = vst.msk [vmem:[#allocation4 + $0x68] sm:$0xff] %vm3781, %v6353
      %6386 = vst.msk [vmem:[#allocation4 + $0x70] sm:$0xff] %vm3781, %v6354
      %6387 = vst.msk [vmem:[#allocation4 + $0x78] sm:$0xff] %vm3781, %v6355
      %6388 = vst.msk [vmem:[#allocation4 + $0x80] sm:$0xff] %vm3781, %v6356
      %6389 = vst.msk [vmem:[#allocation4 + $0x88] sm:$0xff] %vm3781, %v6357
      %6390 = vst.msk [vmem:[#allocation4 + $0x90] sm:$0xff] %vm3781, %v6358
      %6391 = vst.msk [vmem:[#allocation4 + $0x98] sm:$0xff] %vm3781, %v6359
      %6392 = vst.msk [vmem:[#allocation4 + $0xa0] sm:$0xff] %vm3781, %v6360
      %6393 = vst.msk [vmem:[#allocation4 + $0xa8] sm:$0xff] %vm3781, %v6361
      %6394 = vst.msk [vmem:[#allocation4 + $0xb0] sm:$0xff] %vm3781, %v6362
      %6395 = vst.msk [vmem:[#allocation4 + $0xb8] sm:$0xff] %vm3781, %v6363
      %6396 = vst.msk [vmem:[#allocation4 + $0xc0] sm:$0xff] %vm3781, %v6364
      %6397 = vst.msk [vmem:[#allocation4 + $0xc8] sm:$0xff] %vm3781, %v6365
      %6398 = vst.msk [vmem:[#allocation4 + $0xd0] sm:$0xff] %vm3781, %v6366
      %6399 = vst.msk [vmem:[#allocation4 + $0xd8] sm:$0xff] %vm3781, %v6367
      %6400 = vst.msk [vmem:[#allocation4 + $0xe0] sm:$0xff] %vm3781, %v6368
      %6401 = vst.msk [vmem:[#allocation4 + $0xe8] sm:$0xff] %vm3781, %v6369
      %6402 = vst.msk [vmem:[#allocation4 + $0xf0] sm:$0xff] %vm3781, %v6370
      %6403 = vst.msk [vmem:[#allocation4 + $0xf8] sm:$0xff] %vm3781, %v6371
      %v6404 = vld [vmem:[%s6033 + $0x1] sm:$0xff]
      %v6405 = vld [vmem:[%s6033 + $0x9] sm:$0xff]
      %v6406 = vld [vmem:[%s6033 + $0x19] sm:$0xff]
      %v6407 = vld [vmem:[%s6033 + $0x21] sm:$0xff]
      %v6408 = vld [vmem:[%s6033 + $0x31] sm:$0xff]
      %v6409 = vld [vmem:[%s6033 + $0x39] sm:$0xff]
      %v6410 = vld [vmem:[%s6033 + $0x49] sm:$0xff]
      %v6411 = vld [vmem:[%s6033 + $0x51] sm:$0xff]
      %v6412 = vld [vmem:[%s6033 + $0x61] sm:$0xff]
      %v6413 = vld [vmem:[%s6033 + $0x69] sm:$0xff]
      %v6414 = vld [vmem:[%s6033 + $0x79] sm:$0xff]
      %v6415 = vld [vmem:[%s6033 + $0x81] sm:$0xff]
      %v6416 = vld [vmem:[%s6033 + $0x91] sm:$0xff]
      %v6417 = vld [vmem:[%s6033 + $0x99] sm:$0xff]
      %v6418 = vld [vmem:[%s6033 + $0xa9] sm:$0xff]
      %v6419 = vld [vmem:[%s6033 + $0xb1] sm:$0xff]
      %v6420 = vld [vmem:[%s6033 + $0xc1] sm:$0xff]
      %v6421 = vld [vmem:[%s6033 + $0xc9] sm:$0xff]
      %v6422 = vld [vmem:[%s6033 + $0xd9] sm:$0xff]
      %v6423 = vld [vmem:[%s6033 + $0xe1] sm:$0xff]
      %v6424 = vld [vmem:[%s6033 + $0xf1] sm:$0xff]
      %v6425 = vld [vmem:[%s6033 + $0xf9] sm:$0xff]
      %v6426 = vld [vmem:[%s6033 + $0x109] sm:$0xff]
      %v6427 = vld [vmem:[%s6033 + $0x111] sm:$0xff]
      %v6428 = vld [vmem:[%s6033 + $0x121] sm:$0xff]
      %v6429 = vld [vmem:[%s6033 + $0x129] sm:$0xff]
      %v6430 = vld [vmem:[%s6033 + $0x139] sm:$0xff]
      %v6431 = vld [vmem:[%s6033 + $0x141] sm:$0xff]
      %v6432 = vld [vmem:[%s6033 + $0x151] sm:$0xff]
      %v6433 = vld [vmem:[%s6033 + $0x159] sm:$0xff]
      %v6434 = vld [vmem:[%s6033 + $0x169] sm:$0xff]
      %v6435 = vld [vmem:[%s6033 + $0x171] sm:$0xff]
      %v6436 = vld [vmem:[#allocation4] sm:$0xff]
      %v6437 = vld [vmem:[#allocation4 + $0x8] sm:$0xff]
      %v6438 = vld [vmem:[#allocation4 + $0x10] sm:$0xff]
      %v6439 = vld [vmem:[#allocation4 + $0x18] sm:$0xff]
      %v6440 = vld [vmem:[#allocation4 + $0x20] sm:$0xff]
      %v6441 = vld [vmem:[#allocation4 + $0x28] sm:$0xff]
      %v6442 = vld [vmem:[#allocation4 + $0x30] sm:$0xff]
      %v6443 = vld [vmem:[#allocation4 + $0x38] sm:$0xff]
      %v6444 = vld [vmem:[#allocation4 + $0x40] sm:$0xff]
      %v6445 = vld [vmem:[#allocation4 + $0x48] sm:$0xff]
      %v6446 = vld [vmem:[#allocation4 + $0x50] sm:$0xff]
      %v6447 = vld [vmem:[#allocation4 + $0x58] sm:$0xff]
      %v6448 = vld [vmem:[#allocation4 + $0x60] sm:$0xff]
      %v6449 = vld [vmem:[#allocation4 + $0x68] sm:$0xff]
      %v6450 = vld [vmem:[#allocation4 + $0x70] sm:$0xff]
      %v6451 = vld [vmem:[#allocation4 + $0x78] sm:$0xff]
      %v6452 = vld [vmem:[#allocation4 + $0x80] sm:$0xff]
      %v6453 = vld [vmem:[#allocation4 + $0x88] sm:$0xff]
      %v6454 = vld [vmem:[#allocation4 + $0x90] sm:$0xff]
      %v6455 = vld [vmem:[#allocation4 + $0x98] sm:$0xff]
      %v6456 = vld [vmem:[#allocation4 + $0xa0] sm:$0xff]
      %v6457 = vld [vmem:[#allocation4 + $0xa8] sm:$0xff]
      %v6458 = vld [vmem:[#allocation4 + $0xb0] sm:$0xff]
      %v6459 = vld [vmem:[#allocation4 + $0xb8] sm:$0xff]
      %v6460 = vld [vmem:[#allocation4 + $0xc0] sm:$0xff]
      %v6461 = vld [vmem:[#allocation4 + $0xc8] sm:$0xff]
      %v6462 = vld [vmem:[#allocation4 + $0xd0] sm:$0xff]
      %v6463 = vld [vmem:[#allocation4 + $0xd8] sm:$0xff]
      %v6464 = vld [vmem:[#allocation4 + $0xe0] sm:$0xff]
      %v6465 = vld [vmem:[#allocation4 + $0xe8] sm:$0xff]
      %v6466 = vld [vmem:[#allocation4 + $0xf0] sm:$0xff]
      %v6467 = vld [vmem:[#allocation4 + $0xf8] sm:$0xff]
      %v6468 = vpack.c.bf16 %v6405, %v6404
      %v6469 = vpack.c.bf16 %v6407, %v6406
      %v6470 = vpack.c.bf16 %v6409, %v6408
      %v6471 = vpack.c.bf16 %v6411, %v6410
      %v6472 = vpack.c.bf16 %v6413, %v6412
      %v6473 = vpack.c.bf16 %v6415, %v6414
      %v6474 = vpack.c.bf16 %v6417, %v6416
      %v6475 = vpack.c.bf16 %v6419, %v6418
      %v6476 = vpack.c.bf16 %v6421, %v6420
      %v6477 = vpack.c.bf16 %v6423, %v6422
      %v6478 = vpack.c.bf16 %v6425, %v6424
      %v6479 = vpack.c.bf16 %v6427, %v6426
      %v6480 = vpack.c.bf16 %v6429, %v6428
      %v6481 = vpack.c.bf16 %v6431, %v6430
      %v6482 = vpack.c.bf16 %v6433, %v6432
      %v6483 = vpack.c.bf16 %v6435, %v6434
      %s6484 = scalar_lea.vmem %s3, 112
      %v6485 = vld [vmem:[%s6484] sm:$0xf]
      %v6486 = vld [vmem:[%s6484 + $0x4] sm:$0xf]
      %v6487 = vld [vmem:[%s6484 + $0x8] sm:$0xf]
      %v6488 = vld [vmem:[%s6484 + $0xc] sm:$0xf]
      %v6493 = vunpack.c.l.b16 %v6485
      %v6494 = vunpack.c.l.b16 %v6486
      %v6495 = vunpack.c.l.b16 %v6487
      %v6496 = vunpack.c.l.b16 %v6488
      %v6497 = vpack.c.b16 %v6494, %v6493
      %v6498 = vpack.c.b16 %v6496, %v6495
      %v6502 = vsel %vm332, %v6468, 0
      %v6505 = vsel %vm332, %v6469, 0
      %v6508 = vsel %vm332, %v6470, 0
      %v6511 = vsel %vm332, %v6471, 0
      %v6514 = vsel %vm332, %v6472, 0
      %v6517 = vsel %vm332, %v6473, 0
      %v6520 = vsel %vm332, %v6474, 0
      %v6523 = vsel %vm332, %v6475, 0
      %v6526 = vsel %vm332, %v6476, 0
      %v6529 = vsel %vm332, %v6477, 0
      %v6532 = vsel %vm332, %v6478, 0
      %v6535 = vsel %vm332, %v6479, 0
      %v6538 = vsel %vm332, %v6480, 0
      %v6541 = vsel %vm332, %v6481, 0
      %v6544 = vsel %vm332, %v6482, 0
      %v6547 = vsel %vm332, %v6483, 0
      %6549 = vmatprep.subr.bf16.mxu0 0
      %6550 = vmatpush1.bf16.msra.mxu0 %v6497
      %6551 = vmatprep.subr.bf16.mxu0 0
      %6552 = vmatpush1.bf16.msra.mxu0 %v6498
      %6553 = vmatprep.subr.bf16.mxu0 0
      %6554 = vmatpush1.bf16.msra.mxu0 0
      %6555 = vmatprep.subr.bf16.mxu0 0
      %6556 = vmatpush1.bf16.msra.mxu0 0
      %6557 = vmatprep.subr.bf16.mxu0 0
      %6558 = vmatpush1.bf16.msra.mxu0 0
      %6559 = vmatprep.subr.bf16.mxu0 0
      %6560 = vmatpush1.bf16.msra.mxu0 0
      %6561 = vmatprep.subr.bf16.mxu0 0
      %6562 = vmatpush1.bf16.msra.mxu0 0
      %6563 = vmatprep.subr.bf16.mxu0 0
      %6564 = vmatpush1.bf16.msra.mxu0 0
      %6565 = vmatprep.subr.bf16.mxu0 0
      %6566 = vmatpush1.bf16.msra.mxu0 0
      %6567 = vmatprep.subr.bf16.mxu0 0
      %6568 = vmatpush1.bf16.msra.mxu0 0
      %6569 = vmatprep.subr.bf16.mxu0 0
      %6570 = vmatpush1.bf16.msra.mxu0 0
      %6571 = vmatprep.subr.bf16.mxu0 0
      %6572 = vmatpush1.bf16.msra.mxu0 0
      %6573 = vmatprep.subr.bf16.mxu0 0
      %6574 = vmatpush1.bf16.msra.mxu0 0
      %6575 = vmatprep.subr.bf16.mxu0 0
      %6576 = vmatpush1.bf16.msra.mxu0 0
      %6577 = vmatprep.subr.bf16.mxu0 0
      %6578 = vmatpush1.bf16.msra.mxu0 0
      %6579 = vmatprep.subr.bf16.mxu0 0
      %6580 = vmatpush1.bf16.msra.mxu0 0
      %6581 = vmatprep.mubr.bf16.mxu0 0
      %6582 = vmatmul.mubr.bf16.gmra.mrb[0].mxu0 %v6502
      %v6583 = vpop.f32.mrb[0].mxu0
      %v6584 = vadd.f32 0.0, %v6583
      %v6585 = vpop.f32.mrb[0].mxu0
      %v6586 = vpop.f32.mrb[0].mxu0
      %v6587 = vadd.f32 0.0, %v6586
      %v6588 = vpop.f32.mrb[0].mxu0
      %6589 = vmatprep.mubr.bf16.mxu0 0
      %6590 = vmatmul.mubr.bf16.gmra.mrb[0].mxu0 %v6505
      %v6591 = vpop.f32.mrb[0].mxu0
      %v6592 = vadd.f32 0.0, %v6591
      %v6593 = vpop.f32.mrb[0].mxu0
      %v6594 = vpop.f32.mrb[0].mxu0
      %v6595 = vadd.f32 0.0, %v6594
      %v6596 = vpop.f32.mrb[0].mxu0
      %6597 = vmatprep.mubr.bf16.mxu0 0
      %6598 = vmatmul.mubr.bf16.gmra.mrb[0].mxu0 %v6508
      %v6599 = vpop.f32.mrb[0].mxu0
      %v6600 = vadd.f32 0.0, %v6599
      %v6601 = vpop.f32.mrb[0].mxu0
      %v6602 = vpop.f32.mrb[0].mxu0
      %v6603 = vadd.f32 0.0, %v6602
      %v6604 = vpop.f32.mrb[0].mxu0
      %6605 = vmatprep.mubr.bf16.mxu0 0
      %6606 = vmatmul.mubr.bf16.gmra.mrb[0].mxu0 %v6511
      %v6607 = vpop.f32.mrb[0].mxu0
      %v6608 = vadd.f32 0.0, %v6607
      %v6609 = vpop.f32.mrb[0].mxu0
      %v6610 = vpop.f32.mrb[0].mxu0
      %v6611 = vadd.f32 0.0, %v6610
      %v6612 = vpop.f32.mrb[0].mxu0
      %6613 = vmatprep.mubr.bf16.mxu0 0
      %6614 = vmatmul.mubr.bf16.gmra.mrb[0].mxu0 %v6514
      %v6615 = vpop.f32.mrb[0].mxu0
      %v6616 = vadd.f32 0.0, %v6615
      %v6617 = vpop.f32.mrb[0].mxu0
      %v6618 = vpop.f32.mrb[0].mxu0
      %v6619 = vadd.f32 0.0, %v6618
      %v6620 = vpop.f32.mrb[0].mxu0
      %6621 = vmatprep.mubr.bf16.mxu0 0
      %6622 = vmatmul.mubr.bf16.gmra.mrb[0].mxu0 %v6517
      %v6623 = vpop.f32.mrb[0].mxu0
      %v6624 = vadd.f32 0.0, %v6623
      %v6625 = vpop.f32.mrb[0].mxu0
      %v6626 = vpop.f32.mrb[0].mxu0
      %v6627 = vadd.f32 0.0, %v6626
      %v6628 = vpop.f32.mrb[0].mxu0
      %6629 = vmatprep.mubr.bf16.mxu0 0
      %6630 = vmatmul.mubr.bf16.gmra.mrb[0].mxu0 %v6520
      %v6631 = vpop.f32.mrb[0].mxu0
      %v6632 = vadd.f32 0.0, %v6631
      %v6633 = vpop.f32.mrb[0].mxu0
      %v6634 = vpop.f32.mrb[0].mxu0
      %v6635 = vadd.f32 0.0, %v6634
      %v6636 = vpop.f32.mrb[0].mxu0
      %6637 = vmatprep.mubr.bf16.mxu0 0
      %6638 = vmatmul.mubr.bf16.gmra.mrb[0].mxu0 %v6523
      %v6639 = vpop.f32.mrb[0].mxu0
      %v6640 = vadd.f32 0.0, %v6639
      %v6641 = vpop.f32.mrb[0].mxu0
      %v6642 = vpop.f32.mrb[0].mxu0
      %v6643 = vadd.f32 0.0, %v6642
      %v6644 = vpop.f32.mrb[0].mxu0
      %6645 = vmatprep.mubr.bf16.mxu0 0
      %6646 = vmatmul.mubr.bf16.gmra.mrb[0].mxu0 %v6526
      %v6647 = vpop.f32.mrb[0].mxu0
      %v6648 = vadd.f32 0.0, %v6647
      %v6649 = vpop.f32.mrb[0].mxu0
      %v6650 = vpop.f32.mrb[0].mxu0
      %v6651 = vadd.f32 0.0, %v6650
      %v6652 = vpop.f32.mrb[0].mxu0
      %6653 = vmatprep.mubr.bf16.mxu0 0
      %6654 = vmatmul.mubr.bf16.gmra.mrb[0].mxu0 %v6529
      %v6655 = vpop.f32.mrb[0].mxu0
      %v6656 = vadd.f32 0.0, %v6655
      %v6657 = vpop.f32.mrb[0].mxu0
      %v6658 = vpop.f32.mrb[0].mxu0
      %v6659 = vadd.f32 0.0, %v6658
      %v6660 = vpop.f32.mrb[0].mxu0
      %6661 = vmatprep.mubr.bf16.mxu0 0
      %6662 = vmatmul.mubr.bf16.gmra.mrb[0].mxu0 %v6532
      %v6663 = vpop.f32.mrb[0].mxu0
      %v6664 = vadd.f32 0.0, %v6663
      %v6665 = vpop.f32.mrb[0].mxu0
      %v6666 = vpop.f32.mrb[0].mxu0
      %v6667 = vadd.f32 0.0, %v6666
      %v6668 = vpop.f32.mrb[0].mxu0
      %6669 = vmatprep.mubr.bf16.mxu0 0
      %6670 = vmatmul.mubr.bf16.gmra.mrb[0].mxu0 %v6535
      %v6671 = vpop.f32.mrb[0].mxu0
      %v6672 = vadd.f32 0.0, %v6671
      %v6673 = vpop.f32.mrb[0].mxu0
      %v6674 = vpop.f32.mrb[0].mxu0
      %v6675 = vadd.f32 0.0, %v6674
      %v6676 = vpop.f32.mrb[0].mxu0
      %6677 = vmatprep.mubr.bf16.mxu0 0
      %6678 = vmatmul.mubr.bf16.gmra.mrb[0].mxu0 %v6538
      %v6679 = vpop.f32.mrb[0].mxu0
      %v6680 = vadd.f32 0.0, %v6679
      %v6681 = vpop.f32.mrb[0].mxu0
      %v6682 = vpop.f32.mrb[0].mxu0
      %v6683 = vadd.f32 0.0, %v6682
      %v6684 = vpop.f32.mrb[0].mxu0
      %6685 = vmatprep.mubr.bf16.mxu0 0
      %6686 = vmatmul.mubr.bf16.gmra.mrb[0].mxu0 %v6541
      %v6687 = vpop.f32.mrb[0].mxu0
      %v6688 = vadd.f32 0.0, %v6687
      %v6689 = vpop.f32.mrb[0].mxu0
      %v6690 = vpop.f32.mrb[0].mxu0
      %v6691 = vadd.f32 0.0, %v6690
      %v6692 = vpop.f32.mrb[0].mxu0
      %6693 = vmatprep.mubr.bf16.mxu0 0
      %6694 = vmatmul.mubr.bf16.gmra.mrb[0].mxu0 %v6544
      %v6695 = vpop.f32.mrb[0].mxu0
      %v6696 = vadd.f32 0.0, %v6695
      %v6697 = vpop.f32.mrb[0].mxu0
      %v6698 = vpop.f32.mrb[0].mxu0
      %v6699 = vadd.f32 0.0, %v6698
      %v6700 = vpop.f32.mrb[0].mxu0
      %6701 = vmatprep.mubr.bf16.mxu0 0
      %6702 = vmatmul.mubr.bf16.gmra.mrb[0].mxu0 %v6547
      %v6703 = vpop.f32.mrb[0].mxu0
      %v6704 = vadd.f32 0.0, %v6703
      %v6705 = vpop.f32.mrb[0].mxu0
      %v6706 = vpop.f32.mrb[0].mxu0
      %v6707 = vadd.f32 0.0, %v6706
      %v6708 = vpop.f32.mrb[0].mxu0
      %6709 = vdwg.mxu0
      %v6710 = vadd.f32 %v6436, %v6584
      %v6711 = vadd.f32 %v6437, %v6587
      %v6712 = vadd.f32 %v6438, %v6592
      %v6713 = vadd.f32 %v6439, %v6595
      %v6714 = vadd.f32 %v6440, %v6600
      %v6715 = vadd.f32 %v6441, %v6603
      %v6716 = vadd.f32 %v6442, %v6608
      %v6717 = vadd.f32 %v6443, %v6611
      %v6718 = vadd.f32 %v6444, %v6616
      %v6719 = vadd.f32 %v6445, %v6619
      %v6720 = vadd.f32 %v6446, %v6624
      %v6721 = vadd.f32 %v6447, %v6627
      %v6722 = vadd.f32 %v6448, %v6632
      %v6723 = vadd.f32 %v6449, %v6635
      %v6724 = vadd.f32 %v6450, %v6640
      %v6725 = vadd.f32 %v6451, %v6643
      %v6726 = vadd.f32 %v6452, %v6648
      %v6727 = vadd.f32 %v6453, %v6651
      %v6728 = vadd.f32 %v6454, %v6656
      %v6729 = vadd.f32 %v6455, %v6659
      %v6730 = vadd.f32 %v6456, %v6664
      %v6731 = vadd.f32 %v6457, %v6667
      %v6732 = vadd.f32 %v6458, %v6672
      %v6733 = vadd.f32 %v6459, %v6675
      %v6734 = vadd.f32 %v6460, %v6680
      %v6735 = vadd.f32 %v6461, %v6683
      %v6736 = vadd.f32 %v6462, %v6688
      %v6737 = vadd.f32 %v6463, %v6691
      %v6738 = vadd.f32 %v6464, %v6696
      %v6739 = vadd.f32 %v6465, %v6699
      %v6740 = vadd.f32 %v6466, %v6704
      %v6741 = vadd.f32 %v6467, %v6707
      %6742 = vst.msk [vmem:[#allocation4] sm:$0xff] %vm3781, %v6710
      %6743 = vst.msk [vmem:[#allocation4 + $0x8] sm:$0xff] %vm3781, %v6711
      %6744 = vst.msk [vmem:[#allocation4 + $0x10] sm:$0xff] %vm3781, %v6712
      %6745 = vst.msk [vmem:[#allocation4 + $0x18] sm:$0xff] %vm3781, %v6713
      %6746 = vst.msk [vmem:[#allocation4 + $0x20] sm:$0xff] %vm3781, %v6714
      %6747 = vst.msk [vmem:[#allocation4 + $0x28] sm:$0xff] %vm3781, %v6715
      %6748 = vst.msk [vmem:[#allocation4 + $0x30] sm:$0xff] %vm3781, %v6716
      %6749 = vst.msk [vmem:[#allocation4 + $0x38] sm:$0xff] %vm3781, %v6717
      %6750 = vst.msk [vmem:[#allocation4 + $0x40] sm:$0xff] %vm3781, %v6718
      %6751 = vst.msk [vmem:[#allocation4 + $0x48] sm:$0xff] %vm3781, %v6719
      %6752 = vst.msk [vmem:[#allocation4 + $0x50] sm:$0xff] %vm3781, %v6720
      %6753 = vst.msk [vmem:[#allocation4 + $0x58] sm:$0xff] %vm3781, %v6721
      %6754 = vst.msk [vmem:[#allocation4 + $0x60] sm:$0xff] %vm3781, %v6722
      %6755 = vst.msk [vmem:[#allocation4 + $0x68] sm:$0xff] %vm3781, %v6723
      %6756 = vst.msk [vmem:[#allocation4 + $0x70] sm:$0xff] %vm3781, %v6724
      %6757 = vst.msk [vmem:[#allocation4 + $0x78] sm:$0xff] %vm3781, %v6725
      %6758 = vst.msk [vmem:[#allocation4 + $0x80] sm:$0xff] %vm3781, %v6726
      %6759 = vst.msk [vmem:[#allocation4 + $0x88] sm:$0xff] %vm3781, %v6727
      %6760 = vst.msk [vmem:[#allocation4 + $0x90] sm:$0xff] %vm3781, %v6728
      %6761 = vst.msk [vmem:[#allocation4 + $0x98] sm:$0xff] %vm3781, %v6729
      %6762 = vst.msk [vmem:[#allocation4 + $0xa0] sm:$0xff] %vm3781, %v6730
      %6763 = vst.msk [vmem:[#allocation4 + $0xa8] sm:$0xff] %vm3781, %v6731
      %6764 = vst.msk [vmem:[#allocation4 + $0xb0] sm:$0xff] %vm3781, %v6732
      %6765 = vst.msk [vmem:[#allocation4 + $0xb8] sm:$0xff] %vm3781, %v6733
      %6766 = vst.msk [vmem:[#allocation4 + $0xc0] sm:$0xff] %vm3781, %v6734
      %6767 = vst.msk [vmem:[#allocation4 + $0xc8] sm:$0xff] %vm3781, %v6735
      %6768 = vst.msk [vmem:[#allocation4 + $0xd0] sm:$0xff] %vm3781, %v6736
      %6769 = vst.msk [vmem:[#allocation4 + $0xd8] sm:$0xff] %vm3781, %v6737
      %6770 = vst.msk [vmem:[#allocation4 + $0xe0] sm:$0xff] %vm3781, %v6738
      %6771 = vst.msk [vmem:[#allocation4 + $0xe8] sm:$0xff] %vm3781, %v6739
      %6772 = vst.msk [vmem:[#allocation4 + $0xf0] sm:$0xff] %vm3781, %v6740
      %6773 = vst.msk [vmem:[#allocation4 + $0xf8] sm:$0xff] %vm3781, %v6741
      %v6774 = vld [vmem:[%s6033 + $0x2] sm:$0xff]
      %v6775 = vld [vmem:[%s6033 + $0xa] sm:$0xff]
      %v6776 = vld [vmem:[%s6033 + $0x1a] sm:$0xff]
      %v6777 = vld [vmem:[%s6033 + $0x22] sm:$0xff]
      %v6778 = vld [vmem:[%s6033 + $0x32] sm:$0xff]
      %v6779 = vld [vmem:[%s6033 + $0x3a] sm:$0xff]
      %v6780 = vld [vmem:[%s6033 + $0x4a] sm:$0xff]
      %v6781 = vld [vmem:[%s6033 + $0x52] sm:$0xff]
      %v6782 = vld [vmem:[%s6033 + $0x62] sm:$0xff]
      %v6783 = vld [vmem:[%s6033 + $0x6a] sm:$0xff]
      %v6784 = vld [vmem:[%s6033 + $0x7a] sm:$0xff]
      %v6785 = vld [vmem:[%s6033 + $0x82] sm:$0xff]
      %v6786 = vld [vmem:[%s6033 + $0x92] sm:$0xff]
      %v6787 = vld [vmem:[%s6033 + $0x9a] sm:$0xff]
      %v6788 = vld [vmem:[%s6033 + $0xaa] sm:$0xff]
      %v6789 = vld [vmem:[%s6033 + $0xb2] sm:$0xff]
      %v6790 = vld [vmem:[%s6033 + $0xc2] sm:$0xff]
      %v6791 = vld [vmem:[%s6033 + $0xca] sm:$0xff]
      %v6792 = vld [vmem:[%s6033 + $0xda] sm:$0xff]
      %v6793 = vld [vmem:[%s6033 + $0xe2] sm:$0xff]
      %v6794 = vld [vmem:[%s6033 + $0xf2] sm:$0xff]
      %v6795 = vld [vmem:[%s6033 + $0xfa] sm:$0xff]
      %v6796 = vld [vmem:[%s6033 + $0x10a] sm:$0xff]
      %v6797 = vld [vmem:[%s6033 + $0x112] sm:$0xff]
      %v6798 = vld [vmem:[%s6033 + $0x122] sm:$0xff]
      %v6799 = vld [vmem:[%s6033 + $0x12a] sm:$0xff]
      %v6800 = vld [vmem:[%s6033 + $0x13a] sm:$0xff]
      %v6801 = vld [vmem:[%s6033 + $0x142] sm:$0xff]
      %v6802 = vld [vmem:[%s6033 + $0x152] sm:$0xff]
      %v6803 = vld [vmem:[%s6033 + $0x15a] sm:$0xff]
      %v6804 = vld [vmem:[%s6033 + $0x16a] sm:$0xff]
      %v6805 = vld [vmem:[%s6033 + $0x172] sm:$0xff]
      %v6806 = vld [vmem:[#allocation4] sm:$0xff]
      %v6807 = vld [vmem:[#allocation4 + $0x8] sm:$0xff]
      %v6808 = vld [vmem:[#allocation4 + $0x10] sm:$0xff]
      %v6809 = vld [vmem:[#allocation4 + $0x18] sm:$0xff]
      %v6810 = vld [vmem:[#allocation4 + $0x20] sm:$0xff]
      %v6811 = vld [vmem:[#allocation4 + $0x28] sm:$0xff]
      %v6812 = vld [vmem:[#allocation4 + $0x30] sm:$0xff]
      %v6813 = vld [vmem:[#allocation4 + $0x38] sm:$0xff]
      %v6814 = vld [vmem:[#allocation4 + $0x40] sm:$0xff]
      %v6815 = vld [vmem:[#allocation4 + $0x48] sm:$0xff]
      %v6816 = vld [vmem:[#allocation4 + $0x50] sm:$0xff]
      %v6817 = vld [vmem:[#allocation4 + $0x58] sm:$0xff]
      %v6818 = vld [vmem:[#allocation4 + $0x60] sm:$0xff]
      %v6819 = vld [vmem:[#allocation4 + $0x68] sm:$0xff]
      %v6820 = vld [vmem:[#allocation4 + $0x70] sm:$0xff]
      %v6821 = vld [vmem:[#allocation4 + $0x78] sm:$0xff]
      %v6822 = vld [vmem:[#allocation4 + $0x80] sm:$0xff]
      %v6823 = vld [vmem:[#allocation4 + $0x88] sm:$0xff]
      %v6824 = vld [vmem:[#allocation4 + $0x90] sm:$0xff]
      %v6825 = vld [vmem:[#allocation4 + $0x98] sm:$0xff]
      %v6826 = vld [vmem:[#allocation4 + $0xa0] sm:$0xff]
      %v6827 = vld [vmem:[#allocation4 + $0xa8] sm:$0xff]
      %v6828 = vld [vmem:[#allocation4 + $0xb0] sm:$0xff]
      %v6829 = vld [vmem:[#allocation4 + $0xb8] sm:$0xff]
      %v6830 = vld [vmem:[#allocation4 + $0xc0] sm:$0xff]
      %v6831 = vld [vmem:[#allocation4 + $0xc8] sm:$0xff]
      %v6832 = vld [vmem:[#allocation4 + $0xd0] sm:$0xff]
      %v6833 = vld [vmem:[#allocation4 + $0xd8] sm:$0xff]
      %v6834 = vld [vmem:[#allocation4 + $0xe0] sm:$0xff]
      %v6835 = vld [vmem:[#allocation4 + $0xe8] sm:$0xff]
      %v6836 = vld [vmem:[#allocation4 + $0xf0] sm:$0xff]
      %v6837 = vld [vmem:[#allocation4 + $0xf8] sm:$0xff]
      %v6838 = vpack.c.bf16 %v6775, %v6774
      %v6839 = vpack.c.bf16 %v6777, %v6776
      %v6840 = vpack.c.bf16 %v6779, %v6778
      %v6841 = vpack.c.bf16 %v6781, %v6780
      %v6842 = vpack.c.bf16 %v6783, %v6782
      %v6843 = vpack.c.bf16 %v6785, %v6784
      %v6844 = vpack.c.bf16 %v6787, %v6786
      %v6845 = vpack.c.bf16 %v6789, %v6788
      %v6846 = vpack.c.bf16 %v6791, %v6790
      %v6847 = vpack.c.bf16 %v6793, %v6792
      %v6848 = vpack.c.bf16 %v6795, %v6794
      %v6849 = vpack.c.bf16 %v6797, %v6796
      %v6850 = vpack.c.bf16 %v6799, %v6798
      %v6851 = vpack.c.bf16 %v6801, %v6800
      %v6852 = vpack.c.bf16 %v6803, %v6802
      %v6853 = vpack.c.bf16 %v6805, %v6804
      %s6854 = scalar_lea.vmem %s3, 128
      %v6855 = vld [vmem:[%s6854] sm:$0xf]
      %v6856 = vld [vmem:[%s6854 + $0x4] sm:$0xf]
      %v6857 = vld [vmem:[%s6854 + $0x8] sm:$0xf]
      %v6858 = vld [vmem:[%s6854 + $0xc] sm:$0xf]
      %v6863 = vunpack.c.l.b16 %v6855
      %v6864 = vunpack.c.l.b16 %v6856
      %v6865 = vunpack.c.l.b16 %v6857
      %v6866 = vunpack.c.l.b16 %v6858
      %v6867 = vpack.c.b16 %v6864, %v6863
      %v6868 = vpack.c.b16 %v6866, %v6865
      %v6872 = vsel %vm332, %v6838, 0
      %v6875 = vsel %vm332, %v6839, 0
      %v6878 = vsel %vm332, %v6840, 0
      %v6881 = vsel %vm332, %v6841, 0
      %v6884 = vsel %vm332, %v6842, 0
      %v6887 = vsel %vm332, %v6843, 0
      %v6890 = vsel %vm332, %v6844, 0
      %v6893 = vsel %vm332, %v6845, 0
      %v6896 = vsel %vm332, %v6846, 0
      %v6899 = vsel %vm332, %v6847, 0
      %v6902 = vsel %vm332, %v6848, 0
      %v6905 = vsel %vm332, %v6849, 0
      %v6908 = vsel %vm332, %v6850, 0
      %v6911 = vsel %vm332, %v6851, 0
      %v6914 = vsel %vm332, %v6852, 0
      %v6917 = vsel %vm332, %v6853, 0
      %6919 = vmatprep.subr.bf16.mxu0 0
      %6920 = vmatpush1.bf16.msra.mxu0 %v6867
      %6921 = vmatprep.subr.bf16.mxu0 0
      %6922 = vmatpush1.bf16.msra.mxu0 %v6868
      %6923 = vmatprep.subr.bf16.mxu0 0
      %6924 = vmatpush1.bf16.msra.mxu0 0
      %6925 = vmatprep.subr.bf16.mxu0 0
      %6926 = vmatpush1.bf16.msra.mxu0 0
      %6927 = vmatprep.subr.bf16.mxu0 0
      %6928 = vmatpush1.bf16.msra.mxu0 0
      %6929 = vmatprep.subr.bf16.mxu0 0
      %6930 = vmatpush1.bf16.msra.mxu0 0
      %6931 = vmatprep.subr.bf16.mxu0 0
      %6932 = vmatpush1.bf16.msra.mxu0 0
      %6933 = vmatprep.subr.bf16.mxu0 0
      %6934 = vmatpush1.bf16.msra.mxu0 0
      %6935 = vmatprep.subr.bf16.mxu0 0
      %6936 = vmatpush1.bf16.msra.mxu0 0
      %6937 = vmatprep.subr.bf16.mxu0 0
      %6938 = vmatpush1.bf16.msra.mxu0 0
      %6939 = vmatprep.subr.bf16.mxu0 0
      %6940 = vmatpush1.bf16.msra.mxu0 0
      %6941 = vmatprep.subr.bf16.mxu0 0
      %6942 = vmatpush1.bf16.msra.mxu0 0
      %6943 = vmatprep.subr.bf16.mxu0 0
      %6944 = vmatpush1.bf16.msra.mxu0 0
      %6945 = vmatprep.subr.bf16.mxu0 0
      %6946 = vmatpush1.bf16.msra.mxu0 0
      %6947 = vmatprep.subr.bf16.mxu0 0
      %6948 = vmatpush1.bf16.msra.mxu0 0
      %6949 = vmatprep.subr.bf16.mxu0 0
      %6950 = vmatpush1.bf16.msra.mxu0 0
      %6951 = vmatprep.mubr.bf16.mxu0 0
      %6952 = vmatmul.mubr.bf16.gmra.mrb[0].mxu0 %v6872
      %v6953 = vpop.f32.mrb[0].mxu0
      %v6954 = vadd.f32 0.0, %v6953
      %v6955 = vpop.f32.mrb[0].mxu0
      %v6956 = vpop.f32.mrb[0].mxu0
      %v6957 = vadd.f32 0.0, %v6956
      %v6958 = vpop.f32.mrb[0].mxu0
      %6959 = vmatprep.mubr.bf16.mxu0 0
      %6960 = vmatmul.mubr.bf16.gmra.mrb[0].mxu0 %v6875
      %v6961 = vpop.f32.mrb[0].mxu0
      %v6962 = vadd.f32 0.0, %v6961
      %v6963 = vpop.f32.mrb[0].mxu0
      %v6964 = vpop.f32.mrb[0].mxu0
      %v6965 = vadd.f32 0.0, %v6964
      %v6966 = vpop.f32.mrb[0].mxu0
      %6967 = vmatprep.mubr.bf16.mxu0 0
      %6968 = vmatmul.mubr.bf16.gmra.mrb[0].mxu0 %v6878
      %v6969 = vpop.f32.mrb[0].mxu0
      %v6970 = vadd.f32 0.0, %v6969
      %v6971 = vpop.f32.mrb[0].mxu0
      %v6972 = vpop.f32.mrb[0].mxu0
      %v6973 = vadd.f32 0.0, %v6972
      %v6974 = vpop.f32.mrb[0].mxu0
      %6975 = vmatprep.mubr.bf16.mxu0 0
      %6976 = vmatmul.mubr.bf16.gmra.mrb[0].mxu0 %v6881
      %v6977 = vpop.f32.mrb[0].mxu0
      %v6978 = vadd.f32 0.0, %v6977
      %v6979 = vpop.f32.mrb[0].mxu0
      %v6980 = vpop.f32.mrb[0].mxu0
      %v6981 = vadd.f32 0.0, %v6980
      %v6982 = vpop.f32.mrb[0].mxu0
      %6983 = vmatprep.mubr.bf16.mxu0 0
      %6984 = vmatmul.mubr.bf16.gmra.mrb[0].mxu0 %v6884
      %v6985 = vpop.f32.mrb[0].mxu0
      %v6986 = vadd.f32 0.0, %v6985
      %v6987 = vpop.f32.mrb[0].mxu0
      %v6988 = vpop.f32.mrb[0].mxu0
      %v6989 = vadd.f32 0.0, %v6988
      %v6990 = vpop.f32.mrb[0].mxu0
      %6991 = vmatprep.mubr.bf16.mxu0 0
      %6992 = vmatmul.mubr.bf16.gmra.mrb[0].mxu0 %v6887
      %v6993 = vpop.f32.mrb[0].mxu0
      %v6994 = vadd.f32 0.0, %v6993
      %v6995 = vpop.f32.mrb[0].mxu0
      %v6996 = vpop.f32.mrb[0].mxu0
      %v6997 = vadd.f32 0.0, %v6996
      %v6998 = vpop.f32.mrb[0].mxu0
      %6999 = vmatprep.mubr.bf16.mxu0 0
      %7000 = vmatmul.mubr.bf16.gmra.mrb[0].mxu0 %v6890
      %v7001 = vpop.f32.mrb[0].mxu0
      %v7002 = vadd.f32 0.0, %v7001
      %v7003 = vpop.f32.mrb[0].mxu0
      %v7004 = vpop.f32.mrb[0].mxu0
      %v7005 = vadd.f32 0.0, %v7004
      %v7006 = vpop.f32.mrb[0].mxu0
      %7007 = vmatprep.mubr.bf16.mxu0 0
      %7008 = vmatmul.mubr.bf16.gmra.mrb[0].mxu0 %v6893
      %v7009 = vpop.f32.mrb[0].mxu0
      %v7010 = vadd.f32 0.0, %v7009
      %v7011 = vpop.f32.mrb[0].mxu0
      %v7012 = vpop.f32.mrb[0].mxu0
      %v7013 = vadd.f32 0.0, %v7012
      %v7014 = vpop.f32.mrb[0].mxu0
      %7015 = vmatprep.mubr.bf16.mxu0 0
      %7016 = vmatmul.mubr.bf16.gmra.mrb[0].mxu0 %v6896
      %v7017 = vpop.f32.mrb[0].mxu0
      %v7018 = vadd.f32 0.0, %v7017
      %v7019 = vpop.f32.mrb[0].mxu0
      %v7020 = vpop.f32.mrb[0].mxu0
      %v7021 = vadd.f32 0.0, %v7020
      %v7022 = vpop.f32.mrb[0].mxu0
      %7023 = vmatprep.mubr.bf16.mxu0 0
      %7024 = vmatmul.mubr.bf16.gmra.mrb[0].mxu0 %v6899
      %v7025 = vpop.f32.mrb[0].mxu0
      %v7026 = vadd.f32 0.0, %v7025
      %v7027 = vpop.f32.mrb[0].mxu0
      %v7028 = vpop.f32.mrb[0].mxu0
      %v7029 = vadd.f32 0.0, %v7028
      %v7030 = vpop.f32.mrb[0].mxu0
      %7031 = vmatprep.mubr.bf16.mxu0 0
      %7032 = vmatmul.mubr.bf16.gmra.mrb[0].mxu0 %v6902
      %v7033 = vpop.f32.mrb[0].mxu0
      %v7034 = vadd.f32 0.0, %v7033
      %v7035 = vpop.f32.mrb[0].mxu0
      %v7036 = vpop.f32.mrb[0].mxu0
      %v7037 = vadd.f32 0.0, %v7036
      %v7038 = vpop.f32.mrb[0].mxu0
      %7039 = vmatprep.mubr.bf16.mxu0 0
      %7040 = vmatmul.mubr.bf16.gmra.mrb[0].mxu0 %v6905
      %v7041 = vpop.f32.mrb[0].mxu0
      %v7042 = vadd.f32 0.0, %v7041
      %v7043 = vpop.f32.mrb[0].mxu0
      %v7044 = vpop.f32.mrb[0].mxu0
      %v7045 = vadd.f32 0.0, %v7044
      %v7046 = vpop.f32.mrb[0].mxu0
      %7047 = vmatprep.mubr.bf16.mxu0 0
      %7048 = vmatmul.mubr.bf16.gmra.mrb[0].mxu0 %v6908
      %v7049 = vpop.f32.mrb[0].mxu0
      %v7050 = vadd.f32 0.0, %v7049
      %v7051 = vpop.f32.mrb[0].mxu0
      %v7052 = vpop.f32.mrb[0].mxu0
      %v7053 = vadd.f32 0.0, %v7052
      %v7054 = vpop.f32.mrb[0].mxu0
      %7055 = vmatprep.mubr.bf16.mxu0 0
      %7056 = vmatmul.mubr.bf16.gmra.mrb[0].mxu0 %v6911
      %v7057 = vpop.f32.mrb[0].mxu0
      %v7058 = vadd.f32 0.0, %v7057
      %v7059 = vpop.f32.mrb[0].mxu0
      %v7060 = vpop.f32.mrb[0].mxu0
      %v7061 = vadd.f32 0.0, %v7060
      %v7062 = vpop.f32.mrb[0].mxu0
      %7063 = vmatprep.mubr.bf16.mxu0 0
      %7064 = vmatmul.mubr.bf16.gmra.mrb[0].mxu0 %v6914
      %v7065 = vpop.f32.mrb[0].mxu0
      %v7066 = vadd.f32 0.0, %v7065
      %v7067 = vpop.f32.mrb[0].mxu0
      %v7068 = vpop.f32.mrb[0].mxu0
      %v7069 = vadd.f32 0.0, %v7068
      %v7070 = vpop.f32.mrb[0].mxu0
      %7071 = vmatprep.mubr.bf16.mxu0 0
      %7072 = vmatmul.mubr.bf16.gmra.mrb[0].mxu0 %v6917
      %v7073 = vpop.f32.mrb[0].mxu0
      %v7074 = vadd.f32 0.0, %v7073
      %v7075 = vpop.f32.mrb[0].mxu0
      %v7076 = vpop.f32.mrb[0].mxu0
      %v7077 = vadd.f32 0.0, %v7076
      %v7078 = vpop.f32.mrb[0].mxu0
      %7079 = vdwg.mxu0
      %v7080 = vadd.f32 %v6806, %v6954
      %v7081 = vadd.f32 %v6807, %v6957
      %v7082 = vadd.f32 %v6808, %v6962
      %v7083 = vadd.f32 %v6809, %v6965
      %v7084 = vadd.f32 %v6810, %v6970
      %v7085 = vadd.f32 %v6811, %v6973
      %v7086 = vadd.f32 %v6812, %v6978
      %v7087 = vadd.f32 %v6813, %v6981
      %v7088 = vadd.f32 %v6814, %v6986
      %v7089 = vadd.f32 %v6815, %v6989
      %v7090 = vadd.f32 %v6816, %v6994
      %v7091 = vadd.f32 %v6817, %v6997
      %v7092 = vadd.f32 %v6818, %v7002
      %v7093 = vadd.f32 %v6819, %v7005
      %v7094 = vadd.f32 %v6820, %v7010
      %v7095 = vadd.f32 %v6821, %v7013
      %v7096 = vadd.f32 %v6822, %v7018
      %v7097 = vadd.f32 %v6823, %v7021
      %v7098 = vadd.f32 %v6824, %v7026
      %v7099 = vadd.f32 %v6825, %v7029
      %v7100 = vadd.f32 %v6826, %v7034
      %v7101 = vadd.f32 %v6827, %v7037
      %v7102 = vadd.f32 %v6828, %v7042
      %v7103 = vadd.f32 %v6829, %v7045
      %v7104 = vadd.f32 %v6830, %v7050
      %v7105 = vadd.f32 %v6831, %v7053
      %v7106 = vadd.f32 %v6832, %v7058
      %v7107 = vadd.f32 %v6833, %v7061
      %v7108 = vadd.f32 %v6834, %v7066
      %v7109 = vadd.f32 %v6835, %v7069
      %v7110 = vadd.f32 %v6836, %v7074
      %v7111 = vadd.f32 %v6837, %v7077
      %7112 = vst.msk [vmem:[#allocation4] sm:$0xff] %vm3781, %v7080
      %7113 = vst.msk [vmem:[#allocation4 + $0x8] sm:$0xff] %vm3781, %v7081
      %7114 = vst.msk [vmem:[#allocation4 + $0x10] sm:$0xff] %vm3781, %v7082
      %7115 = vst.msk [vmem:[#allocation4 + $0x18] sm:$0xff] %vm3781, %v7083
      %7116 = vst.msk [vmem:[#allocation4 + $0x20] sm:$0xff] %vm3781, %v7084
      %7117 = vst.msk [vmem:[#allocation4 + $0x28] sm:$0xff] %vm3781, %v7085
      %7118 = vst.msk [vmem:[#allocation4 + $0x30] sm:$0xff] %vm3781, %v7086
      %7119 = vst.msk [vmem:[#allocation4 + $0x38] sm:$0xff] %vm3781, %v7087
      %7120 = vst.msk [vmem:[#allocation4 + $0x40] sm:$0xff] %vm3781, %v7088
      %7121 = vst.msk [vmem:[#allocation4 + $0x48] sm:$0xff] %vm3781, %v7089
      %7122 = vst.msk [vmem:[#allocation4 + $0x50] sm:$0xff] %vm3781, %v7090
      %7123 = vst.msk [vmem:[#allocation4 + $0x58] sm:$0xff] %vm3781, %v7091
      %7124 = vst.msk [vmem:[#allocation4 + $0x60] sm:$0xff] %vm3781, %v7092
      %7125 = vst.msk [vmem:[#allocation4 + $0x68] sm:$0xff] %vm3781, %v7093
      %7126 = vst.msk [vmem:[#allocation4 + $0x70] sm:$0xff] %vm3781, %v7094
      %7127 = vst.msk [vmem:[#allocation4 + $0x78] sm:$0xff] %vm3781, %v7095
      %7128 = vst.msk [vmem:[#allocation4 + $0x80] sm:$0xff] %vm3781, %v7096
      %7129 = vst.msk [vmem:[#allocation4 + $0x88] sm:$0xff] %vm3781, %v7097
      %7130 = vst.msk [vmem:[#allocation4 + $0x90] sm:$0xff] %vm3781, %v7098
      %7131 = vst.msk [vmem:[#allocation4 + $0x98] sm:$0xff] %vm3781, %v7099
      %7132 = vst.msk [vmem:[#allocation4 + $0xa0] sm:$0xff] %vm3781, %v7100
      %7133 = vst.msk [vmem:[#allocation4 + $0xa8] sm:$0xff] %vm3781, %v7101
      %7134 = vst.msk [vmem:[#allocation4 + $0xb0] sm:$0xff] %vm3781, %v7102
      %7135 = vst.msk [vmem:[#allocation4 + $0xb8] sm:$0xff] %vm3781, %v7103
      %7136 = vst.msk [vmem:[#allocation4 + $0xc0] sm:$0xff] %vm3781, %v7104
      %7137 = vst.msk [vmem:[#allocation4 + $0xc8] sm:$0xff] %vm3781, %v7105
      %7138 = vst.msk [vmem:[#allocation4 + $0xd0] sm:$0xff] %vm3781, %v7106
      %7139 = vst.msk [vmem:[#allocation4 + $0xd8] sm:$0xff] %vm3781, %v7107
      %7140 = vst.msk [vmem:[#allocation4 + $0xe0] sm:$0xff] %vm3781, %v7108
      %7141 = vst.msk [vmem:[#allocation4 + $0xe8] sm:$0xff] %vm3781, %v7109
      %7142 = vst.msk [vmem:[#allocation4 + $0xf0] sm:$0xff] %vm3781, %v7110
      %7143 = vst.msk [vmem:[#allocation4 + $0xf8] sm:$0xff] %vm3781, %v7111
      %v7144 = vld [vmem:[#allocation4] sm:$0xff]
      %v7145 = vld [vmem:[#allocation4 + $0x8] sm:$0xff]
      %v7146 = vld [vmem:[#allocation4 + $0x10] sm:$0xff]
      %v7147 = vld [vmem:[#allocation4 + $0x18] sm:$0xff]
      %v7148 = vld [vmem:[#allocation4 + $0x20] sm:$0xff]
      %v7149 = vld [vmem:[#allocation4 + $0x28] sm:$0xff]
      %v7150 = vld [vmem:[#allocation4 + $0x30] sm:$0xff]
      %v7151 = vld [vmem:[#allocation4 + $0x38] sm:$0xff]
      %v7152 = vld [vmem:[#allocation4 + $0x40] sm:$0xff]
      %v7153 = vld [vmem:[#allocation4 + $0x48] sm:$0xff]
      %v7154 = vld [vmem:[#allocation4 + $0x50] sm:$0xff]
      %v7155 = vld [vmem:[#allocation4 + $0x58] sm:$0xff]
      %v7156 = vld [vmem:[#allocation4 + $0x60] sm:$0xff]
      %v7157 = vld [vmem:[#allocation4 + $0x68] sm:$0xff]
      %v7158 = vld [vmem:[#allocation4 + $0x70] sm:$0xff]
      %v7159 = vld [vmem:[#allocation4 + $0x78] sm:$0xff]
      %v7160 = vld [vmem:[#allocation4 + $0x80] sm:$0xff]
      %v7161 = vld [vmem:[#allocation4 + $0x88] sm:$0xff]
      %v7162 = vld [vmem:[#allocation4 + $0x90] sm:$0xff]
      %v7163 = vld [vmem:[#allocation4 + $0x98] sm:$0xff]
      %v7164 = vld [vmem:[#allocation4 + $0xa0] sm:$0xff]
      %v7165 = vld [vmem:[#allocation4 + $0xa8] sm:$0xff]
      %v7166 = vld [vmem:[#allocation4 + $0xb0] sm:$0xff]
      %v7167 = vld [vmem:[#allocation4 + $0xb8] sm:$0xff]
      %v7168 = vld [vmem:[#allocation4 + $0xc0] sm:$0xff]
      %v7169 = vld [vmem:[#allocation4 + $0xc8] sm:$0xff]
      %v7170 = vld [vmem:[#allocation4 + $0xd0] sm:$0xff]
      %v7171 = vld [vmem:[#allocation4 + $0xd8] sm:$0xff]
      %v7172 = vld [vmem:[#allocation4 + $0xe0] sm:$0xff]
      %v7173 = vld [vmem:[#allocation4 + $0xe8] sm:$0xff]
      %v7174 = vld [vmem:[#allocation4 + $0xf0] sm:$0xff]
      %v7175 = vld [vmem:[#allocation4 + $0xf8] sm:$0xff]
      %v7176 = vld [vmem:[%s4] sm:$0x1]
      %v7178 = vlaneseq
      %v7179 = vshrl.u32 %v7178, 7
      %v7180 = vsub.s32 0, %v7179
      %v7181 = vrot.slane %v7176, %v7180
      %v7183 = vadd.f32 %v7144, %v7181
      %v7184 = vadd.f32 %v7145, %v7181
      %v7185 = vadd.f32 %v7146, %v7181
      %v7186 = vadd.f32 %v7147, %v7181
      %v7187 = vadd.f32 %v7148, %v7181
      %v7188 = vadd.f32 %v7149, %v7181
      %v7189 = vadd.f32 %v7150, %v7181
      %v7190 = vadd.f32 %v7151, %v7181
      %v7191 = vadd.f32 %v7152, %v7181
      %v7192 = vadd.f32 %v7153, %v7181
      %v7193 = vadd.f32 %v7154, %v7181
      %v7194 = vadd.f32 %v7155, %v7181
      %v7195 = vadd.f32 %v7156, %v7181
      %v7196 = vadd.f32 %v7157, %v7181
      %v7197 = vadd.f32 %v7158, %v7181
      %v7198 = vadd.f32 %v7159, %v7181
      %v7199 = vadd.f32 %v7160, %v7181
      %v7200 = vadd.f32 %v7161, %v7181
      %v7201 = vadd.f32 %v7162, %v7181
      %v7202 = vadd.f32 %v7163, %v7181
      %v7203 = vadd.f32 %v7164, %v7181
      %v7204 = vadd.f32 %v7165, %v7181
      %v7205 = vadd.f32 %v7166, %v7181
      %v7206 = vadd.f32 %v7167, %v7181
      %v7207 = vadd.f32 %v7168, %v7181
      %v7208 = vadd.f32 %v7169, %v7181
      %v7209 = vadd.f32 %v7170, %v7181
      %v7210 = vadd.f32 %v7171, %v7181
      %v7211 = vadd.f32 %v7172, %v7181
      %v7212 = vadd.f32 %v7173, %v7181
      %v7213 = vadd.f32 %v7174, %v7181
      %v7214 = vadd.f32 %v7175, %v7181
      %v7215 = vmax.f32 %v7183, 0.0
      %v7216 = vmax.f32 %v7184, 0.0
      %v7217 = vmax.f32 %v7185, 0.0
      %v7218 = vmax.f32 %v7186, 0.0
      %v7219 = vmax.f32 %v7187, 0.0
      %v7220 = vmax.f32 %v7188, 0.0
      %v7221 = vmax.f32 %v7189, 0.0
      %v7222 = vmax.f32 %v7190, 0.0
      %v7223 = vmax.f32 %v7191, 0.0
      %v7224 = vmax.f32 %v7192, 0.0
      %v7225 = vmax.f32 %v7193, 0.0
      %v7226 = vmax.f32 %v7194, 0.0
      %v7227 = vmax.f32 %v7195, 0.0
      %v7228 = vmax.f32 %v7196, 0.0
      %v7229 = vmax.f32 %v7197, 0.0
      %v7230 = vmax.f32 %v7198, 0.0
      %v7231 = vmax.f32 %v7199, 0.0
      %v7232 = vmax.f32 %v7200, 0.0
      %v7233 = vmax.f32 %v7201, 0.0
      %v7234 = vmax.f32 %v7202, 0.0
      %v7235 = vmax.f32 %v7203, 0.0
      %v7236 = vmax.f32 %v7204, 0.0
      %v7237 = vmax.f32 %v7205, 0.0
      %v7238 = vmax.f32 %v7206, 0.0
      %v7239 = vmax.f32 %v7207, 0.0
      %v7240 = vmax.f32 %v7208, 0.0
      %v7241 = vmax.f32 %v7209, 0.0
      %v7242 = vmax.f32 %v7210, 0.0
      %v7243 = vmax.f32 %v7211, 0.0
      %v7244 = vmax.f32 %v7212, 0.0
      %v7245 = vmax.f32 %v7213, 0.0
      %v7246 = vmax.f32 %v7214, 0.0
      %v7247 = vsel %vm3781, %v7215, 0.0
      %v7248 = vsel %vm3781, %v7216, 0.0
      %v7249 = vadd.f32 %v7247, %v7248
      %v7250 = vsel %vm3781, %v7217, 0.0
      %v7251 = vadd.f32 %v7249, %v7250
      %v7252 = vsel %vm3781, %v7218, 0.0
      %v7253 = vadd.f32 %v7251, %v7252
      %v7254 = vsel %vm3781, %v7219, 0.0
      %v7255 = vadd.f32 %v7253, %v7254
      %v7256 = vsel %vm3781, %v7220, 0.0
      %v7257 = vadd.f32 %v7255, %v7256
      %v7258 = vsel %vm3781, %v7221, 0.0
      %v7259 = vadd.f32 %v7257, %v7258
      %v7260 = vsel %vm3781, %v7222, 0.0
      %v7261 = vadd.f32 %v7259, %v7260
      %v7262 = vsel %vm3781, %v7223, 0.0
      %v7263 = vadd.f32 %v7261, %v7262
      %v7264 = vsel %vm3781, %v7224, 0.0
      %v7265 = vadd.f32 %v7263, %v7264
      %v7266 = vsel %vm3781, %v7225, 0.0
      %v7267 = vadd.f32 %v7265, %v7266
      %v7268 = vsel %vm3781, %v7226, 0.0
      %v7269 = vadd.f32 %v7267, %v7268
      %v7270 = vsel %vm3781, %v7227, 0.0
      %v7271 = vadd.f32 %v7269, %v7270
      %v7272 = vsel %vm3781, %v7228, 0.0
      %v7273 = vadd.f32 %v7271, %v7272
      %v7274 = vsel %vm3781, %v7229, 0.0
      %v7275 = vadd.f32 %v7273, %v7274
      %v7276 = vsel %vm3781, %v7230, 0.0
      %v7277 = vadd.f32 %v7275, %v7276
      %v7278 = vsel %vm3781, %v7231, 0.0
      %v7279 = vadd.f32 %v7277, %v7278
      %v7280 = vsel %vm3781, %v7232, 0.0
      %v7281 = vadd.f32 %v7279, %v7280
      %v7282 = vsel %vm3781, %v7233, 0.0
      %v7283 = vadd.f32 %v7281, %v7282
      %v7284 = vsel %vm3781, %v7234, 0.0
      %v7285 = vadd.f32 %v7283, %v7284
      %v7286 = vsel %vm3781, %v7235, 0.0
      %v7287 = vadd.f32 %v7285, %v7286
      %v7288 = vsel %vm3781, %v7236, 0.0
      %v7289 = vadd.f32 %v7287, %v7288
      %v7290 = vsel %vm3781, %v7237, 0.0
      %v7291 = vadd.f32 %v7289, %v7290
      %v7292 = vsel %vm3781, %v7238, 0.0
      %v7293 = vadd.f32 %v7291, %v7292
      %v7294 = vsel %vm3781, %v7239, 0.0
      %v7295 = vadd.f32 %v7293, %v7294
      %v7296 = vsel %vm3781, %v7240, 0.0
      %v7297 = vadd.f32 %v7295, %v7296
      %v7298 = vsel %vm3781, %v7241, 0.0
      %v7299 = vadd.f32 %v7297, %v7298
      %v7300 = vsel %vm3781, %v7242, 0.0
      %v7301 = vadd.f32 %v7299, %v7300
      %v7302 = vsel %vm3781, %v7243, 0.0
      %v7303 = vadd.f32 %v7301, %v7302
      %v7304 = vsel %vm3781, %v7244, 0.0
      %v7305 = vadd.f32 %v7303, %v7304
      %v7306 = vsel %vm3781, %v7245, 0.0
      %v7307 = vadd.f32 %v7305, %v7306
      %v7308 = vsel %vm3781, %v7246, 0.0
      %v7309 = vadd.f32 %v7307, %v7308
      %v7310 = vrot.slane %v7309, 4
      %v7311 = vadd.f32 %v7309, %v7310
      %v7312 = vrot.slane %v7311, 2
      %v7313 = vadd.f32 %v7311, %v7312
      %v7314 = vrot.slane %v7313, 1
      %v7315 = vadd.f32 %v7313, %v7314
      %v7316 = vmul.f32 %v7315, 0.00390625
      %v7317 = vpack.c.bf16 %v7316, %v7316
      %v7318 = vld [vmem:[%s5] sm:$0xf]
      %v7319 = vld [vmem:[%s5 + $0x4] sm:$0xf]
      %v7320 = vld [vmem:[%s5 + $0x8] sm:$0xf]
      %v7321 = vld [vmem:[%s5 + $0xc] sm:$0xf]
      %v7322 = vld [vmem:[%s5 + $0x10] sm:$0xf]
      %v7323 = vld [vmem:[%s5 + $0x14] sm:$0xf]
      %v7324 = vld [vmem:[%s5 + $0x18] sm:$0xf]
      %v7325 = vld [vmem:[%s5 + $0x1c] sm:$0xf]
      %v7326 = vld [vmem:[%s6] sm:$0x1]
      %v7335 = vunpack.c.l.b16 %v7318
      %v7336 = vunpack.c.l.b16 %v7319
      %v7337 = vunpack.c.l.b16 %v7320
      %v7338 = vunpack.c.l.b16 %v7321
      %v7339 = vunpack.c.l.b16 %v7322
      %v7340 = vunpack.c.l.b16 %v7323
      %v7341 = vunpack.c.l.b16 %v7324
      %v7342 = vunpack.c.l.b16 %v7325
      %v7343 = vpack.c.b16 %v7336, %v7335
      %v7344 = vpack.c.b16 %v7338, %v7337
      %v7345 = vpack.c.b16 %v7340, %v7339
      %v7346 = vpack.c.b16 %v7342, %v7341
      %v7352 = vsel %vm3781, %v7317, 0
      %7354 = vmatprep.subr.bf16.mxu0 0
      %7355 = vmatpush1.bf16.msra.mxu0 %v7343
      %7356 = vmatprep.subr.bf16.mxu0 0
      %7357 = vmatpush1.bf16.msra.mxu0 %v7344
      %7358 = vmatprep.subr.bf16.mxu0 0
      %7359 = vmatpush1.bf16.msra.mxu0 %v7345
      %7360 = vmatprep.subr.bf16.mxu0 0
      %7361 = vmatpush1.bf16.msra.mxu0 %v7346
      %7362 = vmatprep.subr.bf16.mxu0 0
      %7363 = vmatpush1.bf16.msra.mxu0 0
      %7364 = vmatprep.subr.bf16.mxu0 0
      %7365 = vmatpush1.bf16.msra.mxu0 0
      %7366 = vmatprep.subr.bf16.mxu0 0
      %7367 = vmatpush1.bf16.msra.mxu0 0
      %7368 = vmatprep.subr.bf16.mxu0 0
      %7369 = vmatpush1.bf16.msra.mxu0 0
      %7370 = vmatprep.subr.bf16.mxu0 0
      %7371 = vmatpush1.bf16.msra.mxu0 0
      %7372 = vmatprep.subr.bf16.mxu0 0
      %7373 = vmatpush1.bf16.msra.mxu0 0
      %7374 = vmatprep.subr.bf16.mxu0 0
      %7375 = vmatpush1.bf16.msra.mxu0 0
      %7376 = vmatprep.subr.bf16.mxu0 0
      %7377 = vmatpush1.bf16.msra.mxu0 0
      %7378 = vmatprep.subr.bf16.mxu0 0
      %7379 = vmatpush1.bf16.msra.mxu0 0
      %7380 = vmatprep.subr.bf16.mxu0 0
      %7381 = vmatpush1.bf16.msra.mxu0 0
      %7382 = vmatprep.subr.bf16.mxu0 0
      %7383 = vmatpush1.bf16.msra.mxu0 0
      %7384 = vmatprep.subr.bf16.mxu0 0
      %7385 = vmatpush1.bf16.msra.mxu0 0
      %7386 = vmatprep.mubr.bf16.mxu0 0
      %7387 = vmatmul.mubr.bf16.gmra.mrb[0].mxu0 %v7352
      %v7388 = vpop.f32.mrb[0].mxu0
      %v7389 = vadd.f32 %v7326, %v7388
      %v7390 = vpop.f32.mrb[0].mxu0
      %v7391 = vpop.f32.mrb[0].mxu0
      %v7392 = vpop.f32.mrb[0].mxu0
      %7393 = vdwg.mxu0
      %v7394 = vmax.f32 %v7389, 0.0
      %v7395 = vpack.c.bf16 %v7394, %v7394
      %v7396 = vld [vmem:[%s7] sm:$0xf]
      %v7397 = vld [vmem:[%s7 + $0x4] sm:$0xf]
      %v7398 = vld [vmem:[%s7 + $0x8] sm:$0xf]
      %v7399 = vld [vmem:[%s7 + $0xc] sm:$0xf]
      %v7400 = vld [vmem:[%s8] sm:$0x1]
      %v7405 = vunpack.c.l.b16 %v7396
      %v7406 = vunpack.c.l.b16 %v7397
      %v7407 = vunpack.c.l.b16 %v7398
      %v7408 = vunpack.c.l.b16 %v7399
      %v7409 = vpack.c.b16 %v7406, %v7405
      %v7410 = vpack.c.b16 %v7408, %v7407
      %v7414 = vsel %vm332, %v7395, 0
      %7416 = vmatprep.subr.bf16.mxu0 0
      %7417 = vmatpush1.bf16.msra.mxu0 %v7409
      %7418 = vmatprep.subr.bf16.mxu0 0
      %7419 = vmatpush1.bf16.msra.mxu0 %v7410
      %7420 = vmatprep.subr.bf16.mxu0 0
      %7421 = vmatpush1.bf16.msra.mxu0 0
      %7422 = vmatprep.subr.bf16.mxu0 0
      %7423 = vmatpush1.bf16.msra.mxu0 0
      %7424 = vmatprep.subr.bf16.mxu0 0
      %7425 = vmatpush1.bf16.msra.mxu0 0
      %7426 = vmatprep.subr.bf16.mxu0 0
      %7427 = vmatpush1.bf16.msra.mxu0 0
      %7428 = vmatprep.subr.bf16.mxu0 0
      %7429 = vmatpush1.bf16.msra.mxu0 0
      %7430 = vmatprep.subr.bf16.mxu0 0
      %7431 = vmatpush1.bf16.msra.mxu0 0
      %7432 = vmatprep.subr.bf16.mxu0 0
      %7433 = vmatpush1.bf16.msra.mxu0 0
      %7434 = vmatprep.subr.bf16.mxu0 0
      %7435 = vmatpush1.bf16.msra.mxu0 0
      %7436 = vmatprep.subr.bf16.mxu0 0
      %7437 = vmatpush1.bf16.msra.mxu0 0
      %7438 = vmatprep.subr.bf16.mxu0 0
      %7439 = vmatpush1.bf16.msra.mxu0 0
      %7440 = vmatprep.subr.bf16.mxu0 0
      %7441 = vmatpush1.bf16.msra.mxu0 0
      %7442 = vmatprep.subr.bf16.mxu0 0
      %7443 = vmatpush1.bf16.msra.mxu0 0
      %7444 = vmatprep.subr.bf16.mxu0 0
      %7445 = vmatpush1.bf16.msra.mxu0 0
      %7446 = vmatprep.subr.bf16.mxu0 0
      %7447 = vmatpush1.bf16.msra.mxu0 0
      %7448 = vmatprep.mubr.bf16.mxu0 0
      %7449 = vmatmul.mubr.bf16.gmra.mrb[0].mxu0 %v7414
      %v7450 = vpop.f32.mrb[0].mxu0
      %v7451 = vadd.f32 %v7400, %v7450
      %v7452 = vpop.f32.mrb[0].mxu0
      %v7453 = vpop.f32.mrb[0].mxu0
      %v7454 = vpop.f32.mrb[0].mxu0
      %7455 = vdwg.mxu0
      %v7456 = vlaneseq
      %v7457 = vshrl.u32 %v7456, 7
      %v7458 = vsub.s32 0, %v7457
      %v7459 = vrot.slane %v7451, %v7458
      %7460 = vst [vmem:[%s330] sm:$0xff] %v7459
      %p7461 = scmp.lt.s32.totalorder %s20, 1
      %s7462 = scalar_select %p7461, %s20, 1
      %s7463 = smul.addr %s7462, 8
      %s7464 = scalar_lea.vmem %s9, %s7463
      // Predicated region
      $region57: #{simplenet2_forward.1} parent=55 // pred_check
        %p7465 = pneg %p232
      $region58: #{simplenet2_forward.1} parent=55 // pred_check_branch
        %7467 = sbr.rel (%p7465) target = $region60
      $region59: #{simplenet2_forward.1} parent=55 // pred_region
        _
      $region60: #{simplenet2_forward.1} parent=55 // pred_fallthru
        _
    $region56: #{simplenet2_forward.1} parent=5 // pred_fallthru
      _
    %p7468 = scmp.le.s32.totalorder 2, %s15
    // Predicated region
    $region61: #{simplenet2_forward.1} parent=5 // pred_check
      %p7469 = pneg %p7468
    $region62: #{simplenet2_forward.1} parent=5 // pred_check_branch
      %7471 = sbr.rel (%p7469) target = $region64
    $region63: #{simplenet2_forward.1} parent=5 // pred_region
      %s7472 = ssub.s32 %s15, 2
      // Predicated region
      $region65: #{simplenet2_forward.1} parent=63 // pred_check
        %p7473 = pneg %p238
      $region66: #{simplenet2_forward.1} parent=63 // pred_check_branch
        %7475 = sbr.rel (%p7473) target = $region68
      $region67: #{simplenet2_forward.1} parent=63 // pred_region
        %p7476 = scmp.lt.s32.totalorder %s21, 1
        %s7477 = scalar_select %p7476, %s21, 1
        %s7478 = smul.addr %s7477, 8
        %s7479 = scalar_lea.vmem %s9, %s7478
      $region68: #{simplenet2_forward.1} parent=63 // pred_fallthru
        _
    $region64: #{simplenet2_forward.1} parent=5 // pred_fallthru
      _
  $region6: #{simplenet2_forward.1} parent=0 // loop_footer
    %s19 = sadd.s32 1, %s15
  $region7: #{simplenet2_forward.1} parent=0 // loop_footer_branch
    %14 = sbr.rel target = $region3
  $region8: #{simplenet2_forward.1} parent=0 // loop_exit
    _

</llo_original>
